<compile_context>
chip_gen: v6e
topology: v6e:2x2x1
jax: 0.10.0
libtpu: 0.0.40
codegen_flags: <defaults>
</compile_context>

<pallas_src>
import math

import jax
import jax.numpy as jnp
from jax.experimental import pallas as pl
from jax.experimental.pallas import tpu as pltpu

OCP = 128  # padded channel width -> lane-dense matmul outputs / stores


# ------------------------------ fused kernel ------------------------------- #
def _make_fused_kernel(n_bp1, Cs1, spb, OH3, OW3, acc2_rows, acc3_rows):
    M3 = OH3 * OW3

    def kernel(p1_ref, w1_ref, b1_ref, w2_ref, b2_ref, w3_ref, b3_ref,
               out_ref, h1_ref, h2_ref, h3_ref):
        # ---- conv1 + ReLU: single (R1, 64) @ (64, 128) bf16 MXU matmul ----
        a1 = jnp.dot(p1_ref[0], w1_ref[...],
                     preferred_element_type=jnp.float32)
        h1_ref[...] = jnp.maximum(a1 + b1_ref[...], 0.0)

        # ---- conv2 + ReLU: 16 matmuls, one per 4x4 kernel offset, all ------
        # samples batched into the M dimension via the class-major layout.
        acc2 = None
        for kh in range(4):
            for kw in range(4):
                cls = (kh % 2) * 2 + (kw % 2)
                start = cls * spb * Cs1 + (kh // 2) * n_bp1 + (kw // 2)
                lhs = h1_ref[pl.ds(start, acc2_rows), :].astype(jnp.bfloat16)
                d = jnp.dot(lhs, w2_ref[kh * 4 + kw],
                            preferred_element_type=jnp.float32)
                acc2 = d if acc2 is None else acc2 + d
        h2_ref[...] = jnp.maximum(acc2 + b2_ref[...], 0.0)

        # ---- conv3 + ReLU: 9 matmuls, one per 3x3 kernel offset ------------
        acc3 = None
        for kh in range(3):
            for kw in range(3):
                start = kh * n_bp1 + kw
                lhs = h2_ref[pl.ds(start, acc3_rows), :].astype(jnp.bfloat16)
                d = jnp.dot(lhs, w3_ref[kh * 3 + kw],
                            preferred_element_type=jnp.float32)
                acc3 = d if acc3 is None else acc3 + d
        h3 = jnp.maximum(acc3 + b3_ref[...], 0.0)

        # Compact the valid (sample, oh3) rows out of the pitched accumulator
        # and store one lane-dense (spb*M3, 128) slab to HBM.
        for s in range(spb):
            for oh in range(OH3):
                src = s * Cs1 + oh * n_bp1
                dst = s * M3 + oh * OW3
                h3_ref[pl.ds(dst, OW3), :] = h3[src:src + OW3, :]
        out_ref[0] = h3_ref[...]

    return kernel


# ------------------------------- forward pass ------------------------------ #
def cnn_shared_net_forward(x, params):
    """Equivalent of CNNSharedNet.forward: conv stack + flatten to (N, -1)."""
    N, C, H, W = x.shape
    assert C == 1, "CNNSharedNet expects single-channel observations"
    OH1, OW1 = (H - 8) // 4 + 1, (W - 8) // 4 + 1
    OH2, OW2 = (OH1 - 4) // 2 + 1, (OW1 - 4) // 2 + 1
    OH3, OW3 = (OH2 - 3) // 1 + 1, (OW2 - 3) // 1 + 1
    assert OH3 >= 1 and OW3 >= 1, "observation too small for the conv stack"
    M3 = OH3 * OW3
    K1 = 64  # 1 * 8 * 8

    # Padded half-grid of conv1 outputs (pitch of the class-major layout).
    n_ap1, n_bp1 = -(-OH1 // 2), -(-OW1 // 2)
    Cs1 = n_ap1 * n_bp1                       # per-sample per-class row pitch

    spb = math.gcd(N, 8)                      # samples per grid step
    G = N // spb
    R1 = 4 * spb * Cs1                        # conv1 rows per grid step
    acc2_rows = (spb - 1) * Cs1 + (OH2 - 1) * n_bp1 + OW2
    acc3_rows = (spb - 1) * Cs1 + (OH3 - 1) * n_bp1 + OW3
    # In-bounds guarantees of the pitch-aligned slab reads.
    assert (1 * n_bp1 + 1) + acc2_rows <= spb * Cs1
    assert (2 * n_bp1 + 2) + acc3_rows <= acc2_rows

    # conv1 im2col in the wrapper (tiny blow-up of the input).  Rows are laid
    # out [class (p,q)] x [sample] x [(oh1//2, ow1//2)] so every conv2 kernel
    # offset becomes ONE contiguous VMEM slab read inside the kernel.
    cols = []
    for kh in range(8):
        for kw in range(8):
            cols.append(x[:, 0, kh:kh + 4 * OH1:4, kw:kw + 4 * OW1:4])
    pat = jnp.stack(cols, axis=-1)                       # (N, OH1, OW1, 64)
    pat = jnp.pad(pat, ((0, 0), (0, 2 * n_ap1 - OH1),
                        (0, 2 * n_bp1 - OW1), (0, 0)))
    pat = pat.reshape(G, spb, n_ap1, 2, n_bp1, 2, K1)
    pat = jnp.transpose(pat, (0, 3, 5, 1, 2, 4, 6))      # (G, p, q, s, a, b, K)
    p1 = pat.reshape(G, R1, K1).astype(jnp.bfloat16)

    # Weights: per-(kh,kw) slabs with in/out channels zero-padded to 128 and
    # cast to bf16 so every matmul runs on the MXU's native bf16 path.
    w1 = params["w1"].reshape(32, K1).T                                # (64, 32)
    w1 = jnp.pad(w1, ((0, 0), (0, OCP - 32))).astype(jnp.bfloat16)     # (64,128)
    b1 = jnp.pad(params["b1"], (0, OCP - 32)).reshape(1, OCP).astype(jnp.float32)

    w2 = jnp.transpose(params["w2"], (2, 3, 1, 0)).reshape(16, 32, 64)
    w2 = jnp.pad(w2, ((0, 0), (0, OCP - 32), (0, OCP - 64))).astype(jnp.bfloat16)
    b2 = jnp.pad(params["b2"], (0, OCP - 64)).reshape(1, OCP).astype(jnp.float32)

    w3 = jnp.transpose(params["w3"], (2, 3, 1, 0)).reshape(9, 64, 64)
    w3 = jnp.pad(w3, ((0, 0), (0, OCP - 64), (0, OCP - 64))).astype(jnp.bfloat16)
    b3 = jnp.pad(params["b3"], (0, OCP - 64)).reshape(1, OCP).astype(jnp.float32)

    kernel = _make_fused_kernel(n_bp1, Cs1, spb, OH3, OW3, acc2_rows, acc3_rows)

    flops = 2 * G * (R1 * K1 * OCP
                     + 16 * acc2_rows * OCP * OCP
                     + 9 * acc3_rows * OCP * OCP)
    bytes_accessed = (p1.size * 2 + w1.size * 2 + w2.size * 2 + w3.size * 2
                      + (b1.size + b2.size + b3.size) * 4
                      + G * spb * M3 * OCP * 4)

    out = pl.pallas_call(
        kernel,
        out_shape=jax.ShapeDtypeStruct((G, spb * M3, OCP), jnp.float32),
        grid_spec=pltpu.PrefetchScalarGridSpec(
            num_scalar_prefetch=0,
            grid=(G,),
            in_specs=[
                pl.BlockSpec((1, R1, K1), lambda g: (g, 0, 0)),     # conv1 patches
                pl.BlockSpec((K1, OCP), lambda g: (0, 0)),          # w1
                pl.BlockSpec((1, OCP), lambda g: (0, 0)),           # b1
                pl.BlockSpec((16, OCP, OCP), lambda g: (0, 0, 0)),  # w2 slabs
                pl.BlockSpec((1, OCP), lambda g: (0, 0)),           # b2
                pl.BlockSpec((9, OCP, OCP), lambda g: (0, 0, 0)),   # w3 slabs
                pl.BlockSpec((1, OCP), lambda g: (0, 0)),           # b3
            ],
            out_specs=pl.BlockSpec((1, spb * M3, OCP), lambda g: (g, 0, 0)),
            scratch_shapes=[
                pltpu.VMEM((R1, OCP), jnp.float32),         # conv1 activations
                pltpu.VMEM((acc2_rows, OCP), jnp.float32),  # conv2 activations
                pltpu.VMEM((spb * M3, OCP), jnp.float32),   # compacted conv3 out
            ],
        ),
        compiler_params=pltpu.CompilerParams(
            dimension_semantics=("parallel",)),
        cost_estimate=pl.CostEstimate(flops=int(flops), transcendentals=0,
                                      bytes_accessed=int(bytes_accessed)),
    )(p1, w1, b1, w2, b2, w3, b3)

    # Channel-major flatten == PyTorch `.view(N, -1)` on the NCHW conv output.
    out = out.reshape(N, M3, OCP)[:, :, :64]
    feat = jnp.transpose(out, (0, 2, 1)).reshape(N, 64 * M3)
    return feat


# --------------------------------- params ---------------------------------- #
def init_params(key):
    k1, k2, k3, k4, k5, k6 = jax.random.split(key, 6)
    scale = 0.05
    return {
        "w1": scale * jax.random.normal(k1, (32, 1, 8, 8), jnp.float32),
        "b1": scale * jax.random.normal(k2, (32,), jnp.float32),
        "w2": scale * jax.random.normal(k3, (64, 32, 4, 4), jnp.float32),
        "b2": scale * jax.random.normal(k4, (64,), jnp.float32),
        "w3": scale * jax.random.normal(k5, (64, 64, 3, 3), jnp.float32),
        "b3": scale * jax.random.normal(k6, (64,), jnp.float32),
    }


# ------------------------- pure-JAX reference check ------------------------ #
def _reference_forward(x, params):
    def conv(x, w, b, s):
        y = jax.lax.conv_general_dilated(
            x, w, window_strides=(s, s), padding="VALID",
            dimension_numbers=("NCHW", "OIHW", "NCHW"))
        return jnp.maximum(y + b.reshape(1, -1, 1, 1), 0.0)

    h = conv(x, params["w1"], params["b1"], 4)
    h = conv(h, params["w2"], params["b2"], 2)
    h = conv(h, params["w3"], params["b3"], 1)
    return h.reshape(x.shape[0], -1)


if __name__ == "__main__":
    key = jax.random.PRNGKey(0)
    kx, kp = jax.random.split(key)

    # observation_space.shape == (1, 52, 52); batch of 8 observations.
    # conv spatial chain: 52 -> 12 -> 5 -> 3, so flat dim = 64*3*3 = 576.
    x = jax.random.normal(kx, (8, 1, 52, 52), jnp.float32)
    params = init_params(kp)

    fwd = jax.jit(cnn_shared_net_forward)
    out = jax.block_until_ready(fwd(x, params))
    ref = jax.block_until_ready(_reference_forward(x, params))

    assert out.shape == (8, 576), out.shape
    # bf16 is used only on the matmul operands (f32 accumulate / bias / ReLU),
    # so the deviation from the pure-f32 reference stays well below this bound.
    err = float(jnp.max(jnp.abs(out - ref)))
    assert err < 5e-2, err

    print("KERNEL_OK")
</pallas_src>

<mosaic_0001>
module attributes {stable_mosaic.version = 11 : i64} {
  func.func @kernel(%arg0: i32, %arg1: memref<1x1152x64xbf16, #tpu.memory_space<vmem>>, %arg2: memref<64x128xbf16, #tpu.memory_space<vmem>>, %arg3: memref<1x128xf32, #tpu.memory_space<vmem>>, %arg4: memref<16x128x128xbf16, #tpu.memory_space<vmem>>, %arg5: memref<1x128xf32, #tpu.memory_space<vmem>>, %arg6: memref<9x128x128xbf16, #tpu.memory_space<vmem>>, %arg7: memref<1x128xf32, #tpu.memory_space<vmem>>, %arg8: memref<1x72x128xf32, #tpu.memory_space<vmem>>, %arg9: memref<1152x128xf32, #tpu.memory_space<vmem>>, %arg10: memref<281x128xf32, #tpu.memory_space<vmem>>, %arg11: memref<72x128xf32, #tpu.memory_space<vmem>>) attributes {dimension_semantics = [#tpu.dimension_semantics<parallel>], iteration_bounds = array<i64: 1>, scalar_prefetch = 0 : i64, scratch_operands = 3 : i64, tpu.core_type = #tpu.core_type<tc>, window_params = [{transform_indices = @transform_0, window_bounds = array<i64: 1, 1152, 64>}, {pipeline_mode = #tpu.pipeline_mode<synchronous>, transform_indices = @transform_1, window_bounds = array<i64: 64, 128>}, {pipeline_mode = #tpu.pipeline_mode<synchronous>, transform_indices = @transform_2, window_bounds = array<i64: 1, 128>}, {pipeline_mode = #tpu.pipeline_mode<synchronous>, transform_indices = @transform_3, window_bounds = array<i64: 16, 128, 128>}, {pipeline_mode = #tpu.pipeline_mode<synchronous>, transform_indices = @transform_4, window_bounds = array<i64: 1, 128>}, {pipeline_mode = #tpu.pipeline_mode<synchronous>, transform_indices = @transform_5, window_bounds = array<i64: 9, 128, 128>}, {pipeline_mode = #tpu.pipeline_mode<synchronous>, transform_indices = @transform_6, window_bounds = array<i64: 1, 128>}, {transform_indices = @transform_7, window_bounds = array<i64: 1, 72, 128>}]} {
    %c0 = arith.constant 0 : index
    %c0_0 = arith.constant 0 : index
    %c0_1 = arith.constant 0 : index
    %0 = vector.load %arg1[%c0, %c0_0, %c0_1] : memref<1x1152x64xbf16, #tpu.memory_space<vmem>>, vector<1x1152x64xbf16>
    %1 = vector.shape_cast %0 : vector<1x1152x64xbf16> to vector<1152x64xbf16>
    %c0_2 = arith.constant 0 : index
    %c0_3 = arith.constant 0 : index
    %2 = vector.load %arg2[%c0_2, %c0_3] : memref<64x128xbf16, #tpu.memory_space<vmem>>, vector<64x128xbf16>
    %cst = arith.constant dense<0.000000e+00> : vector<1152x128xf32>
    %3 = tpu.matmul %1, %2, %cst {dimension_numbers = #tpu.dot_dimension_numbers<[1], [0], [0], [1], [0, 0, 1, 1], [], []>} : vector<1152x64xbf16>, vector<64x128xbf16>, vector<1152x128xf32> -> vector<1152x128xf32>
    %c0_4 = arith.constant 0 : index
    %c0_5 = arith.constant 0 : index
    %4 = vector.load %arg3[%c0_4, %c0_5] : memref<1x128xf32, #tpu.memory_space<vmem>>, vector<1x128xf32>
    %5 = vector.broadcast %4 : vector<1x128xf32> to vector<1152x128xf32>
    %6 = arith.addf %3, %5 : vector<1152x128xf32>
    %cst_6 = arith.constant 0.000000e+00 : f32
    %7 = vector.broadcast %cst_6 : f32 to vector<1152x128xf32>
    %8 = arith.maximumf %6, %7 : vector<1152x128xf32>
    %c0_7 = arith.constant 0 : index
    %c0_8 = arith.constant 0 : index
    %9 = vector.load %arg9[%c0_7, %c0_8] : memref<1152x128xf32, #tpu.memory_space<vmem>>, vector<1152x128xf32>
    tpu.vector_store %arg9[%c0_7, %c0_8], %8 {strides = array<i32>} : memref<1152x128xf32, #tpu.memory_space<vmem>>, vector<1152x128xf32>,
    %c0_9 = arith.constant 0 : index
    %c0_10 = arith.constant 0 : index
    %10 = vector.load %arg9[%c0_9, %c0_10] : memref<1152x128xf32, #tpu.memory_space<vmem>>, vector<281x128xf32>
    %11 = arith.truncf %10 : vector<281x128xf32> to vector<281x128xbf16>
    %c0_11 = arith.constant 0 : index
    %c0_12 = arith.constant 0 : index
    %c0_13 = arith.constant 0 : index
    %12 = vector.load %arg4[%c0_11, %c0_12, %c0_13] : memref<16x128x128xbf16, #tpu.memory_space<vmem>>, vector<1x128x128xbf16>
    %13 = vector.shape_cast %12 : vector<1x128x128xbf16> to vector<128x128xbf16>
    %cst_14 = arith.constant dense<0.000000e+00> : vector<281x128xf32>
    %14 = tpu.matmul %11, %13, %cst_14 {dimension_numbers = #tpu.dot_dimension_numbers<[1], [0], [0], [1], [0, 0, 1, 1], [], []>} : vector<281x128xbf16>, vector<128x128xbf16>, vector<281x128xf32> -> vector<281x128xf32>
    %c288 = arith.constant 288 : index
    %c0_15 = arith.constant 0 : index
    %15 = vector.load %arg9[%c288, %c0_15] : memref<1152x128xf32, #tpu.memory_space<vmem>>, vector<281x128xf32>
    %16 = arith.truncf %15 : vector<281x128xf32> to vector<281x128xbf16>
    %c1 = arith.constant 1 : index
    %c0_16 = arith.constant 0 : index
    %c0_17 = arith.constant 0 : index
    %17 = vector.load %arg4[%c1, %c0_16, %c0_17] : memref<16x128x128xbf16, #tpu.memory_space<vmem>>, vector<1x128x128xbf16>
    %18 = vector.shape_cast %17 : vector<1x128x128xbf16> to vector<128x128xbf16>
    %cst_18 = arith.constant dense<0.000000e+00> : vector<281x128xf32>
    %19 = tpu.matmul %16, %18, %cst_18 {dimension_numbers = #tpu.dot_dimension_numbers<[1], [0], [0], [1], [0, 0, 1, 1], [], []>} : vector<281x128xbf16>, vector<128x128xbf16>, vector<281x128xf32> -> vector<281x128xf32>
    %20 = arith.addf %14, %19 : vector<281x128xf32>
    %c1_19 = arith.constant 1 : index
    %c0_20 = arith.constant 0 : index
    %21 = vector.load %arg9[%c1_19, %c0_20] : memref<1152x128xf32, #tpu.memory_space<vmem>>, vector<281x128xf32>
    %22 = arith.truncf %21 : vector<281x128xf32> to vector<281x128xbf16>
    %c2 = arith.constant 2 : index
    %c0_21 = arith.constant 0 : index
    %c0_22 = arith.constant 0 : index
    %23 = vector.load %arg4[%c2, %c0_21, %c0_22] : memref<16x128x128xbf16, #tpu.memory_space<vmem>>, vector<1x128x128xbf16>
    %24 = vector.shape_cast %23 : vector<1x128x128xbf16> to vector<128x128xbf16>
    %cst_23 = arith.constant dense<0.000000e+00> : vector<281x128xf32>
    %25 = tpu.matmul %22, %24, %cst_23 {dimension_numbers = #tpu.dot_dimension_numbers<[1], [0], [0], [1], [0, 0, 1, 1], [], []>} : vector<281x128xbf16>, vector<128x128xbf16>, vector<281x128xf32> -> vector<281x128xf32>
    %26 = arith.addf %20, %25 : vector<281x128xf32>
    %c289 = arith.constant 289 : index
    %c0_24 = arith.constant 0 : index
    %27 = vector.load %arg9[%c289, %c0_24] : memref<1152x128xf32, #tpu.memory_space<vmem>>, vector<281x128xf32>
    %28 = arith.truncf %27 : vector<281x128xf32> to vector<281x128xbf16>
    %c3 = arith.constant 3 : index
    %c0_25 = arith.constant 0 : index
    %c0_26 = arith.constant 0 : index
    %29 = vector.load %arg4[%c3, %c0_25, %c0_26] : memref<16x128x128xbf16, #tpu.memory_space<vmem>>, vector<1x128x128xbf16>
    %30 = vector.shape_cast %29 : vector<1x128x128xbf16> to vector<128x128xbf16>
    %cst_27 = arith.constant dense<0.000000e+00> : vector<281x128xf32>
    %31 = tpu.matmul %28, %30, %cst_27 {dimension_numbers = #tpu.dot_dimension_numbers<[1], [0], [0], [1], [0, 0, 1, 1], [], []>} : vector<281x128xbf16>, vector<128x128xbf16>, vector<281x128xf32> -> vector<281x128xf32>
    %32 = arith.addf %26, %31 : vector<281x128xf32>
    %c576 = arith.constant 576 : index
    %c0_28 = arith.constant 0 : index
    %33 = vector.load %arg9[%c576, %c0_28] : memref<1152x128xf32, #tpu.memory_space<vmem>>, vector<281x128xf32>
    %34 = arith.truncf %33 : vector<281x128xf32> to vector<281x128xbf16>
    %c4 = arith.constant 4 : index
    %c0_29 = arith.constant 0 : index
    %c0_30 = arith.constant 0 : index
    %35 = vector.load %arg4[%c4, %c0_29, %c0_30] : memref<16x128x128xbf16, #tpu.memory_space<vmem>>, vector<1x128x128xbf16>
    %36 = vector.shape_cast %35 : vector<1x128x128xbf16> to vector<128x128xbf16>
    %cst_31 = arith.constant dense<0.000000e+00> : vector<281x128xf32>
    %37 = tpu.matmul %34, %36, %cst_31 {dimension_numbers = #tpu.dot_dimension_numbers<[1], [0], [0], [1], [0, 0, 1, 1], [], []>} : vector<281x128xbf16>, vector<128x128xbf16>, vector<281x128xf32> -> vector<281x128xf32>
    %38 = arith.addf %32, %37 : vector<281x128xf32>
    %c864 = arith.constant 864 : index
    %c0_32 = arith.constant 0 : index
    %39 = vector.load %arg9[%c864, %c0_32] : memref<1152x128xf32, #tpu.memory_space<vmem>>, vector<281x128xf32>
    %40 = arith.truncf %39 : vector<281x128xf32> to vector<281x128xbf16>
    %c5 = arith.constant 5 : index
    %c0_33 = arith.constant 0 : index
    %c0_34 = arith.constant 0 : index
    %41 = vector.load %arg4[%c5, %c0_33, %c0_34] : memref<16x128x128xbf16, #tpu.memory_space<vmem>>, vector<1x128x128xbf16>
    %42 = vector.shape_cast %41 : vector<1x128x128xbf16> to vector<128x128xbf16>
    %cst_35 = arith.constant dense<0.000000e+00> : vector<281x128xf32>
    %43 = tpu.matmul %40, %42, %cst_35 {dimension_numbers = #tpu.dot_dimension_numbers<[1], [0], [0], [1], [0, 0, 1, 1], [], []>} : vector<281x128xbf16>, vector<128x128xbf16>, vector<281x128xf32> -> vector<281x128xf32>
    %44 = arith.addf %38, %43 : vector<281x128xf32>
    %c577 = arith.constant 577 : index
    %c0_36 = arith.constant 0 : index
    %45 = vector.load %arg9[%c577, %c0_36] : memref<1152x128xf32, #tpu.memory_space<vmem>>, vector<281x128xf32>
    %46 = arith.truncf %45 : vector<281x128xf32> to vector<281x128xbf16>
    %c6 = arith.constant 6 : index
    %c0_37 = arith.constant 0 : index
    %c0_38 = arith.constant 0 : index
    %47 = vector.load %arg4[%c6, %c0_37, %c0_38] : memref<16x128x128xbf16, #tpu.memory_space<vmem>>, vector<1x128x128xbf16>
    %48 = vector.shape_cast %47 : vector<1x128x128xbf16> to vector<128x128xbf16>
    %cst_39 = arith.constant dense<0.000000e+00> : vector<281x128xf32>
    %49 = tpu.matmul %46, %48, %cst_39 {dimension_numbers = #tpu.dot_dimension_numbers<[1], [0], [0], [1], [0, 0, 1, 1], [], []>} : vector<281x128xbf16>, vector<128x128xbf16>, vector<281x128xf32> -> vector<281x128xf32>
    %50 = arith.addf %44, %49 : vector<281x128xf32>
    %c865 = arith.constant 865 : index
    %c0_40 = arith.constant 0 : index
    %51 = vector.load %arg9[%c865, %c0_40] : memref<1152x128xf32, #tpu.memory_space<vmem>>, vector<281x128xf32>
    %52 = arith.truncf %51 : vector<281x128xf32> to vector<281x128xbf16>
    %c7 = arith.constant 7 : index
    %c0_41 = arith.constant 0 : index
    %c0_42 = arith.constant 0 : index
    %53 = vector.load %arg4[%c7, %c0_41, %c0_42] : memref<16x128x128xbf16, #tpu.memory_space<vmem>>, vector<1x128x128xbf16>
    %54 = vector.shape_cast %53 : vector<1x128x128xbf16> to vector<128x128xbf16>
    %cst_43 = arith.constant dense<0.000000e+00> : vector<281x128xf32>
    %55 = tpu.matmul %52, %54, %cst_43 {dimension_numbers = #tpu.dot_dimension_numbers<[1], [0], [0], [1], [0, 0, 1, 1], [], []>} : vector<281x128xbf16>, vector<128x128xbf16>, vector<281x128xf32> -> vector<281x128xf32>
    %56 = arith.addf %50, %55 : vector<281x128xf32>
    %c6_44 = arith.constant 6 : index
    %c0_45 = arith.constant 0 : index
    %57 = vector.load %arg9[%c6_44, %c0_45] : memref<1152x128xf32, #tpu.memory_space<vmem>>, vector<281x128xf32>
    %58 = arith.truncf %57 : vector<281x128xf32> to vector<281x128xbf16>
    %c8 = arith.constant 8 : index
    %c0_46 = arith.constant 0 : index
    %c0_47 = arith.constant 0 : index
    %59 = vector.load %arg4[%c8, %c0_46, %c0_47] : memref<16x128x128xbf16, #tpu.memory_space<vmem>>, vector<1x128x128xbf16>
    %60 = vector.shape_cast %59 : vector<1x128x128xbf16> to vector<128x128xbf16>
    %cst_48 = arith.constant dense<0.000000e+00> : vector<281x128xf32>
    %61 = tpu.matmul %58, %60, %cst_48 {dimension_numbers = #tpu.dot_dimension_numbers<[1], [0], [0], [1], [0, 0, 1, 1], [], []>} : vector<281x128xbf16>, vector<128x128xbf16>, vector<281x128xf32> -> vector<281x128xf32>
    %62 = arith.addf %56, %61 : vector<281x128xf32>
    %c294 = arith.constant 294 : index
    %c0_49 = arith.constant 0 : index
    %63 = vector.load %arg9[%c294, %c0_49] : memref<1152x128xf32, #tpu.memory_space<vmem>>, vector<281x128xf32>
    %64 = arith.truncf %63 : vector<281x128xf32> to vector<281x128xbf16>
    %c9 = arith.constant 9 : index
    %c0_50 = arith.constant 0 : index
    %c0_51 = arith.constant 0 : index
    %65 = vector.load %arg4[%c9, %c0_50, %c0_51] : memref<16x128x128xbf16, #tpu.memory_space<vmem>>, vector<1x128x128xbf16>
    %66 = vector.shape_cast %65 : vector<1x128x128xbf16> to vector<128x128xbf16>
    %cst_52 = arith.constant dense<0.000000e+00> : vector<281x128xf32>
    %67 = tpu.matmul %64, %66, %cst_52 {dimension_numbers = #tpu.dot_dimension_numbers<[1], [0], [0], [1], [0, 0, 1, 1], [], []>} : vector<281x128xbf16>, vector<128x128xbf16>, vector<281x128xf32> -> vector<281x128xf32>
    %68 = arith.addf %62, %67 : vector<281x128xf32>
    %c7_53 = arith.constant 7 : index
    %c0_54 = arith.constant 0 : index
    %69 = vector.load %arg9[%c7_53, %c0_54] : memref<1152x128xf32, #tpu.memory_space<vmem>>, vector<281x128xf32>
    %70 = arith.truncf %69 : vector<281x128xf32> to vector<281x128xbf16>
    %c10 = arith.constant 10 : index
    %c0_55 = arith.constant 0 : index
    %c0_56 = arith.constant 0 : index
    %71 = vector.load %arg4[%c10, %c0_55, %c0_56] : memref<16x128x128xbf16, #tpu.memory_space<vmem>>, vector<1x128x128xbf16>
    %72 = vector.shape_cast %71 : vector<1x128x128xbf16> to vector<128x128xbf16>
    %cst_57 = arith.constant dense<0.000000e+00> : vector<281x128xf32>
    %73 = tpu.matmul %70, %72, %cst_57 {dimension_numbers = #tpu.dot_dimension_numbers<[1], [0], [0], [1], [0, 0, 1, 1], [], []>} : vector<281x128xbf16>, vector<128x128xbf16>, vector<281x128xf32> -> vector<281x128xf32>
    %74 = arith.addf %68, %73 : vector<281x128xf32>
    %c295 = arith.constant 295 : index
    %c0_58 = arith.constant 0 : index
    %75 = vector.load %arg9[%c295, %c0_58] : memref<1152x128xf32, #tpu.memory_space<vmem>>, vector<281x128xf32>
    %76 = arith.truncf %75 : vector<281x128xf32> to vector<281x128xbf16>
    %c11 = arith.constant 11 : index
    %c0_59 = arith.constant 0 : index
    %c0_60 = arith.constant 0 : index
    %77 = vector.load %arg4[%c11, %c0_59, %c0_60] : memref<16x128x128xbf16, #tpu.memory_space<vmem>>, vector<1x128x128xbf16>
    %78 = vector.shape_cast %77 : vector<1x128x128xbf16> to vector<128x128xbf16>
    %cst_61 = arith.constant dense<0.000000e+00> : vector<281x128xf32>
    %79 = tpu.matmul %76, %78, %cst_61 {dimension_numbers = #tpu.dot_dimension_numbers<[1], [0], [0], [1], [0, 0, 1, 1], [], []>} : vector<281x128xbf16>, vector<128x128xbf16>, vector<281x128xf32> -> vector<281x128xf32>
    %80 = arith.addf %74, %79 : vector<281x128xf32>
    %c582 = arith.constant 582 : index
    %c0_62 = arith.constant 0 : index
    %81 = vector.load %arg9[%c582, %c0_62] : memref<1152x128xf32, #tpu.memory_space<vmem>>, vector<281x128xf32>
    %82 = arith.truncf %81 : vector<281x128xf32> to vector<281x128xbf16>
    %c12 = arith.constant 12 : index
    %c0_63 = arith.constant 0 : index
    %c0_64 = arith.constant 0 : index
    %83 = vector.load %arg4[%c12, %c0_63, %c0_64] : memref<16x128x128xbf16, #tpu.memory_space<vmem>>, vector<1x128x128xbf16>
    %84 = vector.shape_cast %83 : vector<1x128x128xbf16> to vector<128x128xbf16>
    %cst_65 = arith.constant dense<0.000000e+00> : vector<281x128xf32>
    %85 = tpu.matmul %82, %84, %cst_65 {dimension_numbers = #tpu.dot_dimension_numbers<[1], [0], [0], [1], [0, 0, 1, 1], [], []>} : vector<281x128xbf16>, vector<128x128xbf16>, vector<281x128xf32> -> vector<281x128xf32>
    %86 = arith.addf %80, %85 : vector<281x128xf32>
    %c870 = arith.constant 870 : index
    %c0_66 = arith.constant 0 : index
    %87 = vector.load %arg9[%c870, %c0_66] : memref<1152x128xf32, #tpu.memory_space<vmem>>, vector<281x128xf32>
    %88 = arith.truncf %87 : vector<281x128xf32> to vector<281x128xbf16>
    %c13 = arith.constant 13 : index
    %c0_67 = arith.constant 0 : index
    %c0_68 = arith.constant 0 : index
    %89 = vector.load %arg4[%c13, %c0_67, %c0_68] : memref<16x128x128xbf16, #tpu.memory_space<vmem>>, vector<1x128x128xbf16>
    %90 = vector.shape_cast %89 : vector<1x128x128xbf16> to vector<128x128xbf16>
    %cst_69 = arith.constant dense<0.000000e+00> : vector<281x128xf32>
    %91 = tpu.matmul %88, %90, %cst_69 {dimension_numbers = #tpu.dot_dimension_numbers<[1], [0], [0], [1], [0, 0, 1, 1], [], []>} : vector<281x128xbf16>, vector<128x128xbf16>, vector<281x128xf32> -> vector<281x128xf32>
    %92 = arith.addf %86, %91 : vector<281x128xf32>
    %c583 = arith.constant 583 : index
    %c0_70 = arith.constant 0 : index
    %93 = vector.load %arg9[%c583, %c0_70] : memref<1152x128xf32, #tpu.memory_space<vmem>>, vector<281x128xf32>
    %94 = arith.truncf %93 : vector<281x128xf32> to vector<281x128xbf16>
    %c14 = arith.constant 14 : index
    %c0_71 = arith.constant 0 : index
    %c0_72 = arith.constant 0 : index
    %95 = vector.load %arg4[%c14, %c0_71, %c0_72] : memref<16x128x128xbf16, #tpu.memory_space<vmem>>, vector<1x128x128xbf16>
    %96 = vector.shape_cast %95 : vector<1x128x128xbf16> to vector<128x128xbf16>
    %cst_73 = arith.constant dense<0.000000e+00> : vector<281x128xf32>
    %97 = tpu.matmul %94, %96, %cst_73 {dimension_numbers = #tpu.dot_dimension_numbers<[1], [0], [0], [1], [0, 0, 1, 1], [], []>} : vector<281x128xbf16>, vector<128x128xbf16>, vector<281x128xf32> -> vector<281x128xf32>
    %98 = arith.addf %92, %97 : vector<281x128xf32>
    %c871 = arith.constant 871 : index
    %c0_74 = arith.constant 0 : index
    %99 = vector.load %arg9[%c871, %c0_74] : memref<1152x128xf32, #tpu.memory_space<vmem>>, vector<281x128xf32>
    %100 = arith.truncf %99 : vector<281x128xf32> to vector<281x128xbf16>
    %c15 = arith.constant 15 : index
    %c0_75 = arith.constant 0 : index
    %c0_76 = arith.constant 0 : index
    %101 = vector.load %arg4[%c15, %c0_75, %c0_76] : memref<16x128x128xbf16, #tpu.memory_space<vmem>>, vector<1x128x128xbf16>
    %102 = vector.shape_cast %101 : vector<1x128x128xbf16> to vector<128x128xbf16>
    %cst_77 = arith.constant dense<0.000000e+00> : vector<281x128xf32>
    %103 = tpu.matmul %100, %102, %cst_77 {dimension_numbers = #tpu.dot_dimension_numbers<[1], [0], [0], [1], [0, 0, 1, 1], [], []>} : vector<281x128xbf16>, vector<128x128xbf16>, vector<281x128xf32> -> vector<281x128xf32>
    %104 = arith.addf %98, %103 : vector<281x128xf32>
    %c0_78 = arith.constant 0 : index
    %c0_79 = arith.constant 0 : index
    %105 = vector.load %arg5[%c0_78, %c0_79] : memref<1x128xf32, #tpu.memory_space<vmem>>, vector<1x128xf32>
    %106 = vector.broadcast %105 : vector<1x128xf32> to vector<281x128xf32>
    %107 = arith.addf %104, %106 : vector<281x128xf32>
    %cst_80 = arith.constant 0.000000e+00 : f32
    %108 = vector.broadcast %cst_80 : f32 to vector<281x128xf32>
    %109 = arith.maximumf %107, %108 : vector<281x128xf32>
    %c0_81 = arith.constant 0 : index
    %c0_82 = arith.constant 0 : index
    %110 = vector.load %arg10[%c0_81, %c0_82] : memref<281x128xf32, #tpu.memory_space<vmem>>, vector<281x128xf32>
    tpu.vector_store %arg10[%c0_81, %c0_82], %109 {strides = array<i32>} : memref<281x128xf32, #tpu.memory_space<vmem>>, vector<281x128xf32>,
    %c0_83 = arith.constant 0 : index
    %c0_84 = arith.constant 0 : index
    %111 = vector.load %arg10[%c0_83, %c0_84] : memref<281x128xf32, #tpu.memory_space<vmem>>, vector<267x128xf32>
    %112 = arith.truncf %111 : vector<267x128xf32> to vector<267x128xbf16>
    %c0_85 = arith.constant 0 : index
    %c0_86 = arith.constant 0 : index
    %c0_87 = arith.constant 0 : index
    %113 = vector.load %arg6[%c0_85, %c0_86, %c0_87] : memref<9x128x128xbf16, #tpu.memory_space<vmem>>, vector<1x128x128xbf16>
    %114 = vector.shape_cast %113 : vector<1x128x128xbf16> to vector<128x128xbf16>
    %cst_88 = arith.constant dense<0.000000e+00> : vector<267x128xf32>
    %115 = tpu.matmul %112, %114, %cst_88 {dimension_numbers = #tpu.dot_dimension_numbers<[1], [0], [0], [1], [0, 0, 1, 1], [], []>} : vector<267x128xbf16>, vector<128x128xbf16>, vector<267x128xf32> -> vector<267x128xf32>
    %c1_89 = arith.constant 1 : index
    %c0_90 = arith.constant 0 : index
    %116 = vector.load %arg10[%c1_89, %c0_90] : memref<281x128xf32, #tpu.memory_space<vmem>>, vector<267x128xf32>
    %117 = arith.truncf %116 : vector<267x128xf32> to vector<267x128xbf16>
    %c1_91 = arith.constant 1 : index
    %c0_92 = arith.constant 0 : index
    %c0_93 = arith.constant 0 : index
    %118 = vector.load %arg6[%c1_91, %c0_92, %c0_93] : memref<9x128x128xbf16, #tpu.memory_space<vmem>>, vector<1x128x128xbf16>
    %119 = vector.shape_cast %118 : vector<1x128x128xbf16> to vector<128x128xbf16>
    %cst_94 = arith.constant dense<0.000000e+00> : vector<267x128xf32>
    %120 = tpu.matmul %117, %119, %cst_94 {dimension_numbers = #tpu.dot_dimension_numbers<[1], [0], [0], [1], [0, 0, 1, 1], [], []>} : vector<267x128xbf16>, vector<128x128xbf16>, vector<267x128xf32> -> vector<267x128xf32>
    %121 = arith.addf %115, %120 : vector<267x128xf32>
    %c2_95 = arith.constant 2 : index
    %c0_96 = arith.constant 0 : index
    %122 = vector.load %arg10[%c2_95, %c0_96] : memref<281x128xf32, #tpu.memory_space<vmem>>, vector<267x128xf32>
    %123 = arith.truncf %122 : vector<267x128xf32> to vector<267x128xbf16>
    %c2_97 = arith.constant 2 : index
    %c0_98 = arith.constant 0 : index
    %c0_99 = arith.constant 0 : index
    %124 = vector.load %arg6[%c2_97, %c0_98, %c0_99] : memref<9x128x128xbf16, #tpu.memory_space<vmem>>, vector<1x128x128xbf16>
    %125 = vector.shape_cast %124 : vector<1x128x128xbf16> to vector<128x128xbf16>
    %cst_100 = arith.constant dense<0.000000e+00> : vector<267x128xf32>
    %126 = tpu.matmul %123, %125, %cst_100 {dimension_numbers = #tpu.dot_dimension_numbers<[1], [0], [0], [1], [0, 0, 1, 1], [], []>} : vector<267x128xbf16>, vector<128x128xbf16>, vector<267x128xf32> -> vector<267x128xf32>
    %127 = arith.addf %121, %126 : vector<267x128xf32>
    %c6_101 = arith.constant 6 : index
    %c0_102 = arith.constant 0 : index
    %128 = vector.load %arg10[%c6_101, %c0_102] : memref<281x128xf32, #tpu.memory_space<vmem>>, vector<267x128xf32>
    %129 = arith.truncf %128 : vector<267x128xf32> to vector<267x128xbf16>
    %c3_103 = arith.constant 3 : index
    %c0_104 = arith.constant 0 : index
    %c0_105 = arith.constant 0 : index
    %130 = vector.load %arg6[%c3_103, %c0_104, %c0_105] : memref<9x128x128xbf16, #tpu.memory_space<vmem>>, vector<1x128x128xbf16>
    %131 = vector.shape_cast %130 : vector<1x128x128xbf16> to vector<128x128xbf16>
    %cst_106 = arith.constant dense<0.000000e+00> : vector<267x128xf32>
    %132 = tpu.matmul %129, %131, %cst_106 {dimension_numbers = #tpu.dot_dimension_numbers<[1], [0], [0], [1], [0, 0, 1, 1], [], []>} : vector<267x128xbf16>, vector<128x128xbf16>, vector<267x128xf32> -> vector<267x128xf32>
    %133 = arith.addf %127, %132 : vector<267x128xf32>
    %c7_107 = arith.constant 7 : index
    %c0_108 = arith.constant 0 : index
    %134 = vector.load %arg10[%c7_107, %c0_108] : memref<281x128xf32, #tpu.memory_space<vmem>>, vector<267x128xf32>
    %135 = arith.truncf %134 : vector<267x128xf32> to vector<267x128xbf16>
    %c4_109 = arith.constant 4 : index
    %c0_110 = arith.constant 0 : index
    %c0_111 = arith.constant 0 : index
    %136 = vector.load %arg6[%c4_109, %c0_110, %c0_111] : memref<9x128x128xbf16, #tpu.memory_space<vmem>>, vector<1x128x128xbf16>
    %137 = vector.shape_cast %136 : vector<1x128x128xbf16> to vector<128x128xbf16>
    %cst_112 = arith.constant dense<0.000000e+00> : vector<267x128xf32>
    %138 = tpu.matmul %135, %137, %cst_112 {dimension_numbers = #tpu.dot_dimension_numbers<[1], [0], [0], [1], [0, 0, 1, 1], [], []>} : vector<267x128xbf16>, vector<128x128xbf16>, vector<267x128xf32> -> vector<267x128xf32>
    %139 = arith.addf %133, %138 : vector<267x128xf32>
    %c8_113 = arith.constant 8 : index
    %c0_114 = arith.constant 0 : index
    %140 = vector.load %arg10[%c8_113, %c0_114] : memref<281x128xf32, #tpu.memory_space<vmem>>, vector<267x128xf32>
    %141 = arith.truncf %140 : vector<267x128xf32> to vector<267x128xbf16>
    %c5_115 = arith.constant 5 : index
    %c0_116 = arith.constant 0 : index
    %c0_117 = arith.constant 0 : index
    %142 = vector.load %arg6[%c5_115, %c0_116, %c0_117] : memref<9x128x128xbf16, #tpu.memory_space<vmem>>, vector<1x128x128xbf16>
    %143 = vector.shape_cast %142 : vector<1x128x128xbf16> to vector<128x128xbf16>
    %cst_118 = arith.constant dense<0.000000e+00> : vector<267x128xf32>
    %144 = tpu.matmul %141, %143, %cst_118 {dimension_numbers = #tpu.dot_dimension_numbers<[1], [0], [0], [1], [0, 0, 1, 1], [], []>} : vector<267x128xbf16>, vector<128x128xbf16>, vector<267x128xf32> -> vector<267x128xf32>
    %145 = arith.addf %139, %144 : vector<267x128xf32>
    %c12_119 = arith.constant 12 : index
    %c0_120 = arith.constant 0 : index
    %146 = vector.load %arg10[%c12_119, %c0_120] : memref<281x128xf32, #tpu.memory_space<vmem>>, vector<267x128xf32>
    %147 = arith.truncf %146 : vector<267x128xf32> to vector<267x128xbf16>
    %c6_121 = arith.constant 6 : index
    %c0_122 = arith.constant 0 : index
    %c0_123 = arith.constant 0 : index
    %148 = vector.load %arg6[%c6_121, %c0_122, %c0_123] : memref<9x128x128xbf16, #tpu.memory_space<vmem>>, vector<1x128x128xbf16>
    %149 = vector.shape_cast %148 : vector<1x128x128xbf16> to vector<128x128xbf16>
    %cst_124 = arith.constant dense<0.000000e+00> : vector<267x128xf32>
    %150 = tpu.matmul %147, %149, %cst_124 {dimension_numbers = #tpu.dot_dimension_numbers<[1], [0], [0], [1], [0, 0, 1, 1], [], []>} : vector<267x128xbf16>, vector<128x128xbf16>, vector<267x128xf32> -> vector<267x128xf32>
    %151 = arith.addf %145, %150 : vector<267x128xf32>
    %c13_125 = arith.constant 13 : index
    %c0_126 = arith.constant 0 : index
    %152 = vector.load %arg10[%c13_125, %c0_126] : memref<281x128xf32, #tpu.memory_space<vmem>>, vector<267x128xf32>
    %153 = arith.truncf %152 : vector<267x128xf32> to vector<267x128xbf16>
    %c7_127 = arith.constant 7 : index
    %c0_128 = arith.constant 0 : index
    %c0_129 = arith.constant 0 : index
    %154 = vector.load %arg6[%c7_127, %c0_128, %c0_129] : memref<9x128x128xbf16, #tpu.memory_space<vmem>>, vector<1x128x128xbf16>
    %155 = vector.shape_cast %154 : vector<1x128x128xbf16> to vector<128x128xbf16>
    %cst_130 = arith.constant dense<0.000000e+00> : vector<267x128xf32>
    %156 = tpu.matmul %153, %155, %cst_130 {dimension_numbers = #tpu.dot_dimension_numbers<[1], [0], [0], [1], [0, 0, 1, 1], [], []>} : vector<267x128xbf16>, vector<128x128xbf16>, vector<267x128xf32> -> vector<267x128xf32>
    %157 = arith.addf %151, %156 : vector<267x128xf32>
    %c14_131 = arith.constant 14 : index
    %c0_132 = arith.constant 0 : index
    %158 = vector.load %arg10[%c14_131, %c0_132] : memref<281x128xf32, #tpu.memory_space<vmem>>, vector<267x128xf32>
    %159 = arith.truncf %158 : vector<267x128xf32> to vector<267x128xbf16>
    %c8_133 = arith.constant 8 : index
    %c0_134 = arith.constant 0 : index
    %c0_135 = arith.constant 0 : index
    %160 = vector.load %arg6[%c8_133, %c0_134, %c0_135] : memref<9x128x128xbf16, #tpu.memory_space<vmem>>, vector<1x128x128xbf16>
    %161 = vector.shape_cast %160 : vector<1x128x128xbf16> to vector<128x128xbf16>
    %cst_136 = arith.constant dense<0.000000e+00> : vector<267x128xf32>
    %162 = tpu.matmul %159, %161, %cst_136 {dimension_numbers = #tpu.dot_dimension_numbers<[1], [0], [0], [1], [0, 0, 1, 1], [], []>} : vector<267x128xbf16>, vector<128x128xbf16>, vector<267x128xf32> -> vector<267x128xf32>
    %163 = arith.addf %157, %162 : vector<267x128xf32>
    %c0_137 = arith.constant 0 : index
    %c0_138 = arith.constant 0 : index
    %164 = vector.load %arg7[%c0_137, %c0_138] : memref<1x128xf32, #tpu.memory_space<vmem>>, vector<1x128xf32>
    %165 = vector.broadcast %164 : vector<1x128xf32> to vector<267x128xf32>
    %166 = arith.addf %163, %165 : vector<267x128xf32>
    %cst_139 = arith.constant 0.000000e+00 : f32
    %167 = vector.broadcast %cst_139 : f32 to vector<267x128xf32>
    %168 = arith.maximumf %166, %167 : vector<267x128xf32>
    %169 = vector.extract_strided_slice %168 {offsets = [0, 0], sizes = [3, 128], strides = [1, 1]} : vector<267x128xf32> to vector<3x128xf32>
    %c0_140 = arith.constant 0 : index
    %c0_141 = arith.constant 0 : index
    %170 = vector.load %arg11[%c0_140, %c0_141] : memref<72x128xf32, #tpu.memory_space<vmem>>, vector<3x128xf32>
    tpu.vector_store %arg11[%c0_140, %c0_141], %169 {strides = array<i32>} : memref<72x128xf32, #tpu.memory_space<vmem>>, vector<3x128xf32>,
    %171 = vector.extract_strided_slice %168 {offsets = [6, 0], sizes = [3, 128], strides = [1, 1]} : vector<267x128xf32> to vector<3x128xf32>
    %c3_142 = arith.constant 3 : index
    %c0_143 = arith.constant 0 : index
    %172 = vector.load %arg11[%c3_142, %c0_143] : memref<72x128xf32, #tpu.memory_space<vmem>>, vector<3x128xf32>
    tpu.vector_store %arg11[%c3_142, %c0_143], %171 {strides = array<i32>} : memref<72x128xf32, #tpu.memory_space<vmem>>, vector<3x128xf32>,
    %173 = vector.extract_strided_slice %168 {offsets = [12, 0], sizes = [3, 128], strides = [1, 1]} : vector<267x128xf32> to vector<3x128xf32>
    %c6_144 = arith.constant 6 : index
    %c0_145 = arith.constant 0 : index
    %174 = vector.load %arg11[%c6_144, %c0_145] : memref<72x128xf32, #tpu.memory_space<vmem>>, vector<3x128xf32>
    tpu.vector_store %arg11[%c6_144, %c0_145], %173 {strides = array<i32>} : memref<72x128xf32, #tpu.memory_space<vmem>>, vector<3x128xf32>,
    %175 = vector.extract_strided_slice %168 {offsets = [36, 0], sizes = [3, 128], strides = [1, 1]} : vector<267x128xf32> to vector<3x128xf32>
    %c9_146 = arith.constant 9 : index
    %c0_147 = arith.constant 0 : index
    %176 = vector.load %arg11[%c9_146, %c0_147] : memref<72x128xf32, #tpu.memory_space<vmem>>, vector<3x128xf32>
    tpu.vector_store %arg11[%c9_146, %c0_147], %175 {strides = array<i32>} : memref<72x128xf32, #tpu.memory_space<vmem>>, vector<3x128xf32>,
    %177 = vector.extract_strided_slice %168 {offsets = [42, 0], sizes = [3, 128], strides = [1, 1]} : vector<267x128xf32> to vector<3x128xf32>
    %c12_148 = arith.constant 12 : index
    %c0_149 = arith.constant 0 : index
    %178 = vector.load %arg11[%c12_148, %c0_149] : memref<72x128xf32, #tpu.memory_space<vmem>>, vector<3x128xf32>
    tpu.vector_store %arg11[%c12_148, %c0_149], %177 {strides = array<i32>} : memref<72x128xf32, #tpu.memory_space<vmem>>, vector<3x128xf32>,
    %179 = vector.extract_strided_slice %168 {offsets = [48, 0], sizes = [3, 128], strides = [1, 1]} : vector<267x128xf32> to vector<3x128xf32>
    %c15_150 = arith.constant 15 : index
    %c0_151 = arith.constant 0 : index
    %180 = vector.load %arg11[%c15_150, %c0_151] : memref<72x128xf32, #tpu.memory_space<vmem>>, vector<3x128xf32>
    tpu.vector_store %arg11[%c15_150, %c0_151], %179 {strides = array<i32>} : memref<72x128xf32, #tpu.memory_space<vmem>>, vector<3x128xf32>,
    %181 = vector.extract_strided_slice %168 {offsets = [72, 0], sizes = [3, 128], strides = [1, 1]} : vector<267x128xf32> to vector<3x128xf32>
    %c18 = arith.constant 18 : index
    %c0_152 = arith.constant 0 : index
    %182 = vector.load %arg11[%c18, %c0_152] : memref<72x128xf32, #tpu.memory_space<vmem>>, vector<3x128xf32>
    tpu.vector_store %arg11[%c18, %c0_152], %181 {strides = array<i32>} : memref<72x128xf32, #tpu.memory_space<vmem>>, vector<3x128xf32>,
    %183 = vector.extract_strided_slice %168 {offsets = [78, 0], sizes = [3, 128], strides = [1, 1]} : vector<267x128xf32> to vector<3x128xf32>
    %c21 = arith.constant 21 : index
    %c0_153 = arith.constant 0 : index
    %184 = vector.load %arg11[%c21, %c0_153] : memref<72x128xf32, #tpu.memory_space<vmem>>, vector<3x128xf32>
    tpu.vector_store %arg11[%c21, %c0_153], %183 {strides = array<i32>} : memref<72x128xf32, #tpu.memory_space<vmem>>, vector<3x128xf32>,
    %185 = vector.extract_strided_slice %168 {offsets = [84, 0], sizes = [3, 128], strides = [1, 1]} : vector<267x128xf32> to vector<3x128xf32>
    %c24 = arith.constant 24 : index
    %c0_154 = arith.constant 0 : index
    %186 = vector.load %arg11[%c24, %c0_154] : memref<72x128xf32, #tpu.memory_space<vmem>>, vector<3x128xf32>
    tpu.vector_store %arg11[%c24, %c0_154], %185 {strides = array<i32>} : memref<72x128xf32, #tpu.memory_space<vmem>>, vector<3x128xf32>,
    %187 = vector.extract_strided_slice %168 {offsets = [108, 0], sizes = [3, 128], strides = [1, 1]} : vector<267x128xf32> to vector<3x128xf32>
    %c27 = arith.constant 27 : index
    %c0_155 = arith.constant 0 : index
    %188 = vector.load %arg11[%c27, %c0_155] : memref<72x128xf32, #tpu.memory_space<vmem>>, vector<3x128xf32>
    tpu.vector_store %arg11[%c27, %c0_155], %187 {strides = array<i32>} : memref<72x128xf32, #tpu.memory_space<vmem>>, vector<3x128xf32>,
    %189 = vector.extract_strided_slice %168 {offsets = [114, 0], sizes = [3, 128], strides = [1, 1]} : vector<267x128xf32> to vector<3x128xf32>
    %c30 = arith.constant 30 : index
    %c0_156 = arith.constant 0 : index
    %190 = vector.load %arg11[%c30, %c0_156] : memref<72x128xf32, #tpu.memory_space<vmem>>, vector<3x128xf32>
    tpu.vector_store %arg11[%c30, %c0_156], %189 {strides = array<i32>} : memref<72x128xf32, #tpu.memory_space<vmem>>, vector<3x128xf32>,
    %191 = vector.extract_strided_slice %168 {offsets = [120, 0], sizes = [3, 128], strides = [1, 1]} : vector<267x128xf32> to vector<3x128xf32>
    %c33 = arith.constant 33 : index
    %c0_157 = arith.constant 0 : index
    %192 = vector.load %arg11[%c33, %c0_157] : memref<72x128xf32, #tpu.memory_space<vmem>>, vector<3x128xf32>
    tpu.vector_store %arg11[%c33, %c0_157], %191 {strides = array<i32>} : memref<72x128xf32, #tpu.memory_space<vmem>>, vector<3x128xf32>,
    %193 = vector.extract_strided_slice %168 {offsets = [144, 0], sizes = [3, 128], strides = [1, 1]} : vector<267x128xf32> to vector<3x128xf32>
    %c36 = arith.constant 36 : index
    %c0_158 = arith.constant 0 : index
    %194 = vector.load %arg11[%c36, %c0_158] : memref<72x128xf32, #tpu.memory_space<vmem>>, vector<3x128xf32>
    tpu.vector_store %arg11[%c36, %c0_158], %193 {strides = array<i32>} : memref<72x128xf32, #tpu.memory_space<vmem>>, vector<3x128xf32>,
    %195 = vector.extract_strided_slice %168 {offsets = [150, 0], sizes = [3, 128], strides = [1, 1]} : vector<267x128xf32> to vector<3x128xf32>
    %c39 = arith.constant 39 : index
    %c0_159 = arith.constant 0 : index
    %196 = vector.load %arg11[%c39, %c0_159] : memref<72x128xf32, #tpu.memory_space<vmem>>, vector<3x128xf32>
    tpu.vector_store %arg11[%c39, %c0_159], %195 {strides = array<i32>} : memref<72x128xf32, #tpu.memory_space<vmem>>, vector<3x128xf32>,
    %197 = vector.extract_strided_slice %168 {offsets = [156, 0], sizes = [3, 128], strides = [1, 1]} : vector<267x128xf32> to vector<3x128xf32>
    %c42 = arith.constant 42 : index
    %c0_160 = arith.constant 0 : index
    %198 = vector.load %arg11[%c42, %c0_160] : memref<72x128xf32, #tpu.memory_space<vmem>>, vector<3x128xf32>
    tpu.vector_store %arg11[%c42, %c0_160], %197 {strides = array<i32>} : memref<72x128xf32, #tpu.memory_space<vmem>>, vector<3x128xf32>,
    %199 = vector.extract_strided_slice %168 {offsets = [180, 0], sizes = [3, 128], strides = [1, 1]} : vector<267x128xf32> to vector<3x128xf32>
    %c45 = arith.constant 45 : index
    %c0_161 = arith.constant 0 : index
    %200 = vector.load %arg11[%c45, %c0_161] : memref<72x128xf32, #tpu.memory_space<vmem>>, vector<3x128xf32>
    tpu.vector_store %arg11[%c45, %c0_161], %199 {strides = array<i32>} : memref<72x128xf32, #tpu.memory_space<vmem>>, vector<3x128xf32>,
    %201 = vector.extract_strided_slice %168 {offsets = [186, 0], sizes = [3, 128], strides = [1, 1]} : vector<267x128xf32> to vector<3x128xf32>
    %c48 = arith.constant 48 : index
    %c0_162 = arith.constant 0 : index
    %202 = vector.load %arg11[%c48, %c0_162] : memref<72x128xf32, #tpu.memory_space<vmem>>, vector<3x128xf32>
    tpu.vector_store %arg11[%c48, %c0_162], %201 {strides = array<i32>} : memref<72x128xf32, #tpu.memory_space<vmem>>, vector<3x128xf32>,
    %203 = vector.extract_strided_slice %168 {offsets = [192, 0], sizes = [3, 128], strides = [1, 1]} : vector<267x128xf32> to vector<3x128xf32>
    %c51 = arith.constant 51 : index
    %c0_163 = arith.constant 0 : index
    %204 = vector.load %arg11[%c51, %c0_163] : memref<72x128xf32, #tpu.memory_space<vmem>>, vector<3x128xf32>
    tpu.vector_store %arg11[%c51, %c0_163], %203 {strides = array<i32>} : memref<72x128xf32, #tpu.memory_space<vmem>>, vector<3x128xf32>,
    %205 = vector.extract_strided_slice %168 {offsets = [216, 0], sizes = [3, 128], strides = [1, 1]} : vector<267x128xf32> to vector<3x128xf32>
    %c54 = arith.constant 54 : index
    %c0_164 = arith.constant 0 : index
    %206 = vector.load %arg11[%c54, %c0_164] : memref<72x128xf32, #tpu.memory_space<vmem>>, vector<3x128xf32>
    tpu.vector_store %arg11[%c54, %c0_164], %205 {strides = array<i32>} : memref<72x128xf32, #tpu.memory_space<vmem>>, vector<3x128xf32>,
    %207 = vector.extract_strided_slice %168 {offsets = [222, 0], sizes = [3, 128], strides = [1, 1]} : vector<267x128xf32> to vector<3x128xf32>
    %c57 = arith.constant 57 : index
    %c0_165 = arith.constant 0 : index
    %208 = vector.load %arg11[%c57, %c0_165] : memref<72x128xf32, #tpu.memory_space<vmem>>, vector<3x128xf32>
    tpu.vector_store %arg11[%c57, %c0_165], %207 {strides = array<i32>} : memref<72x128xf32, #tpu.memory_space<vmem>>, vector<3x128xf32>,
    %209 = vector.extract_strided_slice %168 {offsets = [228, 0], sizes = [3, 128], strides = [1, 1]} : vector<267x128xf32> to vector<3x128xf32>
    %c60 = arith.constant 60 : index
    %c0_166 = arith.constant 0 : index
    %210 = vector.load %arg11[%c60, %c0_166] : memref<72x128xf32, #tpu.memory_space<vmem>>, vector<3x128xf32>
    tpu.vector_store %arg11[%c60, %c0_166], %209 {strides = array<i32>} : memref<72x128xf32, #tpu.memory_space<vmem>>, vector<3x128xf32>,
    %211 = vector.extract_strided_slice %168 {offsets = [252, 0], sizes = [3, 128], strides = [1, 1]} : vector<267x128xf32> to vector<3x128xf32>
    %c63 = arith.constant 63 : index
    %c0_167 = arith.constant 0 : index
    %212 = vector.load %arg11[%c63, %c0_167] : memref<72x128xf32, #tpu.memory_space<vmem>>, vector<3x128xf32>
    tpu.vector_store %arg11[%c63, %c0_167], %211 {strides = array<i32>} : memref<72x128xf32, #tpu.memory_space<vmem>>, vector<3x128xf32>,
    %213 = vector.extract_strided_slice %168 {offsets = [258, 0], sizes = [3, 128], strides = [1, 1]} : vector<267x128xf32> to vector<3x128xf32>
    %c66 = arith.constant 66 : index
    %c0_168 = arith.constant 0 : index
    %214 = vector.load %arg11[%c66, %c0_168] : memref<72x128xf32, #tpu.memory_space<vmem>>, vector<3x128xf32>
    tpu.vector_store %arg11[%c66, %c0_168], %213 {strides = array<i32>} : memref<72x128xf32, #tpu.memory_space<vmem>>, vector<3x128xf32>,
    %215 = vector.extract_strided_slice %168 {offsets = [264, 0], sizes = [3, 128], strides = [1, 1]} : vector<267x128xf32> to vector<3x128xf32>
    %c69 = arith.constant 69 : index
    %c0_169 = arith.constant 0 : index
    %216 = vector.load %arg11[%c69, %c0_169] : memref<72x128xf32, #tpu.memory_space<vmem>>, vector<3x128xf32>
    tpu.vector_store %arg11[%c69, %c0_169], %215 {strides = array<i32>} : memref<72x128xf32, #tpu.memory_space<vmem>>, vector<3x128xf32>,
    %c0_170 = arith.constant 0 : index
    %c0_171 = arith.constant 0 : index
    %217 = vector.load %arg11[%c0_170, %c0_171] : memref<72x128xf32, #tpu.memory_space<vmem>>, vector<72x128xf32>
    %c0_172 = arith.constant 0 : index
    %c0_173 = arith.constant 0 : index
    %c0_174 = arith.constant 0 : index
    %218 = vector.load %arg8[%c0_172, %c0_173, %c0_174] : memref<1x72x128xf32, #tpu.memory_space<vmem>>, vector<1x72x128xf32>
    %219 = vector.shape_cast %218 : vector<1x72x128xf32> to vector<72x128xf32>
    %220 = vector.shape_cast %217 : vector<72x128xf32> to vector<1x72x128xf32>
    tpu.vector_store %arg8[%c0_172, %c0_173, %c0_174], %220 {strides = array<i32>} : memref<1x72x128xf32, #tpu.memory_space<vmem>>, vector<1x72x128xf32>,
    return
  }
  func.func @transform_0(%arg0: i32) -> (i32, i32, i32) {
    %c0_i32 = arith.constant 0 : i32
    %c0_i32_0 = arith.constant 0 : i32
    %c0_i32_1 = arith.constant 0 : i32
    return %arg0, %c0_i32, %c0_i32_0 : i32, i32, i32
  }
  func.func @transform_1(%arg0: i32) -> (i32, i32) {
    %c0_i32 = arith.constant 0 : i32
    %c0_i32_0 = arith.constant 0 : i32
    %c0_i32_1 = arith.constant 0 : i32
    return %c0_i32, %c0_i32_0 : i32, i32
  }
  func.func @transform_2(%arg0: i32) -> (i32, i32) {
    %c0_i32 = arith.constant 0 : i32
    %c0_i32_0 = arith.constant 0 : i32
    %c0_i32_1 = arith.constant 0 : i32
    return %c0_i32, %c0_i32_0 : i32, i32
  }
  func.func @transform_3(%arg0: i32) -> (i32, i32, i32) {
    %c0_i32 = arith.constant 0 : i32
    %c0_i32_0 = arith.constant 0 : i32
    %c0_i32_1 = arith.constant 0 : i32
    %c0_i32_2 = arith.constant 0 : i32
    return %c0_i32, %c0_i32_0, %c0_i32_1 : i32, i32, i32
  }
  func.func @transform_4(%arg0: i32) -> (i32, i32) {
    %c0_i32 = arith.constant 0 : i32
    %c0_i32_0 = arith.constant 0 : i32
    %c0_i32_1 = arith.constant 0 : i32
    return %c0_i32, %c0_i32_0 : i32, i32
  }
  func.func @transform_5(%arg0: i32) -> (i32, i32, i32) {
    %c0_i32 = arith.constant 0 : i32
    %c0_i32_0 = arith.constant 0 : i32
    %c0_i32_1 = arith.constant 0 : i32
    %c0_i32_2 = arith.constant 0 : i32
    return %c0_i32, %c0_i32_0, %c0_i32_1 : i32, i32, i32
  }
  func.func @transform_6(%arg0: i32) -> (i32, i32) {
    %c0_i32 = arith.constant 0 : i32
    %c0_i32_0 = arith.constant 0 : i32
    %c0_i32_1 = arith.constant 0 : i32
    return %c0_i32, %c0_i32_0 : i32, i32
  }
  func.func @transform_7(%arg0: i32) -> (i32, i32, i32) {
    %c0_i32 = arith.constant 0 : i32
    %c0_i32_0 = arith.constant 0 : i32
    %c0_i32_1 = arith.constant 0 : i32
    return %arg0, %c0_i32, %c0_i32_0 : i32, i32, i32
  }
}

</mosaic_0001>

<llo_original>
// kernel: cnn_shared_net_forward.1
$region0: #{cnn_shared_net_forward.1}
  #allocation0 [shape = 'u32[]', space=smem, size = 0x4, offset = 0x4, fixed_abs, tag = 'smem constant byte address 0x4 - core index']
  #allocation1 [shape = 'u32[144,128]{1,0:T(1,128)}', space=vmem, size = 0x12000, scoped, tag = 'internal scratch']
  #allocation2 [shape = 'f32[1152,128]{1,0:T(8,128)}', space=vmem, size = 0x90000, scoped, tag = 'scratch operand']
  #allocation3 [shape = 'f32[281,128]{1,0:T(8,128)}', space=vmem, size = 0x24000, scoped, tag = 'scratch operand']
  #allocation4 [shape = 'f32[72,128]{1,0:T(8,128)}', space=vmem, size = 0x9000, scoped, tag = 'scratch operand']
  %s0 = inlined_call_operand.vmem [shape: bf16[1,1152,64], index: 0, kind: input, shape index: {}]
  %s1 = inlined_call_operand.vmem [shape: bf16[64,128], index: 1, kind: input, shape index: {}]
  %s2 = inlined_call_operand.vmem [shape: f32[1,128], index: 2, kind: input, shape index: {}]
  %s3 = inlined_call_operand.vmem [shape: bf16[16,128,128], index: 3, kind: input, shape index: {}]
  %s4 = inlined_call_operand.vmem [shape: f32[1,128], index: 4, kind: input, shape index: {}]
  %s5 = inlined_call_operand.vmem [shape: bf16[9,128,128], index: 5, kind: input, shape index: {}]
  %s6 = inlined_call_operand.vmem [shape: f32[1,128], index: 6, kind: input, shape index: {}]
  %s7 = inlined_call_operand.vmem [shape: f32[1,72,128], index: 7, kind: output, shape index: {}]
  %s8 = sld [smem:[#allocation0]]
  $region38: #{cnn_shared_net_forward.1} parent=0
    _
  %s10 = ssub.s32 1, %s8
  %s11 = scalar_select 0, %s10, %s8
  // Predicated region
  $region2: #{cnn_shared_net_forward.1} parent=0 // pred_check
    _
  $region3: #{cnn_shared_net_forward.1} parent=0 // pred_check_branch
    %13 = sbr.rel (0) target = $region5
  $region4: #{cnn_shared_net_forward.1} parent=0 // pred_region
    _
  $region5: #{cnn_shared_net_forward.1} parent=0 // pred_fallthru
    _
  // Predicated region
  $region6: #{cnn_shared_net_forward.1} parent=0 // pred_check
    _
  $region7: #{cnn_shared_net_forward.1} parent=0 // pred_check_branch
    %15 = sbr.rel (0) target = $region9
  $region8: #{cnn_shared_net_forward.1} parent=0 // pred_region
    _
  $region9: #{cnn_shared_net_forward.1} parent=0 // pred_fallthru
    _
  // Predicated region
  $region10: #{cnn_shared_net_forward.1} parent=0 // pred_check
    _
  $region11: #{cnn_shared_net_forward.1} parent=0 // pred_check_branch
    %17 = sbr.rel (0) target = $region13
  $region12: #{cnn_shared_net_forward.1} parent=0 // pred_region
    _
  $region13: #{cnn_shared_net_forward.1} parent=0 // pred_fallthru
    _
  // Predicated region
  $region14: #{cnn_shared_net_forward.1} parent=0 // pred_check
    _
  $region15: #{cnn_shared_net_forward.1} parent=0 // pred_check_branch
    %19 = sbr.rel (0) target = $region17
  $region16: #{cnn_shared_net_forward.1} parent=0 // pred_region
    _
  $region17: #{cnn_shared_net_forward.1} parent=0 // pred_fallthru
    _
  // Predicated region
  $region18: #{cnn_shared_net_forward.1} parent=0 // pred_check
    _
  $region19: #{cnn_shared_net_forward.1} parent=0 // pred_check_branch
    %21 = sbr.rel (0) target = $region21
  $region20: #{cnn_shared_net_forward.1} parent=0 // pred_region
    _
  $region21: #{cnn_shared_net_forward.1} parent=0 // pred_fallthru
    _
  // Predicated region
  $region22: #{cnn_shared_net_forward.1} parent=0 // pred_check
    _
  $region23: #{cnn_shared_net_forward.1} parent=0 // pred_check_branch
    %23 = sbr.rel (0) target = $region25
  $region24: #{cnn_shared_net_forward.1} parent=0 // pred_region
    _
  $region25: #{cnn_shared_net_forward.1} parent=0 // pred_fallthru
    _
  // Predicated region
  $region26: #{cnn_shared_net_forward.1} parent=0 // pred_check
    _
  $region27: #{cnn_shared_net_forward.1} parent=0 // pred_check_branch
    %25 = sbr.rel (0) target = $region29
  $region28: #{cnn_shared_net_forward.1} parent=0 // pred_region
    _
  $region29: #{cnn_shared_net_forward.1} parent=0 // pred_fallthru
    _
  %v27 = vld [vmem:[%s0] sm:$0xf]
  %v28 = vld [vmem:[%s0 + $0x4] sm:$0xf]
  %v29 = vld [vmem:[%s0 + $0x8] sm:$0xf]
  %v30 = vld [vmem:[%s0 + $0xc] sm:$0xf]
  %v31 = vld [vmem:[%s0 + $0x10] sm:$0xf]
  %v32 = vld [vmem:[%s0 + $0x14] sm:$0xf]
  %v33 = vld [vmem:[%s0 + $0x18] sm:$0xf]
  %v34 = vld [vmem:[%s0 + $0x1c] sm:$0xf]
  %v35 = vld [vmem:[%s0 + $0x20] sm:$0xf]
  %v36 = vld [vmem:[%s0 + $0x24] sm:$0xf]
  %v37 = vld [vmem:[%s0 + $0x28] sm:$0xf]
  %v38 = vld [vmem:[%s0 + $0x2c] sm:$0xf]
  %v39 = vld [vmem:[%s0 + $0x30] sm:$0xf]
  %v40 = vld [vmem:[%s0 + $0x34] sm:$0xf]
  %v41 = vld [vmem:[%s0 + $0x38] sm:$0xf]
  %v42 = vld [vmem:[%s0 + $0x3c] sm:$0xf]
  %v43 = vld [vmem:[%s0 + $0x40] sm:$0xf]
  %v44 = vld [vmem:[%s0 + $0x44] sm:$0xf]
  %v45 = vld [vmem:[%s0 + $0x48] sm:$0xf]
  %v46 = vld [vmem:[%s0 + $0x4c] sm:$0xf]
  %v47 = vld [vmem:[%s0 + $0x50] sm:$0xf]
  %v48 = vld [vmem:[%s0 + $0x54] sm:$0xf]
  %v49 = vld [vmem:[%s0 + $0x58] sm:$0xf]
  %v50 = vld [vmem:[%s0 + $0x5c] sm:$0xf]
  %v51 = vld [vmem:[%s0 + $0x60] sm:$0xf]
  %v52 = vld [vmem:[%s0 + $0x64] sm:$0xf]
  %v53 = vld [vmem:[%s0 + $0x68] sm:$0xf]
  %v54 = vld [vmem:[%s0 + $0x6c] sm:$0xf]
  %v55 = vld [vmem:[%s0 + $0x70] sm:$0xf]
  %v56 = vld [vmem:[%s0 + $0x74] sm:$0xf]
  %v57 = vld [vmem:[%s0 + $0x78] sm:$0xf]
  %v58 = vld [vmem:[%s0 + $0x7c] sm:$0xf]
  %v59 = vld [vmem:[%s0 + $0x80] sm:$0xf]
  %v60 = vld [vmem:[%s0 + $0x84] sm:$0xf]
  %v61 = vld [vmem:[%s0 + $0x88] sm:$0xf]
  %v62 = vld [vmem:[%s0 + $0x8c] sm:$0xf]
  %v63 = vld [vmem:[%s0 + $0x90] sm:$0xf]
  %v64 = vld [vmem:[%s0 + $0x94] sm:$0xf]
  %v65 = vld [vmem:[%s0 + $0x98] sm:$0xf]
  %v66 = vld [vmem:[%s0 + $0x9c] sm:$0xf]
  %v67 = vld [vmem:[%s0 + $0xa0] sm:$0xf]
  %v68 = vld [vmem:[%s0 + $0xa4] sm:$0xf]
  %v69 = vld [vmem:[%s0 + $0xa8] sm:$0xf]
  %v70 = vld [vmem:[%s0 + $0xac] sm:$0xf]
  %v71 = vld [vmem:[%s0 + $0xb0] sm:$0xf]
  %v72 = vld [vmem:[%s0 + $0xb4] sm:$0xf]
  %v73 = vld [vmem:[%s0 + $0xb8] sm:$0xf]
  %v74 = vld [vmem:[%s0 + $0xbc] sm:$0xf]
  %v75 = vld [vmem:[%s0 + $0xc0] sm:$0xf]
  %v76 = vld [vmem:[%s0 + $0xc4] sm:$0xf]
  %v77 = vld [vmem:[%s0 + $0xc8] sm:$0xf]
  %v78 = vld [vmem:[%s0 + $0xcc] sm:$0xf]
  %v79 = vld [vmem:[%s0 + $0xd0] sm:$0xf]
  %v80 = vld [vmem:[%s0 + $0xd4] sm:$0xf]
  %v81 = vld [vmem:[%s0 + $0xd8] sm:$0xf]
  %v82 = vld [vmem:[%s0 + $0xdc] sm:$0xf]
  %v83 = vld [vmem:[%s0 + $0xe0] sm:$0xf]
  %v84 = vld [vmem:[%s0 + $0xe4] sm:$0xf]
  %v85 = vld [vmem:[%s0 + $0xe8] sm:$0xf]
  %v86 = vld [vmem:[%s0 + $0xec] sm:$0xf]
  %v87 = vld [vmem:[%s0 + $0xf0] sm:$0xf]
  %v88 = vld [vmem:[%s0 + $0xf4] sm:$0xf]
  %v89 = vld [vmem:[%s0 + $0xf8] sm:$0xf]
  %v90 = vld [vmem:[%s0 + $0xfc] sm:$0xf]
  %v91 = vld [vmem:[%s0 + $0x100] sm:$0xf]
  %v92 = vld [vmem:[%s0 + $0x104] sm:$0xf]
  %v93 = vld [vmem:[%s0 + $0x108] sm:$0xf]
  %v94 = vld [vmem:[%s0 + $0x10c] sm:$0xf]
  %v95 = vld [vmem:[%s0 + $0x110] sm:$0xf]
  %v96 = vld [vmem:[%s0 + $0x114] sm:$0xf]
  %v97 = vld [vmem:[%s0 + $0x118] sm:$0xf]
  %v98 = vld [vmem:[%s0 + $0x11c] sm:$0xf]
  %v99 = vld [vmem:[%s0 + $0x120] sm:$0xf]
  %v100 = vld [vmem:[%s0 + $0x124] sm:$0xf]
  %v101 = vld [vmem:[%s0 + $0x128] sm:$0xf]
  %v102 = vld [vmem:[%s0 + $0x12c] sm:$0xf]
  %v103 = vld [vmem:[%s0 + $0x130] sm:$0xf]
  %v104 = vld [vmem:[%s0 + $0x134] sm:$0xf]
  %v105 = vld [vmem:[%s0 + $0x138] sm:$0xf]
  %v106 = vld [vmem:[%s0 + $0x13c] sm:$0xf]
  %v107 = vld [vmem:[%s0 + $0x140] sm:$0xf]
  %v108 = vld [vmem:[%s0 + $0x144] sm:$0xf]
  %v109 = vld [vmem:[%s0 + $0x148] sm:$0xf]
  %v110 = vld [vmem:[%s0 + $0x14c] sm:$0xf]
  %v111 = vld [vmem:[%s0 + $0x150] sm:$0xf]
  %v112 = vld [vmem:[%s0 + $0x154] sm:$0xf]
  %v113 = vld [vmem:[%s0 + $0x158] sm:$0xf]
  %v114 = vld [vmem:[%s0 + $0x15c] sm:$0xf]
  %v115 = vld [vmem:[%s0 + $0x160] sm:$0xf]
  %v116 = vld [vmem:[%s0 + $0x164] sm:$0xf]
  %v117 = vld [vmem:[%s0 + $0x168] sm:$0xf]
  %v118 = vld [vmem:[%s0 + $0x16c] sm:$0xf]
  %v119 = vld [vmem:[%s0 + $0x170] sm:$0xf]
  %v120 = vld [vmem:[%s0 + $0x174] sm:$0xf]
  %v121 = vld [vmem:[%s0 + $0x178] sm:$0xf]
  %v122 = vld [vmem:[%s0 + $0x17c] sm:$0xf]
  %v123 = vld [vmem:[%s0 + $0x180] sm:$0xf]
  %v124 = vld [vmem:[%s0 + $0x184] sm:$0xf]
  %v125 = vld [vmem:[%s0 + $0x188] sm:$0xf]
  %v126 = vld [vmem:[%s0 + $0x18c] sm:$0xf]
  %v127 = vld [vmem:[%s0 + $0x190] sm:$0xf]
  %v128 = vld [vmem:[%s0 + $0x194] sm:$0xf]
  %v129 = vld [vmem:[%s0 + $0x198] sm:$0xf]
  %v130 = vld [vmem:[%s0 + $0x19c] sm:$0xf]
  %v131 = vld [vmem:[%s0 + $0x1a0] sm:$0xf]
  %v132 = vld [vmem:[%s0 + $0x1a4] sm:$0xf]
  %v133 = vld [vmem:[%s0 + $0x1a8] sm:$0xf]
  %v134 = vld [vmem:[%s0 + $0x1ac] sm:$0xf]
  %v135 = vld [vmem:[%s0 + $0x1b0] sm:$0xf]
  %v136 = vld [vmem:[%s0 + $0x1b4] sm:$0xf]
  %v137 = vld [vmem:[%s0 + $0x1b8] sm:$0xf]
  %v138 = vld [vmem:[%s0 + $0x1bc] sm:$0xf]
  %v139 = vld [vmem:[%s0 + $0x1c0] sm:$0xf]
  %v140 = vld [vmem:[%s0 + $0x1c4] sm:$0xf]
  %v141 = vld [vmem:[%s0 + $0x1c8] sm:$0xf]
  %v142 = vld [vmem:[%s0 + $0x1cc] sm:$0xf]
  %v143 = vld [vmem:[%s0 + $0x1d0] sm:$0xf]
  %v144 = vld [vmem:[%s0 + $0x1d4] sm:$0xf]
  %v145 = vld [vmem:[%s0 + $0x1d8] sm:$0xf]
  %v146 = vld [vmem:[%s0 + $0x1dc] sm:$0xf]
  %v147 = vld [vmem:[%s0 + $0x1e0] sm:$0xf]
  %v148 = vld [vmem:[%s0 + $0x1e4] sm:$0xf]
  %v149 = vld [vmem:[%s0 + $0x1e8] sm:$0xf]
  %v150 = vld [vmem:[%s0 + $0x1ec] sm:$0xf]
  %v151 = vld [vmem:[%s0 + $0x1f0] sm:$0xf]
  %v152 = vld [vmem:[%s0 + $0x1f4] sm:$0xf]
  %v153 = vld [vmem:[%s0 + $0x1f8] sm:$0xf]
  %v154 = vld [vmem:[%s0 + $0x1fc] sm:$0xf]
  %v155 = vld [vmem:[%s0 + $0x200] sm:$0xf]
  %v156 = vld [vmem:[%s0 + $0x204] sm:$0xf]
  %v157 = vld [vmem:[%s0 + $0x208] sm:$0xf]
  %v158 = vld [vmem:[%s0 + $0x20c] sm:$0xf]
  %v159 = vld [vmem:[%s0 + $0x210] sm:$0xf]
  %v160 = vld [vmem:[%s0 + $0x214] sm:$0xf]
  %v161 = vld [vmem:[%s0 + $0x218] sm:$0xf]
  %v162 = vld [vmem:[%s0 + $0x21c] sm:$0xf]
  %v163 = vld [vmem:[%s0 + $0x220] sm:$0xf]
  %v164 = vld [vmem:[%s0 + $0x224] sm:$0xf]
  %v165 = vld [vmem:[%s0 + $0x228] sm:$0xf]
  %v166 = vld [vmem:[%s0 + $0x22c] sm:$0xf]
  %v167 = vld [vmem:[%s0 + $0x230] sm:$0xf]
  %v168 = vld [vmem:[%s0 + $0x234] sm:$0xf]
  %v169 = vld [vmem:[%s0 + $0x238] sm:$0xf]
  %v170 = vld [vmem:[%s0 + $0x23c] sm:$0xf]
  %v171 = vld [vmem:[%s1] sm:$0xf]
  %v172 = vld [vmem:[%s1 + $0x4] sm:$0xf]
  %v173 = vld [vmem:[%s1 + $0x8] sm:$0xf]
  %v174 = vld [vmem:[%s1 + $0xc] sm:$0xf]
  %v175 = vld [vmem:[%s1 + $0x10] sm:$0xf]
  %v176 = vld [vmem:[%s1 + $0x14] sm:$0xf]
  %v177 = vld [vmem:[%s1 + $0x18] sm:$0xf]
  %v178 = vld [vmem:[%s1 + $0x1c] sm:$0xf]
  %v179 = vld [vmem:[%s2] sm:$0x1]
  %v181 = vlaneseq
  %v182 = vshrl.u32 %v181, 7
  %v183 = vsub.s32 0, %v182
  %v184 = vrot.slane %v179, %v183
  %v330 = vunpack.c.l.b16 %v27
  %v331 = vunpack.c.l.b16 %v28
  %v332 = vunpack.c.l.b16 %v29
  %v333 = vunpack.c.l.b16 %v30
  %v334 = vunpack.c.l.b16 %v31
  %v335 = vunpack.c.l.b16 %v32
  %v336 = vunpack.c.l.b16 %v33
  %v337 = vunpack.c.l.b16 %v34
  %v338 = vunpack.c.l.b16 %v35
  %v339 = vunpack.c.l.b16 %v36
  %v340 = vunpack.c.l.b16 %v37
  %v341 = vunpack.c.l.b16 %v38
  %v342 = vunpack.c.l.b16 %v39
  %v343 = vunpack.c.l.b16 %v40
  %v344 = vunpack.c.l.b16 %v41
  %v345 = vunpack.c.l.b16 %v42
  %v346 = vunpack.c.l.b16 %v43
  %v347 = vunpack.c.l.b16 %v44
  %v348 = vunpack.c.l.b16 %v45
  %v349 = vunpack.c.l.b16 %v46
  %v350 = vunpack.c.l.b16 %v47
  %v351 = vunpack.c.l.b16 %v48
  %v352 = vunpack.c.l.b16 %v49
  %v353 = vunpack.c.l.b16 %v50
  %v354 = vunpack.c.l.b16 %v51
  %v355 = vunpack.c.l.b16 %v52
  %v356 = vunpack.c.l.b16 %v53
  %v357 = vunpack.c.l.b16 %v54
  %v358 = vunpack.c.l.b16 %v55
  %v359 = vunpack.c.l.b16 %v56
  %v360 = vunpack.c.l.b16 %v57
  %v361 = vunpack.c.l.b16 %v58
  %v362 = vunpack.c.l.b16 %v59
  %v363 = vunpack.c.l.b16 %v60
  %v364 = vunpack.c.l.b16 %v61
  %v365 = vunpack.c.l.b16 %v62
  %v366 = vunpack.c.l.b16 %v63
  %v367 = vunpack.c.l.b16 %v64
  %v368 = vunpack.c.l.b16 %v65
  %v369 = vunpack.c.l.b16 %v66
  %v370 = vunpack.c.l.b16 %v67
  %v371 = vunpack.c.l.b16 %v68
  %v372 = vunpack.c.l.b16 %v69
  %v373 = vunpack.c.l.b16 %v70
  %v374 = vunpack.c.l.b16 %v71
  %v375 = vunpack.c.l.b16 %v72
  %v376 = vunpack.c.l.b16 %v73
  %v377 = vunpack.c.l.b16 %v74
  %v378 = vunpack.c.l.b16 %v75
  %v379 = vunpack.c.l.b16 %v76
  %v380 = vunpack.c.l.b16 %v77
  %v381 = vunpack.c.l.b16 %v78
  %v382 = vunpack.c.l.b16 %v79
  %v383 = vunpack.c.l.b16 %v80
  %v384 = vunpack.c.l.b16 %v81
  %v385 = vunpack.c.l.b16 %v82
  %v386 = vunpack.c.l.b16 %v83
  %v387 = vunpack.c.l.b16 %v84
  %v388 = vunpack.c.l.b16 %v85
  %v389 = vunpack.c.l.b16 %v86
  %v390 = vunpack.c.l.b16 %v87
  %v391 = vunpack.c.l.b16 %v88
  %v392 = vunpack.c.l.b16 %v89
  %v393 = vunpack.c.l.b16 %v90
  %v394 = vunpack.c.l.b16 %v91
  %v395 = vunpack.c.l.b16 %v92
  %v396 = vunpack.c.l.b16 %v93
  %v397 = vunpack.c.l.b16 %v94
  %v398 = vunpack.c.l.b16 %v95
  %v399 = vunpack.c.l.b16 %v96
  %v400 = vunpack.c.l.b16 %v97
  %v401 = vunpack.c.l.b16 %v98
  %v402 = vunpack.c.l.b16 %v99
  %v403 = vunpack.c.l.b16 %v100
  %v404 = vunpack.c.l.b16 %v101
  %v405 = vunpack.c.l.b16 %v102
  %v406 = vunpack.c.l.b16 %v103
  %v407 = vunpack.c.l.b16 %v104
  %v408 = vunpack.c.l.b16 %v105
  %v409 = vunpack.c.l.b16 %v106
  %v410 = vunpack.c.l.b16 %v107
  %v411 = vunpack.c.l.b16 %v108
  %v412 = vunpack.c.l.b16 %v109
  %v413 = vunpack.c.l.b16 %v110
  %v414 = vunpack.c.l.b16 %v111
  %v415 = vunpack.c.l.b16 %v112
  %v416 = vunpack.c.l.b16 %v113
  %v417 = vunpack.c.l.b16 %v114
  %v418 = vunpack.c.l.b16 %v115
  %v419 = vunpack.c.l.b16 %v116
  %v420 = vunpack.c.l.b16 %v117
  %v421 = vunpack.c.l.b16 %v118
  %v422 = vunpack.c.l.b16 %v119
  %v423 = vunpack.c.l.b16 %v120
  %v424 = vunpack.c.l.b16 %v121
  %v425 = vunpack.c.l.b16 %v122
  %v426 = vunpack.c.l.b16 %v123
  %v427 = vunpack.c.l.b16 %v124
  %v428 = vunpack.c.l.b16 %v125
  %v429 = vunpack.c.l.b16 %v126
  %v430 = vunpack.c.l.b16 %v127
  %v431 = vunpack.c.l.b16 %v128
  %v432 = vunpack.c.l.b16 %v129
  %v433 = vunpack.c.l.b16 %v130
  %v434 = vunpack.c.l.b16 %v131
  %v435 = vunpack.c.l.b16 %v132
  %v436 = vunpack.c.l.b16 %v133
  %v437 = vunpack.c.l.b16 %v134
  %v438 = vunpack.c.l.b16 %v135
  %v439 = vunpack.c.l.b16 %v136
  %v440 = vunpack.c.l.b16 %v137
  %v441 = vunpack.c.l.b16 %v138
  %v442 = vunpack.c.l.b16 %v139
  %v443 = vunpack.c.l.b16 %v140
  %v444 = vunpack.c.l.b16 %v141
  %v445 = vunpack.c.l.b16 %v142
  %v446 = vunpack.c.l.b16 %v143
  %v447 = vunpack.c.l.b16 %v144
  %v448 = vunpack.c.l.b16 %v145
  %v449 = vunpack.c.l.b16 %v146
  %v450 = vunpack.c.l.b16 %v147
  %v451 = vunpack.c.l.b16 %v148
  %v452 = vunpack.c.l.b16 %v149
  %v453 = vunpack.c.l.b16 %v150
  %v454 = vunpack.c.l.b16 %v151
  %v455 = vunpack.c.l.b16 %v152
  %v456 = vunpack.c.l.b16 %v153
  %v457 = vunpack.c.l.b16 %v154
  %v458 = vunpack.c.l.b16 %v155
  %v459 = vunpack.c.l.b16 %v156
  %v460 = vunpack.c.l.b16 %v157
  %v461 = vunpack.c.l.b16 %v158
  %v462 = vunpack.c.l.b16 %v159
  %v463 = vunpack.c.l.b16 %v160
  %v464 = vunpack.c.l.b16 %v161
  %v465 = vunpack.c.l.b16 %v162
  %v466 = vunpack.c.l.b16 %v163
  %v467 = vunpack.c.l.b16 %v164
  %v468 = vunpack.c.l.b16 %v165
  %v469 = vunpack.c.l.b16 %v166
  %v470 = vunpack.c.l.b16 %v167
  %v471 = vunpack.c.l.b16 %v168
  %v472 = vunpack.c.l.b16 %v169
  %v473 = vunpack.c.l.b16 %v170
  %v474 = vpack.c.b16 %v331, %v330
  %v475 = vpack.c.b16 %v333, %v332
  %v476 = vpack.c.b16 %v335, %v334
  %v477 = vpack.c.b16 %v337, %v336
  %v478 = vpack.c.b16 %v339, %v338
  %v479 = vpack.c.b16 %v341, %v340
  %v480 = vpack.c.b16 %v343, %v342
  %v481 = vpack.c.b16 %v345, %v344
  %v482 = vpack.c.b16 %v347, %v346
  %v483 = vpack.c.b16 %v349, %v348
  %v484 = vpack.c.b16 %v351, %v350
  %v485 = vpack.c.b16 %v353, %v352
  %v486 = vpack.c.b16 %v355, %v354
  %v487 = vpack.c.b16 %v357, %v356
  %v488 = vpack.c.b16 %v359, %v358
  %v489 = vpack.c.b16 %v361, %v360
  %v490 = vpack.c.b16 %v363, %v362
  %v491 = vpack.c.b16 %v365, %v364
  %v492 = vpack.c.b16 %v367, %v366
  %v493 = vpack.c.b16 %v369, %v368
  %v494 = vpack.c.b16 %v371, %v370
  %v495 = vpack.c.b16 %v373, %v372
  %v496 = vpack.c.b16 %v375, %v374
  %v497 = vpack.c.b16 %v377, %v376
  %v498 = vpack.c.b16 %v379, %v378
  %v499 = vpack.c.b16 %v381, %v380
  %v500 = vpack.c.b16 %v383, %v382
  %v501 = vpack.c.b16 %v385, %v384
  %v502 = vpack.c.b16 %v387, %v386
  %v503 = vpack.c.b16 %v389, %v388
  %v504 = vpack.c.b16 %v391, %v390
  %v505 = vpack.c.b16 %v393, %v392
  %v506 = vpack.c.b16 %v395, %v394
  %v507 = vpack.c.b16 %v397, %v396
  %v508 = vpack.c.b16 %v399, %v398
  %v509 = vpack.c.b16 %v401, %v400
  %v510 = vpack.c.b16 %v403, %v402
  %v511 = vpack.c.b16 %v405, %v404
  %v512 = vpack.c.b16 %v407, %v406
  %v513 = vpack.c.b16 %v409, %v408
  %v514 = vpack.c.b16 %v411, %v410
  %v515 = vpack.c.b16 %v413, %v412
  %v516 = vpack.c.b16 %v415, %v414
  %v517 = vpack.c.b16 %v417, %v416
  %v518 = vpack.c.b16 %v419, %v418
  %v519 = vpack.c.b16 %v421, %v420
  %v520 = vpack.c.b16 %v423, %v422
  %v521 = vpack.c.b16 %v425, %v424
  %v522 = vpack.c.b16 %v427, %v426
  %v523 = vpack.c.b16 %v429, %v428
  %v524 = vpack.c.b16 %v431, %v430
  %v525 = vpack.c.b16 %v433, %v432
  %v526 = vpack.c.b16 %v435, %v434
  %v527 = vpack.c.b16 %v437, %v436
  %v528 = vpack.c.b16 %v439, %v438
  %v529 = vpack.c.b16 %v441, %v440
  %v530 = vpack.c.b16 %v443, %v442
  %v531 = vpack.c.b16 %v445, %v444
  %v532 = vpack.c.b16 %v447, %v446
  %v533 = vpack.c.b16 %v449, %v448
  %v534 = vpack.c.b16 %v451, %v450
  %v535 = vpack.c.b16 %v453, %v452
  %v536 = vpack.c.b16 %v455, %v454
  %v537 = vpack.c.b16 %v457, %v456
  %v538 = vpack.c.b16 %v459, %v458
  %v539 = vpack.c.b16 %v461, %v460
  %v540 = vpack.c.b16 %v463, %v462
  %v541 = vpack.c.b16 %v465, %v464
  %v542 = vpack.c.b16 %v467, %v466
  %v543 = vpack.c.b16 %v469, %v468
  %v544 = vpack.c.b16 %v471, %v470
  %v545 = vpack.c.b16 %v473, %v472
  %v554 = vunpack.c.l.b16 %v171
  %v555 = vunpack.c.l.b16 %v172
  %v556 = vunpack.c.l.b16 %v173
  %v557 = vunpack.c.l.b16 %v174
  %v558 = vunpack.c.l.b16 %v175
  %v559 = vunpack.c.l.b16 %v176
  %v560 = vunpack.c.l.b16 %v177
  %v561 = vunpack.c.l.b16 %v178
  %v562 = vpack.c.b16 %v555, %v554
  %v563 = vpack.c.b16 %v557, %v556
  %v564 = vpack.c.b16 %v559, %v558
  %v565 = vpack.c.b16 %v561, %v560
  %vm570 = vcmask 523264
  %v572 = vsel %vm570, %v474, 0
  %v575 = vsel %vm570, %v475, 0
  %v578 = vsel %vm570, %v476, 0
  %v581 = vsel %vm570, %v477, 0
  %v584 = vsel %vm570, %v478, 0
  %v587 = vsel %vm570, %v479, 0
  %v590 = vsel %vm570, %v480, 0
  %v593 = vsel %vm570, %v481, 0
  %v596 = vsel %vm570, %v482, 0
  %v599 = vsel %vm570, %v483, 0
  %v602 = vsel %vm570, %v484, 0
  %v605 = vsel %vm570, %v485, 0
  %v608 = vsel %vm570, %v486, 0
  %v611 = vsel %vm570, %v487, 0
  %v614 = vsel %vm570, %v488, 0
  %v617 = vsel %vm570, %v489, 0
  %v620 = vsel %vm570, %v490, 0
  %v623 = vsel %vm570, %v491, 0
  %v626 = vsel %vm570, %v492, 0
  %v629 = vsel %vm570, %v493, 0
  %v632 = vsel %vm570, %v494, 0
  %v635 = vsel %vm570, %v495, 0
  %v638 = vsel %vm570, %v496, 0
  %v641 = vsel %vm570, %v497, 0
  %v644 = vsel %vm570, %v498, 0
  %v647 = vsel %vm570, %v499, 0
  %v650 = vsel %vm570, %v500, 0
  %v653 = vsel %vm570, %v501, 0
  %v656 = vsel %vm570, %v502, 0
  %v659 = vsel %vm570, %v503, 0
  %v662 = vsel %vm570, %v504, 0
  %v665 = vsel %vm570, %v505, 0
  %v668 = vsel %vm570, %v506, 0
  %v671 = vsel %vm570, %v507, 0
  %v674 = vsel %vm570, %v508, 0
  %v677 = vsel %vm570, %v509, 0
  %v680 = vsel %vm570, %v510, 0
  %v683 = vsel %vm570, %v511, 0
  %v686 = vsel %vm570, %v512, 0
  %v689 = vsel %vm570, %v513, 0
  %v692 = vsel %vm570, %v514, 0
  %v695 = vsel %vm570, %v515, 0
  %v698 = vsel %vm570, %v516, 0
  %v701 = vsel %vm570, %v517, 0
  %v704 = vsel %vm570, %v518, 0
  %v707 = vsel %vm570, %v519, 0
  %v710 = vsel %vm570, %v520, 0
  %v713 = vsel %vm570, %v521, 0
  %v716 = vsel %vm570, %v522, 0
  %v719 = vsel %vm570, %v523, 0
  %v722 = vsel %vm570, %v524, 0
  %v725 = vsel %vm570, %v525, 0
  %v728 = vsel %vm570, %v526, 0
  %v731 = vsel %vm570, %v527, 0
  %v734 = vsel %vm570, %v528, 0
  %v737 = vsel %vm570, %v529, 0
  %v740 = vsel %vm570, %v530, 0
  %v743 = vsel %vm570, %v531, 0
  %v746 = vsel %vm570, %v532, 0
  %v749 = vsel %vm570, %v533, 0
  %v752 = vsel %vm570, %v534, 0
  %v755 = vsel %vm570, %v535, 0
  %v758 = vsel %vm570, %v536, 0
  %v761 = vsel %vm570, %v537, 0
  %v764 = vsel %vm570, %v538, 0
  %v767 = vsel %vm570, %v539, 0
  %v770 = vsel %vm570, %v540, 0
  %v773 = vsel %vm570, %v541, 0
  %v776 = vsel %vm570, %v542, 0
  %v779 = vsel %vm570, %v543, 0
  %v782 = vsel %vm570, %v544, 0
  %v785 = vsel %vm570, %v545, 0
  %787 = vmatprep.subr.bf16.mxu0 0
  %788 = vmatpush1.bf16.msra.mxu0 0
  %789 = vmatprep.subr.bf16.mxu0 0
  %790 = vmatpush1.bf16.msra.mxu0 0
  %791 = vmatprep.subr.bf16.mxu0 0
  %792 = vmatpush1.bf16.msra.mxu0 0
  %793 = vmatprep.subr.bf16.mxu0 0
  %794 = vmatpush1.bf16.msra.mxu0 0
  %795 = vmatprep.subr.bf16.mxu0 0
  %796 = vmatpush1.bf16.msra.mxu0 %v565
  %797 = vmatprep.subr.bf16.mxu0 0
  %798 = vmatpush1.bf16.msra.mxu0 %v564
  %799 = vmatprep.subr.bf16.mxu0 0
  %800 = vmatpush1.bf16.msra.mxu0 %v563
  %801 = vmatprep.subr.bf16.mxu0 0
  %802 = vmatpush1.bf16.msra.mxu0 %v562
  %803 = vmatprep.subr.bf16.mxu0 0
  %804 = vmatpush2.bf16.msra.mxu0 0
  %805 = vmatprep.subr.bf16.mxu0 0
  %806 = vmatpush2.bf16.msra.mxu0 0
  %807 = vmatprep.subr.bf16.mxu0 0
  %808 = vmatpush2.bf16.msra.mxu0 0
  %809 = vmatprep.subr.bf16.mxu0 0
  %810 = vmatpush2.bf16.msra.mxu0 0
  %811 = vmatprep.subr.bf16.mxu0 0
  %812 = vmatpush2.bf16.msra.mxu0 0
  %813 = vmatprep.subr.bf16.mxu0 0
  %814 = vmatpush2.bf16.msra.mxu0 0
  %815 = vmatprep.subr.bf16.mxu0 0
  %816 = vmatpush2.bf16.msra.mxu0 0
  %817 = vmatprep.subr.bf16.mxu0 0
  %818 = vmatpush2.bf16.msra.mxu0 0
  %819 = vmatprep.mubr.bf16.mxu0 0
  %820 = vmatmul.mubr.bf16.gmra.mxu0 %v572
  %v821 = vpop.f32.mrf.mxu0
  %v822 = vadd.f32 %v184, %v821
  %v823 = vpop.f32.mrf.mxu0
  %v824 = vpop.f32.mrf.mxu0
  %v825 = vadd.f32 %v184, %v824
  %v826 = vpop.f32.mrf.mxu0
  %827 = vmatprep.mubr.bf16.mxu0 0
  %828 = vmatmul.mubr.bf16.gmra.mxu0 %v575
  %v829 = vpop.f32.mrf.mxu0
  %v830 = vadd.f32 %v184, %v829
  %v831 = vpop.f32.mrf.mxu0
  %v832 = vpop.f32.mrf.mxu0
  %v833 = vadd.f32 %v184, %v832
  %v834 = vpop.f32.mrf.mxu0
  %835 = vmatprep.mubr.bf16.mxu0 0
  %836 = vmatmul.mubr.bf16.gmra.mxu0 %v578
  %v837 = vpop.f32.mrf.mxu0
  %v838 = vadd.f32 %v184, %v837
  %v839 = vpop.f32.mrf.mxu0
  %v840 = vpop.f32.mrf.mxu0
  %v841 = vadd.f32 %v184, %v840
  %v842 = vpop.f32.mrf.mxu0
  %843 = vmatprep.mubr.bf16.mxu0 0
  %844 = vmatmul.mubr.bf16.gmra.mxu0 %v581
  %v845 = vpop.f32.mrf.mxu0
  %v846 = vadd.f32 %v184, %v845
  %v847 = vpop.f32.mrf.mxu0
  %v848 = vpop.f32.mrf.mxu0
  %v849 = vadd.f32 %v184, %v848
  %v850 = vpop.f32.mrf.mxu0
  %851 = vmatprep.mubr.bf16.mxu0 0
  %852 = vmatmul.mubr.bf16.gmra.mxu0 %v584
  %v853 = vpop.f32.mrf.mxu0
  %v854 = vadd.f32 %v184, %v853
  %v855 = vpop.f32.mrf.mxu0
  %v856 = vpop.f32.mrf.mxu0
  %v857 = vadd.f32 %v184, %v856
  %v858 = vpop.f32.mrf.mxu0
  %859 = vmatprep.mubr.bf16.mxu0 0
  %860 = vmatmul.mubr.bf16.gmra.mxu0 %v587
  %v861 = vpop.f32.mrf.mxu0
  %v862 = vadd.f32 %v184, %v861
  %v863 = vpop.f32.mrf.mxu0
  %v864 = vpop.f32.mrf.mxu0
  %v865 = vadd.f32 %v184, %v864
  %v866 = vpop.f32.mrf.mxu0
  %867 = vmatprep.mubr.bf16.mxu0 0
  %868 = vmatmul.mubr.bf16.gmra.mxu0 %v590
  %v869 = vpop.f32.mrf.mxu0
  %v870 = vadd.f32 %v184, %v869
  %v871 = vpop.f32.mrf.mxu0
  %v872 = vpop.f32.mrf.mxu0
  %v873 = vadd.f32 %v184, %v872
  %v874 = vpop.f32.mrf.mxu0
  %875 = vmatprep.mubr.bf16.mxu0 0
  %876 = vmatmul.mubr.bf16.gmra.mxu0 %v593
  %v877 = vpop.f32.mrf.mxu0
  %v878 = vadd.f32 %v184, %v877
  %v879 = vpop.f32.mrf.mxu0
  %v880 = vpop.f32.mrf.mxu0
  %v881 = vadd.f32 %v184, %v880
  %v882 = vpop.f32.mrf.mxu0
  %883 = vmatprep.mubr.bf16.mxu0 0
  %884 = vmatmul.mubr.bf16.gmra.mxu0 %v596
  %v885 = vpop.f32.mrf.mxu0
  %v886 = vadd.f32 %v184, %v885
  %v887 = vpop.f32.mrf.mxu0
  %v888 = vpop.f32.mrf.mxu0
  %v889 = vadd.f32 %v184, %v888
  %v890 = vpop.f32.mrf.mxu0
  %891 = vmatprep.mubr.bf16.mxu0 0
  %892 = vmatmul.mubr.bf16.gmra.mxu0 %v599
  %v893 = vpop.f32.mrf.mxu0
  %v894 = vadd.f32 %v184, %v893
  %v895 = vpop.f32.mrf.mxu0
  %v896 = vpop.f32.mrf.mxu0
  %v897 = vadd.f32 %v184, %v896
  %v898 = vpop.f32.mrf.mxu0
  %899 = vmatprep.mubr.bf16.mxu0 0
  %900 = vmatmul.mubr.bf16.gmra.mxu0 %v602
  %v901 = vpop.f32.mrf.mxu0
  %v902 = vadd.f32 %v184, %v901
  %v903 = vpop.f32.mrf.mxu0
  %v904 = vpop.f32.mrf.mxu0
  %v905 = vadd.f32 %v184, %v904
  %v906 = vpop.f32.mrf.mxu0
  %907 = vmatprep.mubr.bf16.mxu0 0
  %908 = vmatmul.mubr.bf16.gmra.mxu0 %v605
  %v909 = vpop.f32.mrf.mxu0
  %v910 = vadd.f32 %v184, %v909
  %v911 = vpop.f32.mrf.mxu0
  %v912 = vpop.f32.mrf.mxu0
  %v913 = vadd.f32 %v184, %v912
  %v914 = vpop.f32.mrf.mxu0
  %915 = vmatprep.mubr.bf16.mxu0 0
  %916 = vmatmul.mubr.bf16.gmra.mxu0 %v608
  %v917 = vpop.f32.mrf.mxu0
  %v918 = vadd.f32 %v184, %v917
  %v919 = vpop.f32.mrf.mxu0
  %v920 = vpop.f32.mrf.mxu0
  %v921 = vadd.f32 %v184, %v920
  %v922 = vpop.f32.mrf.mxu0
  %923 = vmatprep.mubr.bf16.mxu0 0
  %924 = vmatmul.mubr.bf16.gmra.mxu0 %v611
  %v925 = vpop.f32.mrf.mxu0
  %v926 = vadd.f32 %v184, %v925
  %v927 = vpop.f32.mrf.mxu0
  %v928 = vpop.f32.mrf.mxu0
  %v929 = vadd.f32 %v184, %v928
  %v930 = vpop.f32.mrf.mxu0
  %931 = vmatprep.mubr.bf16.mxu0 0
  %932 = vmatmul.mubr.bf16.gmra.mxu0 %v614
  %v933 = vpop.f32.mrf.mxu0
  %v934 = vadd.f32 %v184, %v933
  %v935 = vpop.f32.mrf.mxu0
  %v936 = vpop.f32.mrf.mxu0
  %v937 = vadd.f32 %v184, %v936
  %v938 = vpop.f32.mrf.mxu0
  %939 = vmatprep.mubr.bf16.mxu0 0
  %940 = vmatmul.mubr.bf16.gmra.mxu0 %v617
  %v941 = vpop.f32.mrf.mxu0
  %v942 = vadd.f32 %v184, %v941
  %v943 = vpop.f32.mrf.mxu0
  %v944 = vpop.f32.mrf.mxu0
  %v945 = vadd.f32 %v184, %v944
  %v946 = vpop.f32.mrf.mxu0
  %947 = vmatprep.mubr.bf16.mxu0 0
  %948 = vmatmul.mubr.bf16.gmra.mxu0 %v620
  %v949 = vpop.f32.mrf.mxu0
  %v950 = vadd.f32 %v184, %v949
  %v951 = vpop.f32.mrf.mxu0
  %v952 = vpop.f32.mrf.mxu0
  %v953 = vadd.f32 %v184, %v952
  %v954 = vpop.f32.mrf.mxu0
  %955 = vmatprep.mubr.bf16.mxu0 0
  %956 = vmatmul.mubr.bf16.gmra.mxu0 %v623
  %v957 = vpop.f32.mrf.mxu0
  %v958 = vadd.f32 %v184, %v957
  %v959 = vpop.f32.mrf.mxu0
  %v960 = vpop.f32.mrf.mxu0
  %v961 = vadd.f32 %v184, %v960
  %v962 = vpop.f32.mrf.mxu0
  %963 = vmatprep.mubr.bf16.mxu0 0
  %964 = vmatmul.mubr.bf16.gmra.mxu0 %v626
  %v965 = vpop.f32.mrf.mxu0
  %v966 = vadd.f32 %v184, %v965
  %v967 = vpop.f32.mrf.mxu0
  %v968 = vpop.f32.mrf.mxu0
  %v969 = vadd.f32 %v184, %v968
  %v970 = vpop.f32.mrf.mxu0
  %971 = vmatprep.mubr.bf16.mxu0 0
  %972 = vmatmul.mubr.bf16.gmra.mxu0 %v629
  %v973 = vpop.f32.mrf.mxu0
  %v974 = vadd.f32 %v184, %v973
  %v975 = vpop.f32.mrf.mxu0
  %v976 = vpop.f32.mrf.mxu0
  %v977 = vadd.f32 %v184, %v976
  %v978 = vpop.f32.mrf.mxu0
  %979 = vmatprep.mubr.bf16.mxu0 0
  %980 = vmatmul.mubr.bf16.gmra.mxu0 %v632
  %v981 = vpop.f32.mrf.mxu0
  %v982 = vadd.f32 %v184, %v981
  %v983 = vpop.f32.mrf.mxu0
  %v984 = vpop.f32.mrf.mxu0
  %v985 = vadd.f32 %v184, %v984
  %v986 = vpop.f32.mrf.mxu0
  %987 = vmatprep.mubr.bf16.mxu0 0
  %988 = vmatmul.mubr.bf16.gmra.mxu0 %v635
  %v989 = vpop.f32.mrf.mxu0
  %v990 = vadd.f32 %v184, %v989
  %v991 = vpop.f32.mrf.mxu0
  %v992 = vpop.f32.mrf.mxu0
  %v993 = vadd.f32 %v184, %v992
  %v994 = vpop.f32.mrf.mxu0
  %995 = vmatprep.mubr.bf16.mxu0 0
  %996 = vmatmul.mubr.bf16.gmra.mxu0 %v638
  %v997 = vpop.f32.mrf.mxu0
  %v998 = vadd.f32 %v184, %v997
  %v999 = vpop.f32.mrf.mxu0
  %v1000 = vpop.f32.mrf.mxu0
  %v1001 = vadd.f32 %v184, %v1000
  %v1002 = vpop.f32.mrf.mxu0
  %1003 = vmatprep.mubr.bf16.mxu0 0
  %1004 = vmatmul.mubr.bf16.gmra.mxu0 %v641
  %v1005 = vpop.f32.mrf.mxu0
  %v1006 = vadd.f32 %v184, %v1005
  %v1007 = vpop.f32.mrf.mxu0
  %v1008 = vpop.f32.mrf.mxu0
  %v1009 = vadd.f32 %v184, %v1008
  %v1010 = vpop.f32.mrf.mxu0
  %1011 = vmatprep.mubr.bf16.mxu0 0
  %1012 = vmatmul.mubr.bf16.gmra.mxu0 %v644
  %v1013 = vpop.f32.mrf.mxu0
  %v1014 = vadd.f32 %v184, %v1013
  %v1015 = vpop.f32.mrf.mxu0
  %v1016 = vpop.f32.mrf.mxu0
  %v1017 = vadd.f32 %v184, %v1016
  %v1018 = vpop.f32.mrf.mxu0
  %1019 = vmatprep.mubr.bf16.mxu0 0
  %1020 = vmatmul.mubr.bf16.gmra.mxu0 %v647
  %v1021 = vpop.f32.mrf.mxu0
  %v1022 = vadd.f32 %v184, %v1021
  %v1023 = vpop.f32.mrf.mxu0
  %v1024 = vpop.f32.mrf.mxu0
  %v1025 = vadd.f32 %v184, %v1024
  %v1026 = vpop.f32.mrf.mxu0
  %1027 = vmatprep.mubr.bf16.mxu0 0
  %1028 = vmatmul.mubr.bf16.gmra.mxu0 %v650
  %v1029 = vpop.f32.mrf.mxu0
  %v1030 = vadd.f32 %v184, %v1029
  %v1031 = vpop.f32.mrf.mxu0
  %v1032 = vpop.f32.mrf.mxu0
  %v1033 = vadd.f32 %v184, %v1032
  %v1034 = vpop.f32.mrf.mxu0
  %1035 = vmatprep.mubr.bf16.mxu0 0
  %1036 = vmatmul.mubr.bf16.gmra.mxu0 %v653
  %v1037 = vpop.f32.mrf.mxu0
  %v1038 = vadd.f32 %v184, %v1037
  %v1039 = vpop.f32.mrf.mxu0
  %v1040 = vpop.f32.mrf.mxu0
  %v1041 = vadd.f32 %v184, %v1040
  %v1042 = vpop.f32.mrf.mxu0
  %1043 = vmatprep.mubr.bf16.mxu0 0
  %1044 = vmatmul.mubr.bf16.gmra.mxu0 %v656
  %v1045 = vpop.f32.mrf.mxu0
  %v1046 = vadd.f32 %v184, %v1045
  %v1047 = vpop.f32.mrf.mxu0
  %v1048 = vpop.f32.mrf.mxu0
  %v1049 = vadd.f32 %v184, %v1048
  %v1050 = vpop.f32.mrf.mxu0
  %1051 = vmatprep.mubr.bf16.mxu0 0
  %1052 = vmatmul.mubr.bf16.gmra.mxu0 %v659
  %v1053 = vpop.f32.mrf.mxu0
  %v1054 = vadd.f32 %v184, %v1053
  %v1055 = vpop.f32.mrf.mxu0
  %v1056 = vpop.f32.mrf.mxu0
  %v1057 = vadd.f32 %v184, %v1056
  %v1058 = vpop.f32.mrf.mxu0
  %1059 = vmatprep.mubr.bf16.mxu0 0
  %1060 = vmatmul.mubr.bf16.gmra.mxu0 %v662
  %v1061 = vpop.f32.mrf.mxu0
  %v1062 = vadd.f32 %v184, %v1061
  %v1063 = vpop.f32.mrf.mxu0
  %v1064 = vpop.f32.mrf.mxu0
  %v1065 = vadd.f32 %v184, %v1064
  %v1066 = vpop.f32.mrf.mxu0
  %1067 = vmatprep.mubr.bf16.mxu0 0
  %1068 = vmatmul.mubr.bf16.gmra.mxu0 %v665
  %v1069 = vpop.f32.mrf.mxu0
  %v1070 = vadd.f32 %v184, %v1069
  %v1071 = vpop.f32.mrf.mxu0
  %v1072 = vpop.f32.mrf.mxu0
  %v1073 = vadd.f32 %v184, %v1072
  %v1074 = vpop.f32.mrf.mxu0
  %1075 = vmatprep.mubr.bf16.mxu0 0
  %1076 = vmatmul.mubr.bf16.gmra.mxu0 %v668
  %v1077 = vpop.f32.mrf.mxu0
  %v1078 = vadd.f32 %v184, %v1077
  %v1079 = vpop.f32.mrf.mxu0
  %v1080 = vpop.f32.mrf.mxu0
  %v1081 = vadd.f32 %v184, %v1080
  %v1082 = vpop.f32.mrf.mxu0
  %1083 = vmatprep.mubr.bf16.mxu0 0
  %1084 = vmatmul.mubr.bf16.gmra.mxu0 %v671
  %v1085 = vpop.f32.mrf.mxu0
  %v1086 = vadd.f32 %v184, %v1085
  %v1087 = vpop.f32.mrf.mxu0
  %v1088 = vpop.f32.mrf.mxu0
  %v1089 = vadd.f32 %v184, %v1088
  %v1090 = vpop.f32.mrf.mxu0
  %1091 = vmatprep.mubr.bf16.mxu0 0
  %1092 = vmatmul.mubr.bf16.gmra.mxu0 %v674
  %v1093 = vpop.f32.mrf.mxu0
  %v1094 = vadd.f32 %v184, %v1093
  %v1095 = vpop.f32.mrf.mxu0
  %v1096 = vpop.f32.mrf.mxu0
  %v1097 = vadd.f32 %v184, %v1096
  %v1098 = vpop.f32.mrf.mxu0
  %1099 = vmatprep.mubr.bf16.mxu0 0
  %1100 = vmatmul.mubr.bf16.gmra.mxu0 %v677
  %v1101 = vpop.f32.mrf.mxu0
  %v1102 = vadd.f32 %v184, %v1101
  %v1103 = vpop.f32.mrf.mxu0
  %v1104 = vpop.f32.mrf.mxu0
  %v1105 = vadd.f32 %v184, %v1104
  %v1106 = vpop.f32.mrf.mxu0
  %1107 = vmatprep.mubr.bf16.mxu0 0
  %1108 = vmatmul.mubr.bf16.gmra.mxu0 %v680
  %v1109 = vpop.f32.mrf.mxu0
  %v1110 = vadd.f32 %v184, %v1109
  %v1111 = vpop.f32.mrf.mxu0
  %v1112 = vpop.f32.mrf.mxu0
  %v1113 = vadd.f32 %v184, %v1112
  %v1114 = vpop.f32.mrf.mxu0
  %1115 = vmatprep.mubr.bf16.mxu0 0
  %1116 = vmatmul.mubr.bf16.gmra.mxu0 %v683
  %v1117 = vpop.f32.mrf.mxu0
  %v1118 = vadd.f32 %v184, %v1117
  %v1119 = vpop.f32.mrf.mxu0
  %v1120 = vpop.f32.mrf.mxu0
  %v1121 = vadd.f32 %v184, %v1120
  %v1122 = vpop.f32.mrf.mxu0
  %1123 = vmatprep.mubr.bf16.mxu0 0
  %1124 = vmatmul.mubr.bf16.gmra.mxu0 %v686
  %v1125 = vpop.f32.mrf.mxu0
  %v1126 = vadd.f32 %v184, %v1125
  %v1127 = vpop.f32.mrf.mxu0
  %v1128 = vpop.f32.mrf.mxu0
  %v1129 = vadd.f32 %v184, %v1128
  %v1130 = vpop.f32.mrf.mxu0
  %1131 = vmatprep.mubr.bf16.mxu0 0
  %1132 = vmatmul.mubr.bf16.gmra.mxu0 %v689
  %v1133 = vpop.f32.mrf.mxu0
  %v1134 = vadd.f32 %v184, %v1133
  %v1135 = vpop.f32.mrf.mxu0
  %v1136 = vpop.f32.mrf.mxu0
  %v1137 = vadd.f32 %v184, %v1136
  %v1138 = vpop.f32.mrf.mxu0
  %1139 = vmatprep.mubr.bf16.mxu0 0
  %1140 = vmatmul.mubr.bf16.gmra.mxu0 %v692
  %v1141 = vpop.f32.mrf.mxu0
  %v1142 = vadd.f32 %v184, %v1141
  %v1143 = vpop.f32.mrf.mxu0
  %v1144 = vpop.f32.mrf.mxu0
  %v1145 = vadd.f32 %v184, %v1144
  %v1146 = vpop.f32.mrf.mxu0
  %1147 = vmatprep.mubr.bf16.mxu0 0
  %1148 = vmatmul.mubr.bf16.gmra.mxu0 %v695
  %v1149 = vpop.f32.mrf.mxu0
  %v1150 = vadd.f32 %v184, %v1149
  %v1151 = vpop.f32.mrf.mxu0
  %v1152 = vpop.f32.mrf.mxu0
  %v1153 = vadd.f32 %v184, %v1152
  %v1154 = vpop.f32.mrf.mxu0
  %1155 = vmatprep.mubr.bf16.mxu0 0
  %1156 = vmatmul.mubr.bf16.gmra.mxu0 %v698
  %v1157 = vpop.f32.mrf.mxu0
  %v1158 = vadd.f32 %v184, %v1157
  %v1159 = vpop.f32.mrf.mxu0
  %v1160 = vpop.f32.mrf.mxu0
  %v1161 = vadd.f32 %v184, %v1160
  %v1162 = vpop.f32.mrf.mxu0
  %1163 = vmatprep.mubr.bf16.mxu0 0
  %1164 = vmatmul.mubr.bf16.gmra.mxu0 %v701
  %v1165 = vpop.f32.mrf.mxu0
  %v1166 = vadd.f32 %v184, %v1165
  %v1167 = vpop.f32.mrf.mxu0
  %v1168 = vpop.f32.mrf.mxu0
  %v1169 = vadd.f32 %v184, %v1168
  %v1170 = vpop.f32.mrf.mxu0
  %1171 = vmatprep.mubr.bf16.mxu0 0
  %1172 = vmatmul.mubr.bf16.gmra.mxu0 %v704
  %v1173 = vpop.f32.mrf.mxu0
  %v1174 = vadd.f32 %v184, %v1173
  %v1175 = vpop.f32.mrf.mxu0
  %v1176 = vpop.f32.mrf.mxu0
  %v1177 = vadd.f32 %v184, %v1176
  %v1178 = vpop.f32.mrf.mxu0
  %1179 = vmatprep.mubr.bf16.mxu0 0
  %1180 = vmatmul.mubr.bf16.gmra.mxu0 %v707
  %v1181 = vpop.f32.mrf.mxu0
  %v1182 = vadd.f32 %v184, %v1181
  %v1183 = vpop.f32.mrf.mxu0
  %v1184 = vpop.f32.mrf.mxu0
  %v1185 = vadd.f32 %v184, %v1184
  %v1186 = vpop.f32.mrf.mxu0
  %1187 = vmatprep.mubr.bf16.mxu0 0
  %1188 = vmatmul.mubr.bf16.gmra.mxu0 %v710
  %v1189 = vpop.f32.mrf.mxu0
  %v1190 = vadd.f32 %v184, %v1189
  %v1191 = vpop.f32.mrf.mxu0
  %v1192 = vpop.f32.mrf.mxu0
  %v1193 = vadd.f32 %v184, %v1192
  %v1194 = vpop.f32.mrf.mxu0
  %1195 = vmatprep.mubr.bf16.mxu0 0
  %1196 = vmatmul.mubr.bf16.gmra.mxu0 %v713
  %v1197 = vpop.f32.mrf.mxu0
  %v1198 = vadd.f32 %v184, %v1197
  %v1199 = vpop.f32.mrf.mxu0
  %v1200 = vpop.f32.mrf.mxu0
  %v1201 = vadd.f32 %v184, %v1200
  %v1202 = vpop.f32.mrf.mxu0
  %1203 = vmatprep.mubr.bf16.mxu0 0
  %1204 = vmatmul.mubr.bf16.gmra.mxu0 %v716
  %v1205 = vpop.f32.mrf.mxu0
  %v1206 = vadd.f32 %v184, %v1205
  %v1207 = vpop.f32.mrf.mxu0
  %v1208 = vpop.f32.mrf.mxu0
  %v1209 = vadd.f32 %v184, %v1208
  %v1210 = vpop.f32.mrf.mxu0
  %1211 = vmatprep.mubr.bf16.mxu0 0
  %1212 = vmatmul.mubr.bf16.gmra.mxu0 %v719
  %v1213 = vpop.f32.mrf.mxu0
  %v1214 = vadd.f32 %v184, %v1213
  %v1215 = vpop.f32.mrf.mxu0
  %v1216 = vpop.f32.mrf.mxu0
  %v1217 = vadd.f32 %v184, %v1216
  %v1218 = vpop.f32.mrf.mxu0
  %1219 = vmatprep.mubr.bf16.mxu0 0
  %1220 = vmatmul.mubr.bf16.gmra.mxu0 %v722
  %v1221 = vpop.f32.mrf.mxu0
  %v1222 = vadd.f32 %v184, %v1221
  %v1223 = vpop.f32.mrf.mxu0
  %v1224 = vpop.f32.mrf.mxu0
  %v1225 = vadd.f32 %v184, %v1224
  %v1226 = vpop.f32.mrf.mxu0
  %1227 = vmatprep.mubr.bf16.mxu0 0
  %1228 = vmatmul.mubr.bf16.gmra.mxu0 %v725
  %v1229 = vpop.f32.mrf.mxu0
  %v1230 = vadd.f32 %v184, %v1229
  %v1231 = vpop.f32.mrf.mxu0
  %v1232 = vpop.f32.mrf.mxu0
  %v1233 = vadd.f32 %v184, %v1232
  %v1234 = vpop.f32.mrf.mxu0
  %1235 = vmatprep.mubr.bf16.mxu0 0
  %1236 = vmatmul.mubr.bf16.gmra.mxu0 %v728
  %v1237 = vpop.f32.mrf.mxu0
  %v1238 = vadd.f32 %v184, %v1237
  %v1239 = vpop.f32.mrf.mxu0
  %v1240 = vpop.f32.mrf.mxu0
  %v1241 = vadd.f32 %v184, %v1240
  %v1242 = vpop.f32.mrf.mxu0
  %1243 = vmatprep.mubr.bf16.mxu0 0
  %1244 = vmatmul.mubr.bf16.gmra.mxu0 %v731
  %v1245 = vpop.f32.mrf.mxu0
  %v1246 = vadd.f32 %v184, %v1245
  %v1247 = vpop.f32.mrf.mxu0
  %v1248 = vpop.f32.mrf.mxu0
  %v1249 = vadd.f32 %v184, %v1248
  %v1250 = vpop.f32.mrf.mxu0
  %1251 = vmatprep.mubr.bf16.mxu0 0
  %1252 = vmatmul.mubr.bf16.gmra.mxu0 %v734
  %v1253 = vpop.f32.mrf.mxu0
  %v1254 = vadd.f32 %v184, %v1253
  %v1255 = vpop.f32.mrf.mxu0
  %v1256 = vpop.f32.mrf.mxu0
  %v1257 = vadd.f32 %v184, %v1256
  %v1258 = vpop.f32.mrf.mxu0
  %1259 = vmatprep.mubr.bf16.mxu0 0
  %1260 = vmatmul.mubr.bf16.gmra.mxu0 %v737
  %v1261 = vpop.f32.mrf.mxu0
  %v1262 = vadd.f32 %v184, %v1261
  %v1263 = vpop.f32.mrf.mxu0
  %v1264 = vpop.f32.mrf.mxu0
  %v1265 = vadd.f32 %v184, %v1264
  %v1266 = vpop.f32.mrf.mxu0
  %1267 = vmatprep.mubr.bf16.mxu0 0
  %1268 = vmatmul.mubr.bf16.gmra.mxu0 %v740
  %v1269 = vpop.f32.mrf.mxu0
  %v1270 = vadd.f32 %v184, %v1269
  %v1271 = vpop.f32.mrf.mxu0
  %v1272 = vpop.f32.mrf.mxu0
  %v1273 = vadd.f32 %v184, %v1272
  %v1274 = vpop.f32.mrf.mxu0
  %1275 = vmatprep.mubr.bf16.mxu0 0
  %1276 = vmatmul.mubr.bf16.gmra.mxu0 %v743
  %v1277 = vpop.f32.mrf.mxu0
  %v1278 = vadd.f32 %v184, %v1277
  %v1279 = vpop.f32.mrf.mxu0
  %v1280 = vpop.f32.mrf.mxu0
  %v1281 = vadd.f32 %v184, %v1280
  %v1282 = vpop.f32.mrf.mxu0
  %1283 = vmatprep.mubr.bf16.mxu0 0
  %1284 = vmatmul.mubr.bf16.gmra.mxu0 %v746
  %v1285 = vpop.f32.mrf.mxu0
  %v1286 = vadd.f32 %v184, %v1285
  %v1287 = vpop.f32.mrf.mxu0
  %v1288 = vpop.f32.mrf.mxu0
  %v1289 = vadd.f32 %v184, %v1288
  %v1290 = vpop.f32.mrf.mxu0
  %1291 = vmatprep.mubr.bf16.mxu0 0
  %1292 = vmatmul.mubr.bf16.gmra.mxu0 %v749
  %v1293 = vpop.f32.mrf.mxu0
  %v1294 = vadd.f32 %v184, %v1293
  %v1295 = vpop.f32.mrf.mxu0
  %v1296 = vpop.f32.mrf.mxu0
  %v1297 = vadd.f32 %v184, %v1296
  %v1298 = vpop.f32.mrf.mxu0
  %1299 = vmatprep.mubr.bf16.mxu0 0
  %1300 = vmatmul.mubr.bf16.gmra.mxu0 %v752
  %v1301 = vpop.f32.mrf.mxu0
  %v1302 = vadd.f32 %v184, %v1301
  %v1303 = vpop.f32.mrf.mxu0
  %v1304 = vpop.f32.mrf.mxu0
  %v1305 = vadd.f32 %v184, %v1304
  %v1306 = vpop.f32.mrf.mxu0
  %1307 = vmatprep.mubr.bf16.mxu0 0
  %1308 = vmatmul.mubr.bf16.gmra.mxu0 %v755
  %v1309 = vpop.f32.mrf.mxu0
  %v1310 = vadd.f32 %v184, %v1309
  %v1311 = vpop.f32.mrf.mxu0
  %v1312 = vpop.f32.mrf.mxu0
  %v1313 = vadd.f32 %v184, %v1312
  %v1314 = vpop.f32.mrf.mxu0
  %1315 = vmatprep.mubr.bf16.mxu0 0
  %1316 = vmatmul.mubr.bf16.gmra.mxu0 %v758
  %v1317 = vpop.f32.mrf.mxu0
  %v1318 = vadd.f32 %v184, %v1317
  %v1319 = vpop.f32.mrf.mxu0
  %v1320 = vpop.f32.mrf.mxu0
  %v1321 = vadd.f32 %v184, %v1320
  %v1322 = vpop.f32.mrf.mxu0
  %1323 = vmatprep.mubr.bf16.mxu0 0
  %1324 = vmatmul.mubr.bf16.gmra.mxu0 %v761
  %v1325 = vpop.f32.mrf.mxu0
  %v1326 = vadd.f32 %v184, %v1325
  %v1327 = vpop.f32.mrf.mxu0
  %v1328 = vpop.f32.mrf.mxu0
  %v1329 = vadd.f32 %v184, %v1328
  %v1330 = vpop.f32.mrf.mxu0
  %1331 = vmatprep.mubr.bf16.mxu0 0
  %1332 = vmatmul.mubr.bf16.gmra.mxu0 %v764
  %v1333 = vpop.f32.mrf.mxu0
  %v1334 = vadd.f32 %v184, %v1333
  %v1335 = vpop.f32.mrf.mxu0
  %v1336 = vpop.f32.mrf.mxu0
  %v1337 = vadd.f32 %v184, %v1336
  %v1338 = vpop.f32.mrf.mxu0
  %1339 = vmatprep.mubr.bf16.mxu0 0
  %1340 = vmatmul.mubr.bf16.gmra.mxu0 %v767
  %v1341 = vpop.f32.mrf.mxu0
  %v1342 = vadd.f32 %v184, %v1341
  %v1343 = vpop.f32.mrf.mxu0
  %v1344 = vpop.f32.mrf.mxu0
  %v1345 = vadd.f32 %v184, %v1344
  %v1346 = vpop.f32.mrf.mxu0
  %1347 = vmatprep.mubr.bf16.mxu0 0
  %1348 = vmatmul.mubr.bf16.gmra.mxu0 %v770
  %v1349 = vpop.f32.mrf.mxu0
  %v1350 = vadd.f32 %v184, %v1349
  %v1351 = vpop.f32.mrf.mxu0
  %v1352 = vpop.f32.mrf.mxu0
  %v1353 = vadd.f32 %v184, %v1352
  %v1354 = vpop.f32.mrf.mxu0
  %1355 = vmatprep.mubr.bf16.mxu0 0
  %1356 = vmatmul.mubr.bf16.gmra.mxu0 %v773
  %v1357 = vpop.f32.mrf.mxu0
  %v1358 = vadd.f32 %v184, %v1357
  %v1359 = vpop.f32.mrf.mxu0
  %v1360 = vpop.f32.mrf.mxu0
  %v1361 = vadd.f32 %v184, %v1360
  %v1362 = vpop.f32.mrf.mxu0
  %1363 = vmatprep.mubr.bf16.mxu0 0
  %1364 = vmatmul.mubr.bf16.gmra.mxu0 %v776
  %v1365 = vpop.f32.mrf.mxu0
  %v1366 = vadd.f32 %v184, %v1365
  %v1367 = vpop.f32.mrf.mxu0
  %v1368 = vpop.f32.mrf.mxu0
  %v1369 = vadd.f32 %v184, %v1368
  %v1370 = vpop.f32.mrf.mxu0
  %1371 = vmatprep.mubr.bf16.mxu0 0
  %1372 = vmatmul.mubr.bf16.gmra.mxu0 %v779
  %v1373 = vpop.f32.mrf.mxu0
  %v1374 = vadd.f32 %v184, %v1373
  %v1375 = vpop.f32.mrf.mxu0
  %v1376 = vpop.f32.mrf.mxu0
  %v1377 = vadd.f32 %v184, %v1376
  %v1378 = vpop.f32.mrf.mxu0
  %1379 = vmatprep.mubr.bf16.mxu0 0
  %1380 = vmatmul.mubr.bf16.gmra.mxu0 %v782
  %v1381 = vpop.f32.mrf.mxu0
  %v1382 = vadd.f32 %v184, %v1381
  %v1383 = vpop.f32.mrf.mxu0
  %v1384 = vpop.f32.mrf.mxu0
  %v1385 = vadd.f32 %v184, %v1384
  %v1386 = vpop.f32.mrf.mxu0
  %1387 = vmatprep.mubr.bf16.mxu0 0
  %1388 = vmatmul.mubr.bf16.gmra.mxu0 %v785
  %v1389 = vpop.f32.mrf.mxu0
  %v1390 = vadd.f32 %v184, %v1389
  %v1391 = vpop.f32.mrf.mxu0
  %v1392 = vpop.f32.mrf.mxu0
  %v1393 = vadd.f32 %v184, %v1392
  %v1394 = vpop.f32.mrf.mxu0
  %1395 = vdwg.mxu0
  %v1396 = vmax.f32 %v822, 0.0
  %v1397 = vmax.f32 %v825, 0.0
  %v1398 = vmax.f32 %v830, 0.0
  %v1399 = vmax.f32 %v833, 0.0
  %v1400 = vmax.f32 %v838, 0.0
  %v1401 = vmax.f32 %v841, 0.0
  %v1402 = vmax.f32 %v846, 0.0
  %v1403 = vmax.f32 %v849, 0.0
  %v1404 = vmax.f32 %v854, 0.0
  %v1405 = vmax.f32 %v857, 0.0
  %v1406 = vmax.f32 %v862, 0.0
  %v1407 = vmax.f32 %v865, 0.0
  %v1408 = vmax.f32 %v870, 0.0
  %v1409 = vmax.f32 %v873, 0.0
  %v1410 = vmax.f32 %v878, 0.0
  %v1411 = vmax.f32 %v881, 0.0
  %v1412 = vmax.f32 %v886, 0.0
  %v1413 = vmax.f32 %v889, 0.0
  %v1414 = vmax.f32 %v894, 0.0
  %v1415 = vmax.f32 %v897, 0.0
  %v1416 = vmax.f32 %v902, 0.0
  %v1417 = vmax.f32 %v905, 0.0
  %v1418 = vmax.f32 %v910, 0.0
  %v1419 = vmax.f32 %v913, 0.0
  %v1420 = vmax.f32 %v918, 0.0
  %v1421 = vmax.f32 %v921, 0.0
  %v1422 = vmax.f32 %v926, 0.0
  %v1423 = vmax.f32 %v929, 0.0
  %v1424 = vmax.f32 %v934, 0.0
  %v1425 = vmax.f32 %v937, 0.0
  %v1426 = vmax.f32 %v942, 0.0
  %v1427 = vmax.f32 %v945, 0.0
  %v1428 = vmax.f32 %v950, 0.0
  %v1429 = vmax.f32 %v953, 0.0
  %v1430 = vmax.f32 %v958, 0.0
  %v1431 = vmax.f32 %v961, 0.0
  %v1432 = vmax.f32 %v966, 0.0
  %v1433 = vmax.f32 %v969, 0.0
  %v1434 = vmax.f32 %v974, 0.0
  %v1435 = vmax.f32 %v977, 0.0
  %v1436 = vmax.f32 %v982, 0.0
  %v1437 = vmax.f32 %v985, 0.0
  %v1438 = vmax.f32 %v990, 0.0
  %v1439 = vmax.f32 %v993, 0.0
  %v1440 = vmax.f32 %v998, 0.0
  %v1441 = vmax.f32 %v1001, 0.0
  %v1442 = vmax.f32 %v1006, 0.0
  %v1443 = vmax.f32 %v1009, 0.0
  %v1444 = vmax.f32 %v1014, 0.0
  %v1445 = vmax.f32 %v1017, 0.0
  %v1446 = vmax.f32 %v1022, 0.0
  %v1447 = vmax.f32 %v1025, 0.0
  %v1448 = vmax.f32 %v1030, 0.0
  %v1449 = vmax.f32 %v1033, 0.0
  %v1450 = vmax.f32 %v1038, 0.0
  %v1451 = vmax.f32 %v1041, 0.0
  %v1452 = vmax.f32 %v1046, 0.0
  %v1453 = vmax.f32 %v1049, 0.0
  %v1454 = vmax.f32 %v1054, 0.0
  %v1455 = vmax.f32 %v1057, 0.0
  %v1456 = vmax.f32 %v1062, 0.0
  %v1457 = vmax.f32 %v1065, 0.0
  %v1458 = vmax.f32 %v1070, 0.0
  %v1459 = vmax.f32 %v1073, 0.0
  %v1460 = vmax.f32 %v1078, 0.0
  %v1461 = vmax.f32 %v1081, 0.0
  %v1462 = vmax.f32 %v1086, 0.0
  %v1463 = vmax.f32 %v1089, 0.0
  %v1464 = vmax.f32 %v1094, 0.0
  %v1465 = vmax.f32 %v1097, 0.0
  %v1466 = vmax.f32 %v1102, 0.0
  %v1467 = vmax.f32 %v1105, 0.0
  %v1468 = vmax.f32 %v1110, 0.0
  %v1469 = vmax.f32 %v1113, 0.0
  %v1470 = vmax.f32 %v1118, 0.0
  %v1471 = vmax.f32 %v1121, 0.0
  %v1472 = vmax.f32 %v1126, 0.0
  %v1473 = vmax.f32 %v1129, 0.0
  %v1474 = vmax.f32 %v1134, 0.0
  %v1475 = vmax.f32 %v1137, 0.0
  %v1476 = vmax.f32 %v1142, 0.0
  %v1477 = vmax.f32 %v1145, 0.0
  %v1478 = vmax.f32 %v1150, 0.0
  %v1479 = vmax.f32 %v1153, 0.0
  %v1480 = vmax.f32 %v1158, 0.0
  %v1481 = vmax.f32 %v1161, 0.0
  %v1482 = vmax.f32 %v1166, 0.0
  %v1483 = vmax.f32 %v1169, 0.0
  %v1484 = vmax.f32 %v1174, 0.0
  %v1485 = vmax.f32 %v1177, 0.0
  %v1486 = vmax.f32 %v1182, 0.0
  %v1487 = vmax.f32 %v1185, 0.0
  %v1488 = vmax.f32 %v1190, 0.0
  %v1489 = vmax.f32 %v1193, 0.0
  %v1490 = vmax.f32 %v1198, 0.0
  %v1491 = vmax.f32 %v1201, 0.0
  %v1492 = vmax.f32 %v1206, 0.0
  %v1493 = vmax.f32 %v1209, 0.0
  %v1494 = vmax.f32 %v1214, 0.0
  %v1495 = vmax.f32 %v1217, 0.0
  %v1496 = vmax.f32 %v1222, 0.0
  %v1497 = vmax.f32 %v1225, 0.0
  %v1498 = vmax.f32 %v1230, 0.0
  %v1499 = vmax.f32 %v1233, 0.0
  %v1500 = vmax.f32 %v1238, 0.0
  %v1501 = vmax.f32 %v1241, 0.0
  %v1502 = vmax.f32 %v1246, 0.0
  %v1503 = vmax.f32 %v1249, 0.0
  %v1504 = vmax.f32 %v1254, 0.0
  %v1505 = vmax.f32 %v1257, 0.0
  %v1506 = vmax.f32 %v1262, 0.0
  %v1507 = vmax.f32 %v1265, 0.0
  %v1508 = vmax.f32 %v1270, 0.0
  %v1509 = vmax.f32 %v1273, 0.0
  %v1510 = vmax.f32 %v1278, 0.0
  %v1511 = vmax.f32 %v1281, 0.0
  %v1512 = vmax.f32 %v1286, 0.0
  %v1513 = vmax.f32 %v1289, 0.0
  %v1514 = vmax.f32 %v1294, 0.0
  %v1515 = vmax.f32 %v1297, 0.0
  %v1516 = vmax.f32 %v1302, 0.0
  %v1517 = vmax.f32 %v1305, 0.0
  %v1518 = vmax.f32 %v1310, 0.0
  %v1519 = vmax.f32 %v1313, 0.0
  %v1520 = vmax.f32 %v1318, 0.0
  %v1521 = vmax.f32 %v1321, 0.0
  %v1522 = vmax.f32 %v1326, 0.0
  %v1523 = vmax.f32 %v1329, 0.0
  %v1524 = vmax.f32 %v1334, 0.0
  %v1525 = vmax.f32 %v1337, 0.0
  %v1526 = vmax.f32 %v1342, 0.0
  %v1527 = vmax.f32 %v1345, 0.0
  %v1528 = vmax.f32 %v1350, 0.0
  %v1529 = vmax.f32 %v1353, 0.0
  %v1530 = vmax.f32 %v1358, 0.0
  %v1531 = vmax.f32 %v1361, 0.0
  %v1532 = vmax.f32 %v1366, 0.0
  %v1533 = vmax.f32 %v1369, 0.0
  %v1534 = vmax.f32 %v1374, 0.0
  %v1535 = vmax.f32 %v1377, 0.0
  %v1536 = vmax.f32 %v1382, 0.0
  %v1537 = vmax.f32 %v1385, 0.0
  %v1538 = vmax.f32 %v1390, 0.0
  %v1539 = vmax.f32 %v1393, 0.0
  %1540 = vst [vmem:[#allocation2] sm:$0xff] %v1396
  %1541 = vst [vmem:[#allocation2 + $0x8] sm:$0xff] %v1397
  %1542 = vst [vmem:[#allocation2 + $0x10] sm:$0xff] %v1398
  %1543 = vst [vmem:[#allocation2 + $0x18] sm:$0xff] %v1399
  %1544 = vst [vmem:[#allocation2 + $0x20] sm:$0xff] %v1400
  %1545 = vst [vmem:[#allocation2 + $0x28] sm:$0xff] %v1401
  %1546 = vst [vmem:[#allocation2 + $0x30] sm:$0xff] %v1402
  %1547 = vst [vmem:[#allocation2 + $0x38] sm:$0xff] %v1403
  %1548 = vst [vmem:[#allocation2 + $0x40] sm:$0xff] %v1404
  %1549 = vst [vmem:[#allocation2 + $0x48] sm:$0xff] %v1405
  %1550 = vst [vmem:[#allocation2 + $0x50] sm:$0xff] %v1406
  %1551 = vst [vmem:[#allocation2 + $0x58] sm:$0xff] %v1407
  %1552 = vst [vmem:[#allocation2 + $0x60] sm:$0xff] %v1408
  %1553 = vst [vmem:[#allocation2 + $0x68] sm:$0xff] %v1409
  %1554 = vst [vmem:[#allocation2 + $0x70] sm:$0xff] %v1410
  %1555 = vst [vmem:[#allocation2 + $0x78] sm:$0xff] %v1411
  %1556 = vst [vmem:[#allocation2 + $0x80] sm:$0xff] %v1412
  %1557 = vst [vmem:[#allocation2 + $0x88] sm:$0xff] %v1413
  %1558 = vst [vmem:[#allocation2 + $0x90] sm:$0xff] %v1414
  %1559 = vst [vmem:[#allocation2 + $0x98] sm:$0xff] %v1415
  %1560 = vst [vmem:[#allocation2 + $0xa0] sm:$0xff] %v1416
  %1561 = vst [vmem:[#allocation2 + $0xa8] sm:$0xff] %v1417
  %1562 = vst [vmem:[#allocation2 + $0xb0] sm:$0xff] %v1418
  %1563 = vst [vmem:[#allocation2 + $0xb8] sm:$0xff] %v1419
  %1564 = vst [vmem:[#allocation2 + $0xc0] sm:$0xff] %v1420
  %1565 = vst [vmem:[#allocation2 + $0xc8] sm:$0xff] %v1421
  %1566 = vst [vmem:[#allocation2 + $0xd0] sm:$0xff] %v1422
  %1567 = vst [vmem:[#allocation2 + $0xd8] sm:$0xff] %v1423
  %1568 = vst [vmem:[#allocation2 + $0xe0] sm:$0xff] %v1424
  %1569 = vst [vmem:[#allocation2 + $0xe8] sm:$0xff] %v1425
  %1570 = vst [vmem:[#allocation2 + $0xf0] sm:$0xff] %v1426
  %1571 = vst [vmem:[#allocation2 + $0xf8] sm:$0xff] %v1427
  %1572 = vst [vmem:[#allocation2 + $0x100] sm:$0xff] %v1428
  %1573 = vst [vmem:[#allocation2 + $0x108] sm:$0xff] %v1429
  %1574 = vst [vmem:[#allocation2 + $0x110] sm:$0xff] %v1430
  %1575 = vst [vmem:[#allocation2 + $0x118] sm:$0xff] %v1431
  %1576 = vst [vmem:[#allocation2 + $0x120] sm:$0xff] %v1432
  %1577 = vst [vmem:[#allocation2 + $0x128] sm:$0xff] %v1433
  %1578 = vst [vmem:[#allocation2 + $0x130] sm:$0xff] %v1434
  %1579 = vst [vmem:[#allocation2 + $0x138] sm:$0xff] %v1435
  %1580 = vst [vmem:[#allocation2 + $0x140] sm:$0xff] %v1436
  %1581 = vst [vmem:[#allocation2 + $0x148] sm:$0xff] %v1437
  %1582 = vst [vmem:[#allocation2 + $0x150] sm:$0xff] %v1438
  %1583 = vst [vmem:[#allocation2 + $0x158] sm:$0xff] %v1439
  %1584 = vst [vmem:[#allocation2 + $0x160] sm:$0xff] %v1440
  %1585 = vst [vmem:[#allocation2 + $0x168] sm:$0xff] %v1441
  %1586 = vst [vmem:[#allocation2 + $0x170] sm:$0xff] %v1442
  %1587 = vst [vmem:[#allocation2 + $0x178] sm:$0xff] %v1443
  %1588 = vst [vmem:[#allocation2 + $0x180] sm:$0xff] %v1444
  %1589 = vst [vmem:[#allocation2 + $0x188] sm:$0xff] %v1445
  %1590 = vst [vmem:[#allocation2 + $0x190] sm:$0xff] %v1446
  %1591 = vst [vmem:[#allocation2 + $0x198] sm:$0xff] %v1447
  %1592 = vst [vmem:[#allocation2 + $0x1a0] sm:$0xff] %v1448
  %1593 = vst [vmem:[#allocation2 + $0x1a8] sm:$0xff] %v1449
  %1594 = vst [vmem:[#allocation2 + $0x1b0] sm:$0xff] %v1450
  %1595 = vst [vmem:[#allocation2 + $0x1b8] sm:$0xff] %v1451
  %1596 = vst [vmem:[#allocation2 + $0x1c0] sm:$0xff] %v1452
  %1597 = vst [vmem:[#allocation2 + $0x1c8] sm:$0xff] %v1453
  %1598 = vst [vmem:[#allocation2 + $0x1d0] sm:$0xff] %v1454
  %1599 = vst [vmem:[#allocation2 + $0x1d8] sm:$0xff] %v1455
  %1600 = vst [vmem:[#allocation2 + $0x1e0] sm:$0xff] %v1456
  %1601 = vst [vmem:[#allocation2 + $0x1e8] sm:$0xff] %v1457
  %1602 = vst [vmem:[#allocation2 + $0x1f0] sm:$0xff] %v1458
  %1603 = vst [vmem:[#allocation2 + $0x1f8] sm:$0xff] %v1459
  %1604 = vst [vmem:[#allocation2 + $0x200] sm:$0xff] %v1460
  %1605 = vst [vmem:[#allocation2 + $0x208] sm:$0xff] %v1461
  %1606 = vst [vmem:[#allocation2 + $0x210] sm:$0xff] %v1462
  %1607 = vst [vmem:[#allocation2 + $0x218] sm:$0xff] %v1463
  %1608 = vst [vmem:[#allocation2 + $0x220] sm:$0xff] %v1464
  %1609 = vst [vmem:[#allocation2 + $0x228] sm:$0xff] %v1465
  %1610 = vst [vmem:[#allocation2 + $0x230] sm:$0xff] %v1466
  %1611 = vst [vmem:[#allocation2 + $0x238] sm:$0xff] %v1467
  %1612 = vst [vmem:[#allocation2 + $0x240] sm:$0xff] %v1468
  %1613 = vst [vmem:[#allocation2 + $0x248] sm:$0xff] %v1469
  %1614 = vst [vmem:[#allocation2 + $0x250] sm:$0xff] %v1470
  %1615 = vst [vmem:[#allocation2 + $0x258] sm:$0xff] %v1471
  %1616 = vst [vmem:[#allocation2 + $0x260] sm:$0xff] %v1472
  %1617 = vst [vmem:[#allocation2 + $0x268] sm:$0xff] %v1473
  %1618 = vst [vmem:[#allocation2 + $0x270] sm:$0xff] %v1474
  %1619 = vst [vmem:[#allocation2 + $0x278] sm:$0xff] %v1475
  %1620 = vst [vmem:[#allocation2 + $0x280] sm:$0xff] %v1476
  %1621 = vst [vmem:[#allocation2 + $0x288] sm:$0xff] %v1477
  %1622 = vst [vmem:[#allocation2 + $0x290] sm:$0xff] %v1478
  %1623 = vst [vmem:[#allocation2 + $0x298] sm:$0xff] %v1479
  %1624 = vst [vmem:[#allocation2 + $0x2a0] sm:$0xff] %v1480
  %1625 = vst [vmem:[#allocation2 + $0x2a8] sm:$0xff] %v1481
  %1626 = vst [vmem:[#allocation2 + $0x2b0] sm:$0xff] %v1482
  %1627 = vst [vmem:[#allocation2 + $0x2b8] sm:$0xff] %v1483
  %1628 = vst [vmem:[#allocation2 + $0x2c0] sm:$0xff] %v1484
  %1629 = vst [vmem:[#allocation2 + $0x2c8] sm:$0xff] %v1485
  %1630 = vst [vmem:[#allocation2 + $0x2d0] sm:$0xff] %v1486
  %1631 = vst [vmem:[#allocation2 + $0x2d8] sm:$0xff] %v1487
  %1632 = vst [vmem:[#allocation2 + $0x2e0] sm:$0xff] %v1488
  %1633 = vst [vmem:[#allocation2 + $0x2e8] sm:$0xff] %v1489
  %1634 = vst [vmem:[#allocation2 + $0x2f0] sm:$0xff] %v1490
  %1635 = vst [vmem:[#allocation2 + $0x2f8] sm:$0xff] %v1491
  %1636 = vst [vmem:[#allocation2 + $0x300] sm:$0xff] %v1492
  %1637 = vst [vmem:[#allocation2 + $0x308] sm:$0xff] %v1493
  %1638 = vst [vmem:[#allocation2 + $0x310] sm:$0xff] %v1494
  %1639 = vst [vmem:[#allocation2 + $0x318] sm:$0xff] %v1495
  %1640 = vst [vmem:[#allocation2 + $0x320] sm:$0xff] %v1496
  %1641 = vst [vmem:[#allocation2 + $0x328] sm:$0xff] %v1497
  %1642 = vst [vmem:[#allocation2 + $0x330] sm:$0xff] %v1498
  %1643 = vst [vmem:[#allocation2 + $0x338] sm:$0xff] %v1499
  %1644 = vst [vmem:[#allocation2 + $0x340] sm:$0xff] %v1500
  %1645 = vst [vmem:[#allocation2 + $0x348] sm:$0xff] %v1501
  %1646 = vst [vmem:[#allocation2 + $0x350] sm:$0xff] %v1502
  %1647 = vst [vmem:[#allocation2 + $0x358] sm:$0xff] %v1503
  %1648 = vst [vmem:[#allocation2 + $0x360] sm:$0xff] %v1504
  %1649 = vst [vmem:[#allocation2 + $0x368] sm:$0xff] %v1505
  %1650 = vst [vmem:[#allocation2 + $0x370] sm:$0xff] %v1506
  %1651 = vst [vmem:[#allocation2 + $0x378] sm:$0xff] %v1507
  %1652 = vst [vmem:[#allocation2 + $0x380] sm:$0xff] %v1508
  %1653 = vst [vmem:[#allocation2 + $0x388] sm:$0xff] %v1509
  %1654 = vst [vmem:[#allocation2 + $0x390] sm:$0xff] %v1510
  %1655 = vst [vmem:[#allocation2 + $0x398] sm:$0xff] %v1511
  %1656 = vst [vmem:[#allocation2 + $0x3a0] sm:$0xff] %v1512
  %1657 = vst [vmem:[#allocation2 + $0x3a8] sm:$0xff] %v1513
  %1658 = vst [vmem:[#allocation2 + $0x3b0] sm:$0xff] %v1514
  %1659 = vst [vmem:[#allocation2 + $0x3b8] sm:$0xff] %v1515
  %1660 = vst [vmem:[#allocation2 + $0x3c0] sm:$0xff] %v1516
  %1661 = vst [vmem:[#allocation2 + $0x3c8] sm:$0xff] %v1517
  %1662 = vst [vmem:[#allocation2 + $0x3d0] sm:$0xff] %v1518
  %1663 = vst [vmem:[#allocation2 + $0x3d8] sm:$0xff] %v1519
  %1664 = vst [vmem:[#allocation2 + $0x3e0] sm:$0xff] %v1520
  %1665 = vst [vmem:[#allocation2 + $0x3e8] sm:$0xff] %v1521
  %1666 = vst [vmem:[#allocation2 + $0x3f0] sm:$0xff] %v1522
  %1667 = vst [vmem:[#allocation2 + $0x3f8] sm:$0xff] %v1523
  %1668 = vst [vmem:[#allocation2 + $0x400] sm:$0xff] %v1524
  %1669 = vst [vmem:[#allocation2 + $0x408] sm:$0xff] %v1525
  %1670 = vst [vmem:[#allocation2 + $0x410] sm:$0xff] %v1526
  %1671 = vst [vmem:[#allocation2 + $0x418] sm:$0xff] %v1527
  %1672 = vst [vmem:[#allocation2 + $0x420] sm:$0xff] %v1528
  %1673 = vst [vmem:[#allocation2 + $0x428] sm:$0xff] %v1529
  %1674 = vst [vmem:[#allocation2 + $0x430] sm:$0xff] %v1530
  %1675 = vst [vmem:[#allocation2 + $0x438] sm:$0xff] %v1531
  %1676 = vst [vmem:[#allocation2 + $0x440] sm:$0xff] %v1532
  %1677 = vst [vmem:[#allocation2 + $0x448] sm:$0xff] %v1533
  %1678 = vst [vmem:[#allocation2 + $0x450] sm:$0xff] %v1534
  %1679 = vst [vmem:[#allocation2 + $0x458] sm:$0xff] %v1535
  %1680 = vst [vmem:[#allocation2 + $0x460] sm:$0xff] %v1536
  %1681 = vst [vmem:[#allocation2 + $0x468] sm:$0xff] %v1537
  %1682 = vst [vmem:[#allocation2 + $0x470] sm:$0xff] %v1538
  %1683 = vst [vmem:[#allocation2 + $0x478] sm:$0xff] %v1539
  %v1684 = vld [vmem:[#allocation2] sm:$0xff]
  %v1685 = vld [vmem:[#allocation2 + $0x8] sm:$0xff]
  %v1686 = vld [vmem:[#allocation2 + $0x10] sm:$0xff]
  %v1687 = vld [vmem:[#allocation2 + $0x18] sm:$0xff]
  %v1688 = vld [vmem:[#allocation2 + $0x20] sm:$0xff]
  %v1689 = vld [vmem:[#allocation2 + $0x28] sm:$0xff]
  %v1690 = vld [vmem:[#allocation2 + $0x30] sm:$0xff]
  %v1691 = vld [vmem:[#allocation2 + $0x38] sm:$0xff]
  %v1692 = vld [vmem:[#allocation2 + $0x40] sm:$0xff]
  %v1693 = vld [vmem:[#allocation2 + $0x48] sm:$0xff]
  %v1694 = vld [vmem:[#allocation2 + $0x50] sm:$0xff]
  %v1695 = vld [vmem:[#allocation2 + $0x58] sm:$0xff]
  %v1696 = vld [vmem:[#allocation2 + $0x60] sm:$0xff]
  %v1697 = vld [vmem:[#allocation2 + $0x68] sm:$0xff]
  %v1698 = vld [vmem:[#allocation2 + $0x70] sm:$0xff]
  %v1699 = vld [vmem:[#allocation2 + $0x78] sm:$0xff]
  %v1700 = vld [vmem:[#allocation2 + $0x80] sm:$0xff]
  %v1701 = vld [vmem:[#allocation2 + $0x88] sm:$0xff]
  %v1702 = vld [vmem:[#allocation2 + $0x90] sm:$0xff]
  %v1703 = vld [vmem:[#allocation2 + $0x98] sm:$0xff]
  %v1704 = vld [vmem:[#allocation2 + $0xa0] sm:$0xff]
  %v1705 = vld [vmem:[#allocation2 + $0xa8] sm:$0xff]
  %v1706 = vld [vmem:[#allocation2 + $0xb0] sm:$0xff]
  %v1707 = vld [vmem:[#allocation2 + $0xb8] sm:$0xff]
  %v1708 = vld [vmem:[#allocation2 + $0xc0] sm:$0xff]
  %v1709 = vld [vmem:[#allocation2 + $0xc8] sm:$0xff]
  %v1710 = vld [vmem:[#allocation2 + $0xd0] sm:$0xff]
  %v1711 = vld [vmem:[#allocation2 + $0xd8] sm:$0xff]
  %v1712 = vld [vmem:[#allocation2 + $0xe0] sm:$0xff]
  %v1713 = vld [vmem:[#allocation2 + $0xe8] sm:$0xff]
  %v1714 = vld [vmem:[#allocation2 + $0xf0] sm:$0xff]
  %v1715 = vld [vmem:[#allocation2 + $0xf8] sm:$0xff]
  %v1716 = vld [vmem:[#allocation2 + $0x100] sm:$0xff]
  %v1717 = vld [vmem:[#allocation2 + $0x108] sm:$0xff]
  %v1718 = vld [vmem:[#allocation2 + $0x110] sm:$0xff]
  %v1719 = vld [vmem:[#allocation2 + $0x118] sm:$0x1]
  %v1720 = vpack.c.bf16 %v1685, %v1684
  %v1721 = vpack.c.bf16 %v1687, %v1686
  %v1722 = vpack.c.bf16 %v1689, %v1688
  %v1723 = vpack.c.bf16 %v1691, %v1690
  %v1724 = vpack.c.bf16 %v1693, %v1692
  %v1725 = vpack.c.bf16 %v1695, %v1694
  %v1726 = vpack.c.bf16 %v1697, %v1696
  %v1727 = vpack.c.bf16 %v1699, %v1698
  %v1728 = vpack.c.bf16 %v1701, %v1700
  %v1729 = vpack.c.bf16 %v1703, %v1702
  %v1730 = vpack.c.bf16 %v1705, %v1704
  %v1731 = vpack.c.bf16 %v1707, %v1706
  %v1732 = vpack.c.bf16 %v1709, %v1708
  %v1733 = vpack.c.bf16 %v1711, %v1710
  %v1734 = vpack.c.bf16 %v1713, %v1712
  %v1735 = vpack.c.bf16 %v1715, %v1714
  %v1736 = vpack.c.bf16 %v1717, %v1716
  %v1737 = vpack.c.bf16 %v1719, %v1718
  %v1738 = vld [vmem:[%s3] sm:$0xf]
  %v1739 = vld [vmem:[%s3 + $0x4] sm:$0xf]
  %v1740 = vld [vmem:[%s3 + $0x8] sm:$0xf]
  %v1741 = vld [vmem:[%s3 + $0xc] sm:$0xf]
  %v1742 = vld [vmem:[%s3 + $0x10] sm:$0xf]
  %v1743 = vld [vmem:[%s3 + $0x14] sm:$0xf]
  %v1744 = vld [vmem:[%s3 + $0x18] sm:$0xf]
  %v1745 = vld [vmem:[%s3 + $0x1c] sm:$0xf]
  %v1746 = vld [vmem:[%s3 + $0x20] sm:$0xf]
  %v1747 = vld [vmem:[%s3 + $0x24] sm:$0xf]
  %v1748 = vld [vmem:[%s3 + $0x28] sm:$0xf]
  %v1749 = vld [vmem:[%s3 + $0x2c] sm:$0xf]
  %v1750 = vld [vmem:[%s3 + $0x30] sm:$0xf]
  %v1751 = vld [vmem:[%s3 + $0x34] sm:$0xf]
  %v1752 = vld [vmem:[%s3 + $0x38] sm:$0xf]
  %v1753 = vld [vmem:[%s3 + $0x3c] sm:$0xf]
  %v1754 = vld [vmem:[#allocation2 + $0x120] sm:$0xff]
  %v1755 = vld [vmem:[#allocation2 + $0x128] sm:$0xff]
  %v1756 = vld [vmem:[#allocation2 + $0x130] sm:$0xff]
  %v1757 = vld [vmem:[#allocation2 + $0x138] sm:$0xff]
  %v1758 = vld [vmem:[#allocation2 + $0x140] sm:$0xff]
  %v1759 = vld [vmem:[#allocation2 + $0x148] sm:$0xff]
  %v1760 = vld [vmem:[#allocation2 + $0x150] sm:$0xff]
  %v1761 = vld [vmem:[#allocation2 + $0x158] sm:$0xff]
  %v1762 = vld [vmem:[#allocation2 + $0x160] sm:$0xff]
  %v1763 = vld [vmem:[#allocation2 + $0x168] sm:$0xff]
  %v1764 = vld [vmem:[#allocation2 + $0x170] sm:$0xff]
  %v1765 = vld [vmem:[#allocation2 + $0x178] sm:$0xff]
  %v1766 = vld [vmem:[#allocation2 + $0x180] sm:$0xff]
  %v1767 = vld [vmem:[#allocation2 + $0x188] sm:$0xff]
  %v1768 = vld [vmem:[#allocation2 + $0x190] sm:$0xff]
  %v1769 = vld [vmem:[#allocation2 + $0x198] sm:$0xff]
  %v1770 = vld [vmem:[#allocation2 + $0x1a0] sm:$0xff]
  %v1771 = vld [vmem:[#allocation2 + $0x1a8] sm:$0xff]
  %v1772 = vld [vmem:[#allocation2 + $0x1b0] sm:$0xff]
  %v1773 = vld [vmem:[#allocation2 + $0x1b8] sm:$0xff]
  %v1774 = vld [vmem:[#allocation2 + $0x1c0] sm:$0xff]
  %v1775 = vld [vmem:[#allocation2 + $0x1c8] sm:$0xff]
  %v1776 = vld [vmem:[#allocation2 + $0x1d0] sm:$0xff]
  %v1777 = vld [vmem:[#allocation2 + $0x1d8] sm:$0xff]
  %v1778 = vld [vmem:[#allocation2 + $0x1e0] sm:$0xff]
  %v1779 = vld [vmem:[#allocation2 + $0x1e8] sm:$0xff]
  %v1780 = vld [vmem:[#allocation2 + $0x1f0] sm:$0xff]
  %v1781 = vld [vmem:[#allocation2 + $0x1f8] sm:$0xff]
  %v1782 = vld [vmem:[#allocation2 + $0x200] sm:$0xff]
  %v1783 = vld [vmem:[#allocation2 + $0x208] sm:$0xff]
  %v1784 = vld [vmem:[#allocation2 + $0x210] sm:$0xff]
  %v1785 = vld [vmem:[#allocation2 + $0x218] sm:$0xff]
  %v1786 = vld [vmem:[#allocation2 + $0x220] sm:$0xff]
  %v1787 = vld [vmem:[#allocation2 + $0x228] sm:$0xff]
  %v1788 = vld [vmem:[#allocation2 + $0x230] sm:$0xff]
  %v1789 = vld [vmem:[#allocation2 + $0x238] sm:$0x1]
  %v1790 = vpack.c.bf16 %v1755, %v1754
  %v1791 = vpack.c.bf16 %v1757, %v1756
  %v1792 = vpack.c.bf16 %v1759, %v1758
  %v1793 = vpack.c.bf16 %v1761, %v1760
  %v1794 = vpack.c.bf16 %v1763, %v1762
  %v1795 = vpack.c.bf16 %v1765, %v1764
  %v1796 = vpack.c.bf16 %v1767, %v1766
  %v1797 = vpack.c.bf16 %v1769, %v1768
  %v1798 = vpack.c.bf16 %v1771, %v1770
  %v1799 = vpack.c.bf16 %v1773, %v1772
  %v1800 = vpack.c.bf16 %v1775, %v1774
  %v1801 = vpack.c.bf16 %v1777, %v1776
  %v1802 = vpack.c.bf16 %v1779, %v1778
  %v1803 = vpack.c.bf16 %v1781, %v1780
  %v1804 = vpack.c.bf16 %v1783, %v1782
  %v1805 = vpack.c.bf16 %v1785, %v1784
  %v1806 = vpack.c.bf16 %v1787, %v1786
  %v1807 = vpack.c.bf16 %v1789, %v1788
  %s1808 = scalar_lea.vmem %s3, 64
  %v1809 = vld [vmem:[%s1808] sm:$0xf]
  %v1810 = vld [vmem:[%s1808 + $0x4] sm:$0xf]
  %v1811 = vld [vmem:[%s1808 + $0x8] sm:$0xf]
  %v1812 = vld [vmem:[%s1808 + $0xc] sm:$0xf]
  %v1813 = vld [vmem:[%s1808 + $0x10] sm:$0xf]
  %v1814 = vld [vmem:[%s1808 + $0x14] sm:$0xf]
  %v1815 = vld [vmem:[%s1808 + $0x18] sm:$0xf]
  %v1816 = vld [vmem:[%s1808 + $0x1c] sm:$0xf]
  %v1817 = vld [vmem:[%s1808 + $0x20] sm:$0xf]
  %v1818 = vld [vmem:[%s1808 + $0x24] sm:$0xf]
  %v1819 = vld [vmem:[%s1808 + $0x28] sm:$0xf]
  %v1820 = vld [vmem:[%s1808 + $0x2c] sm:$0xf]
  %v1821 = vld [vmem:[%s1808 + $0x30] sm:$0xf]
  %v1822 = vld [vmem:[%s1808 + $0x34] sm:$0xf]
  %v1823 = vld [vmem:[%s1808 + $0x38] sm:$0xf]
  %v1824 = vld [vmem:[%s1808 + $0x3c] sm:$0xf]
  %v1841 = vunpack.c.l.b16 %v1809
  %v1842 = vunpack.c.l.b16 %v1810
  %v1843 = vunpack.c.l.b16 %v1811
  %v1844 = vunpack.c.l.b16 %v1812
  %v1845 = vunpack.c.l.b16 %v1813
  %v1846 = vunpack.c.l.b16 %v1814
  %v1847 = vunpack.c.l.b16 %v1815
  %v1848 = vunpack.c.l.b16 %v1816
  %v1849 = vunpack.c.l.b16 %v1817
  %v1850 = vunpack.c.l.b16 %v1818
  %v1851 = vunpack.c.l.b16 %v1819
  %v1852 = vunpack.c.l.b16 %v1820
  %v1853 = vunpack.c.l.b16 %v1821
  %v1854 = vunpack.c.l.b16 %v1822
  %v1855 = vunpack.c.l.b16 %v1823
  %v1856 = vunpack.c.l.b16 %v1824
  %v1857 = vpack.c.b16 %v1842, %v1841
  %v1858 = vpack.c.b16 %v1844, %v1843
  %v1859 = vpack.c.b16 %v1846, %v1845
  %v1860 = vpack.c.b16 %v1848, %v1847
  %v1861 = vpack.c.b16 %v1850, %v1849
  %v1862 = vpack.c.b16 %v1852, %v1851
  %v1863 = vpack.c.b16 %v1854, %v1853
  %v1864 = vpack.c.b16 %v1856, %v1855
  %1873 = vmatprep.subr.bf16.mxu0 0
  %1874 = vmatpush1.bf16.msra.mxu0 %v1864
  %1875 = vmatprep.subr.bf16.mxu0 0
  %1876 = vmatpush1.bf16.msra.mxu0 %v1863
  %1877 = vmatprep.subr.bf16.mxu0 0
  %1878 = vmatpush1.bf16.msra.mxu0 %v1862
  %1879 = vmatprep.subr.bf16.mxu0 0
  %1880 = vmatpush1.bf16.msra.mxu0 %v1861
  %1881 = vmatprep.subr.bf16.mxu0 0
  %1882 = vmatpush1.bf16.msra.mxu0 %v1860
  %1883 = vmatprep.subr.bf16.mxu0 0
  %1884 = vmatpush1.bf16.msra.mxu0 %v1859
  %1885 = vmatprep.subr.bf16.mxu0 0
  %1886 = vmatpush1.bf16.msra.mxu0 %v1858
  %1887 = vmatprep.subr.bf16.mxu0 0
  %1888 = vmatpush1.bf16.msra.mxu0 %v1857
  %1889 = vmatprep.subr.bf16.mxu0 0
  %1890 = vmatpush2.bf16.msra.mxu0 0
  %1891 = vmatprep.subr.bf16.mxu0 0
  %1892 = vmatpush2.bf16.msra.mxu0 0
  %1893 = vmatprep.subr.bf16.mxu0 0
  %1894 = vmatpush2.bf16.msra.mxu0 0
  %1895 = vmatprep.subr.bf16.mxu0 0
  %1896 = vmatpush2.bf16.msra.mxu0 0
  %1897 = vmatprep.subr.bf16.mxu0 0
  %1898 = vmatpush2.bf16.msra.mxu0 0
  %1899 = vmatprep.subr.bf16.mxu0 0
  %1900 = vmatpush2.bf16.msra.mxu0 0
  %1901 = vmatprep.subr.bf16.mxu0 0
  %1902 = vmatpush2.bf16.msra.mxu0 0
  %1903 = vmatprep.subr.bf16.mxu0 0
  %1904 = vmatpush2.bf16.msra.mxu0 0
  %1905 = vmatprep.mubr.bf16.mxu0 0
  %1906 = vmatmul.mubr.bf16.gmra.mxu0 %v1790
  %v1907 = vpop.f32.mrf.mxu0
  %v1908 = vadd.f32 0.0, %v1907
  %v1909 = vpop.f32.mrf.mxu0
  %v1910 = vpop.f32.mrf.mxu0
  %v1911 = vadd.f32 0.0, %v1910
  %v1912 = vpop.f32.mrf.mxu0
  %1913 = vmatprep.mubr.bf16.mxu0 0
  %1914 = vmatmul.mubr.bf16.gmra.mxu0 %v1791
  %v1915 = vpop.f32.mrf.mxu0
  %v1916 = vadd.f32 0.0, %v1915
  %v1917 = vpop.f32.mrf.mxu0
  %v1918 = vpop.f32.mrf.mxu0
  %v1919 = vadd.f32 0.0, %v1918
  %v1920 = vpop.f32.mrf.mxu0
  %1921 = vmatprep.mubr.bf16.mxu0 0
  %1922 = vmatmul.mubr.bf16.gmra.mxu0 %v1792
  %v1923 = vpop.f32.mrf.mxu0
  %v1924 = vadd.f32 0.0, %v1923
  %v1925 = vpop.f32.mrf.mxu0
  %v1926 = vpop.f32.mrf.mxu0
  %v1927 = vadd.f32 0.0, %v1926
  %v1928 = vpop.f32.mrf.mxu0
  %1929 = vmatprep.mubr.bf16.mxu0 0
  %1930 = vmatmul.mubr.bf16.gmra.mxu0 %v1793
  %v1931 = vpop.f32.mrf.mxu0
  %v1932 = vadd.f32 0.0, %v1931
  %v1933 = vpop.f32.mrf.mxu0
  %v1934 = vpop.f32.mrf.mxu0
  %v1935 = vadd.f32 0.0, %v1934
  %v1936 = vpop.f32.mrf.mxu0
  %1937 = vmatprep.mubr.bf16.mxu0 0
  %1938 = vmatmul.mubr.bf16.gmra.mxu0 %v1794
  %v1939 = vpop.f32.mrf.mxu0
  %v1940 = vadd.f32 0.0, %v1939
  %v1941 = vpop.f32.mrf.mxu0
  %v1942 = vpop.f32.mrf.mxu0
  %v1943 = vadd.f32 0.0, %v1942
  %v1944 = vpop.f32.mrf.mxu0
  %1945 = vmatprep.mubr.bf16.mxu0 0
  %1946 = vmatmul.mubr.bf16.gmra.mxu0 %v1795
  %v1947 = vpop.f32.mrf.mxu0
  %v1948 = vadd.f32 0.0, %v1947
  %v1949 = vpop.f32.mrf.mxu0
  %v1950 = vpop.f32.mrf.mxu0
  %v1951 = vadd.f32 0.0, %v1950
  %v1952 = vpop.f32.mrf.mxu0
  %1953 = vmatprep.mubr.bf16.mxu0 0
  %1954 = vmatmul.mubr.bf16.gmra.mxu0 %v1796
  %v1955 = vpop.f32.mrf.mxu0
  %v1956 = vadd.f32 0.0, %v1955
  %v1957 = vpop.f32.mrf.mxu0
  %v1958 = vpop.f32.mrf.mxu0
  %v1959 = vadd.f32 0.0, %v1958
  %v1960 = vpop.f32.mrf.mxu0
  %1961 = vmatprep.mubr.bf16.mxu0 0
  %1962 = vmatmul.mubr.bf16.gmra.mxu0 %v1797
  %v1963 = vpop.f32.mrf.mxu0
  %v1964 = vadd.f32 0.0, %v1963
  %v1965 = vpop.f32.mrf.mxu0
  %v1966 = vpop.f32.mrf.mxu0
  %v1967 = vadd.f32 0.0, %v1966
  %v1968 = vpop.f32.mrf.mxu0
  %1969 = vmatprep.mubr.bf16.mxu0 0
  %1970 = vmatmul.mubr.bf16.gmra.mxu0 %v1798
  %v1971 = vpop.f32.mrf.mxu0
  %v1972 = vadd.f32 0.0, %v1971
  %v1973 = vpop.f32.mrf.mxu0
  %v1974 = vpop.f32.mrf.mxu0
  %v1975 = vadd.f32 0.0, %v1974
  %v1976 = vpop.f32.mrf.mxu0
  %1977 = vmatprep.mubr.bf16.mxu0 0
  %1978 = vmatmul.mubr.bf16.gmra.mxu0 %v1799
  %v1979 = vpop.f32.mrf.mxu0
  %v1980 = vadd.f32 0.0, %v1979
  %v1981 = vpop.f32.mrf.mxu0
  %v1982 = vpop.f32.mrf.mxu0
  %v1983 = vadd.f32 0.0, %v1982
  %v1984 = vpop.f32.mrf.mxu0
  %1985 = vmatprep.mubr.bf16.mxu0 0
  %1986 = vmatmul.mubr.bf16.gmra.mxu0 %v1800
  %v1987 = vpop.f32.mrf.mxu0
  %v1988 = vadd.f32 0.0, %v1987
  %v1989 = vpop.f32.mrf.mxu0
  %v1990 = vpop.f32.mrf.mxu0
  %v1991 = vadd.f32 0.0, %v1990
  %v1992 = vpop.f32.mrf.mxu0
  %1993 = vmatprep.mubr.bf16.mxu0 0
  %1994 = vmatmul.mubr.bf16.gmra.mxu0 %v1801
  %v1995 = vpop.f32.mrf.mxu0
  %v1996 = vadd.f32 0.0, %v1995
  %v1997 = vpop.f32.mrf.mxu0
  %v1998 = vpop.f32.mrf.mxu0
  %v1999 = vadd.f32 0.0, %v1998
  %v2000 = vpop.f32.mrf.mxu0
  %2001 = vmatprep.mubr.bf16.mxu0 0
  %2002 = vmatmul.mubr.bf16.gmra.mxu0 %v1802
  %v2003 = vpop.f32.mrf.mxu0
  %v2004 = vadd.f32 0.0, %v2003
  %v2005 = vpop.f32.mrf.mxu0
  %v2006 = vpop.f32.mrf.mxu0
  %v2007 = vadd.f32 0.0, %v2006
  %v2008 = vpop.f32.mrf.mxu0
  %2009 = vmatprep.mubr.bf16.mxu0 0
  %2010 = vmatmul.mubr.bf16.gmra.mxu0 %v1803
  %v2011 = vpop.f32.mrf.mxu0
  %v2012 = vadd.f32 0.0, %v2011
  %v2013 = vpop.f32.mrf.mxu0
  %v2014 = vpop.f32.mrf.mxu0
  %v2015 = vadd.f32 0.0, %v2014
  %v2016 = vpop.f32.mrf.mxu0
  %2017 = vmatprep.mubr.bf16.mxu0 0
  %2018 = vmatmul.mubr.bf16.gmra.mxu0 %v1804
  %v2019 = vpop.f32.mrf.mxu0
  %v2020 = vadd.f32 0.0, %v2019
  %v2021 = vpop.f32.mrf.mxu0
  %v2022 = vpop.f32.mrf.mxu0
  %v2023 = vadd.f32 0.0, %v2022
  %v2024 = vpop.f32.mrf.mxu0
  %2025 = vmatprep.mubr.bf16.mxu0 0
  %2026 = vmatmul.mubr.bf16.gmra.mxu0 %v1805
  %v2027 = vpop.f32.mrf.mxu0
  %v2028 = vadd.f32 0.0, %v2027
  %v2029 = vpop.f32.mrf.mxu0
  %v2030 = vpop.f32.mrf.mxu0
  %v2031 = vadd.f32 0.0, %v2030
  %v2032 = vpop.f32.mrf.mxu0
  %2033 = vmatprep.mubr.bf16.mxu0 0
  %2034 = vmatmul.mubr.bf16.gmra.mxu0 %v1806
  %v2035 = vpop.f32.mrf.mxu0
  %v2036 = vadd.f32 0.0, %v2035
  %v2037 = vpop.f32.mrf.mxu0
  %v2038 = vpop.f32.mrf.mxu0
  %v2039 = vadd.f32 0.0, %v2038
  %v2040 = vpop.f32.mrf.mxu0
  %2041 = vmatprep.mubr.bf16.mxu0 0
  %2042 = vmatmul.mubr.bf16.gmra.mxu0 %v1807
  %v2043 = vpop.f32.mrf.mxu0
  %v2044 = vadd.f32 0.0, %v2043
  %v2045 = vpop.f32.mrf.mxu0
  %v2046 = vpop.f32.mrf.mxu0
  %v2047 = vadd.f32 0.0, %v2046
  %v2048 = vpop.f32.mrf.mxu0
  %2049 = vdwg.mxu0
  %v2066 = vunpack.c.l.b16 %v1738
  %v2067 = vunpack.c.l.b16 %v1739
  %v2068 = vunpack.c.l.b16 %v1740
  %v2069 = vunpack.c.l.b16 %v1741
  %v2070 = vunpack.c.l.b16 %v1742
  %v2071 = vunpack.c.l.b16 %v1743
  %v2072 = vunpack.c.l.b16 %v1744
  %v2073 = vunpack.c.l.b16 %v1745
  %v2074 = vunpack.c.l.b16 %v1746
  %v2075 = vunpack.c.l.b16 %v1747
  %v2076 = vunpack.c.l.b16 %v1748
  %v2077 = vunpack.c.l.b16 %v1749
  %v2078 = vunpack.c.l.b16 %v1750
  %v2079 = vunpack.c.l.b16 %v1751
  %v2080 = vunpack.c.l.b16 %v1752
  %v2081 = vunpack.c.l.b16 %v1753
  %v2082 = vpack.c.b16 %v2067, %v2066
  %v2083 = vpack.c.b16 %v2069, %v2068
  %v2084 = vpack.c.b16 %v2071, %v2070
  %v2085 = vpack.c.b16 %v2073, %v2072
  %v2086 = vpack.c.b16 %v2075, %v2074
  %v2087 = vpack.c.b16 %v2077, %v2076
  %v2088 = vpack.c.b16 %v2079, %v2078
  %v2089 = vpack.c.b16 %v2081, %v2080
  %2098 = vmatprep.subr.bf16.mxu0 0
  %2099 = vmatpush1.bf16.msra.mxu0 %v2089
  %2100 = vmatprep.subr.bf16.mxu0 0
  %2101 = vmatpush1.bf16.msra.mxu0 %v2088
  %2102 = vmatprep.subr.bf16.mxu0 0
  %2103 = vmatpush1.bf16.msra.mxu0 %v2087
  %2104 = vmatprep.subr.bf16.mxu0 0
  %2105 = vmatpush1.bf16.msra.mxu0 %v2086
  %2106 = vmatprep.subr.bf16.mxu0 0
  %2107 = vmatpush1.bf16.msra.mxu0 %v2085
  %2108 = vmatprep.subr.bf16.mxu0 0
  %2109 = vmatpush1.bf16.msra.mxu0 %v2084
  %2110 = vmatprep.subr.bf16.mxu0 0
  %2111 = vmatpush1.bf16.msra.mxu0 %v2083
  %2112 = vmatprep.subr.bf16.mxu0 0
  %2113 = vmatpush1.bf16.msra.mxu0 %v2082
  %2114 = vmatprep.subr.bf16.mxu0 0
  %2115 = vmatpush2.bf16.msra.mxu0 0
  %2116 = vmatprep.subr.bf16.mxu0 0
  %2117 = vmatpush2.bf16.msra.mxu0 0
  %2118 = vmatprep.subr.bf16.mxu0 0
  %2119 = vmatpush2.bf16.msra.mxu0 0
  %2120 = vmatprep.subr.bf16.mxu0 0
  %2121 = vmatpush2.bf16.msra.mxu0 0
  %2122 = vmatprep.subr.bf16.mxu0 0
  %2123 = vmatpush2.bf16.msra.mxu0 0
  %2124 = vmatprep.subr.bf16.mxu0 0
  %2125 = vmatpush2.bf16.msra.mxu0 0
  %2126 = vmatprep.subr.bf16.mxu0 0
  %2127 = vmatpush2.bf16.msra.mxu0 0
  %2128 = vmatprep.subr.bf16.mxu0 0
  %2129 = vmatpush2.bf16.msra.mxu0 0
  %2130 = vmatprep.mubr.bf16.mxu0 0
  %2131 = vmatmul.mubr.bf16.gmra.mxu0 %v1720
  %v2132 = vpop.f32.mrf.mxu0
  %v2133 = vadd.f32 %v1908, %v2132
  %v2134 = vpop.f32.mrf.mxu0
  %v2135 = vpop.f32.mrf.mxu0
  %v2136 = vadd.f32 %v1911, %v2135
  %v2137 = vpop.f32.mrf.mxu0
  %2138 = vmatprep.mubr.bf16.mxu0 0
  %2139 = vmatmul.mubr.bf16.gmra.mxu0 %v1721
  %v2140 = vpop.f32.mrf.mxu0
  %v2141 = vadd.f32 %v1916, %v2140
  %v2142 = vpop.f32.mrf.mxu0
  %v2143 = vpop.f32.mrf.mxu0
  %v2144 = vadd.f32 %v1919, %v2143
  %v2145 = vpop.f32.mrf.mxu0
  %2146 = vmatprep.mubr.bf16.mxu0 0
  %2147 = vmatmul.mubr.bf16.gmra.mxu0 %v1722
  %v2148 = vpop.f32.mrf.mxu0
  %v2149 = vadd.f32 %v1924, %v2148
  %v2150 = vpop.f32.mrf.mxu0
  %v2151 = vpop.f32.mrf.mxu0
  %v2152 = vadd.f32 %v1927, %v2151
  %v2153 = vpop.f32.mrf.mxu0
  %2154 = vmatprep.mubr.bf16.mxu0 0
  %2155 = vmatmul.mubr.bf16.gmra.mxu0 %v1723
  %v2156 = vpop.f32.mrf.mxu0
  %v2157 = vadd.f32 %v1932, %v2156
  %v2158 = vpop.f32.mrf.mxu0
  %v2159 = vpop.f32.mrf.mxu0
  %v2160 = vadd.f32 %v1935, %v2159
  %v2161 = vpop.f32.mrf.mxu0
  %2162 = vmatprep.mubr.bf16.mxu0 0
  %2163 = vmatmul.mubr.bf16.gmra.mxu0 %v1724
  %v2164 = vpop.f32.mrf.mxu0
  %v2165 = vadd.f32 %v1940, %v2164
  %v2166 = vpop.f32.mrf.mxu0
  %v2167 = vpop.f32.mrf.mxu0
  %v2168 = vadd.f32 %v1943, %v2167
  %v2169 = vpop.f32.mrf.mxu0
  %2170 = vmatprep.mubr.bf16.mxu0 0
  %2171 = vmatmul.mubr.bf16.gmra.mxu0 %v1725
  %v2172 = vpop.f32.mrf.mxu0
  %v2173 = vadd.f32 %v1948, %v2172
  %v2174 = vpop.f32.mrf.mxu0
  %v2175 = vpop.f32.mrf.mxu0
  %v2176 = vadd.f32 %v1951, %v2175
  %v2177 = vpop.f32.mrf.mxu0
  %2178 = vmatprep.mubr.bf16.mxu0 0
  %2179 = vmatmul.mubr.bf16.gmra.mxu0 %v1726
  %v2180 = vpop.f32.mrf.mxu0
  %v2181 = vadd.f32 %v1956, %v2180
  %v2182 = vpop.f32.mrf.mxu0
  %v2183 = vpop.f32.mrf.mxu0
  %v2184 = vadd.f32 %v1959, %v2183
  %v2185 = vpop.f32.mrf.mxu0
  %2186 = vmatprep.mubr.bf16.mxu0 0
  %2187 = vmatmul.mubr.bf16.gmra.mxu0 %v1727
  %v2188 = vpop.f32.mrf.mxu0
  %v2189 = vadd.f32 %v1964, %v2188
  %v2190 = vpop.f32.mrf.mxu0
  %v2191 = vpop.f32.mrf.mxu0
  %v2192 = vadd.f32 %v1967, %v2191
  %v2193 = vpop.f32.mrf.mxu0
  %2194 = vmatprep.mubr.bf16.mxu0 0
  %2195 = vmatmul.mubr.bf16.gmra.mxu0 %v1728
  %v2196 = vpop.f32.mrf.mxu0
  %v2197 = vadd.f32 %v1972, %v2196
  %v2198 = vpop.f32.mrf.mxu0
  %v2199 = vpop.f32.mrf.mxu0
  %v2200 = vadd.f32 %v1975, %v2199
  %v2201 = vpop.f32.mrf.mxu0
  %2202 = vmatprep.mubr.bf16.mxu0 0
  %2203 = vmatmul.mubr.bf16.gmra.mxu0 %v1729
  %v2204 = vpop.f32.mrf.mxu0
  %v2205 = vadd.f32 %v1980, %v2204
  %v2206 = vpop.f32.mrf.mxu0
  %v2207 = vpop.f32.mrf.mxu0
  %v2208 = vadd.f32 %v1983, %v2207
  %v2209 = vpop.f32.mrf.mxu0
  %2210 = vmatprep.mubr.bf16.mxu0 0
  %2211 = vmatmul.mubr.bf16.gmra.mxu0 %v1730
  %v2212 = vpop.f32.mrf.mxu0
  %v2213 = vadd.f32 %v1988, %v2212
  %v2214 = vpop.f32.mrf.mxu0
  %v2215 = vpop.f32.mrf.mxu0
  %v2216 = vadd.f32 %v1991, %v2215
  %v2217 = vpop.f32.mrf.mxu0
  %2218 = vmatprep.mubr.bf16.mxu0 0
  %2219 = vmatmul.mubr.bf16.gmra.mxu0 %v1731
  %v2220 = vpop.f32.mrf.mxu0
  %v2221 = vadd.f32 %v1996, %v2220
  %v2222 = vpop.f32.mrf.mxu0
  %v2223 = vpop.f32.mrf.mxu0
  %v2224 = vadd.f32 %v1999, %v2223
  %v2225 = vpop.f32.mrf.mxu0
  %2226 = vmatprep.mubr.bf16.mxu0 0
  %2227 = vmatmul.mubr.bf16.gmra.mxu0 %v1732
  %v2228 = vpop.f32.mrf.mxu0
  %v2229 = vadd.f32 %v2004, %v2228
  %v2230 = vpop.f32.mrf.mxu0
  %v2231 = vpop.f32.mrf.mxu0
  %v2232 = vadd.f32 %v2007, %v2231
  %v2233 = vpop.f32.mrf.mxu0
  %2234 = vmatprep.mubr.bf16.mxu0 0
  %2235 = vmatmul.mubr.bf16.gmra.mxu0 %v1733
  %v2236 = vpop.f32.mrf.mxu0
  %v2237 = vadd.f32 %v2012, %v2236
  %v2238 = vpop.f32.mrf.mxu0
  %v2239 = vpop.f32.mrf.mxu0
  %v2240 = vadd.f32 %v2015, %v2239
  %v2241 = vpop.f32.mrf.mxu0
  %2242 = vmatprep.mubr.bf16.mxu0 0
  %2243 = vmatmul.mubr.bf16.gmra.mxu0 %v1734
  %v2244 = vpop.f32.mrf.mxu0
  %v2245 = vadd.f32 %v2020, %v2244
  %v2246 = vpop.f32.mrf.mxu0
  %v2247 = vpop.f32.mrf.mxu0
  %v2248 = vadd.f32 %v2023, %v2247
  %v2249 = vpop.f32.mrf.mxu0
  %2250 = vmatprep.mubr.bf16.mxu0 0
  %2251 = vmatmul.mubr.bf16.gmra.mxu0 %v1735
  %v2252 = vpop.f32.mrf.mxu0
  %v2253 = vadd.f32 %v2028, %v2252
  %v2254 = vpop.f32.mrf.mxu0
  %v2255 = vpop.f32.mrf.mxu0
  %v2256 = vadd.f32 %v2031, %v2255
  %v2257 = vpop.f32.mrf.mxu0
  %2258 = vmatprep.mubr.bf16.mxu0 0
  %2259 = vmatmul.mubr.bf16.gmra.mxu0 %v1736
  %v2260 = vpop.f32.mrf.mxu0
  %v2261 = vadd.f32 %v2036, %v2260
  %v2262 = vpop.f32.mrf.mxu0
  %v2263 = vpop.f32.mrf.mxu0
  %v2264 = vadd.f32 %v2039, %v2263
  %v2265 = vpop.f32.mrf.mxu0
  %2266 = vmatprep.mubr.bf16.mxu0 0
  %2267 = vmatmul.mubr.bf16.gmra.mxu0 %v1737
  %v2268 = vpop.f32.mrf.mxu0
  %v2269 = vadd.f32 %v2044, %v2268
  %v2270 = vpop.f32.mrf.mxu0
  %v2271 = vpop.f32.mrf.mxu0
  %v2272 = vadd.f32 %v2047, %v2271
  %v2273 = vpop.f32.mrf.mxu0
  %2274 = vdwg.mxu0
  %v2275 = vld [vmem:[#allocation2 + $0x1] sm:$0xff]
  %v2276 = vld [vmem:[#allocation2 + $0x9] sm:$0xff]
  %v2277 = vld [vmem:[#allocation2 + $0x11] sm:$0xff]
  %v2278 = vld [vmem:[#allocation2 + $0x19] sm:$0xff]
  %v2279 = vld [vmem:[#allocation2 + $0x21] sm:$0xff]
  %v2280 = vld [vmem:[#allocation2 + $0x29] sm:$0xff]
  %v2281 = vld [vmem:[#allocation2 + $0x31] sm:$0xff]
  %v2282 = vld [vmem:[#allocation2 + $0x39] sm:$0xff]
  %v2283 = vld [vmem:[#allocation2 + $0x41] sm:$0xff]
  %v2284 = vld [vmem:[#allocation2 + $0x49] sm:$0xff]
  %v2285 = vld [vmem:[#allocation2 + $0x51] sm:$0xff]
  %v2286 = vld [vmem:[#allocation2 + $0x59] sm:$0xff]
  %v2287 = vld [vmem:[#allocation2 + $0x61] sm:$0xff]
  %v2288 = vld [vmem:[#allocation2 + $0x69] sm:$0xff]
  %v2289 = vld [vmem:[#allocation2 + $0x71] sm:$0xff]
  %v2290 = vld [vmem:[#allocation2 + $0x79] sm:$0xff]
  %v2291 = vld [vmem:[#allocation2 + $0x81] sm:$0xff]
  %v2292 = vld [vmem:[#allocation2 + $0x89] sm:$0xff]
  %v2293 = vld [vmem:[#allocation2 + $0x91] sm:$0xff]
  %v2294 = vld [vmem:[#allocation2 + $0x99] sm:$0xff]
  %v2295 = vld [vmem:[#allocation2 + $0xa1] sm:$0xff]
  %v2296 = vld [vmem:[#allocation2 + $0xa9] sm:$0xff]
  %v2297 = vld [vmem:[#allocation2 + $0xb1] sm:$0xff]
  %v2298 = vld [vmem:[#allocation2 + $0xb9] sm:$0xff]
  %v2299 = vld [vmem:[#allocation2 + $0xc1] sm:$0xff]
  %v2300 = vld [vmem:[#allocation2 + $0xc9] sm:$0xff]
  %v2301 = vld [vmem:[#allocation2 + $0xd1] sm:$0xff]
  %v2302 = vld [vmem:[#allocation2 + $0xd9] sm:$0xff]
  %v2303 = vld [vmem:[#allocation2 + $0xe1] sm:$0xff]
  %v2304 = vld [vmem:[#allocation2 + $0xe9] sm:$0xff]
  %v2305 = vld [vmem:[#allocation2 + $0xf1] sm:$0xff]
  %v2306 = vld [vmem:[#allocation2 + $0xf9] sm:$0xff]
  %v2307 = vld [vmem:[#allocation2 + $0x101] sm:$0xff]
  %v2308 = vld [vmem:[#allocation2 + $0x109] sm:$0xff]
  %v2309 = vld [vmem:[#allocation2 + $0x111] sm:$0xff]
  %v2310 = vld [vmem:[#allocation2 + $0x119] sm:$0x1]
  %v2311 = vpack.c.bf16 %v2276, %v2275
  %v2312 = vpack.c.bf16 %v2278, %v2277
  %v2313 = vpack.c.bf16 %v2280, %v2279
  %v2314 = vpack.c.bf16 %v2282, %v2281
  %v2315 = vpack.c.bf16 %v2284, %v2283
  %v2316 = vpack.c.bf16 %v2286, %v2285
  %v2317 = vpack.c.bf16 %v2288, %v2287
  %v2318 = vpack.c.bf16 %v2290, %v2289
  %v2319 = vpack.c.bf16 %v2292, %v2291
  %v2320 = vpack.c.bf16 %v2294, %v2293
  %v2321 = vpack.c.bf16 %v2296, %v2295
  %v2322 = vpack.c.bf16 %v2298, %v2297
  %v2323 = vpack.c.bf16 %v2300, %v2299
  %v2324 = vpack.c.bf16 %v2302, %v2301
  %v2325 = vpack.c.bf16 %v2304, %v2303
  %v2326 = vpack.c.bf16 %v2306, %v2305
  %v2327 = vpack.c.bf16 %v2308, %v2307
  %v2328 = vpack.c.bf16 %v2310, %v2309
  %s2329 = scalar_lea.vmem %s3, 128
  %v2330 = vld [vmem:[%s2329] sm:$0xf]
  %v2331 = vld [vmem:[%s2329 + $0x4] sm:$0xf]
  %v2332 = vld [vmem:[%s2329 + $0x8] sm:$0xf]
  %v2333 = vld [vmem:[%s2329 + $0xc] sm:$0xf]
  %v2334 = vld [vmem:[%s2329 + $0x10] sm:$0xf]
  %v2335 = vld [vmem:[%s2329 + $0x14] sm:$0xf]
  %v2336 = vld [vmem:[%s2329 + $0x18] sm:$0xf]
  %v2337 = vld [vmem:[%s2329 + $0x1c] sm:$0xf]
  %v2338 = vld [vmem:[%s2329 + $0x20] sm:$0xf]
  %v2339 = vld [vmem:[%s2329 + $0x24] sm:$0xf]
  %v2340 = vld [vmem:[%s2329 + $0x28] sm:$0xf]
  %v2341 = vld [vmem:[%s2329 + $0x2c] sm:$0xf]
  %v2342 = vld [vmem:[%s2329 + $0x30] sm:$0xf]
  %v2343 = vld [vmem:[%s2329 + $0x34] sm:$0xf]
  %v2344 = vld [vmem:[%s2329 + $0x38] sm:$0xf]
  %v2345 = vld [vmem:[%s2329 + $0x3c] sm:$0xf]
  %v2362 = vunpack.c.l.b16 %v2330
  %v2363 = vunpack.c.l.b16 %v2331
  %v2364 = vunpack.c.l.b16 %v2332
  %v2365 = vunpack.c.l.b16 %v2333
  %v2366 = vunpack.c.l.b16 %v2334
  %v2367 = vunpack.c.l.b16 %v2335
  %v2368 = vunpack.c.l.b16 %v2336
  %v2369 = vunpack.c.l.b16 %v2337
  %v2370 = vunpack.c.l.b16 %v2338
  %v2371 = vunpack.c.l.b16 %v2339
  %v2372 = vunpack.c.l.b16 %v2340
  %v2373 = vunpack.c.l.b16 %v2341
  %v2374 = vunpack.c.l.b16 %v2342
  %v2375 = vunpack.c.l.b16 %v2343
  %v2376 = vunpack.c.l.b16 %v2344
  %v2377 = vunpack.c.l.b16 %v2345
  %v2378 = vpack.c.b16 %v2363, %v2362
  %v2379 = vpack.c.b16 %v2365, %v2364
  %v2380 = vpack.c.b16 %v2367, %v2366
  %v2381 = vpack.c.b16 %v2369, %v2368
  %v2382 = vpack.c.b16 %v2371, %v2370
  %v2383 = vpack.c.b16 %v2373, %v2372
  %v2384 = vpack.c.b16 %v2375, %v2374
  %v2385 = vpack.c.b16 %v2377, %v2376
  %2394 = vmatprep.subr.bf16.mxu0 0
  %2395 = vmatpush1.bf16.msra.mxu0 %v2385
  %2396 = vmatprep.subr.bf16.mxu0 0
  %2397 = vmatpush1.bf16.msra.mxu0 %v2384
  %2398 = vmatprep.subr.bf16.mxu0 0
  %2399 = vmatpush1.bf16.msra.mxu0 %v2383
  %2400 = vmatprep.subr.bf16.mxu0 0
  %2401 = vmatpush1.bf16.msra.mxu0 %v2382
  %2402 = vmatprep.subr.bf16.mxu0 0
  %2403 = vmatpush1.bf16.msra.mxu0 %v2381
  %2404 = vmatprep.subr.bf16.mxu0 0
  %2405 = vmatpush1.bf16.msra.mxu0 %v2380
  %2406 = vmatprep.subr.bf16.mxu0 0
  %2407 = vmatpush1.bf16.msra.mxu0 %v2379
  %2408 = vmatprep.subr.bf16.mxu0 0
  %2409 = vmatpush1.bf16.msra.mxu0 %v2378
  %2410 = vmatprep.subr.bf16.mxu0 0
  %2411 = vmatpush2.bf16.msra.mxu0 0
  %2412 = vmatprep.subr.bf16.mxu0 0
  %2413 = vmatpush2.bf16.msra.mxu0 0
  %2414 = vmatprep.subr.bf16.mxu0 0
  %2415 = vmatpush2.bf16.msra.mxu0 0
  %2416 = vmatprep.subr.bf16.mxu0 0
  %2417 = vmatpush2.bf16.msra.mxu0 0
  %2418 = vmatprep.subr.bf16.mxu0 0
  %2419 = vmatpush2.bf16.msra.mxu0 0
  %2420 = vmatprep.subr.bf16.mxu0 0
  %2421 = vmatpush2.bf16.msra.mxu0 0
  %2422 = vmatprep.subr.bf16.mxu0 0
  %2423 = vmatpush2.bf16.msra.mxu0 0
  %2424 = vmatprep.subr.bf16.mxu0 0
  %2425 = vmatpush2.bf16.msra.mxu0 0
  %2426 = vmatprep.mubr.bf16.mxu0 0
  %2427 = vmatmul.mubr.bf16.gmra.mxu0 %v2311
  %v2428 = vpop.f32.mrf.mxu0
  %v2429 = vadd.f32 0.0, %v2428
  %v2430 = vpop.f32.mrf.mxu0
  %v2431 = vpop.f32.mrf.mxu0
  %v2432 = vadd.f32 0.0, %v2431
  %v2433 = vpop.f32.mrf.mxu0
  %2434 = vmatprep.mubr.bf16.mxu0 0
  %2435 = vmatmul.mubr.bf16.gmra.mxu0 %v2312
  %v2436 = vpop.f32.mrf.mxu0
  %v2437 = vadd.f32 0.0, %v2436
  %v2438 = vpop.f32.mrf.mxu0
  %v2439 = vpop.f32.mrf.mxu0
  %v2440 = vadd.f32 0.0, %v2439
  %v2441 = vpop.f32.mrf.mxu0
  %2442 = vmatprep.mubr.bf16.mxu0 0
  %2443 = vmatmul.mubr.bf16.gmra.mxu0 %v2313
  %v2444 = vpop.f32.mrf.mxu0
  %v2445 = vadd.f32 0.0, %v2444
  %v2446 = vpop.f32.mrf.mxu0
  %v2447 = vpop.f32.mrf.mxu0
  %v2448 = vadd.f32 0.0, %v2447
  %v2449 = vpop.f32.mrf.mxu0
  %2450 = vmatprep.mubr.bf16.mxu0 0
  %2451 = vmatmul.mubr.bf16.gmra.mxu0 %v2314
  %v2452 = vpop.f32.mrf.mxu0
  %v2453 = vadd.f32 0.0, %v2452
  %v2454 = vpop.f32.mrf.mxu0
  %v2455 = vpop.f32.mrf.mxu0
  %v2456 = vadd.f32 0.0, %v2455
  %v2457 = vpop.f32.mrf.mxu0
  %2458 = vmatprep.mubr.bf16.mxu0 0
  %2459 = vmatmul.mubr.bf16.gmra.mxu0 %v2315
  %v2460 = vpop.f32.mrf.mxu0
  %v2461 = vadd.f32 0.0, %v2460
  %v2462 = vpop.f32.mrf.mxu0
  %v2463 = vpop.f32.mrf.mxu0
  %v2464 = vadd.f32 0.0, %v2463
  %v2465 = vpop.f32.mrf.mxu0
  %2466 = vmatprep.mubr.bf16.mxu0 0
  %2467 = vmatmul.mubr.bf16.gmra.mxu0 %v2316
  %v2468 = vpop.f32.mrf.mxu0
  %v2469 = vadd.f32 0.0, %v2468
  %v2470 = vpop.f32.mrf.mxu0
  %v2471 = vpop.f32.mrf.mxu0
  %v2472 = vadd.f32 0.0, %v2471
  %v2473 = vpop.f32.mrf.mxu0
  %2474 = vmatprep.mubr.bf16.mxu0 0
  %2475 = vmatmul.mubr.bf16.gmra.mxu0 %v2317
  %v2476 = vpop.f32.mrf.mxu0
  %v2477 = vadd.f32 0.0, %v2476
  %v2478 = vpop.f32.mrf.mxu0
  %v2479 = vpop.f32.mrf.mxu0
  %v2480 = vadd.f32 0.0, %v2479
  %v2481 = vpop.f32.mrf.mxu0
  %2482 = vmatprep.mubr.bf16.mxu0 0
  %2483 = vmatmul.mubr.bf16.gmra.mxu0 %v2318
  %v2484 = vpop.f32.mrf.mxu0
  %v2485 = vadd.f32 0.0, %v2484
  %v2486 = vpop.f32.mrf.mxu0
  %v2487 = vpop.f32.mrf.mxu0
  %v2488 = vadd.f32 0.0, %v2487
  %v2489 = vpop.f32.mrf.mxu0
  %2490 = vmatprep.mubr.bf16.mxu0 0
  %2491 = vmatmul.mubr.bf16.gmra.mxu0 %v2319
  %v2492 = vpop.f32.mrf.mxu0
  %v2493 = vadd.f32 0.0, %v2492
  %v2494 = vpop.f32.mrf.mxu0
  %v2495 = vpop.f32.mrf.mxu0
  %v2496 = vadd.f32 0.0, %v2495
  %v2497 = vpop.f32.mrf.mxu0
  %2498 = vmatprep.mubr.bf16.mxu0 0
  %2499 = vmatmul.mubr.bf16.gmra.mxu0 %v2320
  %v2500 = vpop.f32.mrf.mxu0
  %v2501 = vadd.f32 0.0, %v2500
  %v2502 = vpop.f32.mrf.mxu0
  %v2503 = vpop.f32.mrf.mxu0
  %v2504 = vadd.f32 0.0, %v2503
  %v2505 = vpop.f32.mrf.mxu0
  %2506 = vmatprep.mubr.bf16.mxu0 0
  %2507 = vmatmul.mubr.bf16.gmra.mxu0 %v2321
  %v2508 = vpop.f32.mrf.mxu0
  %v2509 = vadd.f32 0.0, %v2508
  %v2510 = vpop.f32.mrf.mxu0
  %v2511 = vpop.f32.mrf.mxu0
  %v2512 = vadd.f32 0.0, %v2511
  %v2513 = vpop.f32.mrf.mxu0
  %2514 = vmatprep.mubr.bf16.mxu0 0
  %2515 = vmatmul.mubr.bf16.gmra.mxu0 %v2322
  %v2516 = vpop.f32.mrf.mxu0
  %v2517 = vadd.f32 0.0, %v2516
  %v2518 = vpop.f32.mrf.mxu0
  %v2519 = vpop.f32.mrf.mxu0
  %v2520 = vadd.f32 0.0, %v2519
  %v2521 = vpop.f32.mrf.mxu0
  %2522 = vmatprep.mubr.bf16.mxu0 0
  %2523 = vmatmul.mubr.bf16.gmra.mxu0 %v2323
  %v2524 = vpop.f32.mrf.mxu0
  %v2525 = vadd.f32 0.0, %v2524
  %v2526 = vpop.f32.mrf.mxu0
  %v2527 = vpop.f32.mrf.mxu0
  %v2528 = vadd.f32 0.0, %v2527
  %v2529 = vpop.f32.mrf.mxu0
  %2530 = vmatprep.mubr.bf16.mxu0 0
  %2531 = vmatmul.mubr.bf16.gmra.mxu0 %v2324
  %v2532 = vpop.f32.mrf.mxu0
  %v2533 = vadd.f32 0.0, %v2532
  %v2534 = vpop.f32.mrf.mxu0
  %v2535 = vpop.f32.mrf.mxu0
  %v2536 = vadd.f32 0.0, %v2535
  %v2537 = vpop.f32.mrf.mxu0
  %2538 = vmatprep.mubr.bf16.mxu0 0
  %2539 = vmatmul.mubr.bf16.gmra.mxu0 %v2325
  %v2540 = vpop.f32.mrf.mxu0
  %v2541 = vadd.f32 0.0, %v2540
  %v2542 = vpop.f32.mrf.mxu0
  %v2543 = vpop.f32.mrf.mxu0
  %v2544 = vadd.f32 0.0, %v2543
  %v2545 = vpop.f32.mrf.mxu0
  %2546 = vmatprep.mubr.bf16.mxu0 0
  %2547 = vmatmul.mubr.bf16.gmra.mxu0 %v2326
  %v2548 = vpop.f32.mrf.mxu0
  %v2549 = vadd.f32 0.0, %v2548
  %v2550 = vpop.f32.mrf.mxu0
  %v2551 = vpop.f32.mrf.mxu0
  %v2552 = vadd.f32 0.0, %v2551
  %v2553 = vpop.f32.mrf.mxu0
  %2554 = vmatprep.mubr.bf16.mxu0 0
  %2555 = vmatmul.mubr.bf16.gmra.mxu0 %v2327
  %v2556 = vpop.f32.mrf.mxu0
  %v2557 = vadd.f32 0.0, %v2556
  %v2558 = vpop.f32.mrf.mxu0
  %v2559 = vpop.f32.mrf.mxu0
  %v2560 = vadd.f32 0.0, %v2559
  %v2561 = vpop.f32.mrf.mxu0
  %2562 = vmatprep.mubr.bf16.mxu0 0
  %2563 = vmatmul.mubr.bf16.gmra.mxu0 %v2328
  %v2564 = vpop.f32.mrf.mxu0
  %v2565 = vadd.f32 0.0, %v2564
  %v2566 = vpop.f32.mrf.mxu0
  %v2567 = vpop.f32.mrf.mxu0
  %v2568 = vadd.f32 0.0, %v2567
  %v2569 = vpop.f32.mrf.mxu0
  %2570 = vdwg.mxu0
  %v2571 = vadd.f32 %v2133, %v2429
  %v2572 = vadd.f32 %v2136, %v2432
  %v2573 = vadd.f32 %v2141, %v2437
  %v2574 = vadd.f32 %v2144, %v2440
  %v2575 = vadd.f32 %v2149, %v2445
  %v2576 = vadd.f32 %v2152, %v2448
  %v2577 = vadd.f32 %v2157, %v2453
  %v2578 = vadd.f32 %v2160, %v2456
  %v2579 = vadd.f32 %v2165, %v2461
  %v2580 = vadd.f32 %v2168, %v2464
  %v2581 = vadd.f32 %v2173, %v2469
  %v2582 = vadd.f32 %v2176, %v2472
  %v2583 = vadd.f32 %v2181, %v2477
  %v2584 = vadd.f32 %v2184, %v2480
  %v2585 = vadd.f32 %v2189, %v2485
  %v2586 = vadd.f32 %v2192, %v2488
  %v2587 = vadd.f32 %v2197, %v2493
  %v2588 = vadd.f32 %v2200, %v2496
  %v2589 = vadd.f32 %v2205, %v2501
  %v2590 = vadd.f32 %v2208, %v2504
  %v2591 = vadd.f32 %v2213, %v2509
  %v2592 = vadd.f32 %v2216, %v2512
  %v2593 = vadd.f32 %v2221, %v2517
  %v2594 = vadd.f32 %v2224, %v2520
  %v2595 = vadd.f32 %v2229, %v2525
  %v2596 = vadd.f32 %v2232, %v2528
  %v2597 = vadd.f32 %v2237, %v2533
  %v2598 = vadd.f32 %v2240, %v2536
  %v2599 = vadd.f32 %v2245, %v2541
  %v2600 = vadd.f32 %v2248, %v2544
  %v2601 = vadd.f32 %v2253, %v2549
  %v2602 = vadd.f32 %v2256, %v2552
  %v2603 = vadd.f32 %v2261, %v2557
  %v2604 = vadd.f32 %v2264, %v2560
  %v2605 = vadd.f32 %v2269, %v2565
  %v2606 = vadd.f32 %v2272, %v2568
  %v2607 = vld [vmem:[#allocation2 + $0x121] sm:$0xff]
  %v2608 = vld [vmem:[#allocation2 + $0x129] sm:$0xff]
  %v2609 = vld [vmem:[#allocation2 + $0x131] sm:$0xff]
  %v2610 = vld [vmem:[#allocation2 + $0x139] sm:$0xff]
  %v2611 = vld [vmem:[#allocation2 + $0x141] sm:$0xff]
  %v2612 = vld [vmem:[#allocation2 + $0x149] sm:$0xff]
  %v2613 = vld [vmem:[#allocation2 + $0x151] sm:$0xff]
  %v2614 = vld [vmem:[#allocation2 + $0x159] sm:$0xff]
  %v2615 = vld [vmem:[#allocation2 + $0x161] sm:$0xff]
  %v2616 = vld [vmem:[#allocation2 + $0x169] sm:$0xff]
  %v2617 = vld [vmem:[#allocation2 + $0x171] sm:$0xff]
  %v2618 = vld [vmem:[#allocation2 + $0x179] sm:$0xff]
  %v2619 = vld [vmem:[#allocation2 + $0x181] sm:$0xff]
  %v2620 = vld [vmem:[#allocation2 + $0x189] sm:$0xff]
  %v2621 = vld [vmem:[#allocation2 + $0x191] sm:$0xff]
  %v2622 = vld [vmem:[#allocation2 + $0x199] sm:$0xff]
  %v2623 = vld [vmem:[#allocation2 + $0x1a1] sm:$0xff]
  %v2624 = vld [vmem:[#allocation2 + $0x1a9] sm:$0xff]
  %v2625 = vld [vmem:[#allocation2 + $0x1b1] sm:$0xff]
  %v2626 = vld [vmem:[#allocation2 + $0x1b9] sm:$0xff]
  %v2627 = vld [vmem:[#allocation2 + $0x1c1] sm:$0xff]
  %v2628 = vld [vmem:[#allocation2 + $0x1c9] sm:$0xff]
  %v2629 = vld [vmem:[#allocation2 + $0x1d1] sm:$0xff]
  %v2630 = vld [vmem:[#allocation2 + $0x1d9] sm:$0xff]
  %v2631 = vld [vmem:[#allocation2 + $0x1e1] sm:$0xff]
  %v2632 = vld [vmem:[#allocation2 + $0x1e9] sm:$0xff]
  %v2633 = vld [vmem:[#allocation2 + $0x1f1] sm:$0xff]
  %v2634 = vld [vmem:[#allocation2 + $0x1f9] sm:$0xff]
  %v2635 = vld [vmem:[#allocation2 + $0x201] sm:$0xff]
  %v2636 = vld [vmem:[#allocation2 + $0x209] sm:$0xff]
  %v2637 = vld [vmem:[#allocation2 + $0x211] sm:$0xff]
  %v2638 = vld [vmem:[#allocation2 + $0x219] sm:$0xff]
  %v2639 = vld [vmem:[#allocation2 + $0x221] sm:$0xff]
  %v2640 = vld [vmem:[#allocation2 + $0x229] sm:$0xff]
  %v2641 = vld [vmem:[#allocation2 + $0x231] sm:$0xff]
  %v2642 = vld [vmem:[#allocation2 + $0x239] sm:$0x1]
  %v2643 = vpack.c.bf16 %v2608, %v2607
  %v2644 = vpack.c.bf16 %v2610, %v2609
  %v2645 = vpack.c.bf16 %v2612, %v2611
  %v2646 = vpack.c.bf16 %v2614, %v2613
  %v2647 = vpack.c.bf16 %v2616, %v2615
  %v2648 = vpack.c.bf16 %v2618, %v2617
  %v2649 = vpack.c.bf16 %v2620, %v2619
  %v2650 = vpack.c.bf16 %v2622, %v2621
  %v2651 = vpack.c.bf16 %v2624, %v2623
  %v2652 = vpack.c.bf16 %v2626, %v2625
  %v2653 = vpack.c.bf16 %v2628, %v2627
  %v2654 = vpack.c.bf16 %v2630, %v2629
  %v2655 = vpack.c.bf16 %v2632, %v2631
  %v2656 = vpack.c.bf16 %v2634, %v2633
  %v2657 = vpack.c.bf16 %v2636, %v2635
  %v2658 = vpack.c.bf16 %v2638, %v2637
  %v2659 = vpack.c.bf16 %v2640, %v2639
  %v2660 = vpack.c.bf16 %v2642, %v2641
  %s2661 = scalar_lea.vmem %s3, 192
  %v2662 = vld [vmem:[%s2661] sm:$0xf]
  %v2663 = vld [vmem:[%s2661 + $0x4] sm:$0xf]
  %v2664 = vld [vmem:[%s2661 + $0x8] sm:$0xf]
  %v2665 = vld [vmem:[%s2661 + $0xc] sm:$0xf]
  %v2666 = vld [vmem:[%s2661 + $0x10] sm:$0xf]
  %v2667 = vld [vmem:[%s2661 + $0x14] sm:$0xf]
  %v2668 = vld [vmem:[%s2661 + $0x18] sm:$0xf]
  %v2669 = vld [vmem:[%s2661 + $0x1c] sm:$0xf]
  %v2670 = vld [vmem:[%s2661 + $0x20] sm:$0xf]
  %v2671 = vld [vmem:[%s2661 + $0x24] sm:$0xf]
  %v2672 = vld [vmem:[%s2661 + $0x28] sm:$0xf]
  %v2673 = vld [vmem:[%s2661 + $0x2c] sm:$0xf]
  %v2674 = vld [vmem:[%s2661 + $0x30] sm:$0xf]
  %v2675 = vld [vmem:[%s2661 + $0x34] sm:$0xf]
  %v2676 = vld [vmem:[%s2661 + $0x38] sm:$0xf]
  %v2677 = vld [vmem:[%s2661 + $0x3c] sm:$0xf]
  %v2694 = vunpack.c.l.b16 %v2662
  %v2695 = vunpack.c.l.b16 %v2663
  %v2696 = vunpack.c.l.b16 %v2664
  %v2697 = vunpack.c.l.b16 %v2665
  %v2698 = vunpack.c.l.b16 %v2666
  %v2699 = vunpack.c.l.b16 %v2667
  %v2700 = vunpack.c.l.b16 %v2668
  %v2701 = vunpack.c.l.b16 %v2669
  %v2702 = vunpack.c.l.b16 %v2670
  %v2703 = vunpack.c.l.b16 %v2671
  %v2704 = vunpack.c.l.b16 %v2672
  %v2705 = vunpack.c.l.b16 %v2673
  %v2706 = vunpack.c.l.b16 %v2674
  %v2707 = vunpack.c.l.b16 %v2675
  %v2708 = vunpack.c.l.b16 %v2676
  %v2709 = vunpack.c.l.b16 %v2677
  %v2710 = vpack.c.b16 %v2695, %v2694
  %v2711 = vpack.c.b16 %v2697, %v2696
  %v2712 = vpack.c.b16 %v2699, %v2698
  %v2713 = vpack.c.b16 %v2701, %v2700
  %v2714 = vpack.c.b16 %v2703, %v2702
  %v2715 = vpack.c.b16 %v2705, %v2704
  %v2716 = vpack.c.b16 %v2707, %v2706
  %v2717 = vpack.c.b16 %v2709, %v2708
  %2726 = vmatprep.subr.bf16.mxu0 0
  %2727 = vmatpush1.bf16.msra.mxu0 %v2717
  %2728 = vmatprep.subr.bf16.mxu0 0
  %2729 = vmatpush1.bf16.msra.mxu0 %v2716
  %2730 = vmatprep.subr.bf16.mxu0 0
  %2731 = vmatpush1.bf16.msra.mxu0 %v2715
  %2732 = vmatprep.subr.bf16.mxu0 0
  %2733 = vmatpush1.bf16.msra.mxu0 %v2714
  %2734 = vmatprep.subr.bf16.mxu0 0
  %2735 = vmatpush1.bf16.msra.mxu0 %v2713
  %2736 = vmatprep.subr.bf16.mxu0 0
  %2737 = vmatpush1.bf16.msra.mxu0 %v2712
  %2738 = vmatprep.subr.bf16.mxu0 0
  %2739 = vmatpush1.bf16.msra.mxu0 %v2711
  %2740 = vmatprep.subr.bf16.mxu0 0
  %2741 = vmatpush1.bf16.msra.mxu0 %v2710
  %2742 = vmatprep.subr.bf16.mxu0 0
  %2743 = vmatpush2.bf16.msra.mxu0 0
  %2744 = vmatprep.subr.bf16.mxu0 0
  %2745 = vmatpush2.bf16.msra.mxu0 0
  %2746 = vmatprep.subr.bf16.mxu0 0
  %2747 = vmatpush2.bf16.msra.mxu0 0
  %2748 = vmatprep.subr.bf16.mxu0 0
  %2749 = vmatpush2.bf16.msra.mxu0 0
  %2750 = vmatprep.subr.bf16.mxu0 0
  %2751 = vmatpush2.bf16.msra.mxu0 0
  %2752 = vmatprep.subr.bf16.mxu0 0
  %2753 = vmatpush2.bf16.msra.mxu0 0
  %2754 = vmatprep.subr.bf16.mxu0 0
  %2755 = vmatpush2.bf16.msra.mxu0 0
  %2756 = vmatprep.subr.bf16.mxu0 0
  %2757 = vmatpush2.bf16.msra.mxu0 0
  %2758 = vmatprep.mubr.bf16.mxu0 0
  %2759 = vmatmul.mubr.bf16.gmra.mxu0 %v2643
  %v2760 = vpop.f32.mrf.mxu0
  %v2761 = vadd.f32 0.0, %v2760
  %v2762 = vpop.f32.mrf.mxu0
  %v2763 = vpop.f32.mrf.mxu0
  %v2764 = vadd.f32 0.0, %v2763
  %v2765 = vpop.f32.mrf.mxu0
  %2766 = vmatprep.mubr.bf16.mxu0 0
  %2767 = vmatmul.mubr.bf16.gmra.mxu0 %v2644
  %v2768 = vpop.f32.mrf.mxu0
  %v2769 = vadd.f32 0.0, %v2768
  %v2770 = vpop.f32.mrf.mxu0
  %v2771 = vpop.f32.mrf.mxu0
  %v2772 = vadd.f32 0.0, %v2771
  %v2773 = vpop.f32.mrf.mxu0
  %2774 = vmatprep.mubr.bf16.mxu0 0
  %2775 = vmatmul.mubr.bf16.gmra.mxu0 %v2645
  %v2776 = vpop.f32.mrf.mxu0
  %v2777 = vadd.f32 0.0, %v2776
  %v2778 = vpop.f32.mrf.mxu0
  %v2779 = vpop.f32.mrf.mxu0
  %v2780 = vadd.f32 0.0, %v2779
  %v2781 = vpop.f32.mrf.mxu0
  %2782 = vmatprep.mubr.bf16.mxu0 0
  %2783 = vmatmul.mubr.bf16.gmra.mxu0 %v2646
  %v2784 = vpop.f32.mrf.mxu0
  %v2785 = vadd.f32 0.0, %v2784
  %v2786 = vpop.f32.mrf.mxu0
  %v2787 = vpop.f32.mrf.mxu0
  %v2788 = vadd.f32 0.0, %v2787
  %v2789 = vpop.f32.mrf.mxu0
  %2790 = vmatprep.mubr.bf16.mxu0 0
  %2791 = vmatmul.mubr.bf16.gmra.mxu0 %v2647
  %v2792 = vpop.f32.mrf.mxu0
  %v2793 = vadd.f32 0.0, %v2792
  %v2794 = vpop.f32.mrf.mxu0
  %v2795 = vpop.f32.mrf.mxu0
  %v2796 = vadd.f32 0.0, %v2795
  %v2797 = vpop.f32.mrf.mxu0
  %2798 = vmatprep.mubr.bf16.mxu0 0
  %2799 = vmatmul.mubr.bf16.gmra.mxu0 %v2648
  %v2800 = vpop.f32.mrf.mxu0
  %v2801 = vadd.f32 0.0, %v2800
  %v2802 = vpop.f32.mrf.mxu0
  %v2803 = vpop.f32.mrf.mxu0
  %v2804 = vadd.f32 0.0, %v2803
  %v2805 = vpop.f32.mrf.mxu0
  %2806 = vmatprep.mubr.bf16.mxu0 0
  %2807 = vmatmul.mubr.bf16.gmra.mxu0 %v2649
  %v2808 = vpop.f32.mrf.mxu0
  %v2809 = vadd.f32 0.0, %v2808
  %v2810 = vpop.f32.mrf.mxu0
  %v2811 = vpop.f32.mrf.mxu0
  %v2812 = vadd.f32 0.0, %v2811
  %v2813 = vpop.f32.mrf.mxu0
  %2814 = vmatprep.mubr.bf16.mxu0 0
  %2815 = vmatmul.mubr.bf16.gmra.mxu0 %v2650
  %v2816 = vpop.f32.mrf.mxu0
  %v2817 = vadd.f32 0.0, %v2816
  %v2818 = vpop.f32.mrf.mxu0
  %v2819 = vpop.f32.mrf.mxu0
  %v2820 = vadd.f32 0.0, %v2819
  %v2821 = vpop.f32.mrf.mxu0
  %2822 = vmatprep.mubr.bf16.mxu0 0
  %2823 = vmatmul.mubr.bf16.gmra.mxu0 %v2651
  %v2824 = vpop.f32.mrf.mxu0
  %v2825 = vadd.f32 0.0, %v2824
  %v2826 = vpop.f32.mrf.mxu0
  %v2827 = vpop.f32.mrf.mxu0
  %v2828 = vadd.f32 0.0, %v2827
  %v2829 = vpop.f32.mrf.mxu0
  %2830 = vmatprep.mubr.bf16.mxu0 0
  %2831 = vmatmul.mubr.bf16.gmra.mxu0 %v2652
  %v2832 = vpop.f32.mrf.mxu0
  %v2833 = vadd.f32 0.0, %v2832
  %v2834 = vpop.f32.mrf.mxu0
  %v2835 = vpop.f32.mrf.mxu0
  %v2836 = vadd.f32 0.0, %v2835
  %v2837 = vpop.f32.mrf.mxu0
  %2838 = vmatprep.mubr.bf16.mxu0 0
  %2839 = vmatmul.mubr.bf16.gmra.mxu0 %v2653
  %v2840 = vpop.f32.mrf.mxu0
  %v2841 = vadd.f32 0.0, %v2840
  %v2842 = vpop.f32.mrf.mxu0
  %v2843 = vpop.f32.mrf.mxu0
  %v2844 = vadd.f32 0.0, %v2843
  %v2845 = vpop.f32.mrf.mxu0
  %2846 = vmatprep.mubr.bf16.mxu0 0
  %2847 = vmatmul.mubr.bf16.gmra.mxu0 %v2654
  %v2848 = vpop.f32.mrf.mxu0
  %v2849 = vadd.f32 0.0, %v2848
  %v2850 = vpop.f32.mrf.mxu0
  %v2851 = vpop.f32.mrf.mxu0
  %v2852 = vadd.f32 0.0, %v2851
  %v2853 = vpop.f32.mrf.mxu0
  %2854 = vmatprep.mubr.bf16.mxu0 0
  %2855 = vmatmul.mubr.bf16.gmra.mxu0 %v2655
  %v2856 = vpop.f32.mrf.mxu0
  %v2857 = vadd.f32 0.0, %v2856
  %v2858 = vpop.f32.mrf.mxu0
  %v2859 = vpop.f32.mrf.mxu0
  %v2860 = vadd.f32 0.0, %v2859
  %v2861 = vpop.f32.mrf.mxu0
  %2862 = vmatprep.mubr.bf16.mxu0 0
  %2863 = vmatmul.mubr.bf16.gmra.mxu0 %v2656
  %v2864 = vpop.f32.mrf.mxu0
  %v2865 = vadd.f32 0.0, %v2864
  %v2866 = vpop.f32.mrf.mxu0
  %v2867 = vpop.f32.mrf.mxu0
  %v2868 = vadd.f32 0.0, %v2867
  %v2869 = vpop.f32.mrf.mxu0
  %2870 = vmatprep.mubr.bf16.mxu0 0
  %2871 = vmatmul.mubr.bf16.gmra.mxu0 %v2657
  %v2872 = vpop.f32.mrf.mxu0
  %v2873 = vadd.f32 0.0, %v2872
  %v2874 = vpop.f32.mrf.mxu0
  %v2875 = vpop.f32.mrf.mxu0
  %v2876 = vadd.f32 0.0, %v2875
  %v2877 = vpop.f32.mrf.mxu0
  %2878 = vmatprep.mubr.bf16.mxu0 0
  %2879 = vmatmul.mubr.bf16.gmra.mxu0 %v2658
  %v2880 = vpop.f32.mrf.mxu0
  %v2881 = vadd.f32 0.0, %v2880
  %v2882 = vpop.f32.mrf.mxu0
  %v2883 = vpop.f32.mrf.mxu0
  %v2884 = vadd.f32 0.0, %v2883
  %v2885 = vpop.f32.mrf.mxu0
  %2886 = vmatprep.mubr.bf16.mxu0 0
  %2887 = vmatmul.mubr.bf16.gmra.mxu0 %v2659
  %v2888 = vpop.f32.mrf.mxu0
  %v2889 = vadd.f32 0.0, %v2888
  %v2890 = vpop.f32.mrf.mxu0
  %v2891 = vpop.f32.mrf.mxu0
  %v2892 = vadd.f32 0.0, %v2891
  %v2893 = vpop.f32.mrf.mxu0
  %2894 = vmatprep.mubr.bf16.mxu0 0
  %2895 = vmatmul.mubr.bf16.gmra.mxu0 %v2660
  %v2896 = vpop.f32.mrf.mxu0
  %v2897 = vadd.f32 0.0, %v2896
  %v2898 = vpop.f32.mrf.mxu0
  %v2899 = vpop.f32.mrf.mxu0
  %v2900 = vadd.f32 0.0, %v2899
  %v2901 = vpop.f32.mrf.mxu0
  %2902 = vdwg.mxu0
  %v2903 = vadd.f32 %v2571, %v2761
  %v2904 = vadd.f32 %v2572, %v2764
  %v2905 = vadd.f32 %v2573, %v2769
  %v2906 = vadd.f32 %v2574, %v2772
  %v2907 = vadd.f32 %v2575, %v2777
  %v2908 = vadd.f32 %v2576, %v2780
  %v2909 = vadd.f32 %v2577, %v2785
  %v2910 = vadd.f32 %v2578, %v2788
  %v2911 = vadd.f32 %v2579, %v2793
  %v2912 = vadd.f32 %v2580, %v2796
  %v2913 = vadd.f32 %v2581, %v2801
  %v2914 = vadd.f32 %v2582, %v2804
  %v2915 = vadd.f32 %v2583, %v2809
  %v2916 = vadd.f32 %v2584, %v2812
  %v2917 = vadd.f32 %v2585, %v2817
  %v2918 = vadd.f32 %v2586, %v2820
  %v2919 = vadd.f32 %v2587, %v2825
  %v2920 = vadd.f32 %v2588, %v2828
  %v2921 = vadd.f32 %v2589, %v2833
  %v2922 = vadd.f32 %v2590, %v2836
  %v2923 = vadd.f32 %v2591, %v2841
  %v2924 = vadd.f32 %v2592, %v2844
  %v2925 = vadd.f32 %v2593, %v2849
  %v2926 = vadd.f32 %v2594, %v2852
  %v2927 = vadd.f32 %v2595, %v2857
  %v2928 = vadd.f32 %v2596, %v2860
  %v2929 = vadd.f32 %v2597, %v2865
  %v2930 = vadd.f32 %v2598, %v2868
  %v2931 = vadd.f32 %v2599, %v2873
  %v2932 = vadd.f32 %v2600, %v2876
  %v2933 = vadd.f32 %v2601, %v2881
  %v2934 = vadd.f32 %v2602, %v2884
  %v2935 = vadd.f32 %v2603, %v2889
  %v2936 = vadd.f32 %v2604, %v2892
  %v2937 = vadd.f32 %v2605, %v2897
  %v2938 = vadd.f32 %v2606, %v2900
  %v2939 = vld [vmem:[#allocation2 + $0x240] sm:$0xff]
  %v2940 = vld [vmem:[#allocation2 + $0x248] sm:$0xff]
  %v2941 = vld [vmem:[#allocation2 + $0x250] sm:$0xff]
  %v2942 = vld [vmem:[#allocation2 + $0x258] sm:$0xff]
  %v2943 = vld [vmem:[#allocation2 + $0x260] sm:$0xff]
  %v2944 = vld [vmem:[#allocation2 + $0x268] sm:$0xff]
  %v2945 = vld [vmem:[#allocation2 + $0x270] sm:$0xff]
  %v2946 = vld [vmem:[#allocation2 + $0x278] sm:$0xff]
  %v2947 = vld [vmem:[#allocation2 + $0x280] sm:$0xff]
  %v2948 = vld [vmem:[#allocation2 + $0x288] sm:$0xff]
  %v2949 = vld [vmem:[#allocation2 + $0x290] sm:$0xff]
  %v2950 = vld [vmem:[#allocation2 + $0x298] sm:$0xff]
  %v2951 = vld [vmem:[#allocation2 + $0x2a0] sm:$0xff]
  %v2952 = vld [vmem:[#allocation2 + $0x2a8] sm:$0xff]
  %v2953 = vld [vmem:[#allocation2 + $0x2b0] sm:$0xff]
  %v2954 = vld [vmem:[#allocation2 + $0x2b8] sm:$0xff]
  %v2955 = vld [vmem:[#allocation2 + $0x2c0] sm:$0xff]
  %v2956 = vld [vmem:[#allocation2 + $0x2c8] sm:$0xff]
  %v2957 = vld [vmem:[#allocation2 + $0x2d0] sm:$0xff]
  %v2958 = vld [vmem:[#allocation2 + $0x2d8] sm:$0xff]
  %v2959 = vld [vmem:[#allocation2 + $0x2e0] sm:$0xff]
  %v2960 = vld [vmem:[#allocation2 + $0x2e8] sm:$0xff]
  %v2961 = vld [vmem:[#allocation2 + $0x2f0] sm:$0xff]
  %v2962 = vld [vmem:[#allocation2 + $0x2f8] sm:$0xff]
  %v2963 = vld [vmem:[#allocation2 + $0x300] sm:$0xff]
  %v2964 = vld [vmem:[#allocation2 + $0x308] sm:$0xff]
  %v2965 = vld [vmem:[#allocation2 + $0x310] sm:$0xff]
  %v2966 = vld [vmem:[#allocation2 + $0x318] sm:$0xff]
  %v2967 = vld [vmem:[#allocation2 + $0x320] sm:$0xff]
  %v2968 = vld [vmem:[#allocation2 + $0x328] sm:$0xff]
  %v2969 = vld [vmem:[#allocation2 + $0x330] sm:$0xff]
  %v2970 = vld [vmem:[#allocation2 + $0x338] sm:$0xff]
  %v2971 = vld [vmem:[#allocation2 + $0x340] sm:$0xff]
  %v2972 = vld [vmem:[#allocation2 + $0x348] sm:$0xff]
  %v2973 = vld [vmem:[#allocation2 + $0x350] sm:$0xff]
  %v2974 = vld [vmem:[#allocation2 + $0x358] sm:$0x1]
  %v2975 = vpack.c.bf16 %v2940, %v2939
  %v2976 = vpack.c.bf16 %v2942, %v2941
  %v2977 = vpack.c.bf16 %v2944, %v2943
  %v2978 = vpack.c.bf16 %v2946, %v2945
  %v2979 = vpack.c.bf16 %v2948, %v2947
  %v2980 = vpack.c.bf16 %v2950, %v2949
  %v2981 = vpack.c.bf16 %v2952, %v2951
  %v2982 = vpack.c.bf16 %v2954, %v2953
  %v2983 = vpack.c.bf16 %v2956, %v2955
  %v2984 = vpack.c.bf16 %v2958, %v2957
  %v2985 = vpack.c.bf16 %v2960, %v2959
  %v2986 = vpack.c.bf16 %v2962, %v2961
  %v2987 = vpack.c.bf16 %v2964, %v2963
  %v2988 = vpack.c.bf16 %v2966, %v2965
  %v2989 = vpack.c.bf16 %v2968, %v2967
  %v2990 = vpack.c.bf16 %v2970, %v2969
  %v2991 = vpack.c.bf16 %v2972, %v2971
  %v2992 = vpack.c.bf16 %v2974, %v2973
  %s2993 = scalar_lea.vmem %s3, 256
  %v2994 = vld [vmem:[%s2993] sm:$0xf]
  %v2995 = vld [vmem:[%s2993 + $0x4] sm:$0xf]
  %v2996 = vld [vmem:[%s2993 + $0x8] sm:$0xf]
  %v2997 = vld [vmem:[%s2993 + $0xc] sm:$0xf]
  %v2998 = vld [vmem:[%s2993 + $0x10] sm:$0xf]
  %v2999 = vld [vmem:[%s2993 + $0x14] sm:$0xf]
  %v3000 = vld [vmem:[%s2993 + $0x18] sm:$0xf]
  %v3001 = vld [vmem:[%s2993 + $0x1c] sm:$0xf]
  %v3002 = vld [vmem:[%s2993 + $0x20] sm:$0xf]
  %v3003 = vld [vmem:[%s2993 + $0x24] sm:$0xf]
  %v3004 = vld [vmem:[%s2993 + $0x28] sm:$0xf]
  %v3005 = vld [vmem:[%s2993 + $0x2c] sm:$0xf]
  %v3006 = vld [vmem:[%s2993 + $0x30] sm:$0xf]
  %v3007 = vld [vmem:[%s2993 + $0x34] sm:$0xf]
  %v3008 = vld [vmem:[%s2993 + $0x38] sm:$0xf]
  %v3009 = vld [vmem:[%s2993 + $0x3c] sm:$0xf]
  %v3026 = vunpack.c.l.b16 %v2994
  %v3027 = vunpack.c.l.b16 %v2995
  %v3028 = vunpack.c.l.b16 %v2996
  %v3029 = vunpack.c.l.b16 %v2997
  %v3030 = vunpack.c.l.b16 %v2998
  %v3031 = vunpack.c.l.b16 %v2999
  %v3032 = vunpack.c.l.b16 %v3000
  %v3033 = vunpack.c.l.b16 %v3001
  %v3034 = vunpack.c.l.b16 %v3002
  %v3035 = vunpack.c.l.b16 %v3003
  %v3036 = vunpack.c.l.b16 %v3004
  %v3037 = vunpack.c.l.b16 %v3005
  %v3038 = vunpack.c.l.b16 %v3006
  %v3039 = vunpack.c.l.b16 %v3007
  %v3040 = vunpack.c.l.b16 %v3008
  %v3041 = vunpack.c.l.b16 %v3009
  %v3042 = vpack.c.b16 %v3027, %v3026
  %v3043 = vpack.c.b16 %v3029, %v3028
  %v3044 = vpack.c.b16 %v3031, %v3030
  %v3045 = vpack.c.b16 %v3033, %v3032
  %v3046 = vpack.c.b16 %v3035, %v3034
  %v3047 = vpack.c.b16 %v3037, %v3036
  %v3048 = vpack.c.b16 %v3039, %v3038
  %v3049 = vpack.c.b16 %v3041, %v3040
  %3058 = vmatprep.subr.bf16.mxu0 0
  %3059 = vmatpush1.bf16.msra.mxu0 %v3049
  %3060 = vmatprep.subr.bf16.mxu0 0
  %3061 = vmatpush1.bf16.msra.mxu0 %v3048
  %3062 = vmatprep.subr.bf16.mxu0 0
  %3063 = vmatpush1.bf16.msra.mxu0 %v3047
  %3064 = vmatprep.subr.bf16.mxu0 0
  %3065 = vmatpush1.bf16.msra.mxu0 %v3046
  %3066 = vmatprep.subr.bf16.mxu0 0
  %3067 = vmatpush1.bf16.msra.mxu0 %v3045
  %3068 = vmatprep.subr.bf16.mxu0 0
  %3069 = vmatpush1.bf16.msra.mxu0 %v3044
  %3070 = vmatprep.subr.bf16.mxu0 0
  %3071 = vmatpush1.bf16.msra.mxu0 %v3043
  %3072 = vmatprep.subr.bf16.mxu0 0
  %3073 = vmatpush1.bf16.msra.mxu0 %v3042
  %3074 = vmatprep.subr.bf16.mxu0 0
  %3075 = vmatpush2.bf16.msra.mxu0 0
  %3076 = vmatprep.subr.bf16.mxu0 0
  %3077 = vmatpush2.bf16.msra.mxu0 0
  %3078 = vmatprep.subr.bf16.mxu0 0
  %3079 = vmatpush2.bf16.msra.mxu0 0
  %3080 = vmatprep.subr.bf16.mxu0 0
  %3081 = vmatpush2.bf16.msra.mxu0 0
  %3082 = vmatprep.subr.bf16.mxu0 0
  %3083 = vmatpush2.bf16.msra.mxu0 0
  %3084 = vmatprep.subr.bf16.mxu0 0
  %3085 = vmatpush2.bf16.msra.mxu0 0
  %3086 = vmatprep.subr.bf16.mxu0 0
  %3087 = vmatpush2.bf16.msra.mxu0 0
  %3088 = vmatprep.subr.bf16.mxu0 0
  %3089 = vmatpush2.bf16.msra.mxu0 0
  %3090 = vmatprep.mubr.bf16.mxu0 0
  %3091 = vmatmul.mubr.bf16.gmra.mxu0 %v2975
  %v3092 = vpop.f32.mrf.mxu0
  %v3093 = vadd.f32 0.0, %v3092
  %v3094 = vpop.f32.mrf.mxu0
  %v3095 = vpop.f32.mrf.mxu0
  %v3096 = vadd.f32 0.0, %v3095
  %v3097 = vpop.f32.mrf.mxu0
  %3098 = vmatprep.mubr.bf16.mxu0 0
  %3099 = vmatmul.mubr.bf16.gmra.mxu0 %v2976
  %v3100 = vpop.f32.mrf.mxu0
  %v3101 = vadd.f32 0.0, %v3100
  %v3102 = vpop.f32.mrf.mxu0
  %v3103 = vpop.f32.mrf.mxu0
  %v3104 = vadd.f32 0.0, %v3103
  %v3105 = vpop.f32.mrf.mxu0
  %3106 = vmatprep.mubr.bf16.mxu0 0
  %3107 = vmatmul.mubr.bf16.gmra.mxu0 %v2977
  %v3108 = vpop.f32.mrf.mxu0
  %v3109 = vadd.f32 0.0, %v3108
  %v3110 = vpop.f32.mrf.mxu0
  %v3111 = vpop.f32.mrf.mxu0
  %v3112 = vadd.f32 0.0, %v3111
  %v3113 = vpop.f32.mrf.mxu0
  %3114 = vmatprep.mubr.bf16.mxu0 0
  %3115 = vmatmul.mubr.bf16.gmra.mxu0 %v2978
  %v3116 = vpop.f32.mrf.mxu0
  %v3117 = vadd.f32 0.0, %v3116
  %v3118 = vpop.f32.mrf.mxu0
  %v3119 = vpop.f32.mrf.mxu0
  %v3120 = vadd.f32 0.0, %v3119
  %v3121 = vpop.f32.mrf.mxu0
  %3122 = vmatprep.mubr.bf16.mxu0 0
  %3123 = vmatmul.mubr.bf16.gmra.mxu0 %v2979
  %v3124 = vpop.f32.mrf.mxu0
  %v3125 = vadd.f32 0.0, %v3124
  %v3126 = vpop.f32.mrf.mxu0
  %v3127 = vpop.f32.mrf.mxu0
  %v3128 = vadd.f32 0.0, %v3127
  %v3129 = vpop.f32.mrf.mxu0
  %3130 = vmatprep.mubr.bf16.mxu0 0
  %3131 = vmatmul.mubr.bf16.gmra.mxu0 %v2980
  %v3132 = vpop.f32.mrf.mxu0
  %v3133 = vadd.f32 0.0, %v3132
  %v3134 = vpop.f32.mrf.mxu0
  %v3135 = vpop.f32.mrf.mxu0
  %v3136 = vadd.f32 0.0, %v3135
  %v3137 = vpop.f32.mrf.mxu0
  %3138 = vmatprep.mubr.bf16.mxu0 0
  %3139 = vmatmul.mubr.bf16.gmra.mxu0 %v2981
  %v3140 = vpop.f32.mrf.mxu0
  %v3141 = vadd.f32 0.0, %v3140
  %v3142 = vpop.f32.mrf.mxu0
  %v3143 = vpop.f32.mrf.mxu0
  %v3144 = vadd.f32 0.0, %v3143
  %v3145 = vpop.f32.mrf.mxu0
  %3146 = vmatprep.mubr.bf16.mxu0 0
  %3147 = vmatmul.mubr.bf16.gmra.mxu0 %v2982
  %v3148 = vpop.f32.mrf.mxu0
  %v3149 = vadd.f32 0.0, %v3148
  %v3150 = vpop.f32.mrf.mxu0
  %v3151 = vpop.f32.mrf.mxu0
  %v3152 = vadd.f32 0.0, %v3151
  %v3153 = vpop.f32.mrf.mxu0
  %3154 = vmatprep.mubr.bf16.mxu0 0
  %3155 = vmatmul.mubr.bf16.gmra.mxu0 %v2983
  %v3156 = vpop.f32.mrf.mxu0
  %v3157 = vadd.f32 0.0, %v3156
  %v3158 = vpop.f32.mrf.mxu0
  %v3159 = vpop.f32.mrf.mxu0
  %v3160 = vadd.f32 0.0, %v3159
  %v3161 = vpop.f32.mrf.mxu0
  %3162 = vmatprep.mubr.bf16.mxu0 0
  %3163 = vmatmul.mubr.bf16.gmra.mxu0 %v2984
  %v3164 = vpop.f32.mrf.mxu0
  %v3165 = vadd.f32 0.0, %v3164
  %v3166 = vpop.f32.mrf.mxu0
  %v3167 = vpop.f32.mrf.mxu0
  %v3168 = vadd.f32 0.0, %v3167
  %v3169 = vpop.f32.mrf.mxu0
  %3170 = vmatprep.mubr.bf16.mxu0 0
  %3171 = vmatmul.mubr.bf16.gmra.mxu0 %v2985
  %v3172 = vpop.f32.mrf.mxu0
  %v3173 = vadd.f32 0.0, %v3172
  %v3174 = vpop.f32.mrf.mxu0
  %v3175 = vpop.f32.mrf.mxu0
  %v3176 = vadd.f32 0.0, %v3175
  %v3177 = vpop.f32.mrf.mxu0
  %3178 = vmatprep.mubr.bf16.mxu0 0
  %3179 = vmatmul.mubr.bf16.gmra.mxu0 %v2986
  %v3180 = vpop.f32.mrf.mxu0
  %v3181 = vadd.f32 0.0, %v3180
  %v3182 = vpop.f32.mrf.mxu0
  %v3183 = vpop.f32.mrf.mxu0
  %v3184 = vadd.f32 0.0, %v3183
  %v3185 = vpop.f32.mrf.mxu0
  %3186 = vmatprep.mubr.bf16.mxu0 0
  %3187 = vmatmul.mubr.bf16.gmra.mxu0 %v2987
  %v3188 = vpop.f32.mrf.mxu0
  %v3189 = vadd.f32 0.0, %v3188
  %v3190 = vpop.f32.mrf.mxu0
  %v3191 = vpop.f32.mrf.mxu0
  %v3192 = vadd.f32 0.0, %v3191
  %v3193 = vpop.f32.mrf.mxu0
  %3194 = vmatprep.mubr.bf16.mxu0 0
  %3195 = vmatmul.mubr.bf16.gmra.mxu0 %v2988
  %v3196 = vpop.f32.mrf.mxu0
  %v3197 = vadd.f32 0.0, %v3196
  %v3198 = vpop.f32.mrf.mxu0
  %v3199 = vpop.f32.mrf.mxu0
  %v3200 = vadd.f32 0.0, %v3199
  %v3201 = vpop.f32.mrf.mxu0
  %3202 = vmatprep.mubr.bf16.mxu0 0
  %3203 = vmatmul.mubr.bf16.gmra.mxu0 %v2989
  %v3204 = vpop.f32.mrf.mxu0
  %v3205 = vadd.f32 0.0, %v3204
  %v3206 = vpop.f32.mrf.mxu0
  %v3207 = vpop.f32.mrf.mxu0
  %v3208 = vadd.f32 0.0, %v3207
  %v3209 = vpop.f32.mrf.mxu0
  %3210 = vmatprep.mubr.bf16.mxu0 0
  %3211 = vmatmul.mubr.bf16.gmra.mxu0 %v2990
  %v3212 = vpop.f32.mrf.mxu0
  %v3213 = vadd.f32 0.0, %v3212
  %v3214 = vpop.f32.mrf.mxu0
  %v3215 = vpop.f32.mrf.mxu0
  %v3216 = vadd.f32 0.0, %v3215
  %v3217 = vpop.f32.mrf.mxu0
  %3218 = vmatprep.mubr.bf16.mxu0 0
  %3219 = vmatmul.mubr.bf16.gmra.mxu0 %v2991
  %v3220 = vpop.f32.mrf.mxu0
  %v3221 = vadd.f32 0.0, %v3220
  %v3222 = vpop.f32.mrf.mxu0
  %v3223 = vpop.f32.mrf.mxu0
  %v3224 = vadd.f32 0.0, %v3223
  %v3225 = vpop.f32.mrf.mxu0
  %3226 = vmatprep.mubr.bf16.mxu0 0
  %3227 = vmatmul.mubr.bf16.gmra.mxu0 %v2992
  %v3228 = vpop.f32.mrf.mxu0
  %v3229 = vadd.f32 0.0, %v3228
  %v3230 = vpop.f32.mrf.mxu0
  %v3231 = vpop.f32.mrf.mxu0
  %v3232 = vadd.f32 0.0, %v3231
  %v3233 = vpop.f32.mrf.mxu0
  %3234 = vdwg.mxu0
  %v3235 = vadd.f32 %v2903, %v3093
  %v3236 = vadd.f32 %v2904, %v3096
  %v3237 = vadd.f32 %v2905, %v3101
  %v3238 = vadd.f32 %v2906, %v3104
  %v3239 = vadd.f32 %v2907, %v3109
  %v3240 = vadd.f32 %v2908, %v3112
  %v3241 = vadd.f32 %v2909, %v3117
  %v3242 = vadd.f32 %v2910, %v3120
  %v3243 = vadd.f32 %v2911, %v3125
  %v3244 = vadd.f32 %v2912, %v3128
  %v3245 = vadd.f32 %v2913, %v3133
  %v3246 = vadd.f32 %v2914, %v3136
  %v3247 = vadd.f32 %v2915, %v3141
  %v3248 = vadd.f32 %v2916, %v3144
  %v3249 = vadd.f32 %v2917, %v3149
  %v3250 = vadd.f32 %v2918, %v3152
  %v3251 = vadd.f32 %v2919, %v3157
  %v3252 = vadd.f32 %v2920, %v3160
  %v3253 = vadd.f32 %v2921, %v3165
  %v3254 = vadd.f32 %v2922, %v3168
  %v3255 = vadd.f32 %v2923, %v3173
  %v3256 = vadd.f32 %v2924, %v3176
  %v3257 = vadd.f32 %v2925, %v3181
  %v3258 = vadd.f32 %v2926, %v3184
  %v3259 = vadd.f32 %v2927, %v3189
  %v3260 = vadd.f32 %v2928, %v3192
  %v3261 = vadd.f32 %v2929, %v3197
  %v3262 = vadd.f32 %v2930, %v3200
  %v3263 = vadd.f32 %v2931, %v3205
  %v3264 = vadd.f32 %v2932, %v3208
  %v3265 = vadd.f32 %v2933, %v3213
  %v3266 = vadd.f32 %v2934, %v3216
  %v3267 = vadd.f32 %v2935, %v3221
  %v3268 = vadd.f32 %v2936, %v3224
  %v3269 = vadd.f32 %v2937, %v3229
  %v3270 = vadd.f32 %v2938, %v3232
  %v3271 = vld [vmem:[#allocation2 + $0x360] sm:$0xff]
  %v3272 = vld [vmem:[#allocation2 + $0x368] sm:$0xff]
  %v3273 = vld [vmem:[#allocation2 + $0x370] sm:$0xff]
  %v3274 = vld [vmem:[#allocation2 + $0x378] sm:$0xff]
  %v3275 = vld [vmem:[#allocation2 + $0x380] sm:$0xff]
  %v3276 = vld [vmem:[#allocation2 + $0x388] sm:$0xff]
  %v3277 = vld [vmem:[#allocation2 + $0x390] sm:$0xff]
  %v3278 = vld [vmem:[#allocation2 + $0x398] sm:$0xff]
  %v3279 = vld [vmem:[#allocation2 + $0x3a0] sm:$0xff]
  %v3280 = vld [vmem:[#allocation2 + $0x3a8] sm:$0xff]
  %v3281 = vld [vmem:[#allocation2 + $0x3b0] sm:$0xff]
  %v3282 = vld [vmem:[#allocation2 + $0x3b8] sm:$0xff]
  %v3283 = vld [vmem:[#allocation2 + $0x3c0] sm:$0xff]
  %v3284 = vld [vmem:[#allocation2 + $0x3c8] sm:$0xff]
  %v3285 = vld [vmem:[#allocation2 + $0x3d0] sm:$0xff]
  %v3286 = vld [vmem:[#allocation2 + $0x3d8] sm:$0xff]
  %v3287 = vld [vmem:[#allocation2 + $0x3e0] sm:$0xff]
  %v3288 = vld [vmem:[#allocation2 + $0x3e8] sm:$0xff]
  %v3289 = vld [vmem:[#allocation2 + $0x3f0] sm:$0xff]
  %v3290 = vld [vmem:[#allocation2 + $0x3f8] sm:$0xff]
  %v3291 = vld [vmem:[#allocation2 + $0x400] sm:$0xff]
  %v3292 = vld [vmem:[#allocation2 + $0x408] sm:$0xff]
  %v3293 = vld [vmem:[#allocation2 + $0x410] sm:$0xff]
  %v3294 = vld [vmem:[#allocation2 + $0x418] sm:$0xff]
  %v3295 = vld [vmem:[#allocation2 + $0x420] sm:$0xff]
  %v3296 = vld [vmem:[#allocation2 + $0x428] sm:$0xff]
  %v3297 = vld [vmem:[#allocation2 + $0x430] sm:$0xff]
  %v3298 = vld [vmem:[#allocation2 + $0x438] sm:$0xff]
  %v3299 = vld [vmem:[#allocation2 + $0x440] sm:$0xff]
  %v3300 = vld [vmem:[#allocation2 + $0x448] sm:$0xff]
  %v3301 = vld [vmem:[#allocation2 + $0x450] sm:$0xff]
  %v3302 = vld [vmem:[#allocation2 + $0x458] sm:$0xff]
  %v3303 = vld [vmem:[#allocation2 + $0x460] sm:$0xff]
  %v3304 = vld [vmem:[#allocation2 + $0x468] sm:$0xff]
  %v3305 = vld [vmem:[#allocation2 + $0x470] sm:$0xff]
  %v3306 = vld [vmem:[#allocation2 + $0x478] sm:$0x1]
  %v3307 = vpack.c.bf16 %v3272, %v3271
  %v3308 = vpack.c.bf16 %v3274, %v3273
  %v3309 = vpack.c.bf16 %v3276, %v3275
  %v3310 = vpack.c.bf16 %v3278, %v3277
  %v3311 = vpack.c.bf16 %v3280, %v3279
  %v3312 = vpack.c.bf16 %v3282, %v3281
  %v3313 = vpack.c.bf16 %v3284, %v3283
  %v3314 = vpack.c.bf16 %v3286, %v3285
  %v3315 = vpack.c.bf16 %v3288, %v3287
  %v3316 = vpack.c.bf16 %v3290, %v3289
  %v3317 = vpack.c.bf16 %v3292, %v3291
  %v3318 = vpack.c.bf16 %v3294, %v3293
  %v3319 = vpack.c.bf16 %v3296, %v3295
  %v3320 = vpack.c.bf16 %v3298, %v3297
  %v3321 = vpack.c.bf16 %v3300, %v3299
  %v3322 = vpack.c.bf16 %v3302, %v3301
  %v3323 = vpack.c.bf16 %v3304, %v3303
  %v3324 = vpack.c.bf16 %v3306, %v3305
  %s3325 = scalar_lea.vmem %s3, 320
  %v3326 = vld [vmem:[%s3325] sm:$0xf]
  %v3327 = vld [vmem:[%s3325 + $0x4] sm:$0xf]
  %v3328 = vld [vmem:[%s3325 + $0x8] sm:$0xf]
  %v3329 = vld [vmem:[%s3325 + $0xc] sm:$0xf]
  %v3330 = vld [vmem:[%s3325 + $0x10] sm:$0xf]
  %v3331 = vld [vmem:[%s3325 + $0x14] sm:$0xf]
  %v3332 = vld [vmem:[%s3325 + $0x18] sm:$0xf]
  %v3333 = vld [vmem:[%s3325 + $0x1c] sm:$0xf]
  %v3334 = vld [vmem:[%s3325 + $0x20] sm:$0xf]
  %v3335 = vld [vmem:[%s3325 + $0x24] sm:$0xf]
  %v3336 = vld [vmem:[%s3325 + $0x28] sm:$0xf]
  %v3337 = vld [vmem:[%s3325 + $0x2c] sm:$0xf]
  %v3338 = vld [vmem:[%s3325 + $0x30] sm:$0xf]
  %v3339 = vld [vmem:[%s3325 + $0x34] sm:$0xf]
  %v3340 = vld [vmem:[%s3325 + $0x38] sm:$0xf]
  %v3341 = vld [vmem:[%s3325 + $0x3c] sm:$0xf]
  %v3358 = vunpack.c.l.b16 %v3326
  %v3359 = vunpack.c.l.b16 %v3327
  %v3360 = vunpack.c.l.b16 %v3328
  %v3361 = vunpack.c.l.b16 %v3329
  %v3362 = vunpack.c.l.b16 %v3330
  %v3363 = vunpack.c.l.b16 %v3331
  %v3364 = vunpack.c.l.b16 %v3332
  %v3365 = vunpack.c.l.b16 %v3333
  %v3366 = vunpack.c.l.b16 %v3334
  %v3367 = vunpack.c.l.b16 %v3335
  %v3368 = vunpack.c.l.b16 %v3336
  %v3369 = vunpack.c.l.b16 %v3337
  %v3370 = vunpack.c.l.b16 %v3338
  %v3371 = vunpack.c.l.b16 %v3339
  %v3372 = vunpack.c.l.b16 %v3340
  %v3373 = vunpack.c.l.b16 %v3341
  %v3374 = vpack.c.b16 %v3359, %v3358
  %v3375 = vpack.c.b16 %v3361, %v3360
  %v3376 = vpack.c.b16 %v3363, %v3362
  %v3377 = vpack.c.b16 %v3365, %v3364
  %v3378 = vpack.c.b16 %v3367, %v3366
  %v3379 = vpack.c.b16 %v3369, %v3368
  %v3380 = vpack.c.b16 %v3371, %v3370
  %v3381 = vpack.c.b16 %v3373, %v3372
  %3390 = vmatprep.subr.bf16.mxu0 0
  %3391 = vmatpush1.bf16.msra.mxu0 %v3381
  %3392 = vmatprep.subr.bf16.mxu0 0
  %3393 = vmatpush1.bf16.msra.mxu0 %v3380
  %3394 = vmatprep.subr.bf16.mxu0 0
  %3395 = vmatpush1.bf16.msra.mxu0 %v3379
  %3396 = vmatprep.subr.bf16.mxu0 0
  %3397 = vmatpush1.bf16.msra.mxu0 %v3378
  %3398 = vmatprep.subr.bf16.mxu0 0
  %3399 = vmatpush1.bf16.msra.mxu0 %v3377
  %3400 = vmatprep.subr.bf16.mxu0 0
  %3401 = vmatpush1.bf16.msra.mxu0 %v3376
  %3402 = vmatprep.subr.bf16.mxu0 0
  %3403 = vmatpush1.bf16.msra.mxu0 %v3375
  %3404 = vmatprep.subr.bf16.mxu0 0
  %3405 = vmatpush1.bf16.msra.mxu0 %v3374
  %3406 = vmatprep.subr.bf16.mxu0 0
  %3407 = vmatpush2.bf16.msra.mxu0 0
  %3408 = vmatprep.subr.bf16.mxu0 0
  %3409 = vmatpush2.bf16.msra.mxu0 0
  %3410 = vmatprep.subr.bf16.mxu0 0
  %3411 = vmatpush2.bf16.msra.mxu0 0
  %3412 = vmatprep.subr.bf16.mxu0 0
  %3413 = vmatpush2.bf16.msra.mxu0 0
  %3414 = vmatprep.subr.bf16.mxu0 0
  %3415 = vmatpush2.bf16.msra.mxu0 0
  %3416 = vmatprep.subr.bf16.mxu0 0
  %3417 = vmatpush2.bf16.msra.mxu0 0
  %3418 = vmatprep.subr.bf16.mxu0 0
  %3419 = vmatpush2.bf16.msra.mxu0 0
  %3420 = vmatprep.subr.bf16.mxu0 0
  %3421 = vmatpush2.bf16.msra.mxu0 0
  %3422 = vmatprep.mubr.bf16.mxu0 0
  %3423 = vmatmul.mubr.bf16.gmra.mxu0 %v3307
  %v3424 = vpop.f32.mrf.mxu0
  %v3425 = vadd.f32 0.0, %v3424
  %v3426 = vpop.f32.mrf.mxu0
  %v3427 = vpop.f32.mrf.mxu0
  %v3428 = vadd.f32 0.0, %v3427
  %v3429 = vpop.f32.mrf.mxu0
  %3430 = vmatprep.mubr.bf16.mxu0 0
  %3431 = vmatmul.mubr.bf16.gmra.mxu0 %v3308
  %v3432 = vpop.f32.mrf.mxu0
  %v3433 = vadd.f32 0.0, %v3432
  %v3434 = vpop.f32.mrf.mxu0
  %v3435 = vpop.f32.mrf.mxu0
  %v3436 = vadd.f32 0.0, %v3435
  %v3437 = vpop.f32.mrf.mxu0
  %3438 = vmatprep.mubr.bf16.mxu0 0
  %3439 = vmatmul.mubr.bf16.gmra.mxu0 %v3309
  %v3440 = vpop.f32.mrf.mxu0
  %v3441 = vadd.f32 0.0, %v3440
  %v3442 = vpop.f32.mrf.mxu0
  %v3443 = vpop.f32.mrf.mxu0
  %v3444 = vadd.f32 0.0, %v3443
  %v3445 = vpop.f32.mrf.mxu0
  %3446 = vmatprep.mubr.bf16.mxu0 0
  %3447 = vmatmul.mubr.bf16.gmra.mxu0 %v3310
  %v3448 = vpop.f32.mrf.mxu0
  %v3449 = vadd.f32 0.0, %v3448
  %v3450 = vpop.f32.mrf.mxu0
  %v3451 = vpop.f32.mrf.mxu0
  %v3452 = vadd.f32 0.0, %v3451
  %v3453 = vpop.f32.mrf.mxu0
  %3454 = vmatprep.mubr.bf16.mxu0 0
  %3455 = vmatmul.mubr.bf16.gmra.mxu0 %v3311
  %v3456 = vpop.f32.mrf.mxu0
  %v3457 = vadd.f32 0.0, %v3456
  %v3458 = vpop.f32.mrf.mxu0
  %v3459 = vpop.f32.mrf.mxu0
  %v3460 = vadd.f32 0.0, %v3459
  %v3461 = vpop.f32.mrf.mxu0
  %3462 = vmatprep.mubr.bf16.mxu0 0
  %3463 = vmatmul.mubr.bf16.gmra.mxu0 %v3312
  %v3464 = vpop.f32.mrf.mxu0
  %v3465 = vadd.f32 0.0, %v3464
  %v3466 = vpop.f32.mrf.mxu0
  %v3467 = vpop.f32.mrf.mxu0
  %v3468 = vadd.f32 0.0, %v3467
  %v3469 = vpop.f32.mrf.mxu0
  %3470 = vmatprep.mubr.bf16.mxu0 0
  %3471 = vmatmul.mubr.bf16.gmra.mxu0 %v3313
  %v3472 = vpop.f32.mrf.mxu0
  %v3473 = vadd.f32 0.0, %v3472
  %v3474 = vpop.f32.mrf.mxu0
  %v3475 = vpop.f32.mrf.mxu0
  %v3476 = vadd.f32 0.0, %v3475
  %v3477 = vpop.f32.mrf.mxu0
  %3478 = vmatprep.mubr.bf16.mxu0 0
  %3479 = vmatmul.mubr.bf16.gmra.mxu0 %v3314
  %v3480 = vpop.f32.mrf.mxu0
  %v3481 = vadd.f32 0.0, %v3480
  %v3482 = vpop.f32.mrf.mxu0
  %v3483 = vpop.f32.mrf.mxu0
  %v3484 = vadd.f32 0.0, %v3483
  %v3485 = vpop.f32.mrf.mxu0
  %3486 = vmatprep.mubr.bf16.mxu0 0
  %3487 = vmatmul.mubr.bf16.gmra.mxu0 %v3315
  %v3488 = vpop.f32.mrf.mxu0
  %v3489 = vadd.f32 0.0, %v3488
  %v3490 = vpop.f32.mrf.mxu0
  %v3491 = vpop.f32.mrf.mxu0
  %v3492 = vadd.f32 0.0, %v3491
  %v3493 = vpop.f32.mrf.mxu0
  %3494 = vmatprep.mubr.bf16.mxu0 0
  %3495 = vmatmul.mubr.bf16.gmra.mxu0 %v3316
  %v3496 = vpop.f32.mrf.mxu0
  %v3497 = vadd.f32 0.0, %v3496
  %v3498 = vpop.f32.mrf.mxu0
  %v3499 = vpop.f32.mrf.mxu0
  %v3500 = vadd.f32 0.0, %v3499
  %v3501 = vpop.f32.mrf.mxu0
  %3502 = vmatprep.mubr.bf16.mxu0 0
  %3503 = vmatmul.mubr.bf16.gmra.mxu0 %v3317
  %v3504 = vpop.f32.mrf.mxu0
  %v3505 = vadd.f32 0.0, %v3504
  %v3506 = vpop.f32.mrf.mxu0
  %v3507 = vpop.f32.mrf.mxu0
  %v3508 = vadd.f32 0.0, %v3507
  %v3509 = vpop.f32.mrf.mxu0
  %3510 = vmatprep.mubr.bf16.mxu0 0
  %3511 = vmatmul.mubr.bf16.gmra.mxu0 %v3318
  %v3512 = vpop.f32.mrf.mxu0
  %v3513 = vadd.f32 0.0, %v3512
  %v3514 = vpop.f32.mrf.mxu0
  %v3515 = vpop.f32.mrf.mxu0
  %v3516 = vadd.f32 0.0, %v3515
  %v3517 = vpop.f32.mrf.mxu0
  %3518 = vmatprep.mubr.bf16.mxu0 0
  %3519 = vmatmul.mubr.bf16.gmra.mxu0 %v3319
  %v3520 = vpop.f32.mrf.mxu0
  %v3521 = vadd.f32 0.0, %v3520
  %v3522 = vpop.f32.mrf.mxu0
  %v3523 = vpop.f32.mrf.mxu0
  %v3524 = vadd.f32 0.0, %v3523
  %v3525 = vpop.f32.mrf.mxu0
  %3526 = vmatprep.mubr.bf16.mxu0 0
  %3527 = vmatmul.mubr.bf16.gmra.mxu0 %v3320
  %v3528 = vpop.f32.mrf.mxu0
  %v3529 = vadd.f32 0.0, %v3528
  %v3530 = vpop.f32.mrf.mxu0
  %v3531 = vpop.f32.mrf.mxu0
  %v3532 = vadd.f32 0.0, %v3531
  %v3533 = vpop.f32.mrf.mxu0
  %3534 = vmatprep.mubr.bf16.mxu0 0
  %3535 = vmatmul.mubr.bf16.gmra.mxu0 %v3321
  %v3536 = vpop.f32.mrf.mxu0
  %v3537 = vadd.f32 0.0, %v3536
  %v3538 = vpop.f32.mrf.mxu0
  %v3539 = vpop.f32.mrf.mxu0
  %v3540 = vadd.f32 0.0, %v3539
  %v3541 = vpop.f32.mrf.mxu0
  %3542 = vmatprep.mubr.bf16.mxu0 0
  %3543 = vmatmul.mubr.bf16.gmra.mxu0 %v3322
  %v3544 = vpop.f32.mrf.mxu0
  %v3545 = vadd.f32 0.0, %v3544
  %v3546 = vpop.f32.mrf.mxu0
  %v3547 = vpop.f32.mrf.mxu0
  %v3548 = vadd.f32 0.0, %v3547
  %v3549 = vpop.f32.mrf.mxu0
  %3550 = vmatprep.mubr.bf16.mxu0 0
  %3551 = vmatmul.mubr.bf16.gmra.mxu0 %v3323
  %v3552 = vpop.f32.mrf.mxu0
  %v3553 = vadd.f32 0.0, %v3552
  %v3554 = vpop.f32.mrf.mxu0
  %v3555 = vpop.f32.mrf.mxu0
  %v3556 = vadd.f32 0.0, %v3555
  %v3557 = vpop.f32.mrf.mxu0
  %3558 = vmatprep.mubr.bf16.mxu0 0
  %3559 = vmatmul.mubr.bf16.gmra.mxu0 %v3324
  %v3560 = vpop.f32.mrf.mxu0
  %v3561 = vadd.f32 0.0, %v3560
  %v3562 = vpop.f32.mrf.mxu0
  %v3563 = vpop.f32.mrf.mxu0
  %v3564 = vadd.f32 0.0, %v3563
  %v3565 = vpop.f32.mrf.mxu0
  %3566 = vdwg.mxu0
  %v3567 = vadd.f32 %v3235, %v3425
  %v3568 = vadd.f32 %v3236, %v3428
  %v3569 = vadd.f32 %v3237, %v3433
  %v3570 = vadd.f32 %v3238, %v3436
  %v3571 = vadd.f32 %v3239, %v3441
  %v3572 = vadd.f32 %v3240, %v3444
  %v3573 = vadd.f32 %v3241, %v3449
  %v3574 = vadd.f32 %v3242, %v3452
  %v3575 = vadd.f32 %v3243, %v3457
  %v3576 = vadd.f32 %v3244, %v3460
  %v3577 = vadd.f32 %v3245, %v3465
  %v3578 = vadd.f32 %v3246, %v3468
  %v3579 = vadd.f32 %v3247, %v3473
  %v3580 = vadd.f32 %v3248, %v3476
  %v3581 = vadd.f32 %v3249, %v3481
  %v3582 = vadd.f32 %v3250, %v3484
  %v3583 = vadd.f32 %v3251, %v3489
  %v3584 = vadd.f32 %v3252, %v3492
  %v3585 = vadd.f32 %v3253, %v3497
  %v3586 = vadd.f32 %v3254, %v3500
  %v3587 = vadd.f32 %v3255, %v3505
  %v3588 = vadd.f32 %v3256, %v3508
  %v3589 = vadd.f32 %v3257, %v3513
  %v3590 = vadd.f32 %v3258, %v3516
  %v3591 = vadd.f32 %v3259, %v3521
  %v3592 = vadd.f32 %v3260, %v3524
  %v3593 = vadd.f32 %v3261, %v3529
  %v3594 = vadd.f32 %v3262, %v3532
  %v3595 = vadd.f32 %v3263, %v3537
  %v3596 = vadd.f32 %v3264, %v3540
  %v3597 = vadd.f32 %v3265, %v3545
  %v3598 = vadd.f32 %v3266, %v3548
  %v3599 = vadd.f32 %v3267, %v3553
  %v3600 = vadd.f32 %v3268, %v3556
  %v3601 = vadd.f32 %v3269, %v3561
  %v3602 = vadd.f32 %v3270, %v3564
  %v3603 = vld [vmem:[#allocation2 + $0x241] sm:$0xff]
  %v3604 = vld [vmem:[#allocation2 + $0x249] sm:$0xff]
  %v3605 = vld [vmem:[#allocation2 + $0x251] sm:$0xff]
  %v3606 = vld [vmem:[#allocation2 + $0x259] sm:$0xff]
  %v3607 = vld [vmem:[#allocation2 + $0x261] sm:$0xff]
  %v3608 = vld [vmem:[#allocation2 + $0x269] sm:$0xff]
  %v3609 = vld [vmem:[#allocation2 + $0x271] sm:$0xff]
  %v3610 = vld [vmem:[#allocation2 + $0x279] sm:$0xff]
  %v3611 = vld [vmem:[#allocation2 + $0x281] sm:$0xff]
  %v3612 = vld [vmem:[#allocation2 + $0x289] sm:$0xff]
  %v3613 = vld [vmem:[#allocation2 + $0x291] sm:$0xff]
  %v3614 = vld [vmem:[#allocation2 + $0x299] sm:$0xff]
  %v3615 = vld [vmem:[#allocation2 + $0x2a1] sm:$0xff]
  %v3616 = vld [vmem:[#allocation2 + $0x2a9] sm:$0xff]
  %v3617 = vld [vmem:[#allocation2 + $0x2b1] sm:$0xff]
  %v3618 = vld [vmem:[#allocation2 + $0x2b9] sm:$0xff]
  %v3619 = vld [vmem:[#allocation2 + $0x2c1] sm:$0xff]
  %v3620 = vld [vmem:[#allocation2 + $0x2c9] sm:$0xff]
  %v3621 = vld [vmem:[#allocation2 + $0x2d1] sm:$0xff]
  %v3622 = vld [vmem:[#allocation2 + $0x2d9] sm:$0xff]
  %v3623 = vld [vmem:[#allocation2 + $0x2e1] sm:$0xff]
  %v3624 = vld [vmem:[#allocation2 + $0x2e9] sm:$0xff]
  %v3625 = vld [vmem:[#allocation2 + $0x2f1] sm:$0xff]
  %v3626 = vld [vmem:[#allocation2 + $0x2f9] sm:$0xff]
  %v3627 = vld [vmem:[#allocation2 + $0x301] sm:$0xff]
  %v3628 = vld [vmem:[#allocation2 + $0x309] sm:$0xff]
  %v3629 = vld [vmem:[#allocation2 + $0x311] sm:$0xff]
  %v3630 = vld [vmem:[#allocation2 + $0x319] sm:$0xff]
  %v3631 = vld [vmem:[#allocation2 + $0x321] sm:$0xff]
  %v3632 = vld [vmem:[#allocation2 + $0x329] sm:$0xff]
  %v3633 = vld [vmem:[#allocation2 + $0x331] sm:$0xff]
  %v3634 = vld [vmem:[#allocation2 + $0x339] sm:$0xff]
  %v3635 = vld [vmem:[#allocation2 + $0x341] sm:$0xff]
  %v3636 = vld [vmem:[#allocation2 + $0x349] sm:$0xff]
  %v3637 = vld [vmem:[#allocation2 + $0x351] sm:$0xff]
  %v3638 = vld [vmem:[#allocation2 + $0x359] sm:$0x1]
  %v3639 = vpack.c.bf16 %v3604, %v3603
  %v3640 = vpack.c.bf16 %v3606, %v3605
  %v3641 = vpack.c.bf16 %v3608, %v3607
  %v3642 = vpack.c.bf16 %v3610, %v3609
  %v3643 = vpack.c.bf16 %v3612, %v3611
  %v3644 = vpack.c.bf16 %v3614, %v3613
  %v3645 = vpack.c.bf16 %v3616, %v3615
  %v3646 = vpack.c.bf16 %v3618, %v3617
  %v3647 = vpack.c.bf16 %v3620, %v3619
  %v3648 = vpack.c.bf16 %v3622, %v3621
  %v3649 = vpack.c.bf16 %v3624, %v3623
  %v3650 = vpack.c.bf16 %v3626, %v3625
  %v3651 = vpack.c.bf16 %v3628, %v3627
  %v3652 = vpack.c.bf16 %v3630, %v3629
  %v3653 = vpack.c.bf16 %v3632, %v3631
  %v3654 = vpack.c.bf16 %v3634, %v3633
  %v3655 = vpack.c.bf16 %v3636, %v3635
  %v3656 = vpack.c.bf16 %v3638, %v3637
  %s3657 = scalar_lea.vmem %s3, 384
  %v3658 = vld [vmem:[%s3657] sm:$0xf]
  %v3659 = vld [vmem:[%s3657 + $0x4] sm:$0xf]
  %v3660 = vld [vmem:[%s3657 + $0x8] sm:$0xf]
  %v3661 = vld [vmem:[%s3657 + $0xc] sm:$0xf]
  %v3662 = vld [vmem:[%s3657 + $0x10] sm:$0xf]
  %v3663 = vld [vmem:[%s3657 + $0x14] sm:$0xf]
  %v3664 = vld [vmem:[%s3657 + $0x18] sm:$0xf]
  %v3665 = vld [vmem:[%s3657 + $0x1c] sm:$0xf]
  %v3666 = vld [vmem:[%s3657 + $0x20] sm:$0xf]
  %v3667 = vld [vmem:[%s3657 + $0x24] sm:$0xf]
  %v3668 = vld [vmem:[%s3657 + $0x28] sm:$0xf]
  %v3669 = vld [vmem:[%s3657 + $0x2c] sm:$0xf]
  %v3670 = vld [vmem:[%s3657 + $0x30] sm:$0xf]
  %v3671 = vld [vmem:[%s3657 + $0x34] sm:$0xf]
  %v3672 = vld [vmem:[%s3657 + $0x38] sm:$0xf]
  %v3673 = vld [vmem:[%s3657 + $0x3c] sm:$0xf]
  %v3690 = vunpack.c.l.b16 %v3658
  %v3691 = vunpack.c.l.b16 %v3659
  %v3692 = vunpack.c.l.b16 %v3660
  %v3693 = vunpack.c.l.b16 %v3661
  %v3694 = vunpack.c.l.b16 %v3662
  %v3695 = vunpack.c.l.b16 %v3663
  %v3696 = vunpack.c.l.b16 %v3664
  %v3697 = vunpack.c.l.b16 %v3665
  %v3698 = vunpack.c.l.b16 %v3666
  %v3699 = vunpack.c.l.b16 %v3667
  %v3700 = vunpack.c.l.b16 %v3668
  %v3701 = vunpack.c.l.b16 %v3669
  %v3702 = vunpack.c.l.b16 %v3670
  %v3703 = vunpack.c.l.b16 %v3671
  %v3704 = vunpack.c.l.b16 %v3672
  %v3705 = vunpack.c.l.b16 %v3673
  %v3706 = vpack.c.b16 %v3691, %v3690
  %v3707 = vpack.c.b16 %v3693, %v3692
  %v3708 = vpack.c.b16 %v3695, %v3694
  %v3709 = vpack.c.b16 %v3697, %v3696
  %v3710 = vpack.c.b16 %v3699, %v3698
  %v3711 = vpack.c.b16 %v3701, %v3700
  %v3712 = vpack.c.b16 %v3703, %v3702
  %v3713 = vpack.c.b16 %v3705, %v3704
  %3722 = vmatprep.subr.bf16.mxu0 0
  %3723 = vmatpush1.bf16.msra.mxu0 %v3713
  %3724 = vmatprep.subr.bf16.mxu0 0
  %3725 = vmatpush1.bf16.msra.mxu0 %v3712
  %3726 = vmatprep.subr.bf16.mxu0 0
  %3727 = vmatpush1.bf16.msra.mxu0 %v3711
  %3728 = vmatprep.subr.bf16.mxu0 0
  %3729 = vmatpush1.bf16.msra.mxu0 %v3710
  %3730 = vmatprep.subr.bf16.mxu0 0
  %3731 = vmatpush1.bf16.msra.mxu0 %v3709
  %3732 = vmatprep.subr.bf16.mxu0 0
  %3733 = vmatpush1.bf16.msra.mxu0 %v3708
  %3734 = vmatprep.subr.bf16.mxu0 0
  %3735 = vmatpush1.bf16.msra.mxu0 %v3707
  %3736 = vmatprep.subr.bf16.mxu0 0
  %3737 = vmatpush1.bf16.msra.mxu0 %v3706
  %3738 = vmatprep.subr.bf16.mxu0 0
  %3739 = vmatpush2.bf16.msra.mxu0 0
  %3740 = vmatprep.subr.bf16.mxu0 0
  %3741 = vmatpush2.bf16.msra.mxu0 0
  %3742 = vmatprep.subr.bf16.mxu0 0
  %3743 = vmatpush2.bf16.msra.mxu0 0
  %3744 = vmatprep.subr.bf16.mxu0 0
  %3745 = vmatpush2.bf16.msra.mxu0 0
  %3746 = vmatprep.subr.bf16.mxu0 0
  %3747 = vmatpush2.bf16.msra.mxu0 0
  %3748 = vmatprep.subr.bf16.mxu0 0
  %3749 = vmatpush2.bf16.msra.mxu0 0
  %3750 = vmatprep.subr.bf16.mxu0 0
  %3751 = vmatpush2.bf16.msra.mxu0 0
  %3752 = vmatprep.subr.bf16.mxu0 0
  %3753 = vmatpush2.bf16.msra.mxu0 0
  %3754 = vmatprep.mubr.bf16.mxu0 0
  %3755 = vmatmul.mubr.bf16.gmra.mxu0 %v3639
  %v3756 = vpop.f32.mrf.mxu0
  %v3757 = vadd.f32 0.0, %v3756
  %v3758 = vpop.f32.mrf.mxu0
  %v3759 = vpop.f32.mrf.mxu0
  %v3760 = vadd.f32 0.0, %v3759
  %v3761 = vpop.f32.mrf.mxu0
  %3762 = vmatprep.mubr.bf16.mxu0 0
  %3763 = vmatmul.mubr.bf16.gmra.mxu0 %v3640
  %v3764 = vpop.f32.mrf.mxu0
  %v3765 = vadd.f32 0.0, %v3764
  %v3766 = vpop.f32.mrf.mxu0
  %v3767 = vpop.f32.mrf.mxu0
  %v3768 = vadd.f32 0.0, %v3767
  %v3769 = vpop.f32.mrf.mxu0
  %3770 = vmatprep.mubr.bf16.mxu0 0
  %3771 = vmatmul.mubr.bf16.gmra.mxu0 %v3641
  %v3772 = vpop.f32.mrf.mxu0
  %v3773 = vadd.f32 0.0, %v3772
  %v3774 = vpop.f32.mrf.mxu0
  %v3775 = vpop.f32.mrf.mxu0
  %v3776 = vadd.f32 0.0, %v3775
  %v3777 = vpop.f32.mrf.mxu0
  %3778 = vmatprep.mubr.bf16.mxu0 0
  %3779 = vmatmul.mubr.bf16.gmra.mxu0 %v3642
  %v3780 = vpop.f32.mrf.mxu0
  %v3781 = vadd.f32 0.0, %v3780
  %v3782 = vpop.f32.mrf.mxu0
  %v3783 = vpop.f32.mrf.mxu0
  %v3784 = vadd.f32 0.0, %v3783
  %v3785 = vpop.f32.mrf.mxu0
  %3786 = vmatprep.mubr.bf16.mxu0 0
  %3787 = vmatmul.mubr.bf16.gmra.mxu0 %v3643
  %v3788 = vpop.f32.mrf.mxu0
  %v3789 = vadd.f32 0.0, %v3788
  %v3790 = vpop.f32.mrf.mxu0
  %v3791 = vpop.f32.mrf.mxu0
  %v3792 = vadd.f32 0.0, %v3791
  %v3793 = vpop.f32.mrf.mxu0
  %3794 = vmatprep.mubr.bf16.mxu0 0
  %3795 = vmatmul.mubr.bf16.gmra.mxu0 %v3644
  %v3796 = vpop.f32.mrf.mxu0
  %v3797 = vadd.f32 0.0, %v3796
  %v3798 = vpop.f32.mrf.mxu0
  %v3799 = vpop.f32.mrf.mxu0
  %v3800 = vadd.f32 0.0, %v3799
  %v3801 = vpop.f32.mrf.mxu0
  %3802 = vmatprep.mubr.bf16.mxu0 0
  %3803 = vmatmul.mubr.bf16.gmra.mxu0 %v3645
  %v3804 = vpop.f32.mrf.mxu0
  %v3805 = vadd.f32 0.0, %v3804
  %v3806 = vpop.f32.mrf.mxu0
  %v3807 = vpop.f32.mrf.mxu0
  %v3808 = vadd.f32 0.0, %v3807
  %v3809 = vpop.f32.mrf.mxu0
  %3810 = vmatprep.mubr.bf16.mxu0 0
  %3811 = vmatmul.mubr.bf16.gmra.mxu0 %v3646
  %v3812 = vpop.f32.mrf.mxu0
  %v3813 = vadd.f32 0.0, %v3812
  %v3814 = vpop.f32.mrf.mxu0
  %v3815 = vpop.f32.mrf.mxu0
  %v3816 = vadd.f32 0.0, %v3815
  %v3817 = vpop.f32.mrf.mxu0
  %3818 = vmatprep.mubr.bf16.mxu0 0
  %3819 = vmatmul.mubr.bf16.gmra.mxu0 %v3647
  %v3820 = vpop.f32.mrf.mxu0
  %v3821 = vadd.f32 0.0, %v3820
  %v3822 = vpop.f32.mrf.mxu0
  %v3823 = vpop.f32.mrf.mxu0
  %v3824 = vadd.f32 0.0, %v3823
  %v3825 = vpop.f32.mrf.mxu0
  %3826 = vmatprep.mubr.bf16.mxu0 0
  %3827 = vmatmul.mubr.bf16.gmra.mxu0 %v3648
  %v3828 = vpop.f32.mrf.mxu0
  %v3829 = vadd.f32 0.0, %v3828
  %v3830 = vpop.f32.mrf.mxu0
  %v3831 = vpop.f32.mrf.mxu0
  %v3832 = vadd.f32 0.0, %v3831
  %v3833 = vpop.f32.mrf.mxu0
  %3834 = vmatprep.mubr.bf16.mxu0 0
  %3835 = vmatmul.mubr.bf16.gmra.mxu0 %v3649
  %v3836 = vpop.f32.mrf.mxu0
  %v3837 = vadd.f32 0.0, %v3836
  %v3838 = vpop.f32.mrf.mxu0
  %v3839 = vpop.f32.mrf.mxu0
  %v3840 = vadd.f32 0.0, %v3839
  %v3841 = vpop.f32.mrf.mxu0
  %3842 = vmatprep.mubr.bf16.mxu0 0
  %3843 = vmatmul.mubr.bf16.gmra.mxu0 %v3650
  %v3844 = vpop.f32.mrf.mxu0
  %v3845 = vadd.f32 0.0, %v3844
  %v3846 = vpop.f32.mrf.mxu0
  %v3847 = vpop.f32.mrf.mxu0
  %v3848 = vadd.f32 0.0, %v3847
  %v3849 = vpop.f32.mrf.mxu0
  %3850 = vmatprep.mubr.bf16.mxu0 0
  %3851 = vmatmul.mubr.bf16.gmra.mxu0 %v3651
  %v3852 = vpop.f32.mrf.mxu0
  %v3853 = vadd.f32 0.0, %v3852
  %v3854 = vpop.f32.mrf.mxu0
  %v3855 = vpop.f32.mrf.mxu0
  %v3856 = vadd.f32 0.0, %v3855
  %v3857 = vpop.f32.mrf.mxu0
  %3858 = vmatprep.mubr.bf16.mxu0 0
  %3859 = vmatmul.mubr.bf16.gmra.mxu0 %v3652
  %v3860 = vpop.f32.mrf.mxu0
  %v3861 = vadd.f32 0.0, %v3860
  %v3862 = vpop.f32.mrf.mxu0
  %v3863 = vpop.f32.mrf.mxu0
  %v3864 = vadd.f32 0.0, %v3863
  %v3865 = vpop.f32.mrf.mxu0
  %3866 = vmatprep.mubr.bf16.mxu0 0
  %3867 = vmatmul.mubr.bf16.gmra.mxu0 %v3653
  %v3868 = vpop.f32.mrf.mxu0
  %v3869 = vadd.f32 0.0, %v3868
  %v3870 = vpop.f32.mrf.mxu0
  %v3871 = vpop.f32.mrf.mxu0
  %v3872 = vadd.f32 0.0, %v3871
  %v3873 = vpop.f32.mrf.mxu0
  %3874 = vmatprep.mubr.bf16.mxu0 0
  %3875 = vmatmul.mubr.bf16.gmra.mxu0 %v3654
  %v3876 = vpop.f32.mrf.mxu0
  %v3877 = vadd.f32 0.0, %v3876
  %v3878 = vpop.f32.mrf.mxu0
  %v3879 = vpop.f32.mrf.mxu0
  %v3880 = vadd.f32 0.0, %v3879
  %v3881 = vpop.f32.mrf.mxu0
  %3882 = vmatprep.mubr.bf16.mxu0 0
  %3883 = vmatmul.mubr.bf16.gmra.mxu0 %v3655
  %v3884 = vpop.f32.mrf.mxu0
  %v3885 = vadd.f32 0.0, %v3884
  %v3886 = vpop.f32.mrf.mxu0
  %v3887 = vpop.f32.mrf.mxu0
  %v3888 = vadd.f32 0.0, %v3887
  %v3889 = vpop.f32.mrf.mxu0
  %3890 = vmatprep.mubr.bf16.mxu0 0
  %3891 = vmatmul.mubr.bf16.gmra.mxu0 %v3656
  %v3892 = vpop.f32.mrf.mxu0
  %v3893 = vadd.f32 0.0, %v3892
  %v3894 = vpop.f32.mrf.mxu0
  %v3895 = vpop.f32.mrf.mxu0
  %v3896 = vadd.f32 0.0, %v3895
  %v3897 = vpop.f32.mrf.mxu0
  %3898 = vdwg.mxu0
  %v3899 = vadd.f32 %v3567, %v3757
  %v3900 = vadd.f32 %v3568, %v3760
  %v3901 = vadd.f32 %v3569, %v3765
  %v3902 = vadd.f32 %v3570, %v3768
  %v3903 = vadd.f32 %v3571, %v3773
  %v3904 = vadd.f32 %v3572, %v3776
  %v3905 = vadd.f32 %v3573, %v3781
  %v3906 = vadd.f32 %v3574, %v3784
  %v3907 = vadd.f32 %v3575, %v3789
  %v3908 = vadd.f32 %v3576, %v3792
  %v3909 = vadd.f32 %v3577, %v3797
  %v3910 = vadd.f32 %v3578, %v3800
  %v3911 = vadd.f32 %v3579, %v3805
  %v3912 = vadd.f32 %v3580, %v3808
  %v3913 = vadd.f32 %v3581, %v3813
  %v3914 = vadd.f32 %v3582, %v3816
  %v3915 = vadd.f32 %v3583, %v3821
  %v3916 = vadd.f32 %v3584, %v3824
  %v3917 = vadd.f32 %v3585, %v3829
  %v3918 = vadd.f32 %v3586, %v3832
  %v3919 = vadd.f32 %v3587, %v3837
  %v3920 = vadd.f32 %v3588, %v3840
  %v3921 = vadd.f32 %v3589, %v3845
  %v3922 = vadd.f32 %v3590, %v3848
  %v3923 = vadd.f32 %v3591, %v3853
  %v3924 = vadd.f32 %v3592, %v3856
  %v3925 = vadd.f32 %v3593, %v3861
  %v3926 = vadd.f32 %v3594, %v3864
  %v3927 = vadd.f32 %v3595, %v3869
  %v3928 = vadd.f32 %v3596, %v3872
  %v3929 = vadd.f32 %v3597, %v3877
  %v3930 = vadd.f32 %v3598, %v3880
  %v3931 = vadd.f32 %v3599, %v3885
  %v3932 = vadd.f32 %v3600, %v3888
  %v3933 = vadd.f32 %v3601, %v3893
  %v3934 = vadd.f32 %v3602, %v3896
  %v3935 = vld [vmem:[#allocation2 + $0x361] sm:$0xff]
  %v3936 = vld [vmem:[#allocation2 + $0x369] sm:$0xff]
  %v3937 = vld [vmem:[#allocation2 + $0x371] sm:$0xff]
  %v3938 = vld [vmem:[#allocation2 + $0x379] sm:$0xff]
  %v3939 = vld [vmem:[#allocation2 + $0x381] sm:$0xff]
  %v3940 = vld [vmem:[#allocation2 + $0x389] sm:$0xff]
  %v3941 = vld [vmem:[#allocation2 + $0x391] sm:$0xff]
  %v3942 = vld [vmem:[#allocation2 + $0x399] sm:$0xff]
  %v3943 = vld [vmem:[#allocation2 + $0x3a1] sm:$0xff]
  %v3944 = vld [vmem:[#allocation2 + $0x3a9] sm:$0xff]
  %v3945 = vld [vmem:[#allocation2 + $0x3b1] sm:$0xff]
  %v3946 = vld [vmem:[#allocation2 + $0x3b9] sm:$0xff]
  %v3947 = vld [vmem:[#allocation2 + $0x3c1] sm:$0xff]
  %v3948 = vld [vmem:[#allocation2 + $0x3c9] sm:$0xff]
  %v3949 = vld [vmem:[#allocation2 + $0x3d1] sm:$0xff]
  %v3950 = vld [vmem:[#allocation2 + $0x3d9] sm:$0xff]
  %v3951 = vld [vmem:[#allocation2 + $0x3e1] sm:$0xff]
  %v3952 = vld [vmem:[#allocation2 + $0x3e9] sm:$0xff]
  %v3953 = vld [vmem:[#allocation2 + $0x3f1] sm:$0xff]
  %v3954 = vld [vmem:[#allocation2 + $0x3f9] sm:$0xff]
  %v3955 = vld [vmem:[#allocation2 + $0x401] sm:$0xff]
  %v3956 = vld [vmem:[#allocation2 + $0x409] sm:$0xff]
  %v3957 = vld [vmem:[#allocation2 + $0x411] sm:$0xff]
  %v3958 = vld [vmem:[#allocation2 + $0x419] sm:$0xff]
  %v3959 = vld [vmem:[#allocation2 + $0x421] sm:$0xff]
  %v3960 = vld [vmem:[#allocation2 + $0x429] sm:$0xff]
  %v3961 = vld [vmem:[#allocation2 + $0x431] sm:$0xff]
  %v3962 = vld [vmem:[#allocation2 + $0x439] sm:$0xff]
  %v3963 = vld [vmem:[#allocation2 + $0x441] sm:$0xff]
  %v3964 = vld [vmem:[#allocation2 + $0x449] sm:$0xff]
  %v3965 = vld [vmem:[#allocation2 + $0x451] sm:$0xff]
  %v3966 = vld [vmem:[#allocation2 + $0x459] sm:$0xff]
  %v3967 = vld [vmem:[#allocation2 + $0x461] sm:$0xff]
  %v3968 = vld [vmem:[#allocation2 + $0x469] sm:$0xff]
  %v3969 = vld [vmem:[#allocation2 + $0x471] sm:$0xff]
  %v3970 = vld [vmem:[#allocation2 + $0x479] sm:$0x1]
  %v3971 = vpack.c.bf16 %v3936, %v3935
  %v3972 = vpack.c.bf16 %v3938, %v3937
  %v3973 = vpack.c.bf16 %v3940, %v3939
  %v3974 = vpack.c.bf16 %v3942, %v3941
  %v3975 = vpack.c.bf16 %v3944, %v3943
  %v3976 = vpack.c.bf16 %v3946, %v3945
  %v3977 = vpack.c.bf16 %v3948, %v3947
  %v3978 = vpack.c.bf16 %v3950, %v3949
  %v3979 = vpack.c.bf16 %v3952, %v3951
  %v3980 = vpack.c.bf16 %v3954, %v3953
  %v3981 = vpack.c.bf16 %v3956, %v3955
  %v3982 = vpack.c.bf16 %v3958, %v3957
  %v3983 = vpack.c.bf16 %v3960, %v3959
  %v3984 = vpack.c.bf16 %v3962, %v3961
  %v3985 = vpack.c.bf16 %v3964, %v3963
  %v3986 = vpack.c.bf16 %v3966, %v3965
  %v3987 = vpack.c.bf16 %v3968, %v3967
  %v3988 = vpack.c.bf16 %v3970, %v3969
  %s3989 = scalar_lea.vmem %s3, 448
  %v3990 = vld [vmem:[%s3989] sm:$0xf]
  %v3991 = vld [vmem:[%s3989 + $0x4] sm:$0xf]
  %v3992 = vld [vmem:[%s3989 + $0x8] sm:$0xf]
  %v3993 = vld [vmem:[%s3989 + $0xc] sm:$0xf]
  %v3994 = vld [vmem:[%s3989 + $0x10] sm:$0xf]
  %v3995 = vld [vmem:[%s3989 + $0x14] sm:$0xf]
  %v3996 = vld [vmem:[%s3989 + $0x18] sm:$0xf]
  %v3997 = vld [vmem:[%s3989 + $0x1c] sm:$0xf]
  %v3998 = vld [vmem:[%s3989 + $0x20] sm:$0xf]
  %v3999 = vld [vmem:[%s3989 + $0x24] sm:$0xf]
  %v4000 = vld [vmem:[%s3989 + $0x28] sm:$0xf]
  %v4001 = vld [vmem:[%s3989 + $0x2c] sm:$0xf]
  %v4002 = vld [vmem:[%s3989 + $0x30] sm:$0xf]
  %v4003 = vld [vmem:[%s3989 + $0x34] sm:$0xf]
  %v4004 = vld [vmem:[%s3989 + $0x38] sm:$0xf]
  %v4005 = vld [vmem:[%s3989 + $0x3c] sm:$0xf]
  %v4022 = vunpack.c.l.b16 %v3990
  %v4023 = vunpack.c.l.b16 %v3991
  %v4024 = vunpack.c.l.b16 %v3992
  %v4025 = vunpack.c.l.b16 %v3993
  %v4026 = vunpack.c.l.b16 %v3994
  %v4027 = vunpack.c.l.b16 %v3995
  %v4028 = vunpack.c.l.b16 %v3996
  %v4029 = vunpack.c.l.b16 %v3997
  %v4030 = vunpack.c.l.b16 %v3998
  %v4031 = vunpack.c.l.b16 %v3999
  %v4032 = vunpack.c.l.b16 %v4000
  %v4033 = vunpack.c.l.b16 %v4001
  %v4034 = vunpack.c.l.b16 %v4002
  %v4035 = vunpack.c.l.b16 %v4003
  %v4036 = vunpack.c.l.b16 %v4004
  %v4037 = vunpack.c.l.b16 %v4005
  %v4038 = vpack.c.b16 %v4023, %v4022
  %v4039 = vpack.c.b16 %v4025, %v4024
  %v4040 = vpack.c.b16 %v4027, %v4026
  %v4041 = vpack.c.b16 %v4029, %v4028
  %v4042 = vpack.c.b16 %v4031, %v4030
  %v4043 = vpack.c.b16 %v4033, %v4032
  %v4044 = vpack.c.b16 %v4035, %v4034
  %v4045 = vpack.c.b16 %v4037, %v4036
  %4054 = vmatprep.subr.bf16.mxu0 0
  %4055 = vmatpush1.bf16.msra.mxu0 %v4045
  %4056 = vmatprep.subr.bf16.mxu0 0
  %4057 = vmatpush1.bf16.msra.mxu0 %v4044
  %4058 = vmatprep.subr.bf16.mxu0 0
  %4059 = vmatpush1.bf16.msra.mxu0 %v4043
  %4060 = vmatprep.subr.bf16.mxu0 0
  %4061 = vmatpush1.bf16.msra.mxu0 %v4042
  %4062 = vmatprep.subr.bf16.mxu0 0
  %4063 = vmatpush1.bf16.msra.mxu0 %v4041
  %4064 = vmatprep.subr.bf16.mxu0 0
  %4065 = vmatpush1.bf16.msra.mxu0 %v4040
  %4066 = vmatprep.subr.bf16.mxu0 0
  %4067 = vmatpush1.bf16.msra.mxu0 %v4039
  %4068 = vmatprep.subr.bf16.mxu0 0
  %4069 = vmatpush1.bf16.msra.mxu0 %v4038
  %4070 = vmatprep.subr.bf16.mxu0 0
  %4071 = vmatpush2.bf16.msra.mxu0 0
  %4072 = vmatprep.subr.bf16.mxu0 0
  %4073 = vmatpush2.bf16.msra.mxu0 0
  %4074 = vmatprep.subr.bf16.mxu0 0
  %4075 = vmatpush2.bf16.msra.mxu0 0
  %4076 = vmatprep.subr.bf16.mxu0 0
  %4077 = vmatpush2.bf16.msra.mxu0 0
  %4078 = vmatprep.subr.bf16.mxu0 0
  %4079 = vmatpush2.bf16.msra.mxu0 0
  %4080 = vmatprep.subr.bf16.mxu0 0
  %4081 = vmatpush2.bf16.msra.mxu0 0
  %4082 = vmatprep.subr.bf16.mxu0 0
  %4083 = vmatpush2.bf16.msra.mxu0 0
  %4084 = vmatprep.subr.bf16.mxu0 0
  %4085 = vmatpush2.bf16.msra.mxu0 0
  %4086 = vmatprep.mubr.bf16.mxu0 0
  %4087 = vmatmul.mubr.bf16.gmra.mxu0 %v3971
  %v4088 = vpop.f32.mrf.mxu0
  %v4089 = vadd.f32 0.0, %v4088
  %v4090 = vpop.f32.mrf.mxu0
  %v4091 = vpop.f32.mrf.mxu0
  %v4092 = vadd.f32 0.0, %v4091
  %v4093 = vpop.f32.mrf.mxu0
  %4094 = vmatprep.mubr.bf16.mxu0 0
  %4095 = vmatmul.mubr.bf16.gmra.mxu0 %v3972
  %v4096 = vpop.f32.mrf.mxu0
  %v4097 = vadd.f32 0.0, %v4096
  %v4098 = vpop.f32.mrf.mxu0
  %v4099 = vpop.f32.mrf.mxu0
  %v4100 = vadd.f32 0.0, %v4099
  %v4101 = vpop.f32.mrf.mxu0
  %4102 = vmatprep.mubr.bf16.mxu0 0
  %4103 = vmatmul.mubr.bf16.gmra.mxu0 %v3973
  %v4104 = vpop.f32.mrf.mxu0
  %v4105 = vadd.f32 0.0, %v4104
  %v4106 = vpop.f32.mrf.mxu0
  %v4107 = vpop.f32.mrf.mxu0
  %v4108 = vadd.f32 0.0, %v4107
  %v4109 = vpop.f32.mrf.mxu0
  %4110 = vmatprep.mubr.bf16.mxu0 0
  %4111 = vmatmul.mubr.bf16.gmra.mxu0 %v3974
  %v4112 = vpop.f32.mrf.mxu0
  %v4113 = vadd.f32 0.0, %v4112
  %v4114 = vpop.f32.mrf.mxu0
  %v4115 = vpop.f32.mrf.mxu0
  %v4116 = vadd.f32 0.0, %v4115
  %v4117 = vpop.f32.mrf.mxu0
  %4118 = vmatprep.mubr.bf16.mxu0 0
  %4119 = vmatmul.mubr.bf16.gmra.mxu0 %v3975
  %v4120 = vpop.f32.mrf.mxu0
  %v4121 = vadd.f32 0.0, %v4120
  %v4122 = vpop.f32.mrf.mxu0
  %v4123 = vpop.f32.mrf.mxu0
  %v4124 = vadd.f32 0.0, %v4123
  %v4125 = vpop.f32.mrf.mxu0
  %4126 = vmatprep.mubr.bf16.mxu0 0
  %4127 = vmatmul.mubr.bf16.gmra.mxu0 %v3976
  %v4128 = vpop.f32.mrf.mxu0
  %v4129 = vadd.f32 0.0, %v4128
  %v4130 = vpop.f32.mrf.mxu0
  %v4131 = vpop.f32.mrf.mxu0
  %v4132 = vadd.f32 0.0, %v4131
  %v4133 = vpop.f32.mrf.mxu0
  %4134 = vmatprep.mubr.bf16.mxu0 0
  %4135 = vmatmul.mubr.bf16.gmra.mxu0 %v3977
  %v4136 = vpop.f32.mrf.mxu0
  %v4137 = vadd.f32 0.0, %v4136
  %v4138 = vpop.f32.mrf.mxu0
  %v4139 = vpop.f32.mrf.mxu0
  %v4140 = vadd.f32 0.0, %v4139
  %v4141 = vpop.f32.mrf.mxu0
  %4142 = vmatprep.mubr.bf16.mxu0 0
  %4143 = vmatmul.mubr.bf16.gmra.mxu0 %v3978
  %v4144 = vpop.f32.mrf.mxu0
  %v4145 = vadd.f32 0.0, %v4144
  %v4146 = vpop.f32.mrf.mxu0
  %v4147 = vpop.f32.mrf.mxu0
  %v4148 = vadd.f32 0.0, %v4147
  %v4149 = vpop.f32.mrf.mxu0
  %4150 = vmatprep.mubr.bf16.mxu0 0
  %4151 = vmatmul.mubr.bf16.gmra.mxu0 %v3979
  %v4152 = vpop.f32.mrf.mxu0
  %v4153 = vadd.f32 0.0, %v4152
  %v4154 = vpop.f32.mrf.mxu0
  %v4155 = vpop.f32.mrf.mxu0
  %v4156 = vadd.f32 0.0, %v4155
  %v4157 = vpop.f32.mrf.mxu0
  %4158 = vmatprep.mubr.bf16.mxu0 0
  %4159 = vmatmul.mubr.bf16.gmra.mxu0 %v3980
  %v4160 = vpop.f32.mrf.mxu0
  %v4161 = vadd.f32 0.0, %v4160
  %v4162 = vpop.f32.mrf.mxu0
  %v4163 = vpop.f32.mrf.mxu0
  %v4164 = vadd.f32 0.0, %v4163
  %v4165 = vpop.f32.mrf.mxu0
  %4166 = vmatprep.mubr.bf16.mxu0 0
  %4167 = vmatmul.mubr.bf16.gmra.mxu0 %v3981
  %v4168 = vpop.f32.mrf.mxu0
  %v4169 = vadd.f32 0.0, %v4168
  %v4170 = vpop.f32.mrf.mxu0
  %v4171 = vpop.f32.mrf.mxu0
  %v4172 = vadd.f32 0.0, %v4171
  %v4173 = vpop.f32.mrf.mxu0
  %4174 = vmatprep.mubr.bf16.mxu0 0
  %4175 = vmatmul.mubr.bf16.gmra.mxu0 %v3982
  %v4176 = vpop.f32.mrf.mxu0
  %v4177 = vadd.f32 0.0, %v4176
  %v4178 = vpop.f32.mrf.mxu0
  %v4179 = vpop.f32.mrf.mxu0
  %v4180 = vadd.f32 0.0, %v4179
  %v4181 = vpop.f32.mrf.mxu0
  %4182 = vmatprep.mubr.bf16.mxu0 0
  %4183 = vmatmul.mubr.bf16.gmra.mxu0 %v3983
  %v4184 = vpop.f32.mrf.mxu0
  %v4185 = vadd.f32 0.0, %v4184
  %v4186 = vpop.f32.mrf.mxu0
  %v4187 = vpop.f32.mrf.mxu0
  %v4188 = vadd.f32 0.0, %v4187
  %v4189 = vpop.f32.mrf.mxu0
  %4190 = vmatprep.mubr.bf16.mxu0 0
  %4191 = vmatmul.mubr.bf16.gmra.mxu0 %v3984
  %v4192 = vpop.f32.mrf.mxu0
  %v4193 = vadd.f32 0.0, %v4192
  %v4194 = vpop.f32.mrf.mxu0
  %v4195 = vpop.f32.mrf.mxu0
  %v4196 = vadd.f32 0.0, %v4195
  %v4197 = vpop.f32.mrf.mxu0
  %4198 = vmatprep.mubr.bf16.mxu0 0
  %4199 = vmatmul.mubr.bf16.gmra.mxu0 %v3985
  %v4200 = vpop.f32.mrf.mxu0
  %v4201 = vadd.f32 0.0, %v4200
  %v4202 = vpop.f32.mrf.mxu0
  %v4203 = vpop.f32.mrf.mxu0
  %v4204 = vadd.f32 0.0, %v4203
  %v4205 = vpop.f32.mrf.mxu0
  %4206 = vmatprep.mubr.bf16.mxu0 0
  %4207 = vmatmul.mubr.bf16.gmra.mxu0 %v3986
  %v4208 = vpop.f32.mrf.mxu0
  %v4209 = vadd.f32 0.0, %v4208
  %v4210 = vpop.f32.mrf.mxu0
  %v4211 = vpop.f32.mrf.mxu0
  %v4212 = vadd.f32 0.0, %v4211
  %v4213 = vpop.f32.mrf.mxu0
  %4214 = vmatprep.mubr.bf16.mxu0 0
  %4215 = vmatmul.mubr.bf16.gmra.mxu0 %v3987
  %v4216 = vpop.f32.mrf.mxu0
  %v4217 = vadd.f32 0.0, %v4216
  %v4218 = vpop.f32.mrf.mxu0
  %v4219 = vpop.f32.mrf.mxu0
  %v4220 = vadd.f32 0.0, %v4219
  %v4221 = vpop.f32.mrf.mxu0
  %4222 = vmatprep.mubr.bf16.mxu0 0
  %4223 = vmatmul.mubr.bf16.gmra.mxu0 %v3988
  %v4224 = vpop.f32.mrf.mxu0
  %v4225 = vadd.f32 0.0, %v4224
  %v4226 = vpop.f32.mrf.mxu0
  %v4227 = vpop.f32.mrf.mxu0
  %v4228 = vadd.f32 0.0, %v4227
  %v4229 = vpop.f32.mrf.mxu0
  %4230 = vdwg.mxu0
  %v4231 = vadd.f32 %v3899, %v4089
  %v4232 = vadd.f32 %v3900, %v4092
  %v4233 = vadd.f32 %v3901, %v4097
  %v4234 = vadd.f32 %v3902, %v4100
  %v4235 = vadd.f32 %v3903, %v4105
  %v4236 = vadd.f32 %v3904, %v4108
  %v4237 = vadd.f32 %v3905, %v4113
  %v4238 = vadd.f32 %v3906, %v4116
  %v4239 = vadd.f32 %v3907, %v4121
  %v4240 = vadd.f32 %v3908, %v4124
  %v4241 = vadd.f32 %v3909, %v4129
  %v4242 = vadd.f32 %v3910, %v4132
  %v4243 = vadd.f32 %v3911, %v4137
  %v4244 = vadd.f32 %v3912, %v4140
  %v4245 = vadd.f32 %v3913, %v4145
  %v4246 = vadd.f32 %v3914, %v4148
  %v4247 = vadd.f32 %v3915, %v4153
  %v4248 = vadd.f32 %v3916, %v4156
  %v4249 = vadd.f32 %v3917, %v4161
  %v4250 = vadd.f32 %v3918, %v4164
  %v4251 = vadd.f32 %v3919, %v4169
  %v4252 = vadd.f32 %v3920, %v4172
  %v4253 = vadd.f32 %v3921, %v4177
  %v4254 = vadd.f32 %v3922, %v4180
  %v4255 = vadd.f32 %v3923, %v4185
  %v4256 = vadd.f32 %v3924, %v4188
  %v4257 = vadd.f32 %v3925, %v4193
  %v4258 = vadd.f32 %v3926, %v4196
  %v4259 = vadd.f32 %v3927, %v4201
  %v4260 = vadd.f32 %v3928, %v4204
  %v4261 = vadd.f32 %v3929, %v4209
  %v4262 = vadd.f32 %v3930, %v4212
  %v4263 = vadd.f32 %v3931, %v4217
  %v4264 = vadd.f32 %v3932, %v4220
  %v4265 = vadd.f32 %v3933, %v4225
  %v4266 = vadd.f32 %v3934, %v4228
  %v4267 = vld [vmem:[#allocation2 + $0x6] sm:$0xff]
  %v4268 = vld [vmem:[#allocation2 + $0xe] sm:$0xff]
  %v4269 = vld [vmem:[#allocation2 + $0x16] sm:$0xff]
  %v4270 = vld [vmem:[#allocation2 + $0x1e] sm:$0xff]
  %v4271 = vld [vmem:[#allocation2 + $0x26] sm:$0xff]
  %v4272 = vld [vmem:[#allocation2 + $0x2e] sm:$0xff]
  %v4273 = vld [vmem:[#allocation2 + $0x36] sm:$0xff]
  %v4274 = vld [vmem:[#allocation2 + $0x3e] sm:$0xff]
  %v4275 = vld [vmem:[#allocation2 + $0x46] sm:$0xff]
  %v4276 = vld [vmem:[#allocation2 + $0x4e] sm:$0xff]
  %v4277 = vld [vmem:[#allocation2 + $0x56] sm:$0xff]
  %v4278 = vld [vmem:[#allocation2 + $0x5e] sm:$0xff]
  %v4279 = vld [vmem:[#allocation2 + $0x66] sm:$0xff]
  %v4280 = vld [vmem:[#allocation2 + $0x6e] sm:$0xff]
  %v4281 = vld [vmem:[#allocation2 + $0x76] sm:$0xff]
  %v4282 = vld [vmem:[#allocation2 + $0x7e] sm:$0xff]
  %v4283 = vld [vmem:[#allocation2 + $0x86] sm:$0xff]
  %v4284 = vld [vmem:[#allocation2 + $0x8e] sm:$0xff]
  %v4285 = vld [vmem:[#allocation2 + $0x96] sm:$0xff]
  %v4286 = vld [vmem:[#allocation2 + $0x9e] sm:$0xff]
  %v4287 = vld [vmem:[#allocation2 + $0xa6] sm:$0xff]
  %v4288 = vld [vmem:[#allocation2 + $0xae] sm:$0xff]
  %v4289 = vld [vmem:[#allocation2 + $0xb6] sm:$0xff]
  %v4290 = vld [vmem:[#allocation2 + $0xbe] sm:$0xff]
  %v4291 = vld [vmem:[#allocation2 + $0xc6] sm:$0xff]
  %v4292 = vld [vmem:[#allocation2 + $0xce] sm:$0xff]
  %v4293 = vld [vmem:[#allocation2 + $0xd6] sm:$0xff]
  %v4294 = vld [vmem:[#allocation2 + $0xde] sm:$0xff]
  %v4295 = vld [vmem:[#allocation2 + $0xe6] sm:$0xff]
  %v4296 = vld [vmem:[#allocation2 + $0xee] sm:$0xff]
  %v4297 = vld [vmem:[#allocation2 + $0xf6] sm:$0xff]
  %v4298 = vld [vmem:[#allocation2 + $0xfe] sm:$0xff]
  %v4299 = vld [vmem:[#allocation2 + $0x106] sm:$0xff]
  %v4300 = vld [vmem:[#allocation2 + $0x10e] sm:$0xff]
  %v4301 = vld [vmem:[#allocation2 + $0x116] sm:$0xff]
  %v4302 = vld [vmem:[#allocation2 + $0x11e] sm:$0x1]
  %v4303 = vpack.c.bf16 %v4268, %v4267
  %v4304 = vpack.c.bf16 %v4270, %v4269
  %v4305 = vpack.c.bf16 %v4272, %v4271
  %v4306 = vpack.c.bf16 %v4274, %v4273
  %v4307 = vpack.c.bf16 %v4276, %v4275
  %v4308 = vpack.c.bf16 %v4278, %v4277
  %v4309 = vpack.c.bf16 %v4280, %v4279
  %v4310 = vpack.c.bf16 %v4282, %v4281
  %v4311 = vpack.c.bf16 %v4284, %v4283
  %v4312 = vpack.c.bf16 %v4286, %v4285
  %v4313 = vpack.c.bf16 %v4288, %v4287
  %v4314 = vpack.c.bf16 %v4290, %v4289
  %v4315 = vpack.c.bf16 %v4292, %v4291
  %v4316 = vpack.c.bf16 %v4294, %v4293
  %v4317 = vpack.c.bf16 %v4296, %v4295
  %v4318 = vpack.c.bf16 %v4298, %v4297
  %v4319 = vpack.c.bf16 %v4300, %v4299
  %v4320 = vpack.c.bf16 %v4302, %v4301
  %s4321 = scalar_lea.vmem %s3, 512
  %v4322 = vld [vmem:[%s4321] sm:$0xf]
  %v4323 = vld [vmem:[%s4321 + $0x4] sm:$0xf]
  %v4324 = vld [vmem:[%s4321 + $0x8] sm:$0xf]
  %v4325 = vld [vmem:[%s4321 + $0xc] sm:$0xf]
  %v4326 = vld [vmem:[%s4321 + $0x10] sm:$0xf]
  %v4327 = vld [vmem:[%s4321 + $0x14] sm:$0xf]
  %v4328 = vld [vmem:[%s4321 + $0x18] sm:$0xf]
  %v4329 = vld [vmem:[%s4321 + $0x1c] sm:$0xf]
  %v4330 = vld [vmem:[%s4321 + $0x20] sm:$0xf]
  %v4331 = vld [vmem:[%s4321 + $0x24] sm:$0xf]
  %v4332 = vld [vmem:[%s4321 + $0x28] sm:$0xf]
  %v4333 = vld [vmem:[%s4321 + $0x2c] sm:$0xf]
  %v4334 = vld [vmem:[%s4321 + $0x30] sm:$0xf]
  %v4335 = vld [vmem:[%s4321 + $0x34] sm:$0xf]
  %v4336 = vld [vmem:[%s4321 + $0x38] sm:$0xf]
  %v4337 = vld [vmem:[%s4321 + $0x3c] sm:$0xf]
  %v4354 = vunpack.c.l.b16 %v4322
  %v4355 = vunpack.c.l.b16 %v4323
  %v4356 = vunpack.c.l.b16 %v4324
  %v4357 = vunpack.c.l.b16 %v4325
  %v4358 = vunpack.c.l.b16 %v4326
  %v4359 = vunpack.c.l.b16 %v4327
  %v4360 = vunpack.c.l.b16 %v4328
  %v4361 = vunpack.c.l.b16 %v4329
  %v4362 = vunpack.c.l.b16 %v4330
  %v4363 = vunpack.c.l.b16 %v4331
  %v4364 = vunpack.c.l.b16 %v4332
  %v4365 = vunpack.c.l.b16 %v4333
  %v4366 = vunpack.c.l.b16 %v4334
  %v4367 = vunpack.c.l.b16 %v4335
  %v4368 = vunpack.c.l.b16 %v4336
  %v4369 = vunpack.c.l.b16 %v4337
  %v4370 = vpack.c.b16 %v4355, %v4354
  %v4371 = vpack.c.b16 %v4357, %v4356
  %v4372 = vpack.c.b16 %v4359, %v4358
  %v4373 = vpack.c.b16 %v4361, %v4360
  %v4374 = vpack.c.b16 %v4363, %v4362
  %v4375 = vpack.c.b16 %v4365, %v4364
  %v4376 = vpack.c.b16 %v4367, %v4366
  %v4377 = vpack.c.b16 %v4369, %v4368
  %4386 = vmatprep.subr.bf16.mxu0 0
  %4387 = vmatpush1.bf16.msra.mxu0 %v4377
  %4388 = vmatprep.subr.bf16.mxu0 0
  %4389 = vmatpush1.bf16.msra.mxu0 %v4376
  %4390 = vmatprep.subr.bf16.mxu0 0
  %4391 = vmatpush1.bf16.msra.mxu0 %v4375
  %4392 = vmatprep.subr.bf16.mxu0 0
  %4393 = vmatpush1.bf16.msra.mxu0 %v4374
  %4394 = vmatprep.subr.bf16.mxu0 0
  %4395 = vmatpush1.bf16.msra.mxu0 %v4373
  %4396 = vmatprep.subr.bf16.mxu0 0
  %4397 = vmatpush1.bf16.msra.mxu0 %v4372
  %4398 = vmatprep.subr.bf16.mxu0 0
  %4399 = vmatpush1.bf16.msra.mxu0 %v4371
  %4400 = vmatprep.subr.bf16.mxu0 0
  %4401 = vmatpush1.bf16.msra.mxu0 %v4370
  %4402 = vmatprep.subr.bf16.mxu0 0
  %4403 = vmatpush2.bf16.msra.mxu0 0
  %4404 = vmatprep.subr.bf16.mxu0 0
  %4405 = vmatpush2.bf16.msra.mxu0 0
  %4406 = vmatprep.subr.bf16.mxu0 0
  %4407 = vmatpush2.bf16.msra.mxu0 0
  %4408 = vmatprep.subr.bf16.mxu0 0
  %4409 = vmatpush2.bf16.msra.mxu0 0
  %4410 = vmatprep.subr.bf16.mxu0 0
  %4411 = vmatpush2.bf16.msra.mxu0 0
  %4412 = vmatprep.subr.bf16.mxu0 0
  %4413 = vmatpush2.bf16.msra.mxu0 0
  %4414 = vmatprep.subr.bf16.mxu0 0
  %4415 = vmatpush2.bf16.msra.mxu0 0
  %4416 = vmatprep.subr.bf16.mxu0 0
  %4417 = vmatpush2.bf16.msra.mxu0 0
  %4418 = vmatprep.mubr.bf16.mxu0 0
  %4419 = vmatmul.mubr.bf16.gmra.mxu0 %v4303
  %v4420 = vpop.f32.mrf.mxu0
  %v4421 = vadd.f32 0.0, %v4420
  %v4422 = vpop.f32.mrf.mxu0
  %v4423 = vpop.f32.mrf.mxu0
  %v4424 = vadd.f32 0.0, %v4423
  %v4425 = vpop.f32.mrf.mxu0
  %4426 = vmatprep.mubr.bf16.mxu0 0
  %4427 = vmatmul.mubr.bf16.gmra.mxu0 %v4304
  %v4428 = vpop.f32.mrf.mxu0
  %v4429 = vadd.f32 0.0, %v4428
  %v4430 = vpop.f32.mrf.mxu0
  %v4431 = vpop.f32.mrf.mxu0
  %v4432 = vadd.f32 0.0, %v4431
  %v4433 = vpop.f32.mrf.mxu0
  %4434 = vmatprep.mubr.bf16.mxu0 0
  %4435 = vmatmul.mubr.bf16.gmra.mxu0 %v4305
  %v4436 = vpop.f32.mrf.mxu0
  %v4437 = vadd.f32 0.0, %v4436
  %v4438 = vpop.f32.mrf.mxu0
  %v4439 = vpop.f32.mrf.mxu0
  %v4440 = vadd.f32 0.0, %v4439
  %v4441 = vpop.f32.mrf.mxu0
  %4442 = vmatprep.mubr.bf16.mxu0 0
  %4443 = vmatmul.mubr.bf16.gmra.mxu0 %v4306
  %v4444 = vpop.f32.mrf.mxu0
  %v4445 = vadd.f32 0.0, %v4444
  %v4446 = vpop.f32.mrf.mxu0
  %v4447 = vpop.f32.mrf.mxu0
  %v4448 = vadd.f32 0.0, %v4447
  %v4449 = vpop.f32.mrf.mxu0
  %4450 = vmatprep.mubr.bf16.mxu0 0
  %4451 = vmatmul.mubr.bf16.gmra.mxu0 %v4307
  %v4452 = vpop.f32.mrf.mxu0
  %v4453 = vadd.f32 0.0, %v4452
  %v4454 = vpop.f32.mrf.mxu0
  %v4455 = vpop.f32.mrf.mxu0
  %v4456 = vadd.f32 0.0, %v4455
  %v4457 = vpop.f32.mrf.mxu0
  %4458 = vmatprep.mubr.bf16.mxu0 0
  %4459 = vmatmul.mubr.bf16.gmra.mxu0 %v4308
  %v4460 = vpop.f32.mrf.mxu0
  %v4461 = vadd.f32 0.0, %v4460
  %v4462 = vpop.f32.mrf.mxu0
  %v4463 = vpop.f32.mrf.mxu0
  %v4464 = vadd.f32 0.0, %v4463
  %v4465 = vpop.f32.mrf.mxu0
  %4466 = vmatprep.mubr.bf16.mxu0 0
  %4467 = vmatmul.mubr.bf16.gmra.mxu0 %v4309
  %v4468 = vpop.f32.mrf.mxu0
  %v4469 = vadd.f32 0.0, %v4468
  %v4470 = vpop.f32.mrf.mxu0
  %v4471 = vpop.f32.mrf.mxu0
  %v4472 = vadd.f32 0.0, %v4471
  %v4473 = vpop.f32.mrf.mxu0
  %4474 = vmatprep.mubr.bf16.mxu0 0
  %4475 = vmatmul.mubr.bf16.gmra.mxu0 %v4310
  %v4476 = vpop.f32.mrf.mxu0
  %v4477 = vadd.f32 0.0, %v4476
  %v4478 = vpop.f32.mrf.mxu0
  %v4479 = vpop.f32.mrf.mxu0
  %v4480 = vadd.f32 0.0, %v4479
  %v4481 = vpop.f32.mrf.mxu0
  %4482 = vmatprep.mubr.bf16.mxu0 0
  %4483 = vmatmul.mubr.bf16.gmra.mxu0 %v4311
  %v4484 = vpop.f32.mrf.mxu0
  %v4485 = vadd.f32 0.0, %v4484
  %v4486 = vpop.f32.mrf.mxu0
  %v4487 = vpop.f32.mrf.mxu0
  %v4488 = vadd.f32 0.0, %v4487
  %v4489 = vpop.f32.mrf.mxu0
  %4490 = vmatprep.mubr.bf16.mxu0 0
  %4491 = vmatmul.mubr.bf16.gmra.mxu0 %v4312
  %v4492 = vpop.f32.mrf.mxu0
  %v4493 = vadd.f32 0.0, %v4492
  %v4494 = vpop.f32.mrf.mxu0
  %v4495 = vpop.f32.mrf.mxu0
  %v4496 = vadd.f32 0.0, %v4495
  %v4497 = vpop.f32.mrf.mxu0
  %4498 = vmatprep.mubr.bf16.mxu0 0
  %4499 = vmatmul.mubr.bf16.gmra.mxu0 %v4313
  %v4500 = vpop.f32.mrf.mxu0
  %v4501 = vadd.f32 0.0, %v4500
  %v4502 = vpop.f32.mrf.mxu0
  %v4503 = vpop.f32.mrf.mxu0
  %v4504 = vadd.f32 0.0, %v4503
  %v4505 = vpop.f32.mrf.mxu0
  %4506 = vmatprep.mubr.bf16.mxu0 0
  %4507 = vmatmul.mubr.bf16.gmra.mxu0 %v4314
  %v4508 = vpop.f32.mrf.mxu0
  %v4509 = vadd.f32 0.0, %v4508
  %v4510 = vpop.f32.mrf.mxu0
  %v4511 = vpop.f32.mrf.mxu0
  %v4512 = vadd.f32 0.0, %v4511
  %v4513 = vpop.f32.mrf.mxu0
  %4514 = vmatprep.mubr.bf16.mxu0 0
  %4515 = vmatmul.mubr.bf16.gmra.mxu0 %v4315
  %v4516 = vpop.f32.mrf.mxu0
  %v4517 = vadd.f32 0.0, %v4516
  %v4518 = vpop.f32.mrf.mxu0
  %v4519 = vpop.f32.mrf.mxu0
  %v4520 = vadd.f32 0.0, %v4519
  %v4521 = vpop.f32.mrf.mxu0
  %4522 = vmatprep.mubr.bf16.mxu0 0
  %4523 = vmatmul.mubr.bf16.gmra.mxu0 %v4316
  %v4524 = vpop.f32.mrf.mxu0
  %v4525 = vadd.f32 0.0, %v4524
  %v4526 = vpop.f32.mrf.mxu0
  %v4527 = vpop.f32.mrf.mxu0
  %v4528 = vadd.f32 0.0, %v4527
  %v4529 = vpop.f32.mrf.mxu0
  %4530 = vmatprep.mubr.bf16.mxu0 0
  %4531 = vmatmul.mubr.bf16.gmra.mxu0 %v4317
  %v4532 = vpop.f32.mrf.mxu0
  %v4533 = vadd.f32 0.0, %v4532
  %v4534 = vpop.f32.mrf.mxu0
  %v4535 = vpop.f32.mrf.mxu0
  %v4536 = vadd.f32 0.0, %v4535
  %v4537 = vpop.f32.mrf.mxu0
  %4538 = vmatprep.mubr.bf16.mxu0 0
  %4539 = vmatmul.mubr.bf16.gmra.mxu0 %v4318
  %v4540 = vpop.f32.mrf.mxu0
  %v4541 = vadd.f32 0.0, %v4540
  %v4542 = vpop.f32.mrf.mxu0
  %v4543 = vpop.f32.mrf.mxu0
  %v4544 = vadd.f32 0.0, %v4543
  %v4545 = vpop.f32.mrf.mxu0
  %4546 = vmatprep.mubr.bf16.mxu0 0
  %4547 = vmatmul.mubr.bf16.gmra.mxu0 %v4319
  %v4548 = vpop.f32.mrf.mxu0
  %v4549 = vadd.f32 0.0, %v4548
  %v4550 = vpop.f32.mrf.mxu0
  %v4551 = vpop.f32.mrf.mxu0
  %v4552 = vadd.f32 0.0, %v4551
  %v4553 = vpop.f32.mrf.mxu0
  %4554 = vmatprep.mubr.bf16.mxu0 0
  %4555 = vmatmul.mubr.bf16.gmra.mxu0 %v4320
  %v4556 = vpop.f32.mrf.mxu0
  %v4557 = vadd.f32 0.0, %v4556
  %v4558 = vpop.f32.mrf.mxu0
  %v4559 = vpop.f32.mrf.mxu0
  %v4560 = vadd.f32 0.0, %v4559
  %v4561 = vpop.f32.mrf.mxu0
  %4562 = vdwg.mxu0
  %v4563 = vadd.f32 %v4231, %v4421
  %v4564 = vadd.f32 %v4232, %v4424
  %v4565 = vadd.f32 %v4233, %v4429
  %v4566 = vadd.f32 %v4234, %v4432
  %v4567 = vadd.f32 %v4235, %v4437
  %v4568 = vadd.f32 %v4236, %v4440
  %v4569 = vadd.f32 %v4237, %v4445
  %v4570 = vadd.f32 %v4238, %v4448
  %v4571 = vadd.f32 %v4239, %v4453
  %v4572 = vadd.f32 %v4240, %v4456
  %v4573 = vadd.f32 %v4241, %v4461
  %v4574 = vadd.f32 %v4242, %v4464
  %v4575 = vadd.f32 %v4243, %v4469
  %v4576 = vadd.f32 %v4244, %v4472
  %v4577 = vadd.f32 %v4245, %v4477
  %v4578 = vadd.f32 %v4246, %v4480
  %v4579 = vadd.f32 %v4247, %v4485
  %v4580 = vadd.f32 %v4248, %v4488
  %v4581 = vadd.f32 %v4249, %v4493
  %v4582 = vadd.f32 %v4250, %v4496
  %v4583 = vadd.f32 %v4251, %v4501
  %v4584 = vadd.f32 %v4252, %v4504
  %v4585 = vadd.f32 %v4253, %v4509
  %v4586 = vadd.f32 %v4254, %v4512
  %v4587 = vadd.f32 %v4255, %v4517
  %v4588 = vadd.f32 %v4256, %v4520
  %v4589 = vadd.f32 %v4257, %v4525
  %v4590 = vadd.f32 %v4258, %v4528
  %v4591 = vadd.f32 %v4259, %v4533
  %v4592 = vadd.f32 %v4260, %v4536
  %v4593 = vadd.f32 %v4261, %v4541
  %v4594 = vadd.f32 %v4262, %v4544
  %v4595 = vadd.f32 %v4263, %v4549
  %v4596 = vadd.f32 %v4264, %v4552
  %v4597 = vadd.f32 %v4265, %v4557
  %v4598 = vadd.f32 %v4266, %v4560
  %v4599 = vld [vmem:[#allocation2 + $0x126] sm:$0xff]
  %v4600 = vld [vmem:[#allocation2 + $0x12e] sm:$0xff]
  %v4601 = vld [vmem:[#allocation2 + $0x136] sm:$0xff]
  %v4602 = vld [vmem:[#allocation2 + $0x13e] sm:$0xff]
  %v4603 = vld [vmem:[#allocation2 + $0x146] sm:$0xff]
  %v4604 = vld [vmem:[#allocation2 + $0x14e] sm:$0xff]
  %v4605 = vld [vmem:[#allocation2 + $0x156] sm:$0xff]
  %v4606 = vld [vmem:[#allocation2 + $0x15e] sm:$0xff]
  %v4607 = vld [vmem:[#allocation2 + $0x166] sm:$0xff]
  %v4608 = vld [vmem:[#allocation2 + $0x16e] sm:$0xff]
  %v4609 = vld [vmem:[#allocation2 + $0x176] sm:$0xff]
  %v4610 = vld [vmem:[#allocation2 + $0x17e] sm:$0xff]
  %v4611 = vld [vmem:[#allocation2 + $0x186] sm:$0xff]
  %v4612 = vld [vmem:[#allocation2 + $0x18e] sm:$0xff]
  %v4613 = vld [vmem:[#allocation2 + $0x196] sm:$0xff]
  %v4614 = vld [vmem:[#allocation2 + $0x19e] sm:$0xff]
  %v4615 = vld [vmem:[#allocation2 + $0x1a6] sm:$0xff]
  %v4616 = vld [vmem:[#allocation2 + $0x1ae] sm:$0xff]
  %v4617 = vld [vmem:[#allocation2 + $0x1b6] sm:$0xff]
  %v4618 = vld [vmem:[#allocation2 + $0x1be] sm:$0xff]
  %v4619 = vld [vmem:[#allocation2 + $0x1c6] sm:$0xff]
  %v4620 = vld [vmem:[#allocation2 + $0x1ce] sm:$0xff]
  %v4621 = vld [vmem:[#allocation2 + $0x1d6] sm:$0xff]
  %v4622 = vld [vmem:[#allocation2 + $0x1de] sm:$0xff]
  %v4623 = vld [vmem:[#allocation2 + $0x1e6] sm:$0xff]
  %v4624 = vld [vmem:[#allocation2 + $0x1ee] sm:$0xff]
  %v4625 = vld [vmem:[#allocation2 + $0x1f6] sm:$0xff]
  %v4626 = vld [vmem:[#allocation2 + $0x1fe] sm:$0xff]
  %v4627 = vld [vmem:[#allocation2 + $0x206] sm:$0xff]
  %v4628 = vld [vmem:[#allocation2 + $0x20e] sm:$0xff]
  %v4629 = vld [vmem:[#allocation2 + $0x216] sm:$0xff]
  %v4630 = vld [vmem:[#allocation2 + $0x21e] sm:$0xff]
  %v4631 = vld [vmem:[#allocation2 + $0x226] sm:$0xff]
  %v4632 = vld [vmem:[#allocation2 + $0x22e] sm:$0xff]
  %v4633 = vld [vmem:[#allocation2 + $0x236] sm:$0xff]
  %v4634 = vld [vmem:[#allocation2 + $0x23e] sm:$0x1]
  %v4635 = vpack.c.bf16 %v4600, %v4599
  %v4636 = vpack.c.bf16 %v4602, %v4601
  %v4637 = vpack.c.bf16 %v4604, %v4603
  %v4638 = vpack.c.bf16 %v4606, %v4605
  %v4639 = vpack.c.bf16 %v4608, %v4607
  %v4640 = vpack.c.bf16 %v4610, %v4609
  %v4641 = vpack.c.bf16 %v4612, %v4611
  %v4642 = vpack.c.bf16 %v4614, %v4613
  %v4643 = vpack.c.bf16 %v4616, %v4615
  %v4644 = vpack.c.bf16 %v4618, %v4617
  %v4645 = vpack.c.bf16 %v4620, %v4619
  %v4646 = vpack.c.bf16 %v4622, %v4621
  %v4647 = vpack.c.bf16 %v4624, %v4623
  %v4648 = vpack.c.bf16 %v4626, %v4625
  %v4649 = vpack.c.bf16 %v4628, %v4627
  %v4650 = vpack.c.bf16 %v4630, %v4629
  %v4651 = vpack.c.bf16 %v4632, %v4631
  %v4652 = vpack.c.bf16 %v4634, %v4633
  %s4653 = scalar_lea.vmem %s3, 576
  %v4654 = vld [vmem:[%s4653] sm:$0xf]
  %v4655 = vld [vmem:[%s4653 + $0x4] sm:$0xf]
  %v4656 = vld [vmem:[%s4653 + $0x8] sm:$0xf]
  %v4657 = vld [vmem:[%s4653 + $0xc] sm:$0xf]
  %v4658 = vld [vmem:[%s4653 + $0x10] sm:$0xf]
  %v4659 = vld [vmem:[%s4653 + $0x14] sm:$0xf]
  %v4660 = vld [vmem:[%s4653 + $0x18] sm:$0xf]
  %v4661 = vld [vmem:[%s4653 + $0x1c] sm:$0xf]
  %v4662 = vld [vmem:[%s4653 + $0x20] sm:$0xf]
  %v4663 = vld [vmem:[%s4653 + $0x24] sm:$0xf]
  %v4664 = vld [vmem:[%s4653 + $0x28] sm:$0xf]
  %v4665 = vld [vmem:[%s4653 + $0x2c] sm:$0xf]
  %v4666 = vld [vmem:[%s4653 + $0x30] sm:$0xf]
  %v4667 = vld [vmem:[%s4653 + $0x34] sm:$0xf]
  %v4668 = vld [vmem:[%s4653 + $0x38] sm:$0xf]
  %v4669 = vld [vmem:[%s4653 + $0x3c] sm:$0xf]
  %v4686 = vunpack.c.l.b16 %v4654
  %v4687 = vunpack.c.l.b16 %v4655
  %v4688 = vunpack.c.l.b16 %v4656
  %v4689 = vunpack.c.l.b16 %v4657
  %v4690 = vunpack.c.l.b16 %v4658
  %v4691 = vunpack.c.l.b16 %v4659
  %v4692 = vunpack.c.l.b16 %v4660
  %v4693 = vunpack.c.l.b16 %v4661
  %v4694 = vunpack.c.l.b16 %v4662
  %v4695 = vunpack.c.l.b16 %v4663
  %v4696 = vunpack.c.l.b16 %v4664
  %v4697 = vunpack.c.l.b16 %v4665
  %v4698 = vunpack.c.l.b16 %v4666
  %v4699 = vunpack.c.l.b16 %v4667
  %v4700 = vunpack.c.l.b16 %v4668
  %v4701 = vunpack.c.l.b16 %v4669
  %v4702 = vpack.c.b16 %v4687, %v4686
  %v4703 = vpack.c.b16 %v4689, %v4688
  %v4704 = vpack.c.b16 %v4691, %v4690
  %v4705 = vpack.c.b16 %v4693, %v4692
  %v4706 = vpack.c.b16 %v4695, %v4694
  %v4707 = vpack.c.b16 %v4697, %v4696
  %v4708 = vpack.c.b16 %v4699, %v4698
  %v4709 = vpack.c.b16 %v4701, %v4700
  %4718 = vmatprep.subr.bf16.mxu0 0
  %4719 = vmatpush1.bf16.msra.mxu0 %v4709
  %4720 = vmatprep.subr.bf16.mxu0 0
  %4721 = vmatpush1.bf16.msra.mxu0 %v4708
  %4722 = vmatprep.subr.bf16.mxu0 0
  %4723 = vmatpush1.bf16.msra.mxu0 %v4707
  %4724 = vmatprep.subr.bf16.mxu0 0
  %4725 = vmatpush1.bf16.msra.mxu0 %v4706
  %4726 = vmatprep.subr.bf16.mxu0 0
  %4727 = vmatpush1.bf16.msra.mxu0 %v4705
  %4728 = vmatprep.subr.bf16.mxu0 0
  %4729 = vmatpush1.bf16.msra.mxu0 %v4704
  %4730 = vmatprep.subr.bf16.mxu0 0
  %4731 = vmatpush1.bf16.msra.mxu0 %v4703
  %4732 = vmatprep.subr.bf16.mxu0 0
  %4733 = vmatpush1.bf16.msra.mxu0 %v4702
  %4734 = vmatprep.subr.bf16.mxu0 0
  %4735 = vmatpush2.bf16.msra.mxu0 0
  %4736 = vmatprep.subr.bf16.mxu0 0
  %4737 = vmatpush2.bf16.msra.mxu0 0
  %4738 = vmatprep.subr.bf16.mxu0 0
  %4739 = vmatpush2.bf16.msra.mxu0 0
  %4740 = vmatprep.subr.bf16.mxu0 0
  %4741 = vmatpush2.bf16.msra.mxu0 0
  %4742 = vmatprep.subr.bf16.mxu0 0
  %4743 = vmatpush2.bf16.msra.mxu0 0
  %4744 = vmatprep.subr.bf16.mxu0 0
  %4745 = vmatpush2.bf16.msra.mxu0 0
  %4746 = vmatprep.subr.bf16.mxu0 0
  %4747 = vmatpush2.bf16.msra.mxu0 0
  %4748 = vmatprep.subr.bf16.mxu0 0
  %4749 = vmatpush2.bf16.msra.mxu0 0
  %4750 = vmatprep.mubr.bf16.mxu0 0
  %4751 = vmatmul.mubr.bf16.gmra.mxu0 %v4635
  %v4752 = vpop.f32.mrf.mxu0
  %v4753 = vadd.f32 0.0, %v4752
  %v4754 = vpop.f32.mrf.mxu0
  %v4755 = vpop.f32.mrf.mxu0
  %v4756 = vadd.f32 0.0, %v4755
  %v4757 = vpop.f32.mrf.mxu0
  %4758 = vmatprep.mubr.bf16.mxu0 0
  %4759 = vmatmul.mubr.bf16.gmra.mxu0 %v4636
  %v4760 = vpop.f32.mrf.mxu0
  %v4761 = vadd.f32 0.0, %v4760
  %v4762 = vpop.f32.mrf.mxu0
  %v4763 = vpop.f32.mrf.mxu0
  %v4764 = vadd.f32 0.0, %v4763
  %v4765 = vpop.f32.mrf.mxu0
  %4766 = vmatprep.mubr.bf16.mxu0 0
  %4767 = vmatmul.mubr.bf16.gmra.mxu0 %v4637
  %v4768 = vpop.f32.mrf.mxu0
  %v4769 = vadd.f32 0.0, %v4768
  %v4770 = vpop.f32.mrf.mxu0
  %v4771 = vpop.f32.mrf.mxu0
  %v4772 = vadd.f32 0.0, %v4771
  %v4773 = vpop.f32.mrf.mxu0
  %4774 = vmatprep.mubr.bf16.mxu0 0
  %4775 = vmatmul.mubr.bf16.gmra.mxu0 %v4638
  %v4776 = vpop.f32.mrf.mxu0
  %v4777 = vadd.f32 0.0, %v4776
  %v4778 = vpop.f32.mrf.mxu0
  %v4779 = vpop.f32.mrf.mxu0
  %v4780 = vadd.f32 0.0, %v4779
  %v4781 = vpop.f32.mrf.mxu0
  %4782 = vmatprep.mubr.bf16.mxu0 0
  %4783 = vmatmul.mubr.bf16.gmra.mxu0 %v4639
  %v4784 = vpop.f32.mrf.mxu0
  %v4785 = vadd.f32 0.0, %v4784
  %v4786 = vpop.f32.mrf.mxu0
  %v4787 = vpop.f32.mrf.mxu0
  %v4788 = vadd.f32 0.0, %v4787
  %v4789 = vpop.f32.mrf.mxu0
  %4790 = vmatprep.mubr.bf16.mxu0 0
  %4791 = vmatmul.mubr.bf16.gmra.mxu0 %v4640
  %v4792 = vpop.f32.mrf.mxu0
  %v4793 = vadd.f32 0.0, %v4792
  %v4794 = vpop.f32.mrf.mxu0
  %v4795 = vpop.f32.mrf.mxu0
  %v4796 = vadd.f32 0.0, %v4795
  %v4797 = vpop.f32.mrf.mxu0
  %4798 = vmatprep.mubr.bf16.mxu0 0
  %4799 = vmatmul.mubr.bf16.gmra.mxu0 %v4641
  %v4800 = vpop.f32.mrf.mxu0
  %v4801 = vadd.f32 0.0, %v4800
  %v4802 = vpop.f32.mrf.mxu0
  %v4803 = vpop.f32.mrf.mxu0
  %v4804 = vadd.f32 0.0, %v4803
  %v4805 = vpop.f32.mrf.mxu0
  %4806 = vmatprep.mubr.bf16.mxu0 0
  %4807 = vmatmul.mubr.bf16.gmra.mxu0 %v4642
  %v4808 = vpop.f32.mrf.mxu0
  %v4809 = vadd.f32 0.0, %v4808
  %v4810 = vpop.f32.mrf.mxu0
  %v4811 = vpop.f32.mrf.mxu0
  %v4812 = vadd.f32 0.0, %v4811
  %v4813 = vpop.f32.mrf.mxu0
  %4814 = vmatprep.mubr.bf16.mxu0 0
  %4815 = vmatmul.mubr.bf16.gmra.mxu0 %v4643
  %v4816 = vpop.f32.mrf.mxu0
  %v4817 = vadd.f32 0.0, %v4816
  %v4818 = vpop.f32.mrf.mxu0
  %v4819 = vpop.f32.mrf.mxu0
  %v4820 = vadd.f32 0.0, %v4819
  %v4821 = vpop.f32.mrf.mxu0
  %4822 = vmatprep.mubr.bf16.mxu0 0
  %4823 = vmatmul.mubr.bf16.gmra.mxu0 %v4644
  %v4824 = vpop.f32.mrf.mxu0
  %v4825 = vadd.f32 0.0, %v4824
  %v4826 = vpop.f32.mrf.mxu0
  %v4827 = vpop.f32.mrf.mxu0
  %v4828 = vadd.f32 0.0, %v4827
  %v4829 = vpop.f32.mrf.mxu0
  %4830 = vmatprep.mubr.bf16.mxu0 0
  %4831 = vmatmul.mubr.bf16.gmra.mxu0 %v4645
  %v4832 = vpop.f32.mrf.mxu0
  %v4833 = vadd.f32 0.0, %v4832
  %v4834 = vpop.f32.mrf.mxu0
  %v4835 = vpop.f32.mrf.mxu0
  %v4836 = vadd.f32 0.0, %v4835
  %v4837 = vpop.f32.mrf.mxu0
  %4838 = vmatprep.mubr.bf16.mxu0 0
  %4839 = vmatmul.mubr.bf16.gmra.mxu0 %v4646
  %v4840 = vpop.f32.mrf.mxu0
  %v4841 = vadd.f32 0.0, %v4840
  %v4842 = vpop.f32.mrf.mxu0
  %v4843 = vpop.f32.mrf.mxu0
  %v4844 = vadd.f32 0.0, %v4843
  %v4845 = vpop.f32.mrf.mxu0
  %4846 = vmatprep.mubr.bf16.mxu0 0
  %4847 = vmatmul.mubr.bf16.gmra.mxu0 %v4647
  %v4848 = vpop.f32.mrf.mxu0
  %v4849 = vadd.f32 0.0, %v4848
  %v4850 = vpop.f32.mrf.mxu0
  %v4851 = vpop.f32.mrf.mxu0
  %v4852 = vadd.f32 0.0, %v4851
  %v4853 = vpop.f32.mrf.mxu0
  %4854 = vmatprep.mubr.bf16.mxu0 0
  %4855 = vmatmul.mubr.bf16.gmra.mxu0 %v4648
  %v4856 = vpop.f32.mrf.mxu0
  %v4857 = vadd.f32 0.0, %v4856
  %v4858 = vpop.f32.mrf.mxu0
  %v4859 = vpop.f32.mrf.mxu0
  %v4860 = vadd.f32 0.0, %v4859
  %v4861 = vpop.f32.mrf.mxu0
  %4862 = vmatprep.mubr.bf16.mxu0 0
  %4863 = vmatmul.mubr.bf16.gmra.mxu0 %v4649
  %v4864 = vpop.f32.mrf.mxu0
  %v4865 = vadd.f32 0.0, %v4864
  %v4866 = vpop.f32.mrf.mxu0
  %v4867 = vpop.f32.mrf.mxu0
  %v4868 = vadd.f32 0.0, %v4867
  %v4869 = vpop.f32.mrf.mxu0
  %4870 = vmatprep.mubr.bf16.mxu0 0
  %4871 = vmatmul.mubr.bf16.gmra.mxu0 %v4650
  %v4872 = vpop.f32.mrf.mxu0
  %v4873 = vadd.f32 0.0, %v4872
  %v4874 = vpop.f32.mrf.mxu0
  %v4875 = vpop.f32.mrf.mxu0
  %v4876 = vadd.f32 0.0, %v4875
  %v4877 = vpop.f32.mrf.mxu0
  %4878 = vmatprep.mubr.bf16.mxu0 0
  %4879 = vmatmul.mubr.bf16.gmra.mxu0 %v4651
  %v4880 = vpop.f32.mrf.mxu0
  %v4881 = vadd.f32 0.0, %v4880
  %v4882 = vpop.f32.mrf.mxu0
  %v4883 = vpop.f32.mrf.mxu0
  %v4884 = vadd.f32 0.0, %v4883
  %v4885 = vpop.f32.mrf.mxu0
  %4886 = vmatprep.mubr.bf16.mxu0 0
  %4887 = vmatmul.mubr.bf16.gmra.mxu0 %v4652
  %v4888 = vpop.f32.mrf.mxu0
  %v4889 = vadd.f32 0.0, %v4888
  %v4890 = vpop.f32.mrf.mxu0
  %v4891 = vpop.f32.mrf.mxu0
  %v4892 = vadd.f32 0.0, %v4891
  %v4893 = vpop.f32.mrf.mxu0
  %4894 = vdwg.mxu0
  %v4895 = vadd.f32 %v4563, %v4753
  %v4896 = vadd.f32 %v4564, %v4756
  %v4897 = vadd.f32 %v4565, %v4761
  %v4898 = vadd.f32 %v4566, %v4764
  %v4899 = vadd.f32 %v4567, %v4769
  %v4900 = vadd.f32 %v4568, %v4772
  %v4901 = vadd.f32 %v4569, %v4777
  %v4902 = vadd.f32 %v4570, %v4780
  %v4903 = vadd.f32 %v4571, %v4785
  %v4904 = vadd.f32 %v4572, %v4788
  %v4905 = vadd.f32 %v4573, %v4793
  %v4906 = vadd.f32 %v4574, %v4796
  %v4907 = vadd.f32 %v4575, %v4801
  %v4908 = vadd.f32 %v4576, %v4804
  %v4909 = vadd.f32 %v4577, %v4809
  %v4910 = vadd.f32 %v4578, %v4812
  %v4911 = vadd.f32 %v4579, %v4817
  %v4912 = vadd.f32 %v4580, %v4820
  %v4913 = vadd.f32 %v4581, %v4825
  %v4914 = vadd.f32 %v4582, %v4828
  %v4915 = vadd.f32 %v4583, %v4833
  %v4916 = vadd.f32 %v4584, %v4836
  %v4917 = vadd.f32 %v4585, %v4841
  %v4918 = vadd.f32 %v4586, %v4844
  %v4919 = vadd.f32 %v4587, %v4849
  %v4920 = vadd.f32 %v4588, %v4852
  %v4921 = vadd.f32 %v4589, %v4857
  %v4922 = vadd.f32 %v4590, %v4860
  %v4923 = vadd.f32 %v4591, %v4865
  %v4924 = vadd.f32 %v4592, %v4868
  %v4925 = vadd.f32 %v4593, %v4873
  %v4926 = vadd.f32 %v4594, %v4876
  %v4927 = vadd.f32 %v4595, %v4881
  %v4928 = vadd.f32 %v4596, %v4884
  %v4929 = vadd.f32 %v4597, %v4889
  %v4930 = vadd.f32 %v4598, %v4892
  %v4931 = vld [vmem:[#allocation2 + $0x7] sm:$0xff]
  %v4932 = vld [vmem:[#allocation2 + $0xf] sm:$0xff]
  %v4933 = vld [vmem:[#allocation2 + $0x17] sm:$0xff]
  %v4934 = vld [vmem:[#allocation2 + $0x1f] sm:$0xff]
  %v4935 = vld [vmem:[#allocation2 + $0x27] sm:$0xff]
  %v4936 = vld [vmem:[#allocation2 + $0x2f] sm:$0xff]
  %v4937 = vld [vmem:[#allocation2 + $0x37] sm:$0xff]
  %v4938 = vld [vmem:[#allocation2 + $0x3f] sm:$0xff]
  %v4939 = vld [vmem:[#allocation2 + $0x47] sm:$0xff]
  %v4940 = vld [vmem:[#allocation2 + $0x4f] sm:$0xff]
  %v4941 = vld [vmem:[#allocation2 + $0x57] sm:$0xff]
  %v4942 = vld [vmem:[#allocation2 + $0x5f] sm:$0xff]
  %v4943 = vld [vmem:[#allocation2 + $0x67] sm:$0xff]
  %v4944 = vld [vmem:[#allocation2 + $0x6f] sm:$0xff]
  %v4945 = vld [vmem:[#allocation2 + $0x77] sm:$0xff]
  %v4946 = vld [vmem:[#allocation2 + $0x7f] sm:$0xff]
  %v4947 = vld [vmem:[#allocation2 + $0x87] sm:$0xff]
  %v4948 = vld [vmem:[#allocation2 + $0x8f] sm:$0xff]
  %v4949 = vld [vmem:[#allocation2 + $0x97] sm:$0xff]
  %v4950 = vld [vmem:[#allocation2 + $0x9f] sm:$0xff]
  %v4951 = vld [vmem:[#allocation2 + $0xa7] sm:$0xff]
  %v4952 = vld [vmem:[#allocation2 + $0xaf] sm:$0xff]
  %v4953 = vld [vmem:[#allocation2 + $0xb7] sm:$0xff]
  %v4954 = vld [vmem:[#allocation2 + $0xbf] sm:$0xff]
  %v4955 = vld [vmem:[#allocation2 + $0xc7] sm:$0xff]
  %v4956 = vld [vmem:[#allocation2 + $0xcf] sm:$0xff]
  %v4957 = vld [vmem:[#allocation2 + $0xd7] sm:$0xff]
  %v4958 = vld [vmem:[#allocation2 + $0xdf] sm:$0xff]
  %v4959 = vld [vmem:[#allocation2 + $0xe7] sm:$0xff]
  %v4960 = vld [vmem:[#allocation2 + $0xef] sm:$0xff]
  %v4961 = vld [vmem:[#allocation2 + $0xf7] sm:$0xff]
  %v4962 = vld [vmem:[#allocation2 + $0xff] sm:$0xff]
  %v4963 = vld [vmem:[#allocation2 + $0x107] sm:$0xff]
  %v4964 = vld [vmem:[#allocation2 + $0x10f] sm:$0xff]
  %v4965 = vld [vmem:[#allocation2 + $0x117] sm:$0xff]
  %v4966 = vld [vmem:[#allocation2 + $0x11f] sm:$0x1]
  %v4967 = vpack.c.bf16 %v4932, %v4931
  %v4968 = vpack.c.bf16 %v4934, %v4933
  %v4969 = vpack.c.bf16 %v4936, %v4935
  %v4970 = vpack.c.bf16 %v4938, %v4937
  %v4971 = vpack.c.bf16 %v4940, %v4939
  %v4972 = vpack.c.bf16 %v4942, %v4941
  %v4973 = vpack.c.bf16 %v4944, %v4943
  %v4974 = vpack.c.bf16 %v4946, %v4945
  %v4975 = vpack.c.bf16 %v4948, %v4947
  %v4976 = vpack.c.bf16 %v4950, %v4949
  %v4977 = vpack.c.bf16 %v4952, %v4951
  %v4978 = vpack.c.bf16 %v4954, %v4953
  %v4979 = vpack.c.bf16 %v4956, %v4955
  %v4980 = vpack.c.bf16 %v4958, %v4957
  %v4981 = vpack.c.bf16 %v4960, %v4959
  %v4982 = vpack.c.bf16 %v4962, %v4961
  %v4983 = vpack.c.bf16 %v4964, %v4963
  %v4984 = vpack.c.bf16 %v4966, %v4965
  %s4985 = scalar_lea.vmem %s3, 640
  %v4986 = vld [vmem:[%s4985] sm:$0xf]
  %v4987 = vld [vmem:[%s4985 + $0x4] sm:$0xf]
  %v4988 = vld [vmem:[%s4985 + $0x8] sm:$0xf]
  %v4989 = vld [vmem:[%s4985 + $0xc] sm:$0xf]
  %v4990 = vld [vmem:[%s4985 + $0x10] sm:$0xf]
  %v4991 = vld [vmem:[%s4985 + $0x14] sm:$0xf]
  %v4992 = vld [vmem:[%s4985 + $0x18] sm:$0xf]
  %v4993 = vld [vmem:[%s4985 + $0x1c] sm:$0xf]
  %v4994 = vld [vmem:[%s4985 + $0x20] sm:$0xf]
  %v4995 = vld [vmem:[%s4985 + $0x24] sm:$0xf]
  %v4996 = vld [vmem:[%s4985 + $0x28] sm:$0xf]
  %v4997 = vld [vmem:[%s4985 + $0x2c] sm:$0xf]
  %v4998 = vld [vmem:[%s4985 + $0x30] sm:$0xf]
  %v4999 = vld [vmem:[%s4985 + $0x34] sm:$0xf]
  %v5000 = vld [vmem:[%s4985 + $0x38] sm:$0xf]
  %v5001 = vld [vmem:[%s4985 + $0x3c] sm:$0xf]
  %v5018 = vunpack.c.l.b16 %v4986
  %v5019 = vunpack.c.l.b16 %v4987
  %v5020 = vunpack.c.l.b16 %v4988
  %v5021 = vunpack.c.l.b16 %v4989
  %v5022 = vunpack.c.l.b16 %v4990
  %v5023 = vunpack.c.l.b16 %v4991
  %v5024 = vunpack.c.l.b16 %v4992
  %v5025 = vunpack.c.l.b16 %v4993
  %v5026 = vunpack.c.l.b16 %v4994
  %v5027 = vunpack.c.l.b16 %v4995
  %v5028 = vunpack.c.l.b16 %v4996
  %v5029 = vunpack.c.l.b16 %v4997
  %v5030 = vunpack.c.l.b16 %v4998
  %v5031 = vunpack.c.l.b16 %v4999
  %v5032 = vunpack.c.l.b16 %v5000
  %v5033 = vunpack.c.l.b16 %v5001
  %v5034 = vpack.c.b16 %v5019, %v5018
  %v5035 = vpack.c.b16 %v5021, %v5020
  %v5036 = vpack.c.b16 %v5023, %v5022
  %v5037 = vpack.c.b16 %v5025, %v5024
  %v5038 = vpack.c.b16 %v5027, %v5026
  %v5039 = vpack.c.b16 %v5029, %v5028
  %v5040 = vpack.c.b16 %v5031, %v5030
  %v5041 = vpack.c.b16 %v5033, %v5032
  %5050 = vmatprep.subr.bf16.mxu0 0
  %5051 = vmatpush1.bf16.msra.mxu0 %v5041
  %5052 = vmatprep.subr.bf16.mxu0 0
  %5053 = vmatpush1.bf16.msra.mxu0 %v5040
  %5054 = vmatprep.subr.bf16.mxu0 0
  %5055 = vmatpush1.bf16.msra.mxu0 %v5039
  %5056 = vmatprep.subr.bf16.mxu0 0
  %5057 = vmatpush1.bf16.msra.mxu0 %v5038
  %5058 = vmatprep.subr.bf16.mxu0 0
  %5059 = vmatpush1.bf16.msra.mxu0 %v5037
  %5060 = vmatprep.subr.bf16.mxu0 0
  %5061 = vmatpush1.bf16.msra.mxu0 %v5036
  %5062 = vmatprep.subr.bf16.mxu0 0
  %5063 = vmatpush1.bf16.msra.mxu0 %v5035
  %5064 = vmatprep.subr.bf16.mxu0 0
  %5065 = vmatpush1.bf16.msra.mxu0 %v5034
  %5066 = vmatprep.subr.bf16.mxu0 0
  %5067 = vmatpush2.bf16.msra.mxu0 0
  %5068 = vmatprep.subr.bf16.mxu0 0
  %5069 = vmatpush2.bf16.msra.mxu0 0
  %5070 = vmatprep.subr.bf16.mxu0 0
  %5071 = vmatpush2.bf16.msra.mxu0 0
  %5072 = vmatprep.subr.bf16.mxu0 0
  %5073 = vmatpush2.bf16.msra.mxu0 0
  %5074 = vmatprep.subr.bf16.mxu0 0
  %5075 = vmatpush2.bf16.msra.mxu0 0
  %5076 = vmatprep.subr.bf16.mxu0 0
  %5077 = vmatpush2.bf16.msra.mxu0 0
  %5078 = vmatprep.subr.bf16.mxu0 0
  %5079 = vmatpush2.bf16.msra.mxu0 0
  %5080 = vmatprep.subr.bf16.mxu0 0
  %5081 = vmatpush2.bf16.msra.mxu0 0
  %5082 = vmatprep.mubr.bf16.mxu0 0
  %5083 = vmatmul.mubr.bf16.gmra.mxu0 %v4967
  %v5084 = vpop.f32.mrf.mxu0
  %v5085 = vadd.f32 0.0, %v5084
  %v5086 = vpop.f32.mrf.mxu0
  %v5087 = vpop.f32.mrf.mxu0
  %v5088 = vadd.f32 0.0, %v5087
  %v5089 = vpop.f32.mrf.mxu0
  %5090 = vmatprep.mubr.bf16.mxu0 0
  %5091 = vmatmul.mubr.bf16.gmra.mxu0 %v4968
  %v5092 = vpop.f32.mrf.mxu0
  %v5093 = vadd.f32 0.0, %v5092
  %v5094 = vpop.f32.mrf.mxu0
  %v5095 = vpop.f32.mrf.mxu0
  %v5096 = vadd.f32 0.0, %v5095
  %v5097 = vpop.f32.mrf.mxu0
  %5098 = vmatprep.mubr.bf16.mxu0 0
  %5099 = vmatmul.mubr.bf16.gmra.mxu0 %v4969
  %v5100 = vpop.f32.mrf.mxu0
  %v5101 = vadd.f32 0.0, %v5100
  %v5102 = vpop.f32.mrf.mxu0
  %v5103 = vpop.f32.mrf.mxu0
  %v5104 = vadd.f32 0.0, %v5103
  %v5105 = vpop.f32.mrf.mxu0
  %5106 = vmatprep.mubr.bf16.mxu0 0
  %5107 = vmatmul.mubr.bf16.gmra.mxu0 %v4970
  %v5108 = vpop.f32.mrf.mxu0
  %v5109 = vadd.f32 0.0, %v5108
  %v5110 = vpop.f32.mrf.mxu0
  %v5111 = vpop.f32.mrf.mxu0
  %v5112 = vadd.f32 0.0, %v5111
  %v5113 = vpop.f32.mrf.mxu0
  %5114 = vmatprep.mubr.bf16.mxu0 0
  %5115 = vmatmul.mubr.bf16.gmra.mxu0 %v4971
  %v5116 = vpop.f32.mrf.mxu0
  %v5117 = vadd.f32 0.0, %v5116
  %v5118 = vpop.f32.mrf.mxu0
  %v5119 = vpop.f32.mrf.mxu0
  %v5120 = vadd.f32 0.0, %v5119
  %v5121 = vpop.f32.mrf.mxu0
  %5122 = vmatprep.mubr.bf16.mxu0 0
  %5123 = vmatmul.mubr.bf16.gmra.mxu0 %v4972
  %v5124 = vpop.f32.mrf.mxu0
  %v5125 = vadd.f32 0.0, %v5124
  %v5126 = vpop.f32.mrf.mxu0
  %v5127 = vpop.f32.mrf.mxu0
  %v5128 = vadd.f32 0.0, %v5127
  %v5129 = vpop.f32.mrf.mxu0
  %5130 = vmatprep.mubr.bf16.mxu0 0
  %5131 = vmatmul.mubr.bf16.gmra.mxu0 %v4973
  %v5132 = vpop.f32.mrf.mxu0
  %v5133 = vadd.f32 0.0, %v5132
  %v5134 = vpop.f32.mrf.mxu0
  %v5135 = vpop.f32.mrf.mxu0
  %v5136 = vadd.f32 0.0, %v5135
  %v5137 = vpop.f32.mrf.mxu0
  %5138 = vmatprep.mubr.bf16.mxu0 0
  %5139 = vmatmul.mubr.bf16.gmra.mxu0 %v4974
  %v5140 = vpop.f32.mrf.mxu0
  %v5141 = vadd.f32 0.0, %v5140
  %v5142 = vpop.f32.mrf.mxu0
  %v5143 = vpop.f32.mrf.mxu0
  %v5144 = vadd.f32 0.0, %v5143
  %v5145 = vpop.f32.mrf.mxu0
  %5146 = vmatprep.mubr.bf16.mxu0 0
  %5147 = vmatmul.mubr.bf16.gmra.mxu0 %v4975
  %v5148 = vpop.f32.mrf.mxu0
  %v5149 = vadd.f32 0.0, %v5148
  %v5150 = vpop.f32.mrf.mxu0
  %v5151 = vpop.f32.mrf.mxu0
  %v5152 = vadd.f32 0.0, %v5151
  %v5153 = vpop.f32.mrf.mxu0
  %5154 = vmatprep.mubr.bf16.mxu0 0
  %5155 = vmatmul.mubr.bf16.gmra.mxu0 %v4976
  %v5156 = vpop.f32.mrf.mxu0
  %v5157 = vadd.f32 0.0, %v5156
  %v5158 = vpop.f32.mrf.mxu0
  %v5159 = vpop.f32.mrf.mxu0
  %v5160 = vadd.f32 0.0, %v5159
  %v5161 = vpop.f32.mrf.mxu0
  %5162 = vmatprep.mubr.bf16.mxu0 0
  %5163 = vmatmul.mubr.bf16.gmra.mxu0 %v4977
  %v5164 = vpop.f32.mrf.mxu0
  %v5165 = vadd.f32 0.0, %v5164
  %v5166 = vpop.f32.mrf.mxu0
  %v5167 = vpop.f32.mrf.mxu0
  %v5168 = vadd.f32 0.0, %v5167
  %v5169 = vpop.f32.mrf.mxu0
  %5170 = vmatprep.mubr.bf16.mxu0 0
  %5171 = vmatmul.mubr.bf16.gmra.mxu0 %v4978
  %v5172 = vpop.f32.mrf.mxu0
  %v5173 = vadd.f32 0.0, %v5172
  %v5174 = vpop.f32.mrf.mxu0
  %v5175 = vpop.f32.mrf.mxu0
  %v5176 = vadd.f32 0.0, %v5175
  %v5177 = vpop.f32.mrf.mxu0
  %5178 = vmatprep.mubr.bf16.mxu0 0
  %5179 = vmatmul.mubr.bf16.gmra.mxu0 %v4979
  %v5180 = vpop.f32.mrf.mxu0
  %v5181 = vadd.f32 0.0, %v5180
  %v5182 = vpop.f32.mrf.mxu0
  %v5183 = vpop.f32.mrf.mxu0
  %v5184 = vadd.f32 0.0, %v5183
  %v5185 = vpop.f32.mrf.mxu0
  %5186 = vmatprep.mubr.bf16.mxu0 0
  %5187 = vmatmul.mubr.bf16.gmra.mxu0 %v4980
  %v5188 = vpop.f32.mrf.mxu0
  %v5189 = vadd.f32 0.0, %v5188
  %v5190 = vpop.f32.mrf.mxu0
  %v5191 = vpop.f32.mrf.mxu0
  %v5192 = vadd.f32 0.0, %v5191
  %v5193 = vpop.f32.mrf.mxu0
  %5194 = vmatprep.mubr.bf16.mxu0 0
  %5195 = vmatmul.mubr.bf16.gmra.mxu0 %v4981
  %v5196 = vpop.f32.mrf.mxu0
  %v5197 = vadd.f32 0.0, %v5196
  %v5198 = vpop.f32.mrf.mxu0
  %v5199 = vpop.f32.mrf.mxu0
  %v5200 = vadd.f32 0.0, %v5199
  %v5201 = vpop.f32.mrf.mxu0
  %5202 = vmatprep.mubr.bf16.mxu0 0
  %5203 = vmatmul.mubr.bf16.gmra.mxu0 %v4982
  %v5204 = vpop.f32.mrf.mxu0
  %v5205 = vadd.f32 0.0, %v5204
  %v5206 = vpop.f32.mrf.mxu0
  %v5207 = vpop.f32.mrf.mxu0
  %v5208 = vadd.f32 0.0, %v5207
  %v5209 = vpop.f32.mrf.mxu0
  %5210 = vmatprep.mubr.bf16.mxu0 0
  %5211 = vmatmul.mubr.bf16.gmra.mxu0 %v4983
  %v5212 = vpop.f32.mrf.mxu0
  %v5213 = vadd.f32 0.0, %v5212
  %v5214 = vpop.f32.mrf.mxu0
  %v5215 = vpop.f32.mrf.mxu0
  %v5216 = vadd.f32 0.0, %v5215
  %v5217 = vpop.f32.mrf.mxu0
  %5218 = vmatprep.mubr.bf16.mxu0 0
  %5219 = vmatmul.mubr.bf16.gmra.mxu0 %v4984
  %v5220 = vpop.f32.mrf.mxu0
  %v5221 = vadd.f32 0.0, %v5220
  %v5222 = vpop.f32.mrf.mxu0
  %v5223 = vpop.f32.mrf.mxu0
  %v5224 = vadd.f32 0.0, %v5223
  %v5225 = vpop.f32.mrf.mxu0
  %5226 = vdwg.mxu0
  %v5227 = vadd.f32 %v4895, %v5085
  %v5228 = vadd.f32 %v4896, %v5088
  %v5229 = vadd.f32 %v4897, %v5093
  %v5230 = vadd.f32 %v4898, %v5096
  %v5231 = vadd.f32 %v4899, %v5101
  %v5232 = vadd.f32 %v4900, %v5104
  %v5233 = vadd.f32 %v4901, %v5109
  %v5234 = vadd.f32 %v4902, %v5112
  %v5235 = vadd.f32 %v4903, %v5117
  %v5236 = vadd.f32 %v4904, %v5120
  %v5237 = vadd.f32 %v4905, %v5125
  %v5238 = vadd.f32 %v4906, %v5128
  %v5239 = vadd.f32 %v4907, %v5133
  %v5240 = vadd.f32 %v4908, %v5136
  %v5241 = vadd.f32 %v4909, %v5141
  %v5242 = vadd.f32 %v4910, %v5144
  %v5243 = vadd.f32 %v4911, %v5149
  %v5244 = vadd.f32 %v4912, %v5152
  %v5245 = vadd.f32 %v4913, %v5157
  %v5246 = vadd.f32 %v4914, %v5160
  %v5247 = vadd.f32 %v4915, %v5165
  %v5248 = vadd.f32 %v4916, %v5168
  %v5249 = vadd.f32 %v4917, %v5173
  %v5250 = vadd.f32 %v4918, %v5176
  %v5251 = vadd.f32 %v4919, %v5181
  %v5252 = vadd.f32 %v4920, %v5184
  %v5253 = vadd.f32 %v4921, %v5189
  %v5254 = vadd.f32 %v4922, %v5192
  %v5255 = vadd.f32 %v4923, %v5197
  %v5256 = vadd.f32 %v4924, %v5200
  %v5257 = vadd.f32 %v4925, %v5205
  %v5258 = vadd.f32 %v4926, %v5208
  %v5259 = vadd.f32 %v4927, %v5213
  %v5260 = vadd.f32 %v4928, %v5216
  %v5261 = vadd.f32 %v4929, %v5221
  %v5262 = vadd.f32 %v4930, %v5224
  %v5263 = vld [vmem:[#allocation2 + $0x127] sm:$0xff]
  %v5264 = vld [vmem:[#allocation2 + $0x12f] sm:$0xff]
  %v5265 = vld [vmem:[#allocation2 + $0x137] sm:$0xff]
  %v5266 = vld [vmem:[#allocation2 + $0x13f] sm:$0xff]
  %v5267 = vld [vmem:[#allocation2 + $0x147] sm:$0xff]
  %v5268 = vld [vmem:[#allocation2 + $0x14f] sm:$0xff]
  %v5269 = vld [vmem:[#allocation2 + $0x157] sm:$0xff]
  %v5270 = vld [vmem:[#allocation2 + $0x15f] sm:$0xff]
  %v5271 = vld [vmem:[#allocation2 + $0x167] sm:$0xff]
  %v5272 = vld [vmem:[#allocation2 + $0x16f] sm:$0xff]
  %v5273 = vld [vmem:[#allocation2 + $0x177] sm:$0xff]
  %v5274 = vld [vmem:[#allocation2 + $0x17f] sm:$0xff]
  %v5275 = vld [vmem:[#allocation2 + $0x187] sm:$0xff]
  %v5276 = vld [vmem:[#allocation2 + $0x18f] sm:$0xff]
  %v5277 = vld [vmem:[#allocation2 + $0x197] sm:$0xff]
  %v5278 = vld [vmem:[#allocation2 + $0x19f] sm:$0xff]
  %v5279 = vld [vmem:[#allocation2 + $0x1a7] sm:$0xff]
  %v5280 = vld [vmem:[#allocation2 + $0x1af] sm:$0xff]
  %v5281 = vld [vmem:[#allocation2 + $0x1b7] sm:$0xff]
  %v5282 = vld [vmem:[#allocation2 + $0x1bf] sm:$0xff]
  %v5283 = vld [vmem:[#allocation2 + $0x1c7] sm:$0xff]
  %v5284 = vld [vmem:[#allocation2 + $0x1cf] sm:$0xff]
  %v5285 = vld [vmem:[#allocation2 + $0x1d7] sm:$0xff]
  %v5286 = vld [vmem:[#allocation2 + $0x1df] sm:$0xff]
  %v5287 = vld [vmem:[#allocation2 + $0x1e7] sm:$0xff]
  %v5288 = vld [vmem:[#allocation2 + $0x1ef] sm:$0xff]
  %v5289 = vld [vmem:[#allocation2 + $0x1f7] sm:$0xff]
  %v5290 = vld [vmem:[#allocation2 + $0x1ff] sm:$0xff]
  %v5291 = vld [vmem:[#allocation2 + $0x207] sm:$0xff]
  %v5292 = vld [vmem:[#allocation2 + $0x20f] sm:$0xff]
  %v5293 = vld [vmem:[#allocation2 + $0x217] sm:$0xff]
  %v5294 = vld [vmem:[#allocation2 + $0x21f] sm:$0xff]
  %v5295 = vld [vmem:[#allocation2 + $0x227] sm:$0xff]
  %v5296 = vld [vmem:[#allocation2 + $0x22f] sm:$0xff]
  %v5297 = vld [vmem:[#allocation2 + $0x237] sm:$0xff]
  %v5298 = vld [vmem:[#allocation2 + $0x23f] sm:$0x1]
  %v5299 = vpack.c.bf16 %v5264, %v5263
  %v5300 = vpack.c.bf16 %v5266, %v5265
  %v5301 = vpack.c.bf16 %v5268, %v5267
  %v5302 = vpack.c.bf16 %v5270, %v5269
  %v5303 = vpack.c.bf16 %v5272, %v5271
  %v5304 = vpack.c.bf16 %v5274, %v5273
  %v5305 = vpack.c.bf16 %v5276, %v5275
  %v5306 = vpack.c.bf16 %v5278, %v5277
  %v5307 = vpack.c.bf16 %v5280, %v5279
  %v5308 = vpack.c.bf16 %v5282, %v5281
  %v5309 = vpack.c.bf16 %v5284, %v5283
  %v5310 = vpack.c.bf16 %v5286, %v5285
  %v5311 = vpack.c.bf16 %v5288, %v5287
  %v5312 = vpack.c.bf16 %v5290, %v5289
  %v5313 = vpack.c.bf16 %v5292, %v5291
  %v5314 = vpack.c.bf16 %v5294, %v5293
  %v5315 = vpack.c.bf16 %v5296, %v5295
  %v5316 = vpack.c.bf16 %v5298, %v5297
  %s5317 = scalar_lea.vmem %s3, 704
  %v5318 = vld [vmem:[%s5317] sm:$0xf]
  %v5319 = vld [vmem:[%s5317 + $0x4] sm:$0xf]
  %v5320 = vld [vmem:[%s5317 + $0x8] sm:$0xf]
  %v5321 = vld [vmem:[%s5317 + $0xc] sm:$0xf]
  %v5322 = vld [vmem:[%s5317 + $0x10] sm:$0xf]
  %v5323 = vld [vmem:[%s5317 + $0x14] sm:$0xf]
  %v5324 = vld [vmem:[%s5317 + $0x18] sm:$0xf]
  %v5325 = vld [vmem:[%s5317 + $0x1c] sm:$0xf]
  %v5326 = vld [vmem:[%s5317 + $0x20] sm:$0xf]
  %v5327 = vld [vmem:[%s5317 + $0x24] sm:$0xf]
  %v5328 = vld [vmem:[%s5317 + $0x28] sm:$0xf]
  %v5329 = vld [vmem:[%s5317 + $0x2c] sm:$0xf]
  %v5330 = vld [vmem:[%s5317 + $0x30] sm:$0xf]
  %v5331 = vld [vmem:[%s5317 + $0x34] sm:$0xf]
  %v5332 = vld [vmem:[%s5317 + $0x38] sm:$0xf]
  %v5333 = vld [vmem:[%s5317 + $0x3c] sm:$0xf]
  %v5350 = vunpack.c.l.b16 %v5318
  %v5351 = vunpack.c.l.b16 %v5319
  %v5352 = vunpack.c.l.b16 %v5320
  %v5353 = vunpack.c.l.b16 %v5321
  %v5354 = vunpack.c.l.b16 %v5322
  %v5355 = vunpack.c.l.b16 %v5323
  %v5356 = vunpack.c.l.b16 %v5324
  %v5357 = vunpack.c.l.b16 %v5325
  %v5358 = vunpack.c.l.b16 %v5326
  %v5359 = vunpack.c.l.b16 %v5327
  %v5360 = vunpack.c.l.b16 %v5328
  %v5361 = vunpack.c.l.b16 %v5329
  %v5362 = vunpack.c.l.b16 %v5330
  %v5363 = vunpack.c.l.b16 %v5331
  %v5364 = vunpack.c.l.b16 %v5332
  %v5365 = vunpack.c.l.b16 %v5333
  %v5366 = vpack.c.b16 %v5351, %v5350
  %v5367 = vpack.c.b16 %v5353, %v5352
  %v5368 = vpack.c.b16 %v5355, %v5354
  %v5369 = vpack.c.b16 %v5357, %v5356
  %v5370 = vpack.c.b16 %v5359, %v5358
  %v5371 = vpack.c.b16 %v5361, %v5360
  %v5372 = vpack.c.b16 %v5363, %v5362
  %v5373 = vpack.c.b16 %v5365, %v5364
  %5382 = vmatprep.subr.bf16.mxu0 0
  %5383 = vmatpush1.bf16.msra.mxu0 %v5373
  %5384 = vmatprep.subr.bf16.mxu0 0
  %5385 = vmatpush1.bf16.msra.mxu0 %v5372
  %5386 = vmatprep.subr.bf16.mxu0 0
  %5387 = vmatpush1.bf16.msra.mxu0 %v5371
  %5388 = vmatprep.subr.bf16.mxu0 0
  %5389 = vmatpush1.bf16.msra.mxu0 %v5370
  %5390 = vmatprep.subr.bf16.mxu0 0
  %5391 = vmatpush1.bf16.msra.mxu0 %v5369
  %5392 = vmatprep.subr.bf16.mxu0 0
  %5393 = vmatpush1.bf16.msra.mxu0 %v5368
  %5394 = vmatprep.subr.bf16.mxu0 0
  %5395 = vmatpush1.bf16.msra.mxu0 %v5367
  %5396 = vmatprep.subr.bf16.mxu0 0
  %5397 = vmatpush1.bf16.msra.mxu0 %v5366
  %5398 = vmatprep.subr.bf16.mxu0 0
  %5399 = vmatpush2.bf16.msra.mxu0 0
  %5400 = vmatprep.subr.bf16.mxu0 0
  %5401 = vmatpush2.bf16.msra.mxu0 0
  %5402 = vmatprep.subr.bf16.mxu0 0
  %5403 = vmatpush2.bf16.msra.mxu0 0
  %5404 = vmatprep.subr.bf16.mxu0 0
  %5405 = vmatpush2.bf16.msra.mxu0 0
  %5406 = vmatprep.subr.bf16.mxu0 0
  %5407 = vmatpush2.bf16.msra.mxu0 0
  %5408 = vmatprep.subr.bf16.mxu0 0
  %5409 = vmatpush2.bf16.msra.mxu0 0
  %5410 = vmatprep.subr.bf16.mxu0 0
  %5411 = vmatpush2.bf16.msra.mxu0 0
  %5412 = vmatprep.subr.bf16.mxu0 0
  %5413 = vmatpush2.bf16.msra.mxu0 0
  %5414 = vmatprep.mubr.bf16.mxu0 0
  %5415 = vmatmul.mubr.bf16.gmra.mxu0 %v5299
  %v5416 = vpop.f32.mrf.mxu0
  %v5417 = vadd.f32 0.0, %v5416
  %v5418 = vpop.f32.mrf.mxu0
  %v5419 = vpop.f32.mrf.mxu0
  %v5420 = vadd.f32 0.0, %v5419
  %v5421 = vpop.f32.mrf.mxu0
  %5422 = vmatprep.mubr.bf16.mxu0 0
  %5423 = vmatmul.mubr.bf16.gmra.mxu0 %v5300
  %v5424 = vpop.f32.mrf.mxu0
  %v5425 = vadd.f32 0.0, %v5424
  %v5426 = vpop.f32.mrf.mxu0
  %v5427 = vpop.f32.mrf.mxu0
  %v5428 = vadd.f32 0.0, %v5427
  %v5429 = vpop.f32.mrf.mxu0
  %5430 = vmatprep.mubr.bf16.mxu0 0
  %5431 = vmatmul.mubr.bf16.gmra.mxu0 %v5301
  %v5432 = vpop.f32.mrf.mxu0
  %v5433 = vadd.f32 0.0, %v5432
  %v5434 = vpop.f32.mrf.mxu0
  %v5435 = vpop.f32.mrf.mxu0
  %v5436 = vadd.f32 0.0, %v5435
  %v5437 = vpop.f32.mrf.mxu0
  %5438 = vmatprep.mubr.bf16.mxu0 0
  %5439 = vmatmul.mubr.bf16.gmra.mxu0 %v5302
  %v5440 = vpop.f32.mrf.mxu0
  %v5441 = vadd.f32 0.0, %v5440
  %v5442 = vpop.f32.mrf.mxu0
  %v5443 = vpop.f32.mrf.mxu0
  %v5444 = vadd.f32 0.0, %v5443
  %v5445 = vpop.f32.mrf.mxu0
  %5446 = vmatprep.mubr.bf16.mxu0 0
  %5447 = vmatmul.mubr.bf16.gmra.mxu0 %v5303
  %v5448 = vpop.f32.mrf.mxu0
  %v5449 = vadd.f32 0.0, %v5448
  %v5450 = vpop.f32.mrf.mxu0
  %v5451 = vpop.f32.mrf.mxu0
  %v5452 = vadd.f32 0.0, %v5451
  %v5453 = vpop.f32.mrf.mxu0
  %5454 = vmatprep.mubr.bf16.mxu0 0
  %5455 = vmatmul.mubr.bf16.gmra.mxu0 %v5304
  %v5456 = vpop.f32.mrf.mxu0
  %v5457 = vadd.f32 0.0, %v5456
  %v5458 = vpop.f32.mrf.mxu0
  %v5459 = vpop.f32.mrf.mxu0
  %v5460 = vadd.f32 0.0, %v5459
  %v5461 = vpop.f32.mrf.mxu0
  %5462 = vmatprep.mubr.bf16.mxu0 0
  %5463 = vmatmul.mubr.bf16.gmra.mxu0 %v5305
  %v5464 = vpop.f32.mrf.mxu0
  %v5465 = vadd.f32 0.0, %v5464
  %v5466 = vpop.f32.mrf.mxu0
  %v5467 = vpop.f32.mrf.mxu0
  %v5468 = vadd.f32 0.0, %v5467
  %v5469 = vpop.f32.mrf.mxu0
  %5470 = vmatprep.mubr.bf16.mxu0 0
  %5471 = vmatmul.mubr.bf16.gmra.mxu0 %v5306
  %v5472 = vpop.f32.mrf.mxu0
  %v5473 = vadd.f32 0.0, %v5472
  %v5474 = vpop.f32.mrf.mxu0
  %v5475 = vpop.f32.mrf.mxu0
  %v5476 = vadd.f32 0.0, %v5475
  %v5477 = vpop.f32.mrf.mxu0
  %5478 = vmatprep.mubr.bf16.mxu0 0
  %5479 = vmatmul.mubr.bf16.gmra.mxu0 %v5307
  %v5480 = vpop.f32.mrf.mxu0
  %v5481 = vadd.f32 0.0, %v5480
  %v5482 = vpop.f32.mrf.mxu0
  %v5483 = vpop.f32.mrf.mxu0
  %v5484 = vadd.f32 0.0, %v5483
  %v5485 = vpop.f32.mrf.mxu0
  %5486 = vmatprep.mubr.bf16.mxu0 0
  %5487 = vmatmul.mubr.bf16.gmra.mxu0 %v5308
  %v5488 = vpop.f32.mrf.mxu0
  %v5489 = vadd.f32 0.0, %v5488
  %v5490 = vpop.f32.mrf.mxu0
  %v5491 = vpop.f32.mrf.mxu0
  %v5492 = vadd.f32 0.0, %v5491
  %v5493 = vpop.f32.mrf.mxu0
  %5494 = vmatprep.mubr.bf16.mxu0 0
  %5495 = vmatmul.mubr.bf16.gmra.mxu0 %v5309
  %v5496 = vpop.f32.mrf.mxu0
  %v5497 = vadd.f32 0.0, %v5496
  %v5498 = vpop.f32.mrf.mxu0
  %v5499 = vpop.f32.mrf.mxu0
  %v5500 = vadd.f32 0.0, %v5499
  %v5501 = vpop.f32.mrf.mxu0
  %5502 = vmatprep.mubr.bf16.mxu0 0
  %5503 = vmatmul.mubr.bf16.gmra.mxu0 %v5310
  %v5504 = vpop.f32.mrf.mxu0
  %v5505 = vadd.f32 0.0, %v5504
  %v5506 = vpop.f32.mrf.mxu0
  %v5507 = vpop.f32.mrf.mxu0
  %v5508 = vadd.f32 0.0, %v5507
  %v5509 = vpop.f32.mrf.mxu0
  %5510 = vmatprep.mubr.bf16.mxu0 0
  %5511 = vmatmul.mubr.bf16.gmra.mxu0 %v5311
  %v5512 = vpop.f32.mrf.mxu0
  %v5513 = vadd.f32 0.0, %v5512
  %v5514 = vpop.f32.mrf.mxu0
  %v5515 = vpop.f32.mrf.mxu0
  %v5516 = vadd.f32 0.0, %v5515
  %v5517 = vpop.f32.mrf.mxu0
  %5518 = vmatprep.mubr.bf16.mxu0 0
  %5519 = vmatmul.mubr.bf16.gmra.mxu0 %v5312
  %v5520 = vpop.f32.mrf.mxu0
  %v5521 = vadd.f32 0.0, %v5520
  %v5522 = vpop.f32.mrf.mxu0
  %v5523 = vpop.f32.mrf.mxu0
  %v5524 = vadd.f32 0.0, %v5523
  %v5525 = vpop.f32.mrf.mxu0
  %5526 = vmatprep.mubr.bf16.mxu0 0
  %5527 = vmatmul.mubr.bf16.gmra.mxu0 %v5313
  %v5528 = vpop.f32.mrf.mxu0
  %v5529 = vadd.f32 0.0, %v5528
  %v5530 = vpop.f32.mrf.mxu0
  %v5531 = vpop.f32.mrf.mxu0
  %v5532 = vadd.f32 0.0, %v5531
  %v5533 = vpop.f32.mrf.mxu0
  %5534 = vmatprep.mubr.bf16.mxu0 0
  %5535 = vmatmul.mubr.bf16.gmra.mxu0 %v5314
  %v5536 = vpop.f32.mrf.mxu0
  %v5537 = vadd.f32 0.0, %v5536
  %v5538 = vpop.f32.mrf.mxu0
  %v5539 = vpop.f32.mrf.mxu0
  %v5540 = vadd.f32 0.0, %v5539
  %v5541 = vpop.f32.mrf.mxu0
  %5542 = vmatprep.mubr.bf16.mxu0 0
  %5543 = vmatmul.mubr.bf16.gmra.mxu0 %v5315
  %v5544 = vpop.f32.mrf.mxu0
  %v5545 = vadd.f32 0.0, %v5544
  %v5546 = vpop.f32.mrf.mxu0
  %v5547 = vpop.f32.mrf.mxu0
  %v5548 = vadd.f32 0.0, %v5547
  %v5549 = vpop.f32.mrf.mxu0
  %5550 = vmatprep.mubr.bf16.mxu0 0
  %5551 = vmatmul.mubr.bf16.gmra.mxu0 %v5316
  %v5552 = vpop.f32.mrf.mxu0
  %v5553 = vadd.f32 0.0, %v5552
  %v5554 = vpop.f32.mrf.mxu0
  %v5555 = vpop.f32.mrf.mxu0
  %v5556 = vadd.f32 0.0, %v5555
  %v5557 = vpop.f32.mrf.mxu0
  %5558 = vdwg.mxu0
  %v5559 = vadd.f32 %v5227, %v5417
  %v5560 = vadd.f32 %v5228, %v5420
  %v5561 = vadd.f32 %v5229, %v5425
  %v5562 = vadd.f32 %v5230, %v5428
  %v5563 = vadd.f32 %v5231, %v5433
  %v5564 = vadd.f32 %v5232, %v5436
  %v5565 = vadd.f32 %v5233, %v5441
  %v5566 = vadd.f32 %v5234, %v5444
  %v5567 = vadd.f32 %v5235, %v5449
  %v5568 = vadd.f32 %v5236, %v5452
  %v5569 = vadd.f32 %v5237, %v5457
  %v5570 = vadd.f32 %v5238, %v5460
  %v5571 = vadd.f32 %v5239, %v5465
  %v5572 = vadd.f32 %v5240, %v5468
  %v5573 = vadd.f32 %v5241, %v5473
  %v5574 = vadd.f32 %v5242, %v5476
  %v5575 = vadd.f32 %v5243, %v5481
  %v5576 = vadd.f32 %v5244, %v5484
  %v5577 = vadd.f32 %v5245, %v5489
  %v5578 = vadd.f32 %v5246, %v5492
  %v5579 = vadd.f32 %v5247, %v5497
  %v5580 = vadd.f32 %v5248, %v5500
  %v5581 = vadd.f32 %v5249, %v5505
  %v5582 = vadd.f32 %v5250, %v5508
  %v5583 = vadd.f32 %v5251, %v5513
  %v5584 = vadd.f32 %v5252, %v5516
  %v5585 = vadd.f32 %v5253, %v5521
  %v5586 = vadd.f32 %v5254, %v5524
  %v5587 = vadd.f32 %v5255, %v5529
  %v5588 = vadd.f32 %v5256, %v5532
  %v5589 = vadd.f32 %v5257, %v5537
  %v5590 = vadd.f32 %v5258, %v5540
  %v5591 = vadd.f32 %v5259, %v5545
  %v5592 = vadd.f32 %v5260, %v5548
  %v5593 = vadd.f32 %v5261, %v5553
  %v5594 = vadd.f32 %v5262, %v5556
  %v5595 = vld [vmem:[#allocation2 + $0x246] sm:$0xff]
  %v5596 = vld [vmem:[#allocation2 + $0x24e] sm:$0xff]
  %v5597 = vld [vmem:[#allocation2 + $0x256] sm:$0xff]
  %v5598 = vld [vmem:[#allocation2 + $0x25e] sm:$0xff]
  %v5599 = vld [vmem:[#allocation2 + $0x266] sm:$0xff]
  %v5600 = vld [vmem:[#allocation2 + $0x26e] sm:$0xff]
  %v5601 = vld [vmem:[#allocation2 + $0x276] sm:$0xff]
  %v5602 = vld [vmem:[#allocation2 + $0x27e] sm:$0xff]
  %v5603 = vld [vmem:[#allocation2 + $0x286] sm:$0xff]
  %v5604 = vld [vmem:[#allocation2 + $0x28e] sm:$0xff]
  %v5605 = vld [vmem:[#allocation2 + $0x296] sm:$0xff]
  %v5606 = vld [vmem:[#allocation2 + $0x29e] sm:$0xff]
  %v5607 = vld [vmem:[#allocation2 + $0x2a6] sm:$0xff]
  %v5608 = vld [vmem:[#allocation2 + $0x2ae] sm:$0xff]
  %v5609 = vld [vmem:[#allocation2 + $0x2b6] sm:$0xff]
  %v5610 = vld [vmem:[#allocation2 + $0x2be] sm:$0xff]
  %v5611 = vld [vmem:[#allocation2 + $0x2c6] sm:$0xff]
  %v5612 = vld [vmem:[#allocation2 + $0x2ce] sm:$0xff]
  %v5613 = vld [vmem:[#allocation2 + $0x2d6] sm:$0xff]
  %v5614 = vld [vmem:[#allocation2 + $0x2de] sm:$0xff]
  %v5615 = vld [vmem:[#allocation2 + $0x2e6] sm:$0xff]
  %v5616 = vld [vmem:[#allocation2 + $0x2ee] sm:$0xff]
  %v5617 = vld [vmem:[#allocation2 + $0x2f6] sm:$0xff]
  %v5618 = vld [vmem:[#allocation2 + $0x2fe] sm:$0xff]
  %v5619 = vld [vmem:[#allocation2 + $0x306] sm:$0xff]
  %v5620 = vld [vmem:[#allocation2 + $0x30e] sm:$0xff]
  %v5621 = vld [vmem:[#allocation2 + $0x316] sm:$0xff]
  %v5622 = vld [vmem:[#allocation2 + $0x31e] sm:$0xff]
  %v5623 = vld [vmem:[#allocation2 + $0x326] sm:$0xff]
  %v5624 = vld [vmem:[#allocation2 + $0x32e] sm:$0xff]
  %v5625 = vld [vmem:[#allocation2 + $0x336] sm:$0xff]
  %v5626 = vld [vmem:[#allocation2 + $0x33e] sm:$0xff]
  %v5627 = vld [vmem:[#allocation2 + $0x346] sm:$0xff]
  %v5628 = vld [vmem:[#allocation2 + $0x34e] sm:$0xff]
  %v5629 = vld [vmem:[#allocation2 + $0x356] sm:$0xff]
  %v5630 = vld [vmem:[#allocation2 + $0x35e] sm:$0x1]
  %v5631 = vpack.c.bf16 %v5596, %v5595
  %v5632 = vpack.c.bf16 %v5598, %v5597
  %v5633 = vpack.c.bf16 %v5600, %v5599
  %v5634 = vpack.c.bf16 %v5602, %v5601
  %v5635 = vpack.c.bf16 %v5604, %v5603
  %v5636 = vpack.c.bf16 %v5606, %v5605
  %v5637 = vpack.c.bf16 %v5608, %v5607
  %v5638 = vpack.c.bf16 %v5610, %v5609
  %v5639 = vpack.c.bf16 %v5612, %v5611
  %v5640 = vpack.c.bf16 %v5614, %v5613
  %v5641 = vpack.c.bf16 %v5616, %v5615
  %v5642 = vpack.c.bf16 %v5618, %v5617
  %v5643 = vpack.c.bf16 %v5620, %v5619
  %v5644 = vpack.c.bf16 %v5622, %v5621
  %v5645 = vpack.c.bf16 %v5624, %v5623
  %v5646 = vpack.c.bf16 %v5626, %v5625
  %v5647 = vpack.c.bf16 %v5628, %v5627
  %v5648 = vpack.c.bf16 %v5630, %v5629
  %s5649 = scalar_lea.vmem %s3, 768
  %v5650 = vld [vmem:[%s5649] sm:$0xf]
  %v5651 = vld [vmem:[%s5649 + $0x4] sm:$0xf]
  %v5652 = vld [vmem:[%s5649 + $0x8] sm:$0xf]
  %v5653 = vld [vmem:[%s5649 + $0xc] sm:$0xf]
  %v5654 = vld [vmem:[%s5649 + $0x10] sm:$0xf]
  %v5655 = vld [vmem:[%s5649 + $0x14] sm:$0xf]
  %v5656 = vld [vmem:[%s5649 + $0x18] sm:$0xf]
  %v5657 = vld [vmem:[%s5649 + $0x1c] sm:$0xf]
  %v5658 = vld [vmem:[%s5649 + $0x20] sm:$0xf]
  %v5659 = vld [vmem:[%s5649 + $0x24] sm:$0xf]
  %v5660 = vld [vmem:[%s5649 + $0x28] sm:$0xf]
  %v5661 = vld [vmem:[%s5649 + $0x2c] sm:$0xf]
  %v5662 = vld [vmem:[%s5649 + $0x30] sm:$0xf]
  %v5663 = vld [vmem:[%s5649 + $0x34] sm:$0xf]
  %v5664 = vld [vmem:[%s5649 + $0x38] sm:$0xf]
  %v5665 = vld [vmem:[%s5649 + $0x3c] sm:$0xf]
  %v5682 = vunpack.c.l.b16 %v5650
  %v5683 = vunpack.c.l.b16 %v5651
  %v5684 = vunpack.c.l.b16 %v5652
  %v5685 = vunpack.c.l.b16 %v5653
  %v5686 = vunpack.c.l.b16 %v5654
  %v5687 = vunpack.c.l.b16 %v5655
  %v5688 = vunpack.c.l.b16 %v5656
  %v5689 = vunpack.c.l.b16 %v5657
  %v5690 = vunpack.c.l.b16 %v5658
  %v5691 = vunpack.c.l.b16 %v5659
  %v5692 = vunpack.c.l.b16 %v5660
  %v5693 = vunpack.c.l.b16 %v5661
  %v5694 = vunpack.c.l.b16 %v5662
  %v5695 = vunpack.c.l.b16 %v5663
  %v5696 = vunpack.c.l.b16 %v5664
  %v5697 = vunpack.c.l.b16 %v5665
  %v5698 = vpack.c.b16 %v5683, %v5682
  %v5699 = vpack.c.b16 %v5685, %v5684
  %v5700 = vpack.c.b16 %v5687, %v5686
  %v5701 = vpack.c.b16 %v5689, %v5688
  %v5702 = vpack.c.b16 %v5691, %v5690
  %v5703 = vpack.c.b16 %v5693, %v5692
  %v5704 = vpack.c.b16 %v5695, %v5694
  %v5705 = vpack.c.b16 %v5697, %v5696
  %5714 = vmatprep.subr.bf16.mxu0 0
  %5715 = vmatpush1.bf16.msra.mxu0 %v5705
  %5716 = vmatprep.subr.bf16.mxu0 0
  %5717 = vmatpush1.bf16.msra.mxu0 %v5704
  %5718 = vmatprep.subr.bf16.mxu0 0
  %5719 = vmatpush1.bf16.msra.mxu0 %v5703
  %5720 = vmatprep.subr.bf16.mxu0 0
  %5721 = vmatpush1.bf16.msra.mxu0 %v5702
  %5722 = vmatprep.subr.bf16.mxu0 0
  %5723 = vmatpush1.bf16.msra.mxu0 %v5701
  %5724 = vmatprep.subr.bf16.mxu0 0
  %5725 = vmatpush1.bf16.msra.mxu0 %v5700
  %5726 = vmatprep.subr.bf16.mxu0 0
  %5727 = vmatpush1.bf16.msra.mxu0 %v5699
  %5728 = vmatprep.subr.bf16.mxu0 0
  %5729 = vmatpush1.bf16.msra.mxu0 %v5698
  %5730 = vmatprep.subr.bf16.mxu0 0
  %5731 = vmatpush2.bf16.msra.mxu0 0
  %5732 = vmatprep.subr.bf16.mxu0 0
  %5733 = vmatpush2.bf16.msra.mxu0 0
  %5734 = vmatprep.subr.bf16.mxu0 0
  %5735 = vmatpush2.bf16.msra.mxu0 0
  %5736 = vmatprep.subr.bf16.mxu0 0
  %5737 = vmatpush2.bf16.msra.mxu0 0
  %5738 = vmatprep.subr.bf16.mxu0 0
  %5739 = vmatpush2.bf16.msra.mxu0 0
  %5740 = vmatprep.subr.bf16.mxu0 0
  %5741 = vmatpush2.bf16.msra.mxu0 0
  %5742 = vmatprep.subr.bf16.mxu0 0
  %5743 = vmatpush2.bf16.msra.mxu0 0
  %5744 = vmatprep.subr.bf16.mxu0 0
  %5745 = vmatpush2.bf16.msra.mxu0 0
  %5746 = vmatprep.mubr.bf16.mxu0 0
  %5747 = vmatmul.mubr.bf16.gmra.mxu0 %v5631
  %v5748 = vpop.f32.mrf.mxu0
  %v5749 = vadd.f32 0.0, %v5748
  %v5750 = vpop.f32.mrf.mxu0
  %v5751 = vpop.f32.mrf.mxu0
  %v5752 = vadd.f32 0.0, %v5751
  %v5753 = vpop.f32.mrf.mxu0
  %5754 = vmatprep.mubr.bf16.mxu0 0
  %5755 = vmatmul.mubr.bf16.gmra.mxu0 %v5632
  %v5756 = vpop.f32.mrf.mxu0
  %v5757 = vadd.f32 0.0, %v5756
  %v5758 = vpop.f32.mrf.mxu0
  %v5759 = vpop.f32.mrf.mxu0
  %v5760 = vadd.f32 0.0, %v5759
  %v5761 = vpop.f32.mrf.mxu0
  %5762 = vmatprep.mubr.bf16.mxu0 0
  %5763 = vmatmul.mubr.bf16.gmra.mxu0 %v5633
  %v5764 = vpop.f32.mrf.mxu0
  %v5765 = vadd.f32 0.0, %v5764
  %v5766 = vpop.f32.mrf.mxu0
  %v5767 = vpop.f32.mrf.mxu0
  %v5768 = vadd.f32 0.0, %v5767
  %v5769 = vpop.f32.mrf.mxu0
  %5770 = vmatprep.mubr.bf16.mxu0 0
  %5771 = vmatmul.mubr.bf16.gmra.mxu0 %v5634
  %v5772 = vpop.f32.mrf.mxu0
  %v5773 = vadd.f32 0.0, %v5772
  %v5774 = vpop.f32.mrf.mxu0
  %v5775 = vpop.f32.mrf.mxu0
  %v5776 = vadd.f32 0.0, %v5775
  %v5777 = vpop.f32.mrf.mxu0
  %5778 = vmatprep.mubr.bf16.mxu0 0
  %5779 = vmatmul.mubr.bf16.gmra.mxu0 %v5635
  %v5780 = vpop.f32.mrf.mxu0
  %v5781 = vadd.f32 0.0, %v5780
  %v5782 = vpop.f32.mrf.mxu0
  %v5783 = vpop.f32.mrf.mxu0
  %v5784 = vadd.f32 0.0, %v5783
  %v5785 = vpop.f32.mrf.mxu0
  %5786 = vmatprep.mubr.bf16.mxu0 0
  %5787 = vmatmul.mubr.bf16.gmra.mxu0 %v5636
  %v5788 = vpop.f32.mrf.mxu0
  %v5789 = vadd.f32 0.0, %v5788
  %v5790 = vpop.f32.mrf.mxu0
  %v5791 = vpop.f32.mrf.mxu0
  %v5792 = vadd.f32 0.0, %v5791
  %v5793 = vpop.f32.mrf.mxu0
  %5794 = vmatprep.mubr.bf16.mxu0 0
  %5795 = vmatmul.mubr.bf16.gmra.mxu0 %v5637
  %v5796 = vpop.f32.mrf.mxu0
  %v5797 = vadd.f32 0.0, %v5796
  %v5798 = vpop.f32.mrf.mxu0
  %v5799 = vpop.f32.mrf.mxu0
  %v5800 = vadd.f32 0.0, %v5799
  %v5801 = vpop.f32.mrf.mxu0
  %5802 = vmatprep.mubr.bf16.mxu0 0
  %5803 = vmatmul.mubr.bf16.gmra.mxu0 %v5638
  %v5804 = vpop.f32.mrf.mxu0
  %v5805 = vadd.f32 0.0, %v5804
  %v5806 = vpop.f32.mrf.mxu0
  %v5807 = vpop.f32.mrf.mxu0
  %v5808 = vadd.f32 0.0, %v5807
  %v5809 = vpop.f32.mrf.mxu0
  %5810 = vmatprep.mubr.bf16.mxu0 0
  %5811 = vmatmul.mubr.bf16.gmra.mxu0 %v5639
  %v5812 = vpop.f32.mrf.mxu0
  %v5813 = vadd.f32 0.0, %v5812
  %v5814 = vpop.f32.mrf.mxu0
  %v5815 = vpop.f32.mrf.mxu0
  %v5816 = vadd.f32 0.0, %v5815
  %v5817 = vpop.f32.mrf.mxu0
  %5818 = vmatprep.mubr.bf16.mxu0 0
  %5819 = vmatmul.mubr.bf16.gmra.mxu0 %v5640
  %v5820 = vpop.f32.mrf.mxu0
  %v5821 = vadd.f32 0.0, %v5820
  %v5822 = vpop.f32.mrf.mxu0
  %v5823 = vpop.f32.mrf.mxu0
  %v5824 = vadd.f32 0.0, %v5823
  %v5825 = vpop.f32.mrf.mxu0
  %5826 = vmatprep.mubr.bf16.mxu0 0
  %5827 = vmatmul.mubr.bf16.gmra.mxu0 %v5641
  %v5828 = vpop.f32.mrf.mxu0
  %v5829 = vadd.f32 0.0, %v5828
  %v5830 = vpop.f32.mrf.mxu0
  %v5831 = vpop.f32.mrf.mxu0
  %v5832 = vadd.f32 0.0, %v5831
  %v5833 = vpop.f32.mrf.mxu0
  %5834 = vmatprep.mubr.bf16.mxu0 0
  %5835 = vmatmul.mubr.bf16.gmra.mxu0 %v5642
  %v5836 = vpop.f32.mrf.mxu0
  %v5837 = vadd.f32 0.0, %v5836
  %v5838 = vpop.f32.mrf.mxu0
  %v5839 = vpop.f32.mrf.mxu0
  %v5840 = vadd.f32 0.0, %v5839
  %v5841 = vpop.f32.mrf.mxu0
  %5842 = vmatprep.mubr.bf16.mxu0 0
  %5843 = vmatmul.mubr.bf16.gmra.mxu0 %v5643
  %v5844 = vpop.f32.mrf.mxu0
  %v5845 = vadd.f32 0.0, %v5844
  %v5846 = vpop.f32.mrf.mxu0
  %v5847 = vpop.f32.mrf.mxu0
  %v5848 = vadd.f32 0.0, %v5847
  %v5849 = vpop.f32.mrf.mxu0
  %5850 = vmatprep.mubr.bf16.mxu0 0
  %5851 = vmatmul.mubr.bf16.gmra.mxu0 %v5644
  %v5852 = vpop.f32.mrf.mxu0
  %v5853 = vadd.f32 0.0, %v5852
  %v5854 = vpop.f32.mrf.mxu0
  %v5855 = vpop.f32.mrf.mxu0
  %v5856 = vadd.f32 0.0, %v5855
  %v5857 = vpop.f32.mrf.mxu0
  %5858 = vmatprep.mubr.bf16.mxu0 0
  %5859 = vmatmul.mubr.bf16.gmra.mxu0 %v5645
  %v5860 = vpop.f32.mrf.mxu0
  %v5861 = vadd.f32 0.0, %v5860
  %v5862 = vpop.f32.mrf.mxu0
  %v5863 = vpop.f32.mrf.mxu0
  %v5864 = vadd.f32 0.0, %v5863
  %v5865 = vpop.f32.mrf.mxu0
  %5866 = vmatprep.mubr.bf16.mxu0 0
  %5867 = vmatmul.mubr.bf16.gmra.mxu0 %v5646
  %v5868 = vpop.f32.mrf.mxu0
  %v5869 = vadd.f32 0.0, %v5868
  %v5870 = vpop.f32.mrf.mxu0
  %v5871 = vpop.f32.mrf.mxu0
  %v5872 = vadd.f32 0.0, %v5871
  %v5873 = vpop.f32.mrf.mxu0
  %5874 = vmatprep.mubr.bf16.mxu0 0
  %5875 = vmatmul.mubr.bf16.gmra.mxu0 %v5647
  %v5876 = vpop.f32.mrf.mxu0
  %v5877 = vadd.f32 0.0, %v5876
  %v5878 = vpop.f32.mrf.mxu0
  %v5879 = vpop.f32.mrf.mxu0
  %v5880 = vadd.f32 0.0, %v5879
  %v5881 = vpop.f32.mrf.mxu0
  %5882 = vmatprep.mubr.bf16.mxu0 0
  %5883 = vmatmul.mubr.bf16.gmra.mxu0 %v5648
  %v5884 = vpop.f32.mrf.mxu0
  %v5885 = vadd.f32 0.0, %v5884
  %v5886 = vpop.f32.mrf.mxu0
  %v5887 = vpop.f32.mrf.mxu0
  %v5888 = vadd.f32 0.0, %v5887
  %v5889 = vpop.f32.mrf.mxu0
  %5890 = vdwg.mxu0
  %v5891 = vadd.f32 %v5559, %v5749
  %v5892 = vadd.f32 %v5560, %v5752
  %v5893 = vadd.f32 %v5561, %v5757
  %v5894 = vadd.f32 %v5562, %v5760
  %v5895 = vadd.f32 %v5563, %v5765
  %v5896 = vadd.f32 %v5564, %v5768
  %v5897 = vadd.f32 %v5565, %v5773
  %v5898 = vadd.f32 %v5566, %v5776
  %v5899 = vadd.f32 %v5567, %v5781
  %v5900 = vadd.f32 %v5568, %v5784
  %v5901 = vadd.f32 %v5569, %v5789
  %v5902 = vadd.f32 %v5570, %v5792
  %v5903 = vadd.f32 %v5571, %v5797
  %v5904 = vadd.f32 %v5572, %v5800
  %v5905 = vadd.f32 %v5573, %v5805
  %v5906 = vadd.f32 %v5574, %v5808
  %v5907 = vadd.f32 %v5575, %v5813
  %v5908 = vadd.f32 %v5576, %v5816
  %v5909 = vadd.f32 %v5577, %v5821
  %v5910 = vadd.f32 %v5578, %v5824
  %v5911 = vadd.f32 %v5579, %v5829
  %v5912 = vadd.f32 %v5580, %v5832
  %v5913 = vadd.f32 %v5581, %v5837
  %v5914 = vadd.f32 %v5582, %v5840
  %v5915 = vadd.f32 %v5583, %v5845
  %v5916 = vadd.f32 %v5584, %v5848
  %v5917 = vadd.f32 %v5585, %v5853
  %v5918 = vadd.f32 %v5586, %v5856
  %v5919 = vadd.f32 %v5587, %v5861
  %v5920 = vadd.f32 %v5588, %v5864
  %v5921 = vadd.f32 %v5589, %v5869
  %v5922 = vadd.f32 %v5590, %v5872
  %v5923 = vadd.f32 %v5591, %v5877
  %v5924 = vadd.f32 %v5592, %v5880
  %v5925 = vadd.f32 %v5593, %v5885
  %v5926 = vadd.f32 %v5594, %v5888
  %v5927 = vld [vmem:[#allocation2 + $0x366] sm:$0xff]
  %v5928 = vld [vmem:[#allocation2 + $0x36e] sm:$0xff]
  %v5929 = vld [vmem:[#allocation2 + $0x376] sm:$0xff]
  %v5930 = vld [vmem:[#allocation2 + $0x37e] sm:$0xff]
  %v5931 = vld [vmem:[#allocation2 + $0x386] sm:$0xff]
  %v5932 = vld [vmem:[#allocation2 + $0x38e] sm:$0xff]
  %v5933 = vld [vmem:[#allocation2 + $0x396] sm:$0xff]
  %v5934 = vld [vmem:[#allocation2 + $0x39e] sm:$0xff]
  %v5935 = vld [vmem:[#allocation2 + $0x3a6] sm:$0xff]
  %v5936 = vld [vmem:[#allocation2 + $0x3ae] sm:$0xff]
  %v5937 = vld [vmem:[#allocation2 + $0x3b6] sm:$0xff]
  %v5938 = vld [vmem:[#allocation2 + $0x3be] sm:$0xff]
  %v5939 = vld [vmem:[#allocation2 + $0x3c6] sm:$0xff]
  %v5940 = vld [vmem:[#allocation2 + $0x3ce] sm:$0xff]
  %v5941 = vld [vmem:[#allocation2 + $0x3d6] sm:$0xff]
  %v5942 = vld [vmem:[#allocation2 + $0x3de] sm:$0xff]
  %v5943 = vld [vmem:[#allocation2 + $0x3e6] sm:$0xff]
  %v5944 = vld [vmem:[#allocation2 + $0x3ee] sm:$0xff]
  %v5945 = vld [vmem:[#allocation2 + $0x3f6] sm:$0xff]
  %v5946 = vld [vmem:[#allocation2 + $0x3fe] sm:$0xff]
  %v5947 = vld [vmem:[#allocation2 + $0x406] sm:$0xff]
  %v5948 = vld [vmem:[#allocation2 + $0x40e] sm:$0xff]
  %v5949 = vld [vmem:[#allocation2 + $0x416] sm:$0xff]
  %v5950 = vld [vmem:[#allocation2 + $0x41e] sm:$0xff]
  %v5951 = vld [vmem:[#allocation2 + $0x426] sm:$0xff]
  %v5952 = vld [vmem:[#allocation2 + $0x42e] sm:$0xff]
  %v5953 = vld [vmem:[#allocation2 + $0x436] sm:$0xff]
  %v5954 = vld [vmem:[#allocation2 + $0x43e] sm:$0xff]
  %v5955 = vld [vmem:[#allocation2 + $0x446] sm:$0xff]
  %v5956 = vld [vmem:[#allocation2 + $0x44e] sm:$0xff]
  %v5957 = vld [vmem:[#allocation2 + $0x456] sm:$0xff]
  %v5958 = vld [vmem:[#allocation2 + $0x45e] sm:$0xff]
  %v5959 = vld [vmem:[#allocation2 + $0x466] sm:$0xff]
  %v5960 = vld [vmem:[#allocation2 + $0x46e] sm:$0xff]
  %v5961 = vld [vmem:[#allocation2 + $0x476] sm:$0xff]
  %v5962 = vld [vmem:[#allocation2 + $0x47e] sm:$0x1]
  %v5963 = vpack.c.bf16 %v5928, %v5927
  %v5964 = vpack.c.bf16 %v5930, %v5929
  %v5965 = vpack.c.bf16 %v5932, %v5931
  %v5966 = vpack.c.bf16 %v5934, %v5933
  %v5967 = vpack.c.bf16 %v5936, %v5935
  %v5968 = vpack.c.bf16 %v5938, %v5937
  %v5969 = vpack.c.bf16 %v5940, %v5939
  %v5970 = vpack.c.bf16 %v5942, %v5941
  %v5971 = vpack.c.bf16 %v5944, %v5943
  %v5972 = vpack.c.bf16 %v5946, %v5945
  %v5973 = vpack.c.bf16 %v5948, %v5947
  %v5974 = vpack.c.bf16 %v5950, %v5949
  %v5975 = vpack.c.bf16 %v5952, %v5951
  %v5976 = vpack.c.bf16 %v5954, %v5953
  %v5977 = vpack.c.bf16 %v5956, %v5955
  %v5978 = vpack.c.bf16 %v5958, %v5957
  %v5979 = vpack.c.bf16 %v5960, %v5959
  %v5980 = vpack.c.bf16 %v5962, %v5961
  %s5981 = scalar_lea.vmem %s3, 832
  %v5982 = vld [vmem:[%s5981] sm:$0xf]
  %v5983 = vld [vmem:[%s5981 + $0x4] sm:$0xf]
  %v5984 = vld [vmem:[%s5981 + $0x8] sm:$0xf]
  %v5985 = vld [vmem:[%s5981 + $0xc] sm:$0xf]
  %v5986 = vld [vmem:[%s5981 + $0x10] sm:$0xf]
  %v5987 = vld [vmem:[%s5981 + $0x14] sm:$0xf]
  %v5988 = vld [vmem:[%s5981 + $0x18] sm:$0xf]
  %v5989 = vld [vmem:[%s5981 + $0x1c] sm:$0xf]
  %v5990 = vld [vmem:[%s5981 + $0x20] sm:$0xf]
  %v5991 = vld [vmem:[%s5981 + $0x24] sm:$0xf]
  %v5992 = vld [vmem:[%s5981 + $0x28] sm:$0xf]
  %v5993 = vld [vmem:[%s5981 + $0x2c] sm:$0xf]
  %v5994 = vld [vmem:[%s5981 + $0x30] sm:$0xf]
  %v5995 = vld [vmem:[%s5981 + $0x34] sm:$0xf]
  %v5996 = vld [vmem:[%s5981 + $0x38] sm:$0xf]
  %v5997 = vld [vmem:[%s5981 + $0x3c] sm:$0xf]
  %v6014 = vunpack.c.l.b16 %v5982
  %v6015 = vunpack.c.l.b16 %v5983
  %v6016 = vunpack.c.l.b16 %v5984
  %v6017 = vunpack.c.l.b16 %v5985
  %v6018 = vunpack.c.l.b16 %v5986
  %v6019 = vunpack.c.l.b16 %v5987
  %v6020 = vunpack.c.l.b16 %v5988
  %v6021 = vunpack.c.l.b16 %v5989
  %v6022 = vunpack.c.l.b16 %v5990
  %v6023 = vunpack.c.l.b16 %v5991
  %v6024 = vunpack.c.l.b16 %v5992
  %v6025 = vunpack.c.l.b16 %v5993
  %v6026 = vunpack.c.l.b16 %v5994
  %v6027 = vunpack.c.l.b16 %v5995
  %v6028 = vunpack.c.l.b16 %v5996
  %v6029 = vunpack.c.l.b16 %v5997
  %v6030 = vpack.c.b16 %v6015, %v6014
  %v6031 = vpack.c.b16 %v6017, %v6016
  %v6032 = vpack.c.b16 %v6019, %v6018
  %v6033 = vpack.c.b16 %v6021, %v6020
  %v6034 = vpack.c.b16 %v6023, %v6022
  %v6035 = vpack.c.b16 %v6025, %v6024
  %v6036 = vpack.c.b16 %v6027, %v6026
  %v6037 = vpack.c.b16 %v6029, %v6028
  %6046 = vmatprep.subr.bf16.mxu0 0
  %6047 = vmatpush1.bf16.msra.mxu0 %v6037
  %6048 = vmatprep.subr.bf16.mxu0 0
  %6049 = vmatpush1.bf16.msra.mxu0 %v6036
  %6050 = vmatprep.subr.bf16.mxu0 0
  %6051 = vmatpush1.bf16.msra.mxu0 %v6035
  %6052 = vmatprep.subr.bf16.mxu0 0
  %6053 = vmatpush1.bf16.msra.mxu0 %v6034
  %6054 = vmatprep.subr.bf16.mxu0 0
  %6055 = vmatpush1.bf16.msra.mxu0 %v6033
  %6056 = vmatprep.subr.bf16.mxu0 0
  %6057 = vmatpush1.bf16.msra.mxu0 %v6032
  %6058 = vmatprep.subr.bf16.mxu0 0
  %6059 = vmatpush1.bf16.msra.mxu0 %v6031
  %6060 = vmatprep.subr.bf16.mxu0 0
  %6061 = vmatpush1.bf16.msra.mxu0 %v6030
  %6062 = vmatprep.subr.bf16.mxu0 0
  %6063 = vmatpush2.bf16.msra.mxu0 0
  %6064 = vmatprep.subr.bf16.mxu0 0
  %6065 = vmatpush2.bf16.msra.mxu0 0
  %6066 = vmatprep.subr.bf16.mxu0 0
  %6067 = vmatpush2.bf16.msra.mxu0 0
  %6068 = vmatprep.subr.bf16.mxu0 0
  %6069 = vmatpush2.bf16.msra.mxu0 0
  %6070 = vmatprep.subr.bf16.mxu0 0
  %6071 = vmatpush2.bf16.msra.mxu0 0
  %6072 = vmatprep.subr.bf16.mxu0 0
  %6073 = vmatpush2.bf16.msra.mxu0 0
  %6074 = vmatprep.subr.bf16.mxu0 0
  %6075 = vmatpush2.bf16.msra.mxu0 0
  %6076 = vmatprep.subr.bf16.mxu0 0
  %6077 = vmatpush2.bf16.msra.mxu0 0
  %6078 = vmatprep.mubr.bf16.mxu0 0
  %6079 = vmatmul.mubr.bf16.gmra.mxu0 %v5963
  %v6080 = vpop.f32.mrf.mxu0
  %v6081 = vadd.f32 0.0, %v6080
  %v6082 = vpop.f32.mrf.mxu0
  %v6083 = vpop.f32.mrf.mxu0
  %v6084 = vadd.f32 0.0, %v6083
  %v6085 = vpop.f32.mrf.mxu0
  %6086 = vmatprep.mubr.bf16.mxu0 0
  %6087 = vmatmul.mubr.bf16.gmra.mxu0 %v5964
  %v6088 = vpop.f32.mrf.mxu0
  %v6089 = vadd.f32 0.0, %v6088
  %v6090 = vpop.f32.mrf.mxu0
  %v6091 = vpop.f32.mrf.mxu0
  %v6092 = vadd.f32 0.0, %v6091
  %v6093 = vpop.f32.mrf.mxu0
  %6094 = vmatprep.mubr.bf16.mxu0 0
  %6095 = vmatmul.mubr.bf16.gmra.mxu0 %v5965
  %v6096 = vpop.f32.mrf.mxu0
  %v6097 = vadd.f32 0.0, %v6096
  %v6098 = vpop.f32.mrf.mxu0
  %v6099 = vpop.f32.mrf.mxu0
  %v6100 = vadd.f32 0.0, %v6099
  %v6101 = vpop.f32.mrf.mxu0
  %6102 = vmatprep.mubr.bf16.mxu0 0
  %6103 = vmatmul.mubr.bf16.gmra.mxu0 %v5966
  %v6104 = vpop.f32.mrf.mxu0
  %v6105 = vadd.f32 0.0, %v6104
  %v6106 = vpop.f32.mrf.mxu0
  %v6107 = vpop.f32.mrf.mxu0
  %v6108 = vadd.f32 0.0, %v6107
  %v6109 = vpop.f32.mrf.mxu0
  %6110 = vmatprep.mubr.bf16.mxu0 0
  %6111 = vmatmul.mubr.bf16.gmra.mxu0 %v5967
  %v6112 = vpop.f32.mrf.mxu0
  %v6113 = vadd.f32 0.0, %v6112
  %v6114 = vpop.f32.mrf.mxu0
  %v6115 = vpop.f32.mrf.mxu0
  %v6116 = vadd.f32 0.0, %v6115
  %v6117 = vpop.f32.mrf.mxu0
  %6118 = vmatprep.mubr.bf16.mxu0 0
  %6119 = vmatmul.mubr.bf16.gmra.mxu0 %v5968
  %v6120 = vpop.f32.mrf.mxu0
  %v6121 = vadd.f32 0.0, %v6120
  %v6122 = vpop.f32.mrf.mxu0
  %v6123 = vpop.f32.mrf.mxu0
  %v6124 = vadd.f32 0.0, %v6123
  %v6125 = vpop.f32.mrf.mxu0
  %6126 = vmatprep.mubr.bf16.mxu0 0
  %6127 = vmatmul.mubr.bf16.gmra.mxu0 %v5969
  %v6128 = vpop.f32.mrf.mxu0
  %v6129 = vadd.f32 0.0, %v6128
  %v6130 = vpop.f32.mrf.mxu0
  %v6131 = vpop.f32.mrf.mxu0
  %v6132 = vadd.f32 0.0, %v6131
  %v6133 = vpop.f32.mrf.mxu0
  %6134 = vmatprep.mubr.bf16.mxu0 0
  %6135 = vmatmul.mubr.bf16.gmra.mxu0 %v5970
  %v6136 = vpop.f32.mrf.mxu0
  %v6137 = vadd.f32 0.0, %v6136
  %v6138 = vpop.f32.mrf.mxu0
  %v6139 = vpop.f32.mrf.mxu0
  %v6140 = vadd.f32 0.0, %v6139
  %v6141 = vpop.f32.mrf.mxu0
  %6142 = vmatprep.mubr.bf16.mxu0 0
  %6143 = vmatmul.mubr.bf16.gmra.mxu0 %v5971
  %v6144 = vpop.f32.mrf.mxu0
  %v6145 = vadd.f32 0.0, %v6144
  %v6146 = vpop.f32.mrf.mxu0
  %v6147 = vpop.f32.mrf.mxu0
  %v6148 = vadd.f32 0.0, %v6147
  %v6149 = vpop.f32.mrf.mxu0
  %6150 = vmatprep.mubr.bf16.mxu0 0
  %6151 = vmatmul.mubr.bf16.gmra.mxu0 %v5972
  %v6152 = vpop.f32.mrf.mxu0
  %v6153 = vadd.f32 0.0, %v6152
  %v6154 = vpop.f32.mrf.mxu0
  %v6155 = vpop.f32.mrf.mxu0
  %v6156 = vadd.f32 0.0, %v6155
  %v6157 = vpop.f32.mrf.mxu0
  %6158 = vmatprep.mubr.bf16.mxu0 0
  %6159 = vmatmul.mubr.bf16.gmra.mxu0 %v5973
  %v6160 = vpop.f32.mrf.mxu0
  %v6161 = vadd.f32 0.0, %v6160
  %v6162 = vpop.f32.mrf.mxu0
  %v6163 = vpop.f32.mrf.mxu0
  %v6164 = vadd.f32 0.0, %v6163
  %v6165 = vpop.f32.mrf.mxu0
  %6166 = vmatprep.mubr.bf16.mxu0 0
  %6167 = vmatmul.mubr.bf16.gmra.mxu0 %v5974
  %v6168 = vpop.f32.mrf.mxu0
  %v6169 = vadd.f32 0.0, %v6168
  %v6170 = vpop.f32.mrf.mxu0
  %v6171 = vpop.f32.mrf.mxu0
  %v6172 = vadd.f32 0.0, %v6171
  %v6173 = vpop.f32.mrf.mxu0
  %6174 = vmatprep.mubr.bf16.mxu0 0
  %6175 = vmatmul.mubr.bf16.gmra.mxu0 %v5975
  %v6176 = vpop.f32.mrf.mxu0
  %v6177 = vadd.f32 0.0, %v6176
  %v6178 = vpop.f32.mrf.mxu0
  %v6179 = vpop.f32.mrf.mxu0
  %v6180 = vadd.f32 0.0, %v6179
  %v6181 = vpop.f32.mrf.mxu0
  %6182 = vmatprep.mubr.bf16.mxu0 0
  %6183 = vmatmul.mubr.bf16.gmra.mxu0 %v5976
  %v6184 = vpop.f32.mrf.mxu0
  %v6185 = vadd.f32 0.0, %v6184
  %v6186 = vpop.f32.mrf.mxu0
  %v6187 = vpop.f32.mrf.mxu0
  %v6188 = vadd.f32 0.0, %v6187
  %v6189 = vpop.f32.mrf.mxu0
  %6190 = vmatprep.mubr.bf16.mxu0 0
  %6191 = vmatmul.mubr.bf16.gmra.mxu0 %v5977
  %v6192 = vpop.f32.mrf.mxu0
  %v6193 = vadd.f32 0.0, %v6192
  %v6194 = vpop.f32.mrf.mxu0
  %v6195 = vpop.f32.mrf.mxu0
  %v6196 = vadd.f32 0.0, %v6195
  %v6197 = vpop.f32.mrf.mxu0
  %6198 = vmatprep.mubr.bf16.mxu0 0
  %6199 = vmatmul.mubr.bf16.gmra.mxu0 %v5978
  %v6200 = vpop.f32.mrf.mxu0
  %v6201 = vadd.f32 0.0, %v6200
  %v6202 = vpop.f32.mrf.mxu0
  %v6203 = vpop.f32.mrf.mxu0
  %v6204 = vadd.f32 0.0, %v6203
  %v6205 = vpop.f32.mrf.mxu0
  %6206 = vmatprep.mubr.bf16.mxu0 0
  %6207 = vmatmul.mubr.bf16.gmra.mxu0 %v5979
  %v6208 = vpop.f32.mrf.mxu0
  %v6209 = vadd.f32 0.0, %v6208
  %v6210 = vpop.f32.mrf.mxu0
  %v6211 = vpop.f32.mrf.mxu0
  %v6212 = vadd.f32 0.0, %v6211
  %v6213 = vpop.f32.mrf.mxu0
  %6214 = vmatprep.mubr.bf16.mxu0 0
  %6215 = vmatmul.mubr.bf16.gmra.mxu0 %v5980
  %v6216 = vpop.f32.mrf.mxu0
  %v6217 = vadd.f32 0.0, %v6216
  %v6218 = vpop.f32.mrf.mxu0
  %v6219 = vpop.f32.mrf.mxu0
  %v6220 = vadd.f32 0.0, %v6219
  %v6221 = vpop.f32.mrf.mxu0
  %6222 = vdwg.mxu0
  %v6223 = vadd.f32 %v5891, %v6081
  %v6224 = vadd.f32 %v5892, %v6084
  %v6225 = vadd.f32 %v5893, %v6089
  %v6226 = vadd.f32 %v5894, %v6092
  %v6227 = vadd.f32 %v5895, %v6097
  %v6228 = vadd.f32 %v5896, %v6100
  %v6229 = vadd.f32 %v5897, %v6105
  %v6230 = vadd.f32 %v5898, %v6108
  %v6231 = vadd.f32 %v5899, %v6113
  %v6232 = vadd.f32 %v5900, %v6116
  %v6233 = vadd.f32 %v5901, %v6121
  %v6234 = vadd.f32 %v5902, %v6124
  %v6235 = vadd.f32 %v5903, %v6129
  %v6236 = vadd.f32 %v5904, %v6132
  %v6237 = vadd.f32 %v5905, %v6137
  %v6238 = vadd.f32 %v5906, %v6140
  %v6239 = vadd.f32 %v5907, %v6145
  %v6240 = vadd.f32 %v5908, %v6148
  %v6241 = vadd.f32 %v5909, %v6153
  %v6242 = vadd.f32 %v5910, %v6156
  %v6243 = vadd.f32 %v5911, %v6161
  %v6244 = vadd.f32 %v5912, %v6164
  %v6245 = vadd.f32 %v5913, %v6169
  %v6246 = vadd.f32 %v5914, %v6172
  %v6247 = vadd.f32 %v5915, %v6177
  %v6248 = vadd.f32 %v5916, %v6180
  %v6249 = vadd.f32 %v5917, %v6185
  %v6250 = vadd.f32 %v5918, %v6188
  %v6251 = vadd.f32 %v5919, %v6193
  %v6252 = vadd.f32 %v5920, %v6196
  %v6253 = vadd.f32 %v5921, %v6201
  %v6254 = vadd.f32 %v5922, %v6204
  %v6255 = vadd.f32 %v5923, %v6209
  %v6256 = vadd.f32 %v5924, %v6212
  %v6257 = vadd.f32 %v5925, %v6217
  %v6258 = vadd.f32 %v5926, %v6220
  %v6259 = vld [vmem:[#allocation2 + $0x247] sm:$0xff]
  %v6260 = vld [vmem:[#allocation2 + $0x24f] sm:$0xff]
  %v6261 = vld [vmem:[#allocation2 + $0x257] sm:$0xff]
  %v6262 = vld [vmem:[#allocation2 + $0x25f] sm:$0xff]
  %v6263 = vld [vmem:[#allocation2 + $0x267] sm:$0xff]
  %v6264 = vld [vmem:[#allocation2 + $0x26f] sm:$0xff]
  %v6265 = vld [vmem:[#allocation2 + $0x277] sm:$0xff]
  %v6266 = vld [vmem:[#allocation2 + $0x27f] sm:$0xff]
  %v6267 = vld [vmem:[#allocation2 + $0x287] sm:$0xff]
  %v6268 = vld [vmem:[#allocation2 + $0x28f] sm:$0xff]
  %v6269 = vld [vmem:[#allocation2 + $0x297] sm:$0xff]
  %v6270 = vld [vmem:[#allocation2 + $0x29f] sm:$0xff]
  %v6271 = vld [vmem:[#allocation2 + $0x2a7] sm:$0xff]
  %v6272 = vld [vmem:[#allocation2 + $0x2af] sm:$0xff]
  %v6273 = vld [vmem:[#allocation2 + $0x2b7] sm:$0xff]
  %v6274 = vld [vmem:[#allocation2 + $0x2bf] sm:$0xff]
  %v6275 = vld [vmem:[#allocation2 + $0x2c7] sm:$0xff]
  %v6276 = vld [vmem:[#allocation2 + $0x2cf] sm:$0xff]
  %v6277 = vld [vmem:[#allocation2 + $0x2d7] sm:$0xff]
  %v6278 = vld [vmem:[#allocation2 + $0x2df] sm:$0xff]
  %v6279 = vld [vmem:[#allocation2 + $0x2e7] sm:$0xff]
  %v6280 = vld [vmem:[#allocation2 + $0x2ef] sm:$0xff]
  %v6281 = vld [vmem:[#allocation2 + $0x2f7] sm:$0xff]
  %v6282 = vld [vmem:[#allocation2 + $0x2ff] sm:$0xff]
  %v6283 = vld [vmem:[#allocation2 + $0x307] sm:$0xff]
  %v6284 = vld [vmem:[#allocation2 + $0x30f] sm:$0xff]
  %v6285 = vld [vmem:[#allocation2 + $0x317] sm:$0xff]
  %v6286 = vld [vmem:[#allocation2 + $0x31f] sm:$0xff]
  %v6287 = vld [vmem:[#allocation2 + $0x327] sm:$0xff]
  %v6288 = vld [vmem:[#allocation2 + $0x32f] sm:$0xff]
  %v6289 = vld [vmem:[#allocation2 + $0x337] sm:$0xff]
  %v6290 = vld [vmem:[#allocation2 + $0x33f] sm:$0xff]
  %v6291 = vld [vmem:[#allocation2 + $0x347] sm:$0xff]
  %v6292 = vld [vmem:[#allocation2 + $0x34f] sm:$0xff]
  %v6293 = vld [vmem:[#allocation2 + $0x357] sm:$0xff]
  %v6294 = vld [vmem:[#allocation2 + $0x35f] sm:$0x1]
  %v6295 = vpack.c.bf16 %v6260, %v6259
  %v6296 = vpack.c.bf16 %v6262, %v6261
  %v6297 = vpack.c.bf16 %v6264, %v6263
  %v6298 = vpack.c.bf16 %v6266, %v6265
  %v6299 = vpack.c.bf16 %v6268, %v6267
  %v6300 = vpack.c.bf16 %v6270, %v6269
  %v6301 = vpack.c.bf16 %v6272, %v6271
  %v6302 = vpack.c.bf16 %v6274, %v6273
  %v6303 = vpack.c.bf16 %v6276, %v6275
  %v6304 = vpack.c.bf16 %v6278, %v6277
  %v6305 = vpack.c.bf16 %v6280, %v6279
  %v6306 = vpack.c.bf16 %v6282, %v6281
  %v6307 = vpack.c.bf16 %v6284, %v6283
  %v6308 = vpack.c.bf16 %v6286, %v6285
  %v6309 = vpack.c.bf16 %v6288, %v6287
  %v6310 = vpack.c.bf16 %v6290, %v6289
  %v6311 = vpack.c.bf16 %v6292, %v6291
  %v6312 = vpack.c.bf16 %v6294, %v6293
  %s6313 = scalar_lea.vmem %s3, 896
  %v6314 = vld [vmem:[%s6313] sm:$0xf]
  %v6315 = vld [vmem:[%s6313 + $0x4] sm:$0xf]
  %v6316 = vld [vmem:[%s6313 + $0x8] sm:$0xf]
  %v6317 = vld [vmem:[%s6313 + $0xc] sm:$0xf]
  %v6318 = vld [vmem:[%s6313 + $0x10] sm:$0xf]
  %v6319 = vld [vmem:[%s6313 + $0x14] sm:$0xf]
  %v6320 = vld [vmem:[%s6313 + $0x18] sm:$0xf]
  %v6321 = vld [vmem:[%s6313 + $0x1c] sm:$0xf]
  %v6322 = vld [vmem:[%s6313 + $0x20] sm:$0xf]
  %v6323 = vld [vmem:[%s6313 + $0x24] sm:$0xf]
  %v6324 = vld [vmem:[%s6313 + $0x28] sm:$0xf]
  %v6325 = vld [vmem:[%s6313 + $0x2c] sm:$0xf]
  %v6326 = vld [vmem:[%s6313 + $0x30] sm:$0xf]
  %v6327 = vld [vmem:[%s6313 + $0x34] sm:$0xf]
  %v6328 = vld [vmem:[%s6313 + $0x38] sm:$0xf]
  %v6329 = vld [vmem:[%s6313 + $0x3c] sm:$0xf]
  %v6346 = vunpack.c.l.b16 %v6314
  %v6347 = vunpack.c.l.b16 %v6315
  %v6348 = vunpack.c.l.b16 %v6316
  %v6349 = vunpack.c.l.b16 %v6317
  %v6350 = vunpack.c.l.b16 %v6318
  %v6351 = vunpack.c.l.b16 %v6319
  %v6352 = vunpack.c.l.b16 %v6320
  %v6353 = vunpack.c.l.b16 %v6321
  %v6354 = vunpack.c.l.b16 %v6322
  %v6355 = vunpack.c.l.b16 %v6323
  %v6356 = vunpack.c.l.b16 %v6324
  %v6357 = vunpack.c.l.b16 %v6325
  %v6358 = vunpack.c.l.b16 %v6326
  %v6359 = vunpack.c.l.b16 %v6327
  %v6360 = vunpack.c.l.b16 %v6328
  %v6361 = vunpack.c.l.b16 %v6329
  %v6362 = vpack.c.b16 %v6347, %v6346
  %v6363 = vpack.c.b16 %v6349, %v6348
  %v6364 = vpack.c.b16 %v6351, %v6350
  %v6365 = vpack.c.b16 %v6353, %v6352
  %v6366 = vpack.c.b16 %v6355, %v6354
  %v6367 = vpack.c.b16 %v6357, %v6356
  %v6368 = vpack.c.b16 %v6359, %v6358
  %v6369 = vpack.c.b16 %v6361, %v6360
  %6378 = vmatprep.subr.bf16.mxu0 0
  %6379 = vmatpush1.bf16.msra.mxu0 %v6369
  %6380 = vmatprep.subr.bf16.mxu0 0
  %6381 = vmatpush1.bf16.msra.mxu0 %v6368
  %6382 = vmatprep.subr.bf16.mxu0 0
  %6383 = vmatpush1.bf16.msra.mxu0 %v6367
  %6384 = vmatprep.subr.bf16.mxu0 0
  %6385 = vmatpush1.bf16.msra.mxu0 %v6366
  %6386 = vmatprep.subr.bf16.mxu0 0
  %6387 = vmatpush1.bf16.msra.mxu0 %v6365
  %6388 = vmatprep.subr.bf16.mxu0 0
  %6389 = vmatpush1.bf16.msra.mxu0 %v6364
  %6390 = vmatprep.subr.bf16.mxu0 0
  %6391 = vmatpush1.bf16.msra.mxu0 %v6363
  %6392 = vmatprep.subr.bf16.mxu0 0
  %6393 = vmatpush1.bf16.msra.mxu0 %v6362
  %6394 = vmatprep.subr.bf16.mxu0 0
  %6395 = vmatpush2.bf16.msra.mxu0 0
  %6396 = vmatprep.subr.bf16.mxu0 0
  %6397 = vmatpush2.bf16.msra.mxu0 0
  %6398 = vmatprep.subr.bf16.mxu0 0
  %6399 = vmatpush2.bf16.msra.mxu0 0
  %6400 = vmatprep.subr.bf16.mxu0 0
  %6401 = vmatpush2.bf16.msra.mxu0 0
  %6402 = vmatprep.subr.bf16.mxu0 0
  %6403 = vmatpush2.bf16.msra.mxu0 0
  %6404 = vmatprep.subr.bf16.mxu0 0
  %6405 = vmatpush2.bf16.msra.mxu0 0
  %6406 = vmatprep.subr.bf16.mxu0 0
  %6407 = vmatpush2.bf16.msra.mxu0 0
  %6408 = vmatprep.subr.bf16.mxu0 0
  %6409 = vmatpush2.bf16.msra.mxu0 0
  %6410 = vmatprep.mubr.bf16.mxu0 0
  %6411 = vmatmul.mubr.bf16.gmra.mxu0 %v6295
  %v6412 = vpop.f32.mrf.mxu0
  %v6413 = vadd.f32 0.0, %v6412
  %v6414 = vpop.f32.mrf.mxu0
  %v6415 = vpop.f32.mrf.mxu0
  %v6416 = vadd.f32 0.0, %v6415
  %v6417 = vpop.f32.mrf.mxu0
  %6418 = vmatprep.mubr.bf16.mxu0 0
  %6419 = vmatmul.mubr.bf16.gmra.mxu0 %v6296
  %v6420 = vpop.f32.mrf.mxu0
  %v6421 = vadd.f32 0.0, %v6420
  %v6422 = vpop.f32.mrf.mxu0
  %v6423 = vpop.f32.mrf.mxu0
  %v6424 = vadd.f32 0.0, %v6423
  %v6425 = vpop.f32.mrf.mxu0
  %6426 = vmatprep.mubr.bf16.mxu0 0
  %6427 = vmatmul.mubr.bf16.gmra.mxu0 %v6297
  %v6428 = vpop.f32.mrf.mxu0
  %v6429 = vadd.f32 0.0, %v6428
  %v6430 = vpop.f32.mrf.mxu0
  %v6431 = vpop.f32.mrf.mxu0
  %v6432 = vadd.f32 0.0, %v6431
  %v6433 = vpop.f32.mrf.mxu0
  %6434 = vmatprep.mubr.bf16.mxu0 0
  %6435 = vmatmul.mubr.bf16.gmra.mxu0 %v6298
  %v6436 = vpop.f32.mrf.mxu0
  %v6437 = vadd.f32 0.0, %v6436
  %v6438 = vpop.f32.mrf.mxu0
  %v6439 = vpop.f32.mrf.mxu0
  %v6440 = vadd.f32 0.0, %v6439
  %v6441 = vpop.f32.mrf.mxu0
  %6442 = vmatprep.mubr.bf16.mxu0 0
  %6443 = vmatmul.mubr.bf16.gmra.mxu0 %v6299
  %v6444 = vpop.f32.mrf.mxu0
  %v6445 = vadd.f32 0.0, %v6444
  %v6446 = vpop.f32.mrf.mxu0
  %v6447 = vpop.f32.mrf.mxu0
  %v6448 = vadd.f32 0.0, %v6447
  %v6449 = vpop.f32.mrf.mxu0
  %6450 = vmatprep.mubr.bf16.mxu0 0
  %6451 = vmatmul.mubr.bf16.gmra.mxu0 %v6300
  %v6452 = vpop.f32.mrf.mxu0
  %v6453 = vadd.f32 0.0, %v6452
  %v6454 = vpop.f32.mrf.mxu0
  %v6455 = vpop.f32.mrf.mxu0
  %v6456 = vadd.f32 0.0, %v6455
  %v6457 = vpop.f32.mrf.mxu0
  %6458 = vmatprep.mubr.bf16.mxu0 0
  %6459 = vmatmul.mubr.bf16.gmra.mxu0 %v6301
  %v6460 = vpop.f32.mrf.mxu0
  %v6461 = vadd.f32 0.0, %v6460
  %v6462 = vpop.f32.mrf.mxu0
  %v6463 = vpop.f32.mrf.mxu0
  %v6464 = vadd.f32 0.0, %v6463
  %v6465 = vpop.f32.mrf.mxu0
  %6466 = vmatprep.mubr.bf16.mxu0 0
  %6467 = vmatmul.mubr.bf16.gmra.mxu0 %v6302
  %v6468 = vpop.f32.mrf.mxu0
  %v6469 = vadd.f32 0.0, %v6468
  %v6470 = vpop.f32.mrf.mxu0
  %v6471 = vpop.f32.mrf.mxu0
  %v6472 = vadd.f32 0.0, %v6471
  %v6473 = vpop.f32.mrf.mxu0
  %6474 = vmatprep.mubr.bf16.mxu0 0
  %6475 = vmatmul.mubr.bf16.gmra.mxu0 %v6303
  %v6476 = vpop.f32.mrf.mxu0
  %v6477 = vadd.f32 0.0, %v6476
  %v6478 = vpop.f32.mrf.mxu0
  %v6479 = vpop.f32.mrf.mxu0
  %v6480 = vadd.f32 0.0, %v6479
  %v6481 = vpop.f32.mrf.mxu0
  %6482 = vmatprep.mubr.bf16.mxu0 0
  %6483 = vmatmul.mubr.bf16.gmra.mxu0 %v6304
  %v6484 = vpop.f32.mrf.mxu0
  %v6485 = vadd.f32 0.0, %v6484
  %v6486 = vpop.f32.mrf.mxu0
  %v6487 = vpop.f32.mrf.mxu0
  %v6488 = vadd.f32 0.0, %v6487
  %v6489 = vpop.f32.mrf.mxu0
  %6490 = vmatprep.mubr.bf16.mxu0 0
  %6491 = vmatmul.mubr.bf16.gmra.mxu0 %v6305
  %v6492 = vpop.f32.mrf.mxu0
  %v6493 = vadd.f32 0.0, %v6492
  %v6494 = vpop.f32.mrf.mxu0
  %v6495 = vpop.f32.mrf.mxu0
  %v6496 = vadd.f32 0.0, %v6495
  %v6497 = vpop.f32.mrf.mxu0
  %6498 = vmatprep.mubr.bf16.mxu0 0
  %6499 = vmatmul.mubr.bf16.gmra.mxu0 %v6306
  %v6500 = vpop.f32.mrf.mxu0
  %v6501 = vadd.f32 0.0, %v6500
  %v6502 = vpop.f32.mrf.mxu0
  %v6503 = vpop.f32.mrf.mxu0
  %v6504 = vadd.f32 0.0, %v6503
  %v6505 = vpop.f32.mrf.mxu0
  %6506 = vmatprep.mubr.bf16.mxu0 0
  %6507 = vmatmul.mubr.bf16.gmra.mxu0 %v6307
  %v6508 = vpop.f32.mrf.mxu0
  %v6509 = vadd.f32 0.0, %v6508
  %v6510 = vpop.f32.mrf.mxu0
  %v6511 = vpop.f32.mrf.mxu0
  %v6512 = vadd.f32 0.0, %v6511
  %v6513 = vpop.f32.mrf.mxu0
  %6514 = vmatprep.mubr.bf16.mxu0 0
  %6515 = vmatmul.mubr.bf16.gmra.mxu0 %v6308
  %v6516 = vpop.f32.mrf.mxu0
  %v6517 = vadd.f32 0.0, %v6516
  %v6518 = vpop.f32.mrf.mxu0
  %v6519 = vpop.f32.mrf.mxu0
  %v6520 = vadd.f32 0.0, %v6519
  %v6521 = vpop.f32.mrf.mxu0
  %6522 = vmatprep.mubr.bf16.mxu0 0
  %6523 = vmatmul.mubr.bf16.gmra.mxu0 %v6309
  %v6524 = vpop.f32.mrf.mxu0
  %v6525 = vadd.f32 0.0, %v6524
  %v6526 = vpop.f32.mrf.mxu0
  %v6527 = vpop.f32.mrf.mxu0
  %v6528 = vadd.f32 0.0, %v6527
  %v6529 = vpop.f32.mrf.mxu0
  %6530 = vmatprep.mubr.bf16.mxu0 0
  %6531 = vmatmul.mubr.bf16.gmra.mxu0 %v6310
  %v6532 = vpop.f32.mrf.mxu0
  %v6533 = vadd.f32 0.0, %v6532
  %v6534 = vpop.f32.mrf.mxu0
  %v6535 = vpop.f32.mrf.mxu0
  %v6536 = vadd.f32 0.0, %v6535
  %v6537 = vpop.f32.mrf.mxu0
  %6538 = vmatprep.mubr.bf16.mxu0 0
  %6539 = vmatmul.mubr.bf16.gmra.mxu0 %v6311
  %v6540 = vpop.f32.mrf.mxu0
  %v6541 = vadd.f32 0.0, %v6540
  %v6542 = vpop.f32.mrf.mxu0
  %v6543 = vpop.f32.mrf.mxu0
  %v6544 = vadd.f32 0.0, %v6543
  %v6545 = vpop.f32.mrf.mxu0
  %6546 = vmatprep.mubr.bf16.mxu0 0
  %6547 = vmatmul.mubr.bf16.gmra.mxu0 %v6312
  %v6548 = vpop.f32.mrf.mxu0
  %v6549 = vadd.f32 0.0, %v6548
  %v6550 = vpop.f32.mrf.mxu0
  %v6551 = vpop.f32.mrf.mxu0
  %v6552 = vadd.f32 0.0, %v6551
  %v6553 = vpop.f32.mrf.mxu0
  %6554 = vdwg.mxu0
  %v6555 = vadd.f32 %v6223, %v6413
  %v6556 = vadd.f32 %v6224, %v6416
  %v6557 = vadd.f32 %v6225, %v6421
  %v6558 = vadd.f32 %v6226, %v6424
  %v6559 = vadd.f32 %v6227, %v6429
  %v6560 = vadd.f32 %v6228, %v6432
  %v6561 = vadd.f32 %v6229, %v6437
  %v6562 = vadd.f32 %v6230, %v6440
  %v6563 = vadd.f32 %v6231, %v6445
  %v6564 = vadd.f32 %v6232, %v6448
  %v6565 = vadd.f32 %v6233, %v6453
  %v6566 = vadd.f32 %v6234, %v6456
  %v6567 = vadd.f32 %v6235, %v6461
  %v6568 = vadd.f32 %v6236, %v6464
  %v6569 = vadd.f32 %v6237, %v6469
  %v6570 = vadd.f32 %v6238, %v6472
  %v6571 = vadd.f32 %v6239, %v6477
  %v6572 = vadd.f32 %v6240, %v6480
  %v6573 = vadd.f32 %v6241, %v6485
  %v6574 = vadd.f32 %v6242, %v6488
  %v6575 = vadd.f32 %v6243, %v6493
  %v6576 = vadd.f32 %v6244, %v6496
  %v6577 = vadd.f32 %v6245, %v6501
  %v6578 = vadd.f32 %v6246, %v6504
  %v6579 = vadd.f32 %v6247, %v6509
  %v6580 = vadd.f32 %v6248, %v6512
  %v6581 = vadd.f32 %v6249, %v6517
  %v6582 = vadd.f32 %v6250, %v6520
  %v6583 = vadd.f32 %v6251, %v6525
  %v6584 = vadd.f32 %v6252, %v6528
  %v6585 = vadd.f32 %v6253, %v6533
  %v6586 = vadd.f32 %v6254, %v6536
  %v6587 = vadd.f32 %v6255, %v6541
  %v6588 = vadd.f32 %v6256, %v6544
  %v6589 = vadd.f32 %v6257, %v6549
  %v6590 = vadd.f32 %v6258, %v6552
  %v6591 = vld [vmem:[#allocation2 + $0x367] sm:$0xff]
  %v6592 = vld [vmem:[#allocation2 + $0x36f] sm:$0xff]
  %v6593 = vld [vmem:[#allocation2 + $0x377] sm:$0xff]
  %v6594 = vld [vmem:[#allocation2 + $0x37f] sm:$0xff]
  %v6595 = vld [vmem:[#allocation2 + $0x387] sm:$0xff]
  %v6596 = vld [vmem:[#allocation2 + $0x38f] sm:$0xff]
  %v6597 = vld [vmem:[#allocation2 + $0x397] sm:$0xff]
  %v6598 = vld [vmem:[#allocation2 + $0x39f] sm:$0xff]
  %v6599 = vld [vmem:[#allocation2 + $0x3a7] sm:$0xff]
  %v6600 = vld [vmem:[#allocation2 + $0x3af] sm:$0xff]
  %v6601 = vld [vmem:[#allocation2 + $0x3b7] sm:$0xff]
  %v6602 = vld [vmem:[#allocation2 + $0x3bf] sm:$0xff]
  %v6603 = vld [vmem:[#allocation2 + $0x3c7] sm:$0xff]
  %v6604 = vld [vmem:[#allocation2 + $0x3cf] sm:$0xff]
  %v6605 = vld [vmem:[#allocation2 + $0x3d7] sm:$0xff]
  %v6606 = vld [vmem:[#allocation2 + $0x3df] sm:$0xff]
  %v6607 = vld [vmem:[#allocation2 + $0x3e7] sm:$0xff]
  %v6608 = vld [vmem:[#allocation2 + $0x3ef] sm:$0xff]
  %v6609 = vld [vmem:[#allocation2 + $0x3f7] sm:$0xff]
  %v6610 = vld [vmem:[#allocation2 + $0x3ff] sm:$0xff]
  %v6611 = vld [vmem:[#allocation2 + $0x407] sm:$0xff]
  %v6612 = vld [vmem:[#allocation2 + $0x40f] sm:$0xff]
  %v6613 = vld [vmem:[#allocation2 + $0x417] sm:$0xff]
  %v6614 = vld [vmem:[#allocation2 + $0x41f] sm:$0xff]
  %v6615 = vld [vmem:[#allocation2 + $0x427] sm:$0xff]
  %v6616 = vld [vmem:[#allocation2 + $0x42f] sm:$0xff]
  %v6617 = vld [vmem:[#allocation2 + $0x437] sm:$0xff]
  %v6618 = vld [vmem:[#allocation2 + $0x43f] sm:$0xff]
  %v6619 = vld [vmem:[#allocation2 + $0x447] sm:$0xff]
  %v6620 = vld [vmem:[#allocation2 + $0x44f] sm:$0xff]
  %v6621 = vld [vmem:[#allocation2 + $0x457] sm:$0xff]
  %v6622 = vld [vmem:[#allocation2 + $0x45f] sm:$0xff]
  %v6623 = vld [vmem:[#allocation2 + $0x467] sm:$0xff]
  %v6624 = vld [vmem:[#allocation2 + $0x46f] sm:$0xff]
  %v6625 = vld [vmem:[#allocation2 + $0x477] sm:$0xff]
  %v6626 = vld [vmem:[#allocation2 + $0x47f] sm:$0x1]
  %v6627 = vpack.c.bf16 %v6592, %v6591
  %v6628 = vpack.c.bf16 %v6594, %v6593
  %v6629 = vpack.c.bf16 %v6596, %v6595
  %v6630 = vpack.c.bf16 %v6598, %v6597
  %v6631 = vpack.c.bf16 %v6600, %v6599
  %v6632 = vpack.c.bf16 %v6602, %v6601
  %v6633 = vpack.c.bf16 %v6604, %v6603
  %v6634 = vpack.c.bf16 %v6606, %v6605
  %v6635 = vpack.c.bf16 %v6608, %v6607
  %v6636 = vpack.c.bf16 %v6610, %v6609
  %v6637 = vpack.c.bf16 %v6612, %v6611
  %v6638 = vpack.c.bf16 %v6614, %v6613
  %v6639 = vpack.c.bf16 %v6616, %v6615
  %v6640 = vpack.c.bf16 %v6618, %v6617
  %v6641 = vpack.c.bf16 %v6620, %v6619
  %v6642 = vpack.c.bf16 %v6622, %v6621
  %v6643 = vpack.c.bf16 %v6624, %v6623
  %v6644 = vpack.c.bf16 %v6626, %v6625
  %s6645 = scalar_lea.vmem %s3, 960
  %v6646 = vld [vmem:[%s6645] sm:$0xf]
  %v6647 = vld [vmem:[%s6645 + $0x4] sm:$0xf]
  %v6648 = vld [vmem:[%s6645 + $0x8] sm:$0xf]
  %v6649 = vld [vmem:[%s6645 + $0xc] sm:$0xf]
  %v6650 = vld [vmem:[%s6645 + $0x10] sm:$0xf]
  %v6651 = vld [vmem:[%s6645 + $0x14] sm:$0xf]
  %v6652 = vld [vmem:[%s6645 + $0x18] sm:$0xf]
  %v6653 = vld [vmem:[%s6645 + $0x1c] sm:$0xf]
  %v6654 = vld [vmem:[%s6645 + $0x20] sm:$0xf]
  %v6655 = vld [vmem:[%s6645 + $0x24] sm:$0xf]
  %v6656 = vld [vmem:[%s6645 + $0x28] sm:$0xf]
  %v6657 = vld [vmem:[%s6645 + $0x2c] sm:$0xf]
  %v6658 = vld [vmem:[%s6645 + $0x30] sm:$0xf]
  %v6659 = vld [vmem:[%s6645 + $0x34] sm:$0xf]
  %v6660 = vld [vmem:[%s6645 + $0x38] sm:$0xf]
  %v6661 = vld [vmem:[%s6645 + $0x3c] sm:$0xf]
  %v6678 = vunpack.c.l.b16 %v6646
  %v6679 = vunpack.c.l.b16 %v6647
  %v6680 = vunpack.c.l.b16 %v6648
  %v6681 = vunpack.c.l.b16 %v6649
  %v6682 = vunpack.c.l.b16 %v6650
  %v6683 = vunpack.c.l.b16 %v6651
  %v6684 = vunpack.c.l.b16 %v6652
  %v6685 = vunpack.c.l.b16 %v6653
  %v6686 = vunpack.c.l.b16 %v6654
  %v6687 = vunpack.c.l.b16 %v6655
  %v6688 = vunpack.c.l.b16 %v6656
  %v6689 = vunpack.c.l.b16 %v6657
  %v6690 = vunpack.c.l.b16 %v6658
  %v6691 = vunpack.c.l.b16 %v6659
  %v6692 = vunpack.c.l.b16 %v6660
  %v6693 = vunpack.c.l.b16 %v6661
  %v6694 = vpack.c.b16 %v6679, %v6678
  %v6695 = vpack.c.b16 %v6681, %v6680
  %v6696 = vpack.c.b16 %v6683, %v6682
  %v6697 = vpack.c.b16 %v6685, %v6684
  %v6698 = vpack.c.b16 %v6687, %v6686
  %v6699 = vpack.c.b16 %v6689, %v6688
  %v6700 = vpack.c.b16 %v6691, %v6690
  %v6701 = vpack.c.b16 %v6693, %v6692
  %6710 = vmatprep.subr.bf16.mxu0 0
  %6711 = vmatpush1.bf16.msra.mxu0 %v6701
  %6712 = vmatprep.subr.bf16.mxu0 0
  %6713 = vmatpush1.bf16.msra.mxu0 %v6700
  %6714 = vmatprep.subr.bf16.mxu0 0
  %6715 = vmatpush1.bf16.msra.mxu0 %v6699
  %6716 = vmatprep.subr.bf16.mxu0 0
  %6717 = vmatpush1.bf16.msra.mxu0 %v6698
  %6718 = vmatprep.subr.bf16.mxu0 0
  %6719 = vmatpush1.bf16.msra.mxu0 %v6697
  %6720 = vmatprep.subr.bf16.mxu0 0
  %6721 = vmatpush1.bf16.msra.mxu0 %v6696
  %6722 = vmatprep.subr.bf16.mxu0 0
  %6723 = vmatpush1.bf16.msra.mxu0 %v6695
  %6724 = vmatprep.subr.bf16.mxu0 0
  %6725 = vmatpush1.bf16.msra.mxu0 %v6694
  %6726 = vmatprep.subr.bf16.mxu0 0
  %6727 = vmatpush2.bf16.msra.mxu0 0
  %6728 = vmatprep.subr.bf16.mxu0 0
  %6729 = vmatpush2.bf16.msra.mxu0 0
  %6730 = vmatprep.subr.bf16.mxu0 0
  %6731 = vmatpush2.bf16.msra.mxu0 0
  %6732 = vmatprep.subr.bf16.mxu0 0
  %6733 = vmatpush2.bf16.msra.mxu0 0
  %6734 = vmatprep.subr.bf16.mxu0 0
  %6735 = vmatpush2.bf16.msra.mxu0 0
  %6736 = vmatprep.subr.bf16.mxu0 0
  %6737 = vmatpush2.bf16.msra.mxu0 0
  %6738 = vmatprep.subr.bf16.mxu0 0
  %6739 = vmatpush2.bf16.msra.mxu0 0
  %6740 = vmatprep.subr.bf16.mxu0 0
  %6741 = vmatpush2.bf16.msra.mxu0 0
  %6742 = vmatprep.mubr.bf16.mxu0 0
  %6743 = vmatmul.mubr.bf16.gmra.mxu0 %v6627
  %v6744 = vpop.f32.mrf.mxu0
  %v6745 = vadd.f32 0.0, %v6744
  %v6746 = vpop.f32.mrf.mxu0
  %v6747 = vpop.f32.mrf.mxu0
  %v6748 = vadd.f32 0.0, %v6747
  %v6749 = vpop.f32.mrf.mxu0
  %6750 = vmatprep.mubr.bf16.mxu0 0
  %6751 = vmatmul.mubr.bf16.gmra.mxu0 %v6628
  %v6752 = vpop.f32.mrf.mxu0
  %v6753 = vadd.f32 0.0, %v6752
  %v6754 = vpop.f32.mrf.mxu0
  %v6755 = vpop.f32.mrf.mxu0
  %v6756 = vadd.f32 0.0, %v6755
  %v6757 = vpop.f32.mrf.mxu0
  %6758 = vmatprep.mubr.bf16.mxu0 0
  %6759 = vmatmul.mubr.bf16.gmra.mxu0 %v6629
  %v6760 = vpop.f32.mrf.mxu0
  %v6761 = vadd.f32 0.0, %v6760
  %v6762 = vpop.f32.mrf.mxu0
  %v6763 = vpop.f32.mrf.mxu0
  %v6764 = vadd.f32 0.0, %v6763
  %v6765 = vpop.f32.mrf.mxu0
  %6766 = vmatprep.mubr.bf16.mxu0 0
  %6767 = vmatmul.mubr.bf16.gmra.mxu0 %v6630
  %v6768 = vpop.f32.mrf.mxu0
  %v6769 = vadd.f32 0.0, %v6768
  %v6770 = vpop.f32.mrf.mxu0
  %v6771 = vpop.f32.mrf.mxu0
  %v6772 = vadd.f32 0.0, %v6771
  %v6773 = vpop.f32.mrf.mxu0
  %6774 = vmatprep.mubr.bf16.mxu0 0
  %6775 = vmatmul.mubr.bf16.gmra.mxu0 %v6631
  %v6776 = vpop.f32.mrf.mxu0
  %v6777 = vadd.f32 0.0, %v6776
  %v6778 = vpop.f32.mrf.mxu0
  %v6779 = vpop.f32.mrf.mxu0
  %v6780 = vadd.f32 0.0, %v6779
  %v6781 = vpop.f32.mrf.mxu0
  %6782 = vmatprep.mubr.bf16.mxu0 0
  %6783 = vmatmul.mubr.bf16.gmra.mxu0 %v6632
  %v6784 = vpop.f32.mrf.mxu0
  %v6785 = vadd.f32 0.0, %v6784
  %v6786 = vpop.f32.mrf.mxu0
  %v6787 = vpop.f32.mrf.mxu0
  %v6788 = vadd.f32 0.0, %v6787
  %v6789 = vpop.f32.mrf.mxu0
  %6790 = vmatprep.mubr.bf16.mxu0 0
  %6791 = vmatmul.mubr.bf16.gmra.mxu0 %v6633
  %v6792 = vpop.f32.mrf.mxu0
  %v6793 = vadd.f32 0.0, %v6792
  %v6794 = vpop.f32.mrf.mxu0
  %v6795 = vpop.f32.mrf.mxu0
  %v6796 = vadd.f32 0.0, %v6795
  %v6797 = vpop.f32.mrf.mxu0
  %6798 = vmatprep.mubr.bf16.mxu0 0
  %6799 = vmatmul.mubr.bf16.gmra.mxu0 %v6634
  %v6800 = vpop.f32.mrf.mxu0
  %v6801 = vadd.f32 0.0, %v6800
  %v6802 = vpop.f32.mrf.mxu0
  %v6803 = vpop.f32.mrf.mxu0
  %v6804 = vadd.f32 0.0, %v6803
  %v6805 = vpop.f32.mrf.mxu0
  %6806 = vmatprep.mubr.bf16.mxu0 0
  %6807 = vmatmul.mubr.bf16.gmra.mxu0 %v6635
  %v6808 = vpop.f32.mrf.mxu0
  %v6809 = vadd.f32 0.0, %v6808
  %v6810 = vpop.f32.mrf.mxu0
  %v6811 = vpop.f32.mrf.mxu0
  %v6812 = vadd.f32 0.0, %v6811
  %v6813 = vpop.f32.mrf.mxu0
  %6814 = vmatprep.mubr.bf16.mxu0 0
  %6815 = vmatmul.mubr.bf16.gmra.mxu0 %v6636
  %v6816 = vpop.f32.mrf.mxu0
  %v6817 = vadd.f32 0.0, %v6816
  %v6818 = vpop.f32.mrf.mxu0
  %v6819 = vpop.f32.mrf.mxu0
  %v6820 = vadd.f32 0.0, %v6819
  %v6821 = vpop.f32.mrf.mxu0
  %6822 = vmatprep.mubr.bf16.mxu0 0
  %6823 = vmatmul.mubr.bf16.gmra.mxu0 %v6637
  %v6824 = vpop.f32.mrf.mxu0
  %v6825 = vadd.f32 0.0, %v6824
  %v6826 = vpop.f32.mrf.mxu0
  %v6827 = vpop.f32.mrf.mxu0
  %v6828 = vadd.f32 0.0, %v6827
  %v6829 = vpop.f32.mrf.mxu0
  %6830 = vmatprep.mubr.bf16.mxu0 0
  %6831 = vmatmul.mubr.bf16.gmra.mxu0 %v6638
  %v6832 = vpop.f32.mrf.mxu0
  %v6833 = vadd.f32 0.0, %v6832
  %v6834 = vpop.f32.mrf.mxu0
  %v6835 = vpop.f32.mrf.mxu0
  %v6836 = vadd.f32 0.0, %v6835
  %v6837 = vpop.f32.mrf.mxu0
  %6838 = vmatprep.mubr.bf16.mxu0 0
  %6839 = vmatmul.mubr.bf16.gmra.mxu0 %v6639
  %v6840 = vpop.f32.mrf.mxu0
  %v6841 = vadd.f32 0.0, %v6840
  %v6842 = vpop.f32.mrf.mxu0
  %v6843 = vpop.f32.mrf.mxu0
  %v6844 = vadd.f32 0.0, %v6843
  %v6845 = vpop.f32.mrf.mxu0
  %6846 = vmatprep.mubr.bf16.mxu0 0
  %6847 = vmatmul.mubr.bf16.gmra.mxu0 %v6640
  %v6848 = vpop.f32.mrf.mxu0
  %v6849 = vadd.f32 0.0, %v6848
  %v6850 = vpop.f32.mrf.mxu0
  %v6851 = vpop.f32.mrf.mxu0
  %v6852 = vadd.f32 0.0, %v6851
  %v6853 = vpop.f32.mrf.mxu0
  %6854 = vmatprep.mubr.bf16.mxu0 0
  %6855 = vmatmul.mubr.bf16.gmra.mxu0 %v6641
  %v6856 = vpop.f32.mrf.mxu0
  %v6857 = vadd.f32 0.0, %v6856
  %v6858 = vpop.f32.mrf.mxu0
  %v6859 = vpop.f32.mrf.mxu0
  %v6860 = vadd.f32 0.0, %v6859
  %v6861 = vpop.f32.mrf.mxu0
  %6862 = vmatprep.mubr.bf16.mxu0 0
  %6863 = vmatmul.mubr.bf16.gmra.mxu0 %v6642
  %v6864 = vpop.f32.mrf.mxu0
  %v6865 = vadd.f32 0.0, %v6864
  %v6866 = vpop.f32.mrf.mxu0
  %v6867 = vpop.f32.mrf.mxu0
  %v6868 = vadd.f32 0.0, %v6867
  %v6869 = vpop.f32.mrf.mxu0
  %6870 = vmatprep.mubr.bf16.mxu0 0
  %6871 = vmatmul.mubr.bf16.gmra.mxu0 %v6643
  %v6872 = vpop.f32.mrf.mxu0
  %v6873 = vadd.f32 0.0, %v6872
  %v6874 = vpop.f32.mrf.mxu0
  %v6875 = vpop.f32.mrf.mxu0
  %v6876 = vadd.f32 0.0, %v6875
  %v6877 = vpop.f32.mrf.mxu0
  %6878 = vmatprep.mubr.bf16.mxu0 0
  %6879 = vmatmul.mubr.bf16.gmra.mxu0 %v6644
  %v6880 = vpop.f32.mrf.mxu0
  %v6881 = vadd.f32 0.0, %v6880
  %v6882 = vpop.f32.mrf.mxu0
  %v6883 = vpop.f32.mrf.mxu0
  %v6884 = vadd.f32 0.0, %v6883
  %v6885 = vpop.f32.mrf.mxu0
  %6886 = vdwg.mxu0
  %v6887 = vadd.f32 %v6555, %v6745
  %v6888 = vadd.f32 %v6556, %v6748
  %v6889 = vadd.f32 %v6557, %v6753
  %v6890 = vadd.f32 %v6558, %v6756
  %v6891 = vadd.f32 %v6559, %v6761
  %v6892 = vadd.f32 %v6560, %v6764
  %v6893 = vadd.f32 %v6561, %v6769
  %v6894 = vadd.f32 %v6562, %v6772
  %v6895 = vadd.f32 %v6563, %v6777
  %v6896 = vadd.f32 %v6564, %v6780
  %v6897 = vadd.f32 %v6565, %v6785
  %v6898 = vadd.f32 %v6566, %v6788
  %v6899 = vadd.f32 %v6567, %v6793
  %v6900 = vadd.f32 %v6568, %v6796
  %v6901 = vadd.f32 %v6569, %v6801
  %v6902 = vadd.f32 %v6570, %v6804
  %v6903 = vadd.f32 %v6571, %v6809
  %v6904 = vadd.f32 %v6572, %v6812
  %v6905 = vadd.f32 %v6573, %v6817
  %v6906 = vadd.f32 %v6574, %v6820
  %v6907 = vadd.f32 %v6575, %v6825
  %v6908 = vadd.f32 %v6576, %v6828
  %v6909 = vadd.f32 %v6577, %v6833
  %v6910 = vadd.f32 %v6578, %v6836
  %v6911 = vadd.f32 %v6579, %v6841
  %v6912 = vadd.f32 %v6580, %v6844
  %v6913 = vadd.f32 %v6581, %v6849
  %v6914 = vadd.f32 %v6582, %v6852
  %v6915 = vadd.f32 %v6583, %v6857
  %v6916 = vadd.f32 %v6584, %v6860
  %v6917 = vadd.f32 %v6585, %v6865
  %v6918 = vadd.f32 %v6586, %v6868
  %v6919 = vadd.f32 %v6587, %v6873
  %v6920 = vadd.f32 %v6588, %v6876
  %v6921 = vadd.f32 %v6589, %v6881
  %v6922 = vadd.f32 %v6590, %v6884
  %v6923 = vld [vmem:[%s4] sm:$0x1]
  %v6925 = vlaneseq
  %v6926 = vshrl.u32 %v6925, 7
  %v6927 = vsub.s32 0, %v6926
  %v6928 = vrot.slane %v6923, %v6927
  %v6930 = vadd.f32 %v6887, %v6928
  %v6931 = vadd.f32 %v6888, %v6928
  %v6932 = vadd.f32 %v6889, %v6928
  %v6933 = vadd.f32 %v6890, %v6928
  %v6934 = vadd.f32 %v6891, %v6928
  %v6935 = vadd.f32 %v6892, %v6928
  %v6936 = vadd.f32 %v6893, %v6928
  %v6937 = vadd.f32 %v6894, %v6928
  %v6938 = vadd.f32 %v6895, %v6928
  %v6939 = vadd.f32 %v6896, %v6928
  %v6940 = vadd.f32 %v6897, %v6928
  %v6941 = vadd.f32 %v6898, %v6928
  %v6942 = vadd.f32 %v6899, %v6928
  %v6943 = vadd.f32 %v6900, %v6928
  %v6944 = vadd.f32 %v6901, %v6928
  %v6945 = vadd.f32 %v6902, %v6928
  %v6946 = vadd.f32 %v6903, %v6928
  %v6947 = vadd.f32 %v6904, %v6928
  %v6948 = vadd.f32 %v6905, %v6928
  %v6949 = vadd.f32 %v6906, %v6928
  %v6950 = vadd.f32 %v6907, %v6928
  %v6951 = vadd.f32 %v6908, %v6928
  %v6952 = vadd.f32 %v6909, %v6928
  %v6953 = vadd.f32 %v6910, %v6928
  %v6954 = vadd.f32 %v6911, %v6928
  %v6955 = vadd.f32 %v6912, %v6928
  %v6956 = vadd.f32 %v6913, %v6928
  %v6957 = vadd.f32 %v6914, %v6928
  %v6958 = vadd.f32 %v6915, %v6928
  %v6959 = vadd.f32 %v6916, %v6928
  %v6960 = vadd.f32 %v6917, %v6928
  %v6961 = vadd.f32 %v6918, %v6928
  %v6962 = vadd.f32 %v6919, %v6928
  %v6963 = vadd.f32 %v6920, %v6928
  %v6964 = vadd.f32 %v6921, %v6928
  %v6965 = vadd.f32 %v6922, %v6928
  %v6966 = vmax.f32 %v6930, 0.0
  %v6967 = vmax.f32 %v6931, 0.0
  %v6968 = vmax.f32 %v6932, 0.0
  %v6969 = vmax.f32 %v6933, 0.0
  %v6970 = vmax.f32 %v6934, 0.0
  %v6971 = vmax.f32 %v6935, 0.0
  %v6972 = vmax.f32 %v6936, 0.0
  %v6973 = vmax.f32 %v6937, 0.0
  %v6974 = vmax.f32 %v6938, 0.0
  %v6975 = vmax.f32 %v6939, 0.0
  %v6976 = vmax.f32 %v6940, 0.0
  %v6977 = vmax.f32 %v6941, 0.0
  %v6978 = vmax.f32 %v6942, 0.0
  %v6979 = vmax.f32 %v6943, 0.0
  %v6980 = vmax.f32 %v6944, 0.0
  %v6981 = vmax.f32 %v6945, 0.0
  %v6982 = vmax.f32 %v6946, 0.0
  %v6983 = vmax.f32 %v6947, 0.0
  %v6984 = vmax.f32 %v6948, 0.0
  %v6985 = vmax.f32 %v6949, 0.0
  %v6986 = vmax.f32 %v6950, 0.0
  %v6987 = vmax.f32 %v6951, 0.0
  %v6988 = vmax.f32 %v6952, 0.0
  %v6989 = vmax.f32 %v6953, 0.0
  %v6990 = vmax.f32 %v6954, 0.0
  %v6991 = vmax.f32 %v6955, 0.0
  %v6992 = vmax.f32 %v6956, 0.0
  %v6993 = vmax.f32 %v6957, 0.0
  %v6994 = vmax.f32 %v6958, 0.0
  %v6995 = vmax.f32 %v6959, 0.0
  %v6996 = vmax.f32 %v6960, 0.0
  %v6997 = vmax.f32 %v6961, 0.0
  %v6998 = vmax.f32 %v6962, 0.0
  %v6999 = vmax.f32 %v6963, 0.0
  %v7000 = vmax.f32 %v6964, 0.0
  %v7001 = vmax.f32 %v6965, 0.0
  %7002 = vst [vmem:[#allocation3] sm:$0xff] %v6966
  %7003 = vst [vmem:[#allocation3 + $0x8] sm:$0xff] %v6967
  %7004 = vst [vmem:[#allocation3 + $0x10] sm:$0xff] %v6968
  %7005 = vst [vmem:[#allocation3 + $0x18] sm:$0xff] %v6969
  %7006 = vst [vmem:[#allocation3 + $0x20] sm:$0xff] %v6970
  %7007 = vst [vmem:[#allocation3 + $0x28] sm:$0xff] %v6971
  %7008 = vst [vmem:[#allocation3 + $0x30] sm:$0xff] %v6972
  %7009 = vst [vmem:[#allocation3 + $0x38] sm:$0xff] %v6973
  %7010 = vst [vmem:[#allocation3 + $0x40] sm:$0xff] %v6974
  %7011 = vst [vmem:[#allocation3 + $0x48] sm:$0xff] %v6975
  %7012 = vst [vmem:[#allocation3 + $0x50] sm:$0xff] %v6976
  %7013 = vst [vmem:[#allocation3 + $0x58] sm:$0xff] %v6977
  %7014 = vst [vmem:[#allocation3 + $0x60] sm:$0xff] %v6978
  %7015 = vst [vmem:[#allocation3 + $0x68] sm:$0xff] %v6979
  %7016 = vst [vmem:[#allocation3 + $0x70] sm:$0xff] %v6980
  %7017 = vst [vmem:[#allocation3 + $0x78] sm:$0xff] %v6981
  %7018 = vst [vmem:[#allocation3 + $0x80] sm:$0xff] %v6982
  %7019 = vst [vmem:[#allocation3 + $0x88] sm:$0xff] %v6983
  %7020 = vst [vmem:[#allocation3 + $0x90] sm:$0xff] %v6984
  %7021 = vst [vmem:[#allocation3 + $0x98] sm:$0xff] %v6985
  %7022 = vst [vmem:[#allocation3 + $0xa0] sm:$0xff] %v6986
  %7023 = vst [vmem:[#allocation3 + $0xa8] sm:$0xff] %v6987
  %7024 = vst [vmem:[#allocation3 + $0xb0] sm:$0xff] %v6988
  %7025 = vst [vmem:[#allocation3 + $0xb8] sm:$0xff] %v6989
  %7026 = vst [vmem:[#allocation3 + $0xc0] sm:$0xff] %v6990
  %7027 = vst [vmem:[#allocation3 + $0xc8] sm:$0xff] %v6991
  %7028 = vst [vmem:[#allocation3 + $0xd0] sm:$0xff] %v6992
  %7029 = vst [vmem:[#allocation3 + $0xd8] sm:$0xff] %v6993
  %7030 = vst [vmem:[#allocation3 + $0xe0] sm:$0xff] %v6994
  %7031 = vst [vmem:[#allocation3 + $0xe8] sm:$0xff] %v6995
  %7032 = vst [vmem:[#allocation3 + $0xf0] sm:$0xff] %v6996
  %7033 = vst [vmem:[#allocation3 + $0xf8] sm:$0xff] %v6997
  %7034 = vst [vmem:[#allocation3 + $0x100] sm:$0xff] %v6998
  %7035 = vst [vmem:[#allocation3 + $0x108] sm:$0xff] %v6999
  %7036 = vst [vmem:[#allocation3 + $0x110] sm:$0xff] %v7000
  %7037 = vst [vmem:[#allocation3 + $0x118] sm:$0x1] %v7001
  %v7038 = vld [vmem:[#allocation3] sm:$0xff]
  %v7039 = vld [vmem:[#allocation3 + $0x8] sm:$0xff]
  %v7040 = vld [vmem:[#allocation3 + $0x10] sm:$0xff]
  %v7041 = vld [vmem:[#allocation3 + $0x18] sm:$0xff]
  %v7042 = vld [vmem:[#allocation3 + $0x20] sm:$0xff]
  %v7043 = vld [vmem:[#allocation3 + $0x28] sm:$0xff]
  %v7044 = vld [vmem:[#allocation3 + $0x30] sm:$0xff]
  %v7045 = vld [vmem:[#allocation3 + $0x38] sm:$0xff]
  %v7046 = vld [vmem:[#allocation3 + $0x40] sm:$0xff]
  %v7047 = vld [vmem:[#allocation3 + $0x48] sm:$0xff]
  %v7048 = vld [vmem:[#allocation3 + $0x50] sm:$0xff]
  %v7049 = vld [vmem:[#allocation3 + $0x58] sm:$0xff]
  %v7050 = vld [vmem:[#allocation3 + $0x60] sm:$0xff]
  %v7051 = vld [vmem:[#allocation3 + $0x68] sm:$0xff]
  %v7052 = vld [vmem:[#allocation3 + $0x70] sm:$0xff]
  %v7053 = vld [vmem:[#allocation3 + $0x78] sm:$0xff]
  %v7054 = vld [vmem:[#allocation3 + $0x80] sm:$0xff]
  %v7055 = vld [vmem:[#allocation3 + $0x88] sm:$0xff]
  %v7056 = vld [vmem:[#allocation3 + $0x90] sm:$0xff]
  %v7057 = vld [vmem:[#allocation3 + $0x98] sm:$0xff]
  %v7058 = vld [vmem:[#allocation3 + $0xa0] sm:$0xff]
  %v7059 = vld [vmem:[#allocation3 + $0xa8] sm:$0xff]
  %v7060 = vld [vmem:[#allocation3 + $0xb0] sm:$0xff]
  %v7061 = vld [vmem:[#allocation3 + $0xb8] sm:$0xff]
  %v7062 = vld [vmem:[#allocation3 + $0xc0] sm:$0xff]
  %v7063 = vld [vmem:[#allocation3 + $0xc8] sm:$0xff]
  %v7064 = vld [vmem:[#allocation3 + $0xd0] sm:$0xff]
  %v7065 = vld [vmem:[#allocation3 + $0xd8] sm:$0xff]
  %v7066 = vld [vmem:[#allocation3 + $0xe0] sm:$0xff]
  %v7067 = vld [vmem:[#allocation3 + $0xe8] sm:$0xff]
  %v7068 = vld [vmem:[#allocation3 + $0xf0] sm:$0xff]
  %v7069 = vld [vmem:[#allocation3 + $0xf8] sm:$0xff]
  %v7070 = vld [vmem:[#allocation3 + $0x100] sm:$0xff]
  %v7071 = vld [vmem:[#allocation3 + $0x108] sm:$0x7]
  %v7072 = vpack.c.bf16 %v7039, %v7038
  %v7073 = vpack.c.bf16 %v7041, %v7040
  %v7074 = vpack.c.bf16 %v7043, %v7042
  %v7075 = vpack.c.bf16 %v7045, %v7044
  %v7076 = vpack.c.bf16 %v7047, %v7046
  %v7077 = vpack.c.bf16 %v7049, %v7048
  %v7078 = vpack.c.bf16 %v7051, %v7050
  %v7079 = vpack.c.bf16 %v7053, %v7052
  %v7080 = vpack.c.bf16 %v7055, %v7054
  %v7081 = vpack.c.bf16 %v7057, %v7056
  %v7082 = vpack.c.bf16 %v7059, %v7058
  %v7083 = vpack.c.bf16 %v7061, %v7060
  %v7084 = vpack.c.bf16 %v7063, %v7062
  %v7085 = vpack.c.bf16 %v7065, %v7064
  %v7086 = vpack.c.bf16 %v7067, %v7066
  %v7087 = vpack.c.bf16 %v7069, %v7068
  %v7088 = vpack.c.bf16 %v7071, %v7070
  %v7089 = vld [vmem:[%s5] sm:$0xf]
  %v7090 = vld [vmem:[%s5 + $0x4] sm:$0xf]
  %v7091 = vld [vmem:[%s5 + $0x8] sm:$0xf]
  %v7092 = vld [vmem:[%s5 + $0xc] sm:$0xf]
  %v7093 = vld [vmem:[%s5 + $0x10] sm:$0xf]
  %v7094 = vld [vmem:[%s5 + $0x14] sm:$0xf]
  %v7095 = vld [vmem:[%s5 + $0x18] sm:$0xf]
  %v7096 = vld [vmem:[%s5 + $0x1c] sm:$0xf]
  %v7097 = vld [vmem:[%s5 + $0x20] sm:$0xf]
  %v7098 = vld [vmem:[%s5 + $0x24] sm:$0xf]
  %v7099 = vld [vmem:[%s5 + $0x28] sm:$0xf]
  %v7100 = vld [vmem:[%s5 + $0x2c] sm:$0xf]
  %v7101 = vld [vmem:[%s5 + $0x30] sm:$0xf]
  %v7102 = vld [vmem:[%s5 + $0x34] sm:$0xf]
  %v7103 = vld [vmem:[%s5 + $0x38] sm:$0xf]
  %v7104 = vld [vmem:[%s5 + $0x3c] sm:$0xf]
  %v7105 = vld [vmem:[#allocation3 + $0x1] sm:$0xff]
  %v7106 = vld [vmem:[#allocation3 + $0x9] sm:$0xff]
  %v7107 = vld [vmem:[#allocation3 + $0x11] sm:$0xff]
  %v7108 = vld [vmem:[#allocation3 + $0x19] sm:$0xff]
  %v7109 = vld [vmem:[#allocation3 + $0x21] sm:$0xff]
  %v7110 = vld [vmem:[#allocation3 + $0x29] sm:$0xff]
  %v7111 = vld [vmem:[#allocation3 + $0x31] sm:$0xff]
  %v7112 = vld [vmem:[#allocation3 + $0x39] sm:$0xff]
  %v7113 = vld [vmem:[#allocation3 + $0x41] sm:$0xff]
  %v7114 = vld [vmem:[#allocation3 + $0x49] sm:$0xff]
  %v7115 = vld [vmem:[#allocation3 + $0x51] sm:$0xff]
  %v7116 = vld [vmem:[#allocation3 + $0x59] sm:$0xff]
  %v7117 = vld [vmem:[#allocation3 + $0x61] sm:$0xff]
  %v7118 = vld [vmem:[#allocation3 + $0x69] sm:$0xff]
  %v7119 = vld [vmem:[#allocation3 + $0x71] sm:$0xff]
  %v7120 = vld [vmem:[#allocation3 + $0x79] sm:$0xff]
  %v7121 = vld [vmem:[#allocation3 + $0x81] sm:$0xff]
  %v7122 = vld [vmem:[#allocation3 + $0x89] sm:$0xff]
  %v7123 = vld [vmem:[#allocation3 + $0x91] sm:$0xff]
  %v7124 = vld [vmem:[#allocation3 + $0x99] sm:$0xff]
  %v7125 = vld [vmem:[#allocation3 + $0xa1] sm:$0xff]
  %v7126 = vld [vmem:[#allocation3 + $0xa9] sm:$0xff]
  %v7127 = vld [vmem:[#allocation3 + $0xb1] sm:$0xff]
  %v7128 = vld [vmem:[#allocation3 + $0xb9] sm:$0xff]
  %v7129 = vld [vmem:[#allocation3 + $0xc1] sm:$0xff]
  %v7130 = vld [vmem:[#allocation3 + $0xc9] sm:$0xff]
  %v7131 = vld [vmem:[#allocation3 + $0xd1] sm:$0xff]
  %v7132 = vld [vmem:[#allocation3 + $0xd9] sm:$0xff]
  %v7133 = vld [vmem:[#allocation3 + $0xe1] sm:$0xff]
  %v7134 = vld [vmem:[#allocation3 + $0xe9] sm:$0xff]
  %v7135 = vld [vmem:[#allocation3 + $0xf1] sm:$0xff]
  %v7136 = vld [vmem:[#allocation3 + $0xf9] sm:$0xff]
  %v7137 = vld [vmem:[#allocation3 + $0x101] sm:$0xff]
  %v7138 = vld [vmem:[#allocation3 + $0x109] sm:$0x7]
  %v7139 = vpack.c.bf16 %v7106, %v7105
  %v7140 = vpack.c.bf16 %v7108, %v7107
  %v7141 = vpack.c.bf16 %v7110, %v7109
  %v7142 = vpack.c.bf16 %v7112, %v7111
  %v7143 = vpack.c.bf16 %v7114, %v7113
  %v7144 = vpack.c.bf16 %v7116, %v7115
  %v7145 = vpack.c.bf16 %v7118, %v7117
  %v7146 = vpack.c.bf16 %v7120, %v7119
  %v7147 = vpack.c.bf16 %v7122, %v7121
  %v7148 = vpack.c.bf16 %v7124, %v7123
  %v7149 = vpack.c.bf16 %v7126, %v7125
  %v7150 = vpack.c.bf16 %v7128, %v7127
  %v7151 = vpack.c.bf16 %v7130, %v7129
  %v7152 = vpack.c.bf16 %v7132, %v7131
  %v7153 = vpack.c.bf16 %v7134, %v7133
  %v7154 = vpack.c.bf16 %v7136, %v7135
  %v7155 = vpack.c.bf16 %v7138, %v7137
  %s7156 = scalar_lea.vmem %s5, 64
  %v7157 = vld [vmem:[%s7156] sm:$0xf]
  %v7158 = vld [vmem:[%s7156 + $0x4] sm:$0xf]
  %v7159 = vld [vmem:[%s7156 + $0x8] sm:$0xf]
  %v7160 = vld [vmem:[%s7156 + $0xc] sm:$0xf]
  %v7161 = vld [vmem:[%s7156 + $0x10] sm:$0xf]
  %v7162 = vld [vmem:[%s7156 + $0x14] sm:$0xf]
  %v7163 = vld [vmem:[%s7156 + $0x18] sm:$0xf]
  %v7164 = vld [vmem:[%s7156 + $0x1c] sm:$0xf]
  %v7165 = vld [vmem:[%s7156 + $0x20] sm:$0xf]
  %v7166 = vld [vmem:[%s7156 + $0x24] sm:$0xf]
  %v7167 = vld [vmem:[%s7156 + $0x28] sm:$0xf]
  %v7168 = vld [vmem:[%s7156 + $0x2c] sm:$0xf]
  %v7169 = vld [vmem:[%s7156 + $0x30] sm:$0xf]
  %v7170 = vld [vmem:[%s7156 + $0x34] sm:$0xf]
  %v7171 = vld [vmem:[%s7156 + $0x38] sm:$0xf]
  %v7172 = vld [vmem:[%s7156 + $0x3c] sm:$0xf]
  %v7189 = vunpack.c.l.b16 %v7157
  %v7190 = vunpack.c.l.b16 %v7158
  %v7191 = vunpack.c.l.b16 %v7159
  %v7192 = vunpack.c.l.b16 %v7160
  %v7193 = vunpack.c.l.b16 %v7161
  %v7194 = vunpack.c.l.b16 %v7162
  %v7195 = vunpack.c.l.b16 %v7163
  %v7196 = vunpack.c.l.b16 %v7164
  %v7197 = vunpack.c.l.b16 %v7165
  %v7198 = vunpack.c.l.b16 %v7166
  %v7199 = vunpack.c.l.b16 %v7167
  %v7200 = vunpack.c.l.b16 %v7168
  %v7201 = vunpack.c.l.b16 %v7169
  %v7202 = vunpack.c.l.b16 %v7170
  %v7203 = vunpack.c.l.b16 %v7171
  %v7204 = vunpack.c.l.b16 %v7172
  %v7205 = vpack.c.b16 %v7190, %v7189
  %v7206 = vpack.c.b16 %v7192, %v7191
  %v7207 = vpack.c.b16 %v7194, %v7193
  %v7208 = vpack.c.b16 %v7196, %v7195
  %v7209 = vpack.c.b16 %v7198, %v7197
  %v7210 = vpack.c.b16 %v7200, %v7199
  %v7211 = vpack.c.b16 %v7202, %v7201
  %v7212 = vpack.c.b16 %v7204, %v7203
  %7221 = vmatprep.subr.bf16.mxu0 0
  %7222 = vmatpush1.bf16.msra.mxu0 %v7212
  %7223 = vmatprep.subr.bf16.mxu0 0
  %7224 = vmatpush1.bf16.msra.mxu0 %v7211
  %7225 = vmatprep.subr.bf16.mxu0 0
  %7226 = vmatpush1.bf16.msra.mxu0 %v7210
  %7227 = vmatprep.subr.bf16.mxu0 0
  %7228 = vmatpush1.bf16.msra.mxu0 %v7209
  %7229 = vmatprep.subr.bf16.mxu0 0
  %7230 = vmatpush1.bf16.msra.mxu0 %v7208
  %7231 = vmatprep.subr.bf16.mxu0 0
  %7232 = vmatpush1.bf16.msra.mxu0 %v7207
  %7233 = vmatprep.subr.bf16.mxu0 0
  %7234 = vmatpush1.bf16.msra.mxu0 %v7206
  %7235 = vmatprep.subr.bf16.mxu0 0
  %7236 = vmatpush1.bf16.msra.mxu0 %v7205
  %7237 = vmatprep.subr.bf16.mxu0 0
  %7238 = vmatpush2.bf16.msra.mxu0 0
  %7239 = vmatprep.subr.bf16.mxu0 0
  %7240 = vmatpush2.bf16.msra.mxu0 0
  %7241 = vmatprep.subr.bf16.mxu0 0
  %7242 = vmatpush2.bf16.msra.mxu0 0
  %7243 = vmatprep.subr.bf16.mxu0 0
  %7244 = vmatpush2.bf16.msra.mxu0 0
  %7245 = vmatprep.subr.bf16.mxu0 0
  %7246 = vmatpush2.bf16.msra.mxu0 0
  %7247 = vmatprep.subr.bf16.mxu0 0
  %7248 = vmatpush2.bf16.msra.mxu0 0
  %7249 = vmatprep.subr.bf16.mxu0 0
  %7250 = vmatpush2.bf16.msra.mxu0 0
  %7251 = vmatprep.subr.bf16.mxu0 0
  %7252 = vmatpush2.bf16.msra.mxu0 0
  %7253 = vmatprep.mubr.bf16.mxu0 0
  %7254 = vmatmul.mubr.bf16.gmra.mxu0 %v7139
  %v7255 = vpop.f32.mrf.mxu0
  %v7256 = vadd.f32 0.0, %v7255
  %v7257 = vpop.f32.mrf.mxu0
  %v7258 = vpop.f32.mrf.mxu0
  %v7259 = vadd.f32 0.0, %v7258
  %v7260 = vpop.f32.mrf.mxu0
  %7261 = vmatprep.mubr.bf16.mxu0 0
  %7262 = vmatmul.mubr.bf16.gmra.mxu0 %v7140
  %v7263 = vpop.f32.mrf.mxu0
  %v7264 = vpop.f32.mrf.mxu0
  %v7265 = vpop.f32.mrf.mxu0
  %v7266 = vpop.f32.mrf.mxu0
  %7267 = vmatprep.mubr.bf16.mxu0 0
  %7268 = vmatmul.mubr.bf16.gmra.mxu0 %v7141
  %v7269 = vpop.f32.mrf.mxu0
  %v7270 = vadd.f32 0.0, %v7269
  %v7271 = vpop.f32.mrf.mxu0
  %v7272 = vpop.f32.mrf.mxu0
  %v7273 = vadd.f32 0.0, %v7272
  %v7274 = vpop.f32.mrf.mxu0
  %7275 = vmatprep.mubr.bf16.mxu0 0
  %7276 = vmatmul.mubr.bf16.gmra.mxu0 %v7142
  %v7277 = vpop.f32.mrf.mxu0
  %v7278 = vadd.f32 0.0, %v7277
  %v7279 = vpop.f32.mrf.mxu0
  %v7280 = vpop.f32.mrf.mxu0
  %v7281 = vpop.f32.mrf.mxu0
  %7282 = vmatprep.mubr.bf16.mxu0 0
  %7283 = vmatmul.mubr.bf16.gmra.mxu0 %v7143
  %v7284 = vpop.f32.mrf.mxu0
  %v7285 = vpop.f32.mrf.mxu0
  %v7286 = vpop.f32.mrf.mxu0
  %v7287 = vadd.f32 0.0, %v7286
  %v7288 = vpop.f32.mrf.mxu0
  %7289 = vmatprep.mubr.bf16.mxu0 0
  %7290 = vmatmul.mubr.bf16.gmra.mxu0 %v7144
  %v7291 = vpop.f32.mrf.mxu0
  %v7292 = vadd.f32 0.0, %v7291
  %v7293 = vpop.f32.mrf.mxu0
  %v7294 = vpop.f32.mrf.mxu0
  %v7295 = vpop.f32.mrf.mxu0
  %7296 = vmatprep.mubr.bf16.mxu0 0
  %7297 = vmatmul.mubr.bf16.gmra.mxu0 %v7145
  %v7298 = vpop.f32.mrf.mxu0
  %v7299 = vpop.f32.mrf.mxu0
  %v7300 = vpop.f32.mrf.mxu0
  %v7301 = vadd.f32 0.0, %v7300
  %v7302 = vpop.f32.mrf.mxu0
  %7303 = vmatprep.mubr.bf16.mxu0 0
  %7304 = vmatmul.mubr.bf16.gmra.mxu0 %v7146
  %v7305 = vpop.f32.mrf.mxu0
  %v7306 = vadd.f32 0.0, %v7305
  %v7307 = vpop.f32.mrf.mxu0
  %v7308 = vpop.f32.mrf.mxu0
  %v7309 = vadd.f32 0.0, %v7308
  %v7310 = vpop.f32.mrf.mxu0
  %7311 = vmatprep.mubr.bf16.mxu0 0
  %7312 = vmatmul.mubr.bf16.gmra.mxu0 %v7147
  %v7313 = vpop.f32.mrf.mxu0
  %v7314 = vpop.f32.mrf.mxu0
  %v7315 = vpop.f32.mrf.mxu0
  %v7316 = vpop.f32.mrf.mxu0
  %7317 = vmatprep.mubr.bf16.mxu0 0
  %7318 = vmatmul.mubr.bf16.gmra.mxu0 %v7148
  %v7319 = vpop.f32.mrf.mxu0
  %v7320 = vadd.f32 0.0, %v7319
  %v7321 = vpop.f32.mrf.mxu0
  %v7322 = vpop.f32.mrf.mxu0
  %v7323 = vadd.f32 0.0, %v7322
  %v7324 = vpop.f32.mrf.mxu0
  %7325 = vmatprep.mubr.bf16.mxu0 0
  %7326 = vmatmul.mubr.bf16.gmra.mxu0 %v7149
  %v7327 = vpop.f32.mrf.mxu0
  %v7328 = vpop.f32.mrf.mxu0
  %v7329 = vpop.f32.mrf.mxu0
  %v7330 = vpop.f32.mrf.mxu0
  %7331 = vmatprep.mubr.bf16.mxu0 0
  %7332 = vmatmul.mubr.bf16.gmra.mxu0 %v7150
  %v7333 = vpop.f32.mrf.mxu0
  %v7334 = vadd.f32 0.0, %v7333
  %v7335 = vpop.f32.mrf.mxu0
  %v7336 = vpop.f32.mrf.mxu0
  %v7337 = vadd.f32 0.0, %v7336
  %v7338 = vpop.f32.mrf.mxu0
  %7339 = vmatprep.mubr.bf16.mxu0 0
  %7340 = vmatmul.mubr.bf16.gmra.mxu0 %v7151
  %v7341 = vpop.f32.mrf.mxu0
  %v7342 = vadd.f32 0.0, %v7341
  %v7343 = vpop.f32.mrf.mxu0
  %v7344 = vpop.f32.mrf.mxu0
  %v7345 = vpop.f32.mrf.mxu0
  %7346 = vmatprep.mubr.bf16.mxu0 0
  %7347 = vmatmul.mubr.bf16.gmra.mxu0 %v7152
  %v7348 = vpop.f32.mrf.mxu0
  %v7349 = vpop.f32.mrf.mxu0
  %v7350 = vpop.f32.mrf.mxu0
  %v7351 = vadd.f32 0.0, %v7350
  %v7352 = vpop.f32.mrf.mxu0
  %7353 = vmatprep.mubr.bf16.mxu0 0
  %7354 = vmatmul.mubr.bf16.gmra.mxu0 %v7153
  %v7355 = vpop.f32.mrf.mxu0
  %v7356 = vadd.f32 0.0, %v7355
  %v7357 = vpop.f32.mrf.mxu0
  %v7358 = vpop.f32.mrf.mxu0
  %v7359 = vpop.f32.mrf.mxu0
  %7360 = vmatprep.mubr.bf16.mxu0 0
  %7361 = vmatmul.mubr.bf16.gmra.mxu0 %v7154
  %v7362 = vpop.f32.mrf.mxu0
  %v7363 = vpop.f32.mrf.mxu0
  %v7364 = vpop.f32.mrf.mxu0
  %v7365 = vadd.f32 0.0, %v7364
  %v7366 = vpop.f32.mrf.mxu0
  %7367 = vmatprep.mubr.bf16.mxu0 0
  %7368 = vmatmul.mubr.bf16.gmra.mxu0 %v7155
  %v7369 = vpop.f32.mrf.mxu0
  %v7370 = vadd.f32 0.0, %v7369
  %v7371 = vpop.f32.mrf.mxu0
  %v7372 = vpop.f32.mrf.mxu0
  %v7373 = vadd.f32 0.0, %v7372
  %v7374 = vpop.f32.mrf.mxu0
  %7375 = vdwg.mxu0
  %v7392 = vunpack.c.l.b16 %v7089
  %v7393 = vunpack.c.l.b16 %v7090
  %v7394 = vunpack.c.l.b16 %v7091
  %v7395 = vunpack.c.l.b16 %v7092
  %v7396 = vunpack.c.l.b16 %v7093
  %v7397 = vunpack.c.l.b16 %v7094
  %v7398 = vunpack.c.l.b16 %v7095
  %v7399 = vunpack.c.l.b16 %v7096
  %v7400 = vunpack.c.l.b16 %v7097
  %v7401 = vunpack.c.l.b16 %v7098
  %v7402 = vunpack.c.l.b16 %v7099
  %v7403 = vunpack.c.l.b16 %v7100
  %v7404 = vunpack.c.l.b16 %v7101
  %v7405 = vunpack.c.l.b16 %v7102
  %v7406 = vunpack.c.l.b16 %v7103
  %v7407 = vunpack.c.l.b16 %v7104
  %v7408 = vpack.c.b16 %v7393, %v7392
  %v7409 = vpack.c.b16 %v7395, %v7394
  %v7410 = vpack.c.b16 %v7397, %v7396
  %v7411 = vpack.c.b16 %v7399, %v7398
  %v7412 = vpack.c.b16 %v7401, %v7400
  %v7413 = vpack.c.b16 %v7403, %v7402
  %v7414 = vpack.c.b16 %v7405, %v7404
  %v7415 = vpack.c.b16 %v7407, %v7406
  %7424 = vmatprep.subr.bf16.mxu0 0
  %7425 = vmatpush1.bf16.msra.mxu0 %v7415
  %7426 = vmatprep.subr.bf16.mxu0 0
  %7427 = vmatpush1.bf16.msra.mxu0 %v7414
  %7428 = vmatprep.subr.bf16.mxu0 0
  %7429 = vmatpush1.bf16.msra.mxu0 %v7413
  %7430 = vmatprep.subr.bf16.mxu0 0
  %7431 = vmatpush1.bf16.msra.mxu0 %v7412
  %7432 = vmatprep.subr.bf16.mxu0 0
  %7433 = vmatpush1.bf16.msra.mxu0 %v7411
  %7434 = vmatprep.subr.bf16.mxu0 0
  %7435 = vmatpush1.bf16.msra.mxu0 %v7410
  %7436 = vmatprep.subr.bf16.mxu0 0
  %7437 = vmatpush1.bf16.msra.mxu0 %v7409
  %7438 = vmatprep.subr.bf16.mxu0 0
  %7439 = vmatpush1.bf16.msra.mxu0 %v7408
  %7440 = vmatprep.subr.bf16.mxu0 0
  %7441 = vmatpush2.bf16.msra.mxu0 0
  %7442 = vmatprep.subr.bf16.mxu0 0
  %7443 = vmatpush2.bf16.msra.mxu0 0
  %7444 = vmatprep.subr.bf16.mxu0 0
  %7445 = vmatpush2.bf16.msra.mxu0 0
  %7446 = vmatprep.subr.bf16.mxu0 0
  %7447 = vmatpush2.bf16.msra.mxu0 0
  %7448 = vmatprep.subr.bf16.mxu0 0
  %7449 = vmatpush2.bf16.msra.mxu0 0
  %7450 = vmatprep.subr.bf16.mxu0 0
  %7451 = vmatpush2.bf16.msra.mxu0 0
  %7452 = vmatprep.subr.bf16.mxu0 0
  %7453 = vmatpush2.bf16.msra.mxu0 0
  %7454 = vmatprep.subr.bf16.mxu0 0
  %7455 = vmatpush2.bf16.msra.mxu0 0
  %7456 = vmatprep.mubr.bf16.mxu0 0
  %7457 = vmatmul.mubr.bf16.gmra.mxu0 %v7072
  %v7458 = vpop.f32.mrf.mxu0
  %v7459 = vadd.f32 %v7256, %v7458
  %v7460 = vpop.f32.mrf.mxu0
  %v7461 = vpop.f32.mrf.mxu0
  %v7462 = vadd.f32 %v7259, %v7461
  %v7463 = vpop.f32.mrf.mxu0
  %7464 = vmatprep.mubr.bf16.mxu0 0
  %7465 = vmatmul.mubr.bf16.gmra.mxu0 %v7073
  %v7466 = vpop.f32.mrf.mxu0
  %v7467 = vpop.f32.mrf.mxu0
  %v7468 = vpop.f32.mrf.mxu0
  %v7469 = vpop.f32.mrf.mxu0
  %7470 = vmatprep.mubr.bf16.mxu0 0
  %7471 = vmatmul.mubr.bf16.gmra.mxu0 %v7074
  %v7472 = vpop.f32.mrf.mxu0
  %v7473 = vadd.f32 %v7270, %v7472
  %v7474 = vpop.f32.mrf.mxu0
  %v7475 = vpop.f32.mrf.mxu0
  %v7476 = vadd.f32 %v7273, %v7475
  %v7477 = vpop.f32.mrf.mxu0
  %7478 = vmatprep.mubr.bf16.mxu0 0
  %7479 = vmatmul.mubr.bf16.gmra.mxu0 %v7075
  %v7480 = vpop.f32.mrf.mxu0
  %v7481 = vadd.f32 %v7278, %v7480
  %v7482 = vpop.f32.mrf.mxu0
  %v7483 = vpop.f32.mrf.mxu0
  %v7484 = vpop.f32.mrf.mxu0
  %7485 = vmatprep.mubr.bf16.mxu0 0
  %7486 = vmatmul.mubr.bf16.gmra.mxu0 %v7076
  %v7487 = vpop.f32.mrf.mxu0
  %v7488 = vpop.f32.mrf.mxu0
  %v7489 = vpop.f32.mrf.mxu0
  %v7490 = vadd.f32 %v7287, %v7489
  %v7491 = vpop.f32.mrf.mxu0
  %7492 = vmatprep.mubr.bf16.mxu0 0
  %7493 = vmatmul.mubr.bf16.gmra.mxu0 %v7077
  %v7494 = vpop.f32.mrf.mxu0
  %v7495 = vadd.f32 %v7292, %v7494
  %v7496 = vpop.f32.mrf.mxu0
  %v7497 = vpop.f32.mrf.mxu0
  %v7498 = vpop.f32.mrf.mxu0
  %7499 = vmatprep.mubr.bf16.mxu0 0
  %7500 = vmatmul.mubr.bf16.gmra.mxu0 %v7078
  %v7501 = vpop.f32.mrf.mxu0
  %v7502 = vpop.f32.mrf.mxu0
  %v7503 = vpop.f32.mrf.mxu0
  %v7504 = vadd.f32 %v7301, %v7503
  %v7505 = vpop.f32.mrf.mxu0
  %7506 = vmatprep.mubr.bf16.mxu0 0
  %7507 = vmatmul.mubr.bf16.gmra.mxu0 %v7079
  %v7508 = vpop.f32.mrf.mxu0
  %v7509 = vadd.f32 %v7306, %v7508
  %v7510 = vpop.f32.mrf.mxu0
  %v7511 = vpop.f32.mrf.mxu0
  %v7512 = vadd.f32 %v7309, %v7511
  %v7513 = vpop.f32.mrf.mxu0
  %7514 = vmatprep.mubr.bf16.mxu0 0
  %7515 = vmatmul.mubr.bf16.gmra.mxu0 %v7080
  %v7516 = vpop.f32.mrf.mxu0
  %v7517 = vpop.f32.mrf.mxu0
  %v7518 = vpop.f32.mrf.mxu0
  %v7519 = vpop.f32.mrf.mxu0
  %7520 = vmatprep.mubr.bf16.mxu0 0
  %7521 = vmatmul.mubr.bf16.gmra.mxu0 %v7081
  %v7522 = vpop.f32.mrf.mxu0
  %v7523 = vadd.f32 %v7320, %v7522
  %v7524 = vpop.f32.mrf.mxu0
  %v7525 = vpop.f32.mrf.mxu0
  %v7526 = vadd.f32 %v7323, %v7525
  %v7527 = vpop.f32.mrf.mxu0
  %7528 = vmatprep.mubr.bf16.mxu0 0
  %7529 = vmatmul.mubr.bf16.gmra.mxu0 %v7082
  %v7530 = vpop.f32.mrf.mxu0
  %v7531 = vpop.f32.mrf.mxu0
  %v7532 = vpop.f32.mrf.mxu0
  %v7533 = vpop.f32.mrf.mxu0
  %7534 = vmatprep.mubr.bf16.mxu0 0
  %7535 = vmatmul.mubr.bf16.gmra.mxu0 %v7083
  %v7536 = vpop.f32.mrf.mxu0
  %v7537 = vadd.f32 %v7334, %v7536
  %v7538 = vpop.f32.mrf.mxu0
  %v7539 = vpop.f32.mrf.mxu0
  %v7540 = vadd.f32 %v7337, %v7539
  %v7541 = vpop.f32.mrf.mxu0
  %7542 = vmatprep.mubr.bf16.mxu0 0
  %7543 = vmatmul.mubr.bf16.gmra.mxu0 %v7084
  %v7544 = vpop.f32.mrf.mxu0
  %v7545 = vadd.f32 %v7342, %v7544
  %v7546 = vpop.f32.mrf.mxu0
  %v7547 = vpop.f32.mrf.mxu0
  %v7548 = vpop.f32.mrf.mxu0
  %7549 = vmatprep.mubr.bf16.mxu0 0
  %7550 = vmatmul.mubr.bf16.gmra.mxu0 %v7085
  %v7551 = vpop.f32.mrf.mxu0
  %v7552 = vpop.f32.mrf.mxu0
  %v7553 = vpop.f32.mrf.mxu0
  %v7554 = vadd.f32 %v7351, %v7553
  %v7555 = vpop.f32.mrf.mxu0
  %7556 = vmatprep.mubr.bf16.mxu0 0
  %7557 = vmatmul.mubr.bf16.gmra.mxu0 %v7086
  %v7558 = vpop.f32.mrf.mxu0
  %v7559 = vadd.f32 %v7356, %v7558
  %v7560 = vpop.f32.mrf.mxu0
  %v7561 = vpop.f32.mrf.mxu0
  %v7562 = vpop.f32.mrf.mxu0
  %7563 = vmatprep.mubr.bf16.mxu0 0
  %7564 = vmatmul.mubr.bf16.gmra.mxu0 %v7087
  %v7565 = vpop.f32.mrf.mxu0
  %v7566 = vpop.f32.mrf.mxu0
  %v7567 = vpop.f32.mrf.mxu0
  %v7568 = vadd.f32 %v7365, %v7567
  %v7569 = vpop.f32.mrf.mxu0
  %7570 = vmatprep.mubr.bf16.mxu0 0
  %7571 = vmatmul.mubr.bf16.gmra.mxu0 %v7088
  %v7572 = vpop.f32.mrf.mxu0
  %v7573 = vadd.f32 %v7370, %v7572
  %v7574 = vpop.f32.mrf.mxu0
  %v7575 = vpop.f32.mrf.mxu0
  %v7576 = vadd.f32 %v7373, %v7575
  %v7577 = vpop.f32.mrf.mxu0
  %7578 = vdwg.mxu0
  %v7579 = vld [vmem:[#allocation3 + $0x2] sm:$0xff]
  %v7580 = vld [vmem:[#allocation3 + $0xa] sm:$0xff]
  %v7581 = vld [vmem:[#allocation3 + $0x12] sm:$0xff]
  %v7582 = vld [vmem:[#allocation3 + $0x1a] sm:$0xff]
  %v7583 = vld [vmem:[#allocation3 + $0x22] sm:$0xff]
  %v7584 = vld [vmem:[#allocation3 + $0x2a] sm:$0xff]
  %v7585 = vld [vmem:[#allocation3 + $0x32] sm:$0xff]
  %v7586 = vld [vmem:[#allocation3 + $0x3a] sm:$0xff]
  %v7587 = vld [vmem:[#allocation3 + $0x42] sm:$0xff]
  %v7588 = vld [vmem:[#allocation3 + $0x4a] sm:$0xff]
  %v7589 = vld [vmem:[#allocation3 + $0x52] sm:$0xff]
  %v7590 = vld [vmem:[#allocation3 + $0x5a] sm:$0xff]
  %v7591 = vld [vmem:[#allocation3 + $0x62] sm:$0xff]
  %v7592 = vld [vmem:[#allocation3 + $0x6a] sm:$0xff]
  %v7593 = vld [vmem:[#allocation3 + $0x72] sm:$0xff]
  %v7594 = vld [vmem:[#allocation3 + $0x7a] sm:$0xff]
  %v7595 = vld [vmem:[#allocation3 + $0x82] sm:$0xff]
  %v7596 = vld [vmem:[#allocation3 + $0x8a] sm:$0xff]
  %v7597 = vld [vmem:[#allocation3 + $0x92] sm:$0xff]
  %v7598 = vld [vmem:[#allocation3 + $0x9a] sm:$0xff]
  %v7599 = vld [vmem:[#allocation3 + $0xa2] sm:$0xff]
  %v7600 = vld [vmem:[#allocation3 + $0xaa] sm:$0xff]
  %v7601 = vld [vmem:[#allocation3 + $0xb2] sm:$0xff]
  %v7602 = vld [vmem:[#allocation3 + $0xba] sm:$0xff]
  %v7603 = vld [vmem:[#allocation3 + $0xc2] sm:$0xff]
  %v7604 = vld [vmem:[#allocation3 + $0xca] sm:$0xff]
  %v7605 = vld [vmem:[#allocation3 + $0xd2] sm:$0xff]
  %v7606 = vld [vmem:[#allocation3 + $0xda] sm:$0xff]
  %v7607 = vld [vmem:[#allocation3 + $0xe2] sm:$0xff]
  %v7608 = vld [vmem:[#allocation3 + $0xea] sm:$0xff]
  %v7609 = vld [vmem:[#allocation3 + $0xf2] sm:$0xff]
  %v7610 = vld [vmem:[#allocation3 + $0xfa] sm:$0xff]
  %v7611 = vld [vmem:[#allocation3 + $0x102] sm:$0xff]
  %v7612 = vld [vmem:[#allocation3 + $0x10a] sm:$0x7]
  %v7613 = vpack.c.bf16 %v7580, %v7579
  %v7614 = vpack.c.bf16 %v7582, %v7581
  %v7615 = vpack.c.bf16 %v7584, %v7583
  %v7616 = vpack.c.bf16 %v7586, %v7585
  %v7617 = vpack.c.bf16 %v7588, %v7587
  %v7618 = vpack.c.bf16 %v7590, %v7589
  %v7619 = vpack.c.bf16 %v7592, %v7591
  %v7620 = vpack.c.bf16 %v7594, %v7593
  %v7621 = vpack.c.bf16 %v7596, %v7595
  %v7622 = vpack.c.bf16 %v7598, %v7597
  %v7623 = vpack.c.bf16 %v7600, %v7599
  %v7624 = vpack.c.bf16 %v7602, %v7601
  %v7625 = vpack.c.bf16 %v7604, %v7603
  %v7626 = vpack.c.bf16 %v7606, %v7605
  %v7627 = vpack.c.bf16 %v7608, %v7607
  %v7628 = vpack.c.bf16 %v7610, %v7609
  %v7629 = vpack.c.bf16 %v7612, %v7611
  %s7630 = scalar_lea.vmem %s5, 128
  %v7631 = vld [vmem:[%s7630] sm:$0xf]
  %v7632 = vld [vmem:[%s7630 + $0x4] sm:$0xf]
  %v7633 = vld [vmem:[%s7630 + $0x8] sm:$0xf]
  %v7634 = vld [vmem:[%s7630 + $0xc] sm:$0xf]
  %v7635 = vld [vmem:[%s7630 + $0x10] sm:$0xf]
  %v7636 = vld [vmem:[%s7630 + $0x14] sm:$0xf]
  %v7637 = vld [vmem:[%s7630 + $0x18] sm:$0xf]
  %v7638 = vld [vmem:[%s7630 + $0x1c] sm:$0xf]
  %v7639 = vld [vmem:[%s7630 + $0x20] sm:$0xf]
  %v7640 = vld [vmem:[%s7630 + $0x24] sm:$0xf]
  %v7641 = vld [vmem:[%s7630 + $0x28] sm:$0xf]
  %v7642 = vld [vmem:[%s7630 + $0x2c] sm:$0xf]
  %v7643 = vld [vmem:[%s7630 + $0x30] sm:$0xf]
  %v7644 = vld [vmem:[%s7630 + $0x34] sm:$0xf]
  %v7645 = vld [vmem:[%s7630 + $0x38] sm:$0xf]
  %v7646 = vld [vmem:[%s7630 + $0x3c] sm:$0xf]
  %v7663 = vunpack.c.l.b16 %v7631
  %v7664 = vunpack.c.l.b16 %v7632
  %v7665 = vunpack.c.l.b16 %v7633
  %v7666 = vunpack.c.l.b16 %v7634
  %v7667 = vunpack.c.l.b16 %v7635
  %v7668 = vunpack.c.l.b16 %v7636
  %v7669 = vunpack.c.l.b16 %v7637
  %v7670 = vunpack.c.l.b16 %v7638
  %v7671 = vunpack.c.l.b16 %v7639
  %v7672 = vunpack.c.l.b16 %v7640
  %v7673 = vunpack.c.l.b16 %v7641
  %v7674 = vunpack.c.l.b16 %v7642
  %v7675 = vunpack.c.l.b16 %v7643
  %v7676 = vunpack.c.l.b16 %v7644
  %v7677 = vunpack.c.l.b16 %v7645
  %v7678 = vunpack.c.l.b16 %v7646
  %v7679 = vpack.c.b16 %v7664, %v7663
  %v7680 = vpack.c.b16 %v7666, %v7665
  %v7681 = vpack.c.b16 %v7668, %v7667
  %v7682 = vpack.c.b16 %v7670, %v7669
  %v7683 = vpack.c.b16 %v7672, %v7671
  %v7684 = vpack.c.b16 %v7674, %v7673
  %v7685 = vpack.c.b16 %v7676, %v7675
  %v7686 = vpack.c.b16 %v7678, %v7677
  %7695 = vmatprep.subr.bf16.mxu0 0
  %7696 = vmatpush1.bf16.msra.mxu0 %v7686
  %7697 = vmatprep.subr.bf16.mxu0 0
  %7698 = vmatpush1.bf16.msra.mxu0 %v7685
  %7699 = vmatprep.subr.bf16.mxu0 0
  %7700 = vmatpush1.bf16.msra.mxu0 %v7684
  %7701 = vmatprep.subr.bf16.mxu0 0
  %7702 = vmatpush1.bf16.msra.mxu0 %v7683
  %7703 = vmatprep.subr.bf16.mxu0 0
  %7704 = vmatpush1.bf16.msra.mxu0 %v7682
  %7705 = vmatprep.subr.bf16.mxu0 0
  %7706 = vmatpush1.bf16.msra.mxu0 %v7681
  %7707 = vmatprep.subr.bf16.mxu0 0
  %7708 = vmatpush1.bf16.msra.mxu0 %v7680
  %7709 = vmatprep.subr.bf16.mxu0 0
  %7710 = vmatpush1.bf16.msra.mxu0 %v7679
  %7711 = vmatprep.subr.bf16.mxu0 0
  %7712 = vmatpush2.bf16.msra.mxu0 0
  %7713 = vmatprep.subr.bf16.mxu0 0
  %7714 = vmatpush2.bf16.msra.mxu0 0
  %7715 = vmatprep.subr.bf16.mxu0 0
  %7716 = vmatpush2.bf16.msra.mxu0 0
  %7717 = vmatprep.subr.bf16.mxu0 0
  %7718 = vmatpush2.bf16.msra.mxu0 0
  %7719 = vmatprep.subr.bf16.mxu0 0
  %7720 = vmatpush2.bf16.msra.mxu0 0
  %7721 = vmatprep.subr.bf16.mxu0 0
  %7722 = vmatpush2.bf16.msra.mxu0 0
  %7723 = vmatprep.subr.bf16.mxu0 0
  %7724 = vmatpush2.bf16.msra.mxu0 0
  %7725 = vmatprep.subr.bf16.mxu0 0
  %7726 = vmatpush2.bf16.msra.mxu0 0
  %7727 = vmatprep.mubr.bf16.mxu0 0
  %7728 = vmatmul.mubr.bf16.gmra.mxu0 %v7613
  %v7729 = vpop.f32.mrf.mxu0
  %v7730 = vadd.f32 0.0, %v7729
  %v7731 = vpop.f32.mrf.mxu0
  %v7732 = vpop.f32.mrf.mxu0
  %v7733 = vadd.f32 0.0, %v7732
  %v7734 = vpop.f32.mrf.mxu0
  %7735 = vmatprep.mubr.bf16.mxu0 0
  %7736 = vmatmul.mubr.bf16.gmra.mxu0 %v7614
  %v7737 = vpop.f32.mrf.mxu0
  %v7738 = vpop.f32.mrf.mxu0
  %v7739 = vpop.f32.mrf.mxu0
  %v7740 = vpop.f32.mrf.mxu0
  %7741 = vmatprep.mubr.bf16.mxu0 0
  %7742 = vmatmul.mubr.bf16.gmra.mxu0 %v7615
  %v7743 = vpop.f32.mrf.mxu0
  %v7744 = vadd.f32 0.0, %v7743
  %v7745 = vpop.f32.mrf.mxu0
  %v7746 = vpop.f32.mrf.mxu0
  %v7747 = vadd.f32 0.0, %v7746
  %v7748 = vpop.f32.mrf.mxu0
  %7749 = vmatprep.mubr.bf16.mxu0 0
  %7750 = vmatmul.mubr.bf16.gmra.mxu0 %v7616
  %v7751 = vpop.f32.mrf.mxu0
  %v7752 = vadd.f32 0.0, %v7751
  %v7753 = vpop.f32.mrf.mxu0
  %v7754 = vpop.f32.mrf.mxu0
  %v7755 = vpop.f32.mrf.mxu0
  %7756 = vmatprep.mubr.bf16.mxu0 0
  %7757 = vmatmul.mubr.bf16.gmra.mxu0 %v7617
  %v7758 = vpop.f32.mrf.mxu0
  %v7759 = vpop.f32.mrf.mxu0
  %v7760 = vpop.f32.mrf.mxu0
  %v7761 = vadd.f32 0.0, %v7760
  %v7762 = vpop.f32.mrf.mxu0
  %7763 = vmatprep.mubr.bf16.mxu0 0
  %7764 = vmatmul.mubr.bf16.gmra.mxu0 %v7618
  %v7765 = vpop.f32.mrf.mxu0
  %v7766 = vadd.f32 0.0, %v7765
  %v7767 = vpop.f32.mrf.mxu0
  %v7768 = vpop.f32.mrf.mxu0
  %v7769 = vpop.f32.mrf.mxu0
  %7770 = vmatprep.mubr.bf16.mxu0 0
  %7771 = vmatmul.mubr.bf16.gmra.mxu0 %v7619
  %v7772 = vpop.f32.mrf.mxu0
  %v7773 = vpop.f32.mrf.mxu0
  %v7774 = vpop.f32.mrf.mxu0
  %v7775 = vadd.f32 0.0, %v7774
  %v7776 = vpop.f32.mrf.mxu0
  %7777 = vmatprep.mubr.bf16.mxu0 0
  %7778 = vmatmul.mubr.bf16.gmra.mxu0 %v7620
  %v7779 = vpop.f32.mrf.mxu0
  %v7780 = vadd.f32 0.0, %v7779
  %v7781 = vpop.f32.mrf.mxu0
  %v7782 = vpop.f32.mrf.mxu0
  %v7783 = vadd.f32 0.0, %v7782
  %v7784 = vpop.f32.mrf.mxu0
  %7785 = vmatprep.mubr.bf16.mxu0 0
  %7786 = vmatmul.mubr.bf16.gmra.mxu0 %v7621
  %v7787 = vpop.f32.mrf.mxu0
  %v7788 = vpop.f32.mrf.mxu0
  %v7789 = vpop.f32.mrf.mxu0
  %v7790 = vpop.f32.mrf.mxu0
  %7791 = vmatprep.mubr.bf16.mxu0 0
  %7792 = vmatmul.mubr.bf16.gmra.mxu0 %v7622
  %v7793 = vpop.f32.mrf.mxu0
  %v7794 = vadd.f32 0.0, %v7793
  %v7795 = vpop.f32.mrf.mxu0
  %v7796 = vpop.f32.mrf.mxu0
  %v7797 = vadd.f32 0.0, %v7796
  %v7798 = vpop.f32.mrf.mxu0
  %7799 = vmatprep.mubr.bf16.mxu0 0
  %7800 = vmatmul.mubr.bf16.gmra.mxu0 %v7623
  %v7801 = vpop.f32.mrf.mxu0
  %v7802 = vpop.f32.mrf.mxu0
  %v7803 = vpop.f32.mrf.mxu0
  %v7804 = vpop.f32.mrf.mxu0
  %7805 = vmatprep.mubr.bf16.mxu0 0
  %7806 = vmatmul.mubr.bf16.gmra.mxu0 %v7624
  %v7807 = vpop.f32.mrf.mxu0
  %v7808 = vadd.f32 0.0, %v7807
  %v7809 = vpop.f32.mrf.mxu0
  %v7810 = vpop.f32.mrf.mxu0
  %v7811 = vadd.f32 0.0, %v7810
  %v7812 = vpop.f32.mrf.mxu0
  %7813 = vmatprep.mubr.bf16.mxu0 0
  %7814 = vmatmul.mubr.bf16.gmra.mxu0 %v7625
  %v7815 = vpop.f32.mrf.mxu0
  %v7816 = vadd.f32 0.0, %v7815
  %v7817 = vpop.f32.mrf.mxu0
  %v7818 = vpop.f32.mrf.mxu0
  %v7819 = vpop.f32.mrf.mxu0
  %7820 = vmatprep.mubr.bf16.mxu0 0
  %7821 = vmatmul.mubr.bf16.gmra.mxu0 %v7626
  %v7822 = vpop.f32.mrf.mxu0
  %v7823 = vpop.f32.mrf.mxu0
  %v7824 = vpop.f32.mrf.mxu0
  %v7825 = vadd.f32 0.0, %v7824
  %v7826 = vpop.f32.mrf.mxu0
  %7827 = vmatprep.mubr.bf16.mxu0 0
  %7828 = vmatmul.mubr.bf16.gmra.mxu0 %v7627
  %v7829 = vpop.f32.mrf.mxu0
  %v7830 = vadd.f32 0.0, %v7829
  %v7831 = vpop.f32.mrf.mxu0
  %v7832 = vpop.f32.mrf.mxu0
  %v7833 = vpop.f32.mrf.mxu0
  %7834 = vmatprep.mubr.bf16.mxu0 0
  %7835 = vmatmul.mubr.bf16.gmra.mxu0 %v7628
  %v7836 = vpop.f32.mrf.mxu0
  %v7837 = vpop.f32.mrf.mxu0
  %v7838 = vpop.f32.mrf.mxu0
  %v7839 = vadd.f32 0.0, %v7838
  %v7840 = vpop.f32.mrf.mxu0
  %7841 = vmatprep.mubr.bf16.mxu0 0
  %7842 = vmatmul.mubr.bf16.gmra.mxu0 %v7629
  %v7843 = vpop.f32.mrf.mxu0
  %v7844 = vadd.f32 0.0, %v7843
  %v7845 = vpop.f32.mrf.mxu0
  %v7846 = vpop.f32.mrf.mxu0
  %v7847 = vadd.f32 0.0, %v7846
  %v7848 = vpop.f32.mrf.mxu0
  %7849 = vdwg.mxu0
  %v7850 = vadd.f32 %v7459, %v7730
  %v7851 = vadd.f32 %v7462, %v7733
  %v7852 = vadd.f32 %v7473, %v7744
  %v7853 = vadd.f32 %v7476, %v7747
  %v7854 = vadd.f32 %v7481, %v7752
  %v7855 = vadd.f32 %v7490, %v7761
  %v7856 = vadd.f32 %v7495, %v7766
  %v7857 = vadd.f32 %v7504, %v7775
  %v7858 = vadd.f32 %v7509, %v7780
  %v7859 = vadd.f32 %v7512, %v7783
  %v7860 = vadd.f32 %v7523, %v7794
  %v7861 = vadd.f32 %v7526, %v7797
  %v7862 = vadd.f32 %v7537, %v7808
  %v7863 = vadd.f32 %v7540, %v7811
  %v7864 = vadd.f32 %v7545, %v7816
  %v7865 = vadd.f32 %v7554, %v7825
  %v7866 = vadd.f32 %v7559, %v7830
  %v7867 = vadd.f32 %v7568, %v7839
  %v7868 = vadd.f32 %v7573, %v7844
  %v7869 = vadd.f32 %v7576, %v7847
  %v7870 = vld [vmem:[#allocation3 + $0x6] sm:$0xff]
  %v7871 = vld [vmem:[#allocation3 + $0xe] sm:$0xff]
  %v7872 = vld [vmem:[#allocation3 + $0x16] sm:$0xff]
  %v7873 = vld [vmem:[#allocation3 + $0x1e] sm:$0xff]
  %v7874 = vld [vmem:[#allocation3 + $0x26] sm:$0xff]
  %v7875 = vld [vmem:[#allocation3 + $0x2e] sm:$0xff]
  %v7876 = vld [vmem:[#allocation3 + $0x36] sm:$0xff]
  %v7877 = vld [vmem:[#allocation3 + $0x3e] sm:$0xff]
  %v7878 = vld [vmem:[#allocation3 + $0x46] sm:$0xff]
  %v7879 = vld [vmem:[#allocation3 + $0x4e] sm:$0xff]
  %v7880 = vld [vmem:[#allocation3 + $0x56] sm:$0xff]
  %v7881 = vld [vmem:[#allocation3 + $0x5e] sm:$0xff]
  %v7882 = vld [vmem:[#allocation3 + $0x66] sm:$0xff]
  %v7883 = vld [vmem:[#allocation3 + $0x6e] sm:$0xff]
  %v7884 = vld [vmem:[#allocation3 + $0x76] sm:$0xff]
  %v7885 = vld [vmem:[#allocation3 + $0x7e] sm:$0xff]
  %v7886 = vld [vmem:[#allocation3 + $0x86] sm:$0xff]
  %v7887 = vld [vmem:[#allocation3 + $0x8e] sm:$0xff]
  %v7888 = vld [vmem:[#allocation3 + $0x96] sm:$0xff]
  %v7889 = vld [vmem:[#allocation3 + $0x9e] sm:$0xff]
  %v7890 = vld [vmem:[#allocation3 + $0xa6] sm:$0xff]
  %v7891 = vld [vmem:[#allocation3 + $0xae] sm:$0xff]
  %v7892 = vld [vmem:[#allocation3 + $0xb6] sm:$0xff]
  %v7893 = vld [vmem:[#allocation3 + $0xbe] sm:$0xff]
  %v7894 = vld [vmem:[#allocation3 + $0xc6] sm:$0xff]
  %v7895 = vld [vmem:[#allocation3 + $0xce] sm:$0xff]
  %v7896 = vld [vmem:[#allocation3 + $0xd6] sm:$0xff]
  %v7897 = vld [vmem:[#allocation3 + $0xde] sm:$0xff]
  %v7898 = vld [vmem:[#allocation3 + $0xe6] sm:$0xff]
  %v7899 = vld [vmem:[#allocation3 + $0xee] sm:$0xff]
  %v7900 = vld [vmem:[#allocation3 + $0xf6] sm:$0xff]
  %v7901 = vld [vmem:[#allocation3 + $0xfe] sm:$0xff]
  %v7902 = vld [vmem:[#allocation3 + $0x106] sm:$0xff]
  %v7903 = vld [vmem:[#allocation3 + $0x10e] sm:$0x7]
  %v7904 = vpack.c.bf16 %v7871, %v7870
  %v7905 = vpack.c.bf16 %v7873, %v7872
  %v7906 = vpack.c.bf16 %v7875, %v7874
  %v7907 = vpack.c.bf16 %v7877, %v7876
  %v7908 = vpack.c.bf16 %v7879, %v7878
  %v7909 = vpack.c.bf16 %v7881, %v7880
  %v7910 = vpack.c.bf16 %v7883, %v7882
  %v7911 = vpack.c.bf16 %v7885, %v7884
  %v7912 = vpack.c.bf16 %v7887, %v7886
  %v7913 = vpack.c.bf16 %v7889, %v7888
  %v7914 = vpack.c.bf16 %v7891, %v7890
  %v7915 = vpack.c.bf16 %v7893, %v7892
  %v7916 = vpack.c.bf16 %v7895, %v7894
  %v7917 = vpack.c.bf16 %v7897, %v7896
  %v7918 = vpack.c.bf16 %v7899, %v7898
  %v7919 = vpack.c.bf16 %v7901, %v7900
  %v7920 = vpack.c.bf16 %v7903, %v7902
  %s7921 = scalar_lea.vmem %s5, 192
  %v7922 = vld [vmem:[%s7921] sm:$0xf]
  %v7923 = vld [vmem:[%s7921 + $0x4] sm:$0xf]
  %v7924 = vld [vmem:[%s7921 + $0x8] sm:$0xf]
  %v7925 = vld [vmem:[%s7921 + $0xc] sm:$0xf]
  %v7926 = vld [vmem:[%s7921 + $0x10] sm:$0xf]
  %v7927 = vld [vmem:[%s7921 + $0x14] sm:$0xf]
  %v7928 = vld [vmem:[%s7921 + $0x18] sm:$0xf]
  %v7929 = vld [vmem:[%s7921 + $0x1c] sm:$0xf]
  %v7930 = vld [vmem:[%s7921 + $0x20] sm:$0xf]
  %v7931 = vld [vmem:[%s7921 + $0x24] sm:$0xf]
  %v7932 = vld [vmem:[%s7921 + $0x28] sm:$0xf]
  %v7933 = vld [vmem:[%s7921 + $0x2c] sm:$0xf]
  %v7934 = vld [vmem:[%s7921 + $0x30] sm:$0xf]
  %v7935 = vld [vmem:[%s7921 + $0x34] sm:$0xf]
  %v7936 = vld [vmem:[%s7921 + $0x38] sm:$0xf]
  %v7937 = vld [vmem:[%s7921 + $0x3c] sm:$0xf]
  %v7954 = vunpack.c.l.b16 %v7922
  %v7955 = vunpack.c.l.b16 %v7923
  %v7956 = vunpack.c.l.b16 %v7924
  %v7957 = vunpack.c.l.b16 %v7925
  %v7958 = vunpack.c.l.b16 %v7926
  %v7959 = vunpack.c.l.b16 %v7927
  %v7960 = vunpack.c.l.b16 %v7928
  %v7961 = vunpack.c.l.b16 %v7929
  %v7962 = vunpack.c.l.b16 %v7930
  %v7963 = vunpack.c.l.b16 %v7931
  %v7964 = vunpack.c.l.b16 %v7932
  %v7965 = vunpack.c.l.b16 %v7933
  %v7966 = vunpack.c.l.b16 %v7934
  %v7967 = vunpack.c.l.b16 %v7935
  %v7968 = vunpack.c.l.b16 %v7936
  %v7969 = vunpack.c.l.b16 %v7937
  %v7970 = vpack.c.b16 %v7955, %v7954
  %v7971 = vpack.c.b16 %v7957, %v7956
  %v7972 = vpack.c.b16 %v7959, %v7958
  %v7973 = vpack.c.b16 %v7961, %v7960
  %v7974 = vpack.c.b16 %v7963, %v7962
  %v7975 = vpack.c.b16 %v7965, %v7964
  %v7976 = vpack.c.b16 %v7967, %v7966
  %v7977 = vpack.c.b16 %v7969, %v7968
  %7986 = vmatprep.subr.bf16.mxu0 0
  %7987 = vmatpush1.bf16.msra.mxu0 %v7977
  %7988 = vmatprep.subr.bf16.mxu0 0
  %7989 = vmatpush1.bf16.msra.mxu0 %v7976
  %7990 = vmatprep.subr.bf16.mxu0 0
  %7991 = vmatpush1.bf16.msra.mxu0 %v7975
  %7992 = vmatprep.subr.bf16.mxu0 0
  %7993 = vmatpush1.bf16.msra.mxu0 %v7974
  %7994 = vmatprep.subr.bf16.mxu0 0
  %7995 = vmatpush1.bf16.msra.mxu0 %v7973
  %7996 = vmatprep.subr.bf16.mxu0 0
  %7997 = vmatpush1.bf16.msra.mxu0 %v7972
  %7998 = vmatprep.subr.bf16.mxu0 0
  %7999 = vmatpush1.bf16.msra.mxu0 %v7971
  %8000 = vmatprep.subr.bf16.mxu0 0
  %8001 = vmatpush1.bf16.msra.mxu0 %v7970
  %8002 = vmatprep.subr.bf16.mxu0 0
  %8003 = vmatpush2.bf16.msra.mxu0 0
  %8004 = vmatprep.subr.bf16.mxu0 0
  %8005 = vmatpush2.bf16.msra.mxu0 0
  %8006 = vmatprep.subr.bf16.mxu0 0
  %8007 = vmatpush2.bf16.msra.mxu0 0
  %8008 = vmatprep.subr.bf16.mxu0 0
  %8009 = vmatpush2.bf16.msra.mxu0 0
  %8010 = vmatprep.subr.bf16.mxu0 0
  %8011 = vmatpush2.bf16.msra.mxu0 0
  %8012 = vmatprep.subr.bf16.mxu0 0
  %8013 = vmatpush2.bf16.msra.mxu0 0
  %8014 = vmatprep.subr.bf16.mxu0 0
  %8015 = vmatpush2.bf16.msra.mxu0 0
  %8016 = vmatprep.subr.bf16.mxu0 0
  %8017 = vmatpush2.bf16.msra.mxu0 0
  %8018 = vmatprep.mubr.bf16.mxu0 0
  %8019 = vmatmul.mubr.bf16.gmra.mxu0 %v7904
  %v8020 = vpop.f32.mrf.mxu0
  %v8021 = vadd.f32 0.0, %v8020
  %v8022 = vpop.f32.mrf.mxu0
  %v8023 = vpop.f32.mrf.mxu0
  %v8024 = vadd.f32 0.0, %v8023
  %v8025 = vpop.f32.mrf.mxu0
  %8026 = vmatprep.mubr.bf16.mxu0 0
  %8027 = vmatmul.mubr.bf16.gmra.mxu0 %v7905
  %v8028 = vpop.f32.mrf.mxu0
  %v8029 = vpop.f32.mrf.mxu0
  %v8030 = vpop.f32.mrf.mxu0
  %v8031 = vpop.f32.mrf.mxu0
  %8032 = vmatprep.mubr.bf16.mxu0 0
  %8033 = vmatmul.mubr.bf16.gmra.mxu0 %v7906
  %v8034 = vpop.f32.mrf.mxu0
  %v8035 = vadd.f32 0.0, %v8034
  %v8036 = vpop.f32.mrf.mxu0
  %v8037 = vpop.f32.mrf.mxu0
  %v8038 = vadd.f32 0.0, %v8037
  %v8039 = vpop.f32.mrf.mxu0
  %8040 = vmatprep.mubr.bf16.mxu0 0
  %8041 = vmatmul.mubr.bf16.gmra.mxu0 %v7907
  %v8042 = vpop.f32.mrf.mxu0
  %v8043 = vadd.f32 0.0, %v8042
  %v8044 = vpop.f32.mrf.mxu0
  %v8045 = vpop.f32.mrf.mxu0
  %v8046 = vpop.f32.mrf.mxu0
  %8047 = vmatprep.mubr.bf16.mxu0 0
  %8048 = vmatmul.mubr.bf16.gmra.mxu0 %v7908
  %v8049 = vpop.f32.mrf.mxu0
  %v8050 = vpop.f32.mrf.mxu0
  %v8051 = vpop.f32.mrf.mxu0
  %v8052 = vadd.f32 0.0, %v8051
  %v8053 = vpop.f32.mrf.mxu0
  %8054 = vmatprep.mubr.bf16.mxu0 0
  %8055 = vmatmul.mubr.bf16.gmra.mxu0 %v7909
  %v8056 = vpop.f32.mrf.mxu0
  %v8057 = vadd.f32 0.0, %v8056
  %v8058 = vpop.f32.mrf.mxu0
  %v8059 = vpop.f32.mrf.mxu0
  %v8060 = vpop.f32.mrf.mxu0
  %8061 = vmatprep.mubr.bf16.mxu0 0
  %8062 = vmatmul.mubr.bf16.gmra.mxu0 %v7910
  %v8063 = vpop.f32.mrf.mxu0
  %v8064 = vpop.f32.mrf.mxu0
  %v8065 = vpop.f32.mrf.mxu0
  %v8066 = vadd.f32 0.0, %v8065
  %v8067 = vpop.f32.mrf.mxu0
  %8068 = vmatprep.mubr.bf16.mxu0 0
  %8069 = vmatmul.mubr.bf16.gmra.mxu0 %v7911
  %v8070 = vpop.f32.mrf.mxu0
  %v8071 = vadd.f32 0.0, %v8070
  %v8072 = vpop.f32.mrf.mxu0
  %v8073 = vpop.f32.mrf.mxu0
  %v8074 = vadd.f32 0.0, %v8073
  %v8075 = vpop.f32.mrf.mxu0
  %8076 = vmatprep.mubr.bf16.mxu0 0
  %8077 = vmatmul.mubr.bf16.gmra.mxu0 %v7912
  %v8078 = vpop.f32.mrf.mxu0
  %v8079 = vpop.f32.mrf.mxu0
  %v8080 = vpop.f32.mrf.mxu0
  %v8081 = vpop.f32.mrf.mxu0
  %8082 = vmatprep.mubr.bf16.mxu0 0
  %8083 = vmatmul.mubr.bf16.gmra.mxu0 %v7913
  %v8084 = vpop.f32.mrf.mxu0
  %v8085 = vadd.f32 0.0, %v8084
  %v8086 = vpop.f32.mrf.mxu0
  %v8087 = vpop.f32.mrf.mxu0
  %v8088 = vadd.f32 0.0, %v8087
  %v8089 = vpop.f32.mrf.mxu0
  %8090 = vmatprep.mubr.bf16.mxu0 0
  %8091 = vmatmul.mubr.bf16.gmra.mxu0 %v7914
  %v8092 = vpop.f32.mrf.mxu0
  %v8093 = vpop.f32.mrf.mxu0
  %v8094 = vpop.f32.mrf.mxu0
  %v8095 = vpop.f32.mrf.mxu0
  %8096 = vmatprep.mubr.bf16.mxu0 0
  %8097 = vmatmul.mubr.bf16.gmra.mxu0 %v7915
  %v8098 = vpop.f32.mrf.mxu0
  %v8099 = vadd.f32 0.0, %v8098
  %v8100 = vpop.f32.mrf.mxu0
  %v8101 = vpop.f32.mrf.mxu0
  %v8102 = vadd.f32 0.0, %v8101
  %v8103 = vpop.f32.mrf.mxu0
  %8104 = vmatprep.mubr.bf16.mxu0 0
  %8105 = vmatmul.mubr.bf16.gmra.mxu0 %v7916
  %v8106 = vpop.f32.mrf.mxu0
  %v8107 = vadd.f32 0.0, %v8106
  %v8108 = vpop.f32.mrf.mxu0
  %v8109 = vpop.f32.mrf.mxu0
  %v8110 = vpop.f32.mrf.mxu0
  %8111 = vmatprep.mubr.bf16.mxu0 0
  %8112 = vmatmul.mubr.bf16.gmra.mxu0 %v7917
  %v8113 = vpop.f32.mrf.mxu0
  %v8114 = vpop.f32.mrf.mxu0
  %v8115 = vpop.f32.mrf.mxu0
  %v8116 = vadd.f32 0.0, %v8115
  %v8117 = vpop.f32.mrf.mxu0
  %8118 = vmatprep.mubr.bf16.mxu0 0
  %8119 = vmatmul.mubr.bf16.gmra.mxu0 %v7918
  %v8120 = vpop.f32.mrf.mxu0
  %v8121 = vadd.f32 0.0, %v8120
  %v8122 = vpop.f32.mrf.mxu0
  %v8123 = vpop.f32.mrf.mxu0
  %v8124 = vpop.f32.mrf.mxu0
  %8125 = vmatprep.mubr.bf16.mxu0 0
  %8126 = vmatmul.mubr.bf16.gmra.mxu0 %v7919
  %v8127 = vpop.f32.mrf.mxu0
  %v8128 = vpop.f32.mrf.mxu0
  %v8129 = vpop.f32.mrf.mxu0
  %v8130 = vadd.f32 0.0, %v8129
  %v8131 = vpop.f32.mrf.mxu0
  %8132 = vmatprep.mubr.bf16.mxu0 0
  %8133 = vmatmul.mubr.bf16.gmra.mxu0 %v7920
  %v8134 = vpop.f32.mrf.mxu0
  %v8135 = vadd.f32 0.0, %v8134
  %v8136 = vpop.f32.mrf.mxu0
  %v8137 = vpop.f32.mrf.mxu0
  %v8138 = vadd.f32 0.0, %v8137
  %v8139 = vpop.f32.mrf.mxu0
  %8140 = vdwg.mxu0
  %v8141 = vadd.f32 %v7850, %v8021
  %v8142 = vadd.f32 %v7851, %v8024
  %v8143 = vadd.f32 %v7852, %v8035
  %v8144 = vadd.f32 %v7853, %v8038
  %v8145 = vadd.f32 %v7854, %v8043
  %v8146 = vadd.f32 %v7855, %v8052
  %v8147 = vadd.f32 %v7856, %v8057
  %v8148 = vadd.f32 %v7857, %v8066
  %v8149 = vadd.f32 %v7858, %v8071
  %v8150 = vadd.f32 %v7859, %v8074
  %v8151 = vadd.f32 %v7860, %v8085
  %v8152 = vadd.f32 %v7861, %v8088
  %v8153 = vadd.f32 %v7862, %v8099
  %v8154 = vadd.f32 %v7863, %v8102
  %v8155 = vadd.f32 %v7864, %v8107
  %v8156 = vadd.f32 %v7865, %v8116
  %v8157 = vadd.f32 %v7866, %v8121
  %v8158 = vadd.f32 %v7867, %v8130
  %v8159 = vadd.f32 %v7868, %v8135
  %v8160 = vadd.f32 %v7869, %v8138
  %v8161 = vld [vmem:[#allocation3 + $0x7] sm:$0xff]
  %v8162 = vld [vmem:[#allocation3 + $0xf] sm:$0xff]
  %v8163 = vld [vmem:[#allocation3 + $0x17] sm:$0xff]
  %v8164 = vld [vmem:[#allocation3 + $0x1f] sm:$0xff]
  %v8165 = vld [vmem:[#allocation3 + $0x27] sm:$0xff]
  %v8166 = vld [vmem:[#allocation3 + $0x2f] sm:$0xff]
  %v8167 = vld [vmem:[#allocation3 + $0x37] sm:$0xff]
  %v8168 = vld [vmem:[#allocation3 + $0x3f] sm:$0xff]
  %v8169 = vld [vmem:[#allocation3 + $0x47] sm:$0xff]
  %v8170 = vld [vmem:[#allocation3 + $0x4f] sm:$0xff]
  %v8171 = vld [vmem:[#allocation3 + $0x57] sm:$0xff]
  %v8172 = vld [vmem:[#allocation3 + $0x5f] sm:$0xff]
  %v8173 = vld [vmem:[#allocation3 + $0x67] sm:$0xff]
  %v8174 = vld [vmem:[#allocation3 + $0x6f] sm:$0xff]
  %v8175 = vld [vmem:[#allocation3 + $0x77] sm:$0xff]
  %v8176 = vld [vmem:[#allocation3 + $0x7f] sm:$0xff]
  %v8177 = vld [vmem:[#allocation3 + $0x87] sm:$0xff]
  %v8178 = vld [vmem:[#allocation3 + $0x8f] sm:$0xff]
  %v8179 = vld [vmem:[#allocation3 + $0x97] sm:$0xff]
  %v8180 = vld [vmem:[#allocation3 + $0x9f] sm:$0xff]
  %v8181 = vld [vmem:[#allocation3 + $0xa7] sm:$0xff]
  %v8182 = vld [vmem:[#allocation3 + $0xaf] sm:$0xff]
  %v8183 = vld [vmem:[#allocation3 + $0xb7] sm:$0xff]
  %v8184 = vld [vmem:[#allocation3 + $0xbf] sm:$0xff]
  %v8185 = vld [vmem:[#allocation3 + $0xc7] sm:$0xff]
  %v8186 = vld [vmem:[#allocation3 + $0xcf] sm:$0xff]
  %v8187 = vld [vmem:[#allocation3 + $0xd7] sm:$0xff]
  %v8188 = vld [vmem:[#allocation3 + $0xdf] sm:$0xff]
  %v8189 = vld [vmem:[#allocation3 + $0xe7] sm:$0xff]
  %v8190 = vld [vmem:[#allocation3 + $0xef] sm:$0xff]
  %v8191 = vld [vmem:[#allocation3 + $0xf7] sm:$0xff]
  %v8192 = vld [vmem:[#allocation3 + $0xff] sm:$0xff]
  %v8193 = vld [vmem:[#allocation3 + $0x107] sm:$0xff]
  %v8194 = vld [vmem:[#allocation3 + $0x10f] sm:$0x7]
  %v8195 = vpack.c.bf16 %v8162, %v8161
  %v8196 = vpack.c.bf16 %v8164, %v8163
  %v8197 = vpack.c.bf16 %v8166, %v8165
  %v8198 = vpack.c.bf16 %v8168, %v8167
  %v8199 = vpack.c.bf16 %v8170, %v8169
  %v8200 = vpack.c.bf16 %v8172, %v8171
  %v8201 = vpack.c.bf16 %v8174, %v8173
  %v8202 = vpack.c.bf16 %v8176, %v8175
  %v8203 = vpack.c.bf16 %v8178, %v8177
  %v8204 = vpack.c.bf16 %v8180, %v8179
  %v8205 = vpack.c.bf16 %v8182, %v8181
  %v8206 = vpack.c.bf16 %v8184, %v8183
  %v8207 = vpack.c.bf16 %v8186, %v8185
  %v8208 = vpack.c.bf16 %v8188, %v8187
  %v8209 = vpack.c.bf16 %v8190, %v8189
  %v8210 = vpack.c.bf16 %v8192, %v8191
  %v8211 = vpack.c.bf16 %v8194, %v8193
  %s8212 = scalar_lea.vmem %s5, 256
  %v8213 = vld [vmem:[%s8212] sm:$0xf]
  %v8214 = vld [vmem:[%s8212 + $0x4] sm:$0xf]
  %v8215 = vld [vmem:[%s8212 + $0x8] sm:$0xf]
  %v8216 = vld [vmem:[%s8212 + $0xc] sm:$0xf]
  %v8217 = vld [vmem:[%s8212 + $0x10] sm:$0xf]
  %v8218 = vld [vmem:[%s8212 + $0x14] sm:$0xf]
  %v8219 = vld [vmem:[%s8212 + $0x18] sm:$0xf]
  %v8220 = vld [vmem:[%s8212 + $0x1c] sm:$0xf]
  %v8221 = vld [vmem:[%s8212 + $0x20] sm:$0xf]
  %v8222 = vld [vmem:[%s8212 + $0x24] sm:$0xf]
  %v8223 = vld [vmem:[%s8212 + $0x28] sm:$0xf]
  %v8224 = vld [vmem:[%s8212 + $0x2c] sm:$0xf]
  %v8225 = vld [vmem:[%s8212 + $0x30] sm:$0xf]
  %v8226 = vld [vmem:[%s8212 + $0x34] sm:$0xf]
  %v8227 = vld [vmem:[%s8212 + $0x38] sm:$0xf]
  %v8228 = vld [vmem:[%s8212 + $0x3c] sm:$0xf]
  %v8245 = vunpack.c.l.b16 %v8213
  %v8246 = vunpack.c.l.b16 %v8214
  %v8247 = vunpack.c.l.b16 %v8215
  %v8248 = vunpack.c.l.b16 %v8216
  %v8249 = vunpack.c.l.b16 %v8217
  %v8250 = vunpack.c.l.b16 %v8218
  %v8251 = vunpack.c.l.b16 %v8219
  %v8252 = vunpack.c.l.b16 %v8220
  %v8253 = vunpack.c.l.b16 %v8221
  %v8254 = vunpack.c.l.b16 %v8222
  %v8255 = vunpack.c.l.b16 %v8223
  %v8256 = vunpack.c.l.b16 %v8224
  %v8257 = vunpack.c.l.b16 %v8225
  %v8258 = vunpack.c.l.b16 %v8226
  %v8259 = vunpack.c.l.b16 %v8227
  %v8260 = vunpack.c.l.b16 %v8228
  %v8261 = vpack.c.b16 %v8246, %v8245
  %v8262 = vpack.c.b16 %v8248, %v8247
  %v8263 = vpack.c.b16 %v8250, %v8249
  %v8264 = vpack.c.b16 %v8252, %v8251
  %v8265 = vpack.c.b16 %v8254, %v8253
  %v8266 = vpack.c.b16 %v8256, %v8255
  %v8267 = vpack.c.b16 %v8258, %v8257
  %v8268 = vpack.c.b16 %v8260, %v8259
  %8277 = vmatprep.subr.bf16.mxu0 0
  %8278 = vmatpush1.bf16.msra.mxu0 %v8268
  %8279 = vmatprep.subr.bf16.mxu0 0
  %8280 = vmatpush1.bf16.msra.mxu0 %v8267
  %8281 = vmatprep.subr.bf16.mxu0 0
  %8282 = vmatpush1.bf16.msra.mxu0 %v8266
  %8283 = vmatprep.subr.bf16.mxu0 0
  %8284 = vmatpush1.bf16.msra.mxu0 %v8265
  %8285 = vmatprep.subr.bf16.mxu0 0
  %8286 = vmatpush1.bf16.msra.mxu0 %v8264
  %8287 = vmatprep.subr.bf16.mxu0 0
  %8288 = vmatpush1.bf16.msra.mxu0 %v8263
  %8289 = vmatprep.subr.bf16.mxu0 0
  %8290 = vmatpush1.bf16.msra.mxu0 %v8262
  %8291 = vmatprep.subr.bf16.mxu0 0
  %8292 = vmatpush1.bf16.msra.mxu0 %v8261
  %8293 = vmatprep.subr.bf16.mxu0 0
  %8294 = vmatpush2.bf16.msra.mxu0 0
  %8295 = vmatprep.subr.bf16.mxu0 0
  %8296 = vmatpush2.bf16.msra.mxu0 0
  %8297 = vmatprep.subr.bf16.mxu0 0
  %8298 = vmatpush2.bf16.msra.mxu0 0
  %8299 = vmatprep.subr.bf16.mxu0 0
  %8300 = vmatpush2.bf16.msra.mxu0 0
  %8301 = vmatprep.subr.bf16.mxu0 0
  %8302 = vmatpush2.bf16.msra.mxu0 0
  %8303 = vmatprep.subr.bf16.mxu0 0
  %8304 = vmatpush2.bf16.msra.mxu0 0
  %8305 = vmatprep.subr.bf16.mxu0 0
  %8306 = vmatpush2.bf16.msra.mxu0 0
  %8307 = vmatprep.subr.bf16.mxu0 0
  %8308 = vmatpush2.bf16.msra.mxu0 0
  %8309 = vmatprep.mubr.bf16.mxu0 0
  %8310 = vmatmul.mubr.bf16.gmra.mxu0 %v8195
  %v8311 = vpop.f32.mrf.mxu0
  %v8312 = vadd.f32 0.0, %v8311
  %v8313 = vpop.f32.mrf.mxu0
  %v8314 = vpop.f32.mrf.mxu0
  %v8315 = vadd.f32 0.0, %v8314
  %v8316 = vpop.f32.mrf.mxu0
  %8317 = vmatprep.mubr.bf16.mxu0 0
  %8318 = vmatmul.mubr.bf16.gmra.mxu0 %v8196
  %v8319 = vpop.f32.mrf.mxu0
  %v8320 = vpop.f32.mrf.mxu0
  %v8321 = vpop.f32.mrf.mxu0
  %v8322 = vpop.f32.mrf.mxu0
  %8323 = vmatprep.mubr.bf16.mxu0 0
  %8324 = vmatmul.mubr.bf16.gmra.mxu0 %v8197
  %v8325 = vpop.f32.mrf.mxu0
  %v8326 = vadd.f32 0.0, %v8325
  %v8327 = vpop.f32.mrf.mxu0
  %v8328 = vpop.f32.mrf.mxu0
  %v8329 = vadd.f32 0.0, %v8328
  %v8330 = vpop.f32.mrf.mxu0
  %8331 = vmatprep.mubr.bf16.mxu0 0
  %8332 = vmatmul.mubr.bf16.gmra.mxu0 %v8198
  %v8333 = vpop.f32.mrf.mxu0
  %v8334 = vadd.f32 0.0, %v8333
  %v8335 = vpop.f32.mrf.mxu0
  %v8336 = vpop.f32.mrf.mxu0
  %v8337 = vpop.f32.mrf.mxu0
  %8338 = vmatprep.mubr.bf16.mxu0 0
  %8339 = vmatmul.mubr.bf16.gmra.mxu0 %v8199
  %v8340 = vpop.f32.mrf.mxu0
  %v8341 = vpop.f32.mrf.mxu0
  %v8342 = vpop.f32.mrf.mxu0
  %v8343 = vadd.f32 0.0, %v8342
  %v8344 = vpop.f32.mrf.mxu0
  %8345 = vmatprep.mubr.bf16.mxu0 0
  %8346 = vmatmul.mubr.bf16.gmra.mxu0 %v8200
  %v8347 = vpop.f32.mrf.mxu0
  %v8348 = vadd.f32 0.0, %v8347
  %v8349 = vpop.f32.mrf.mxu0
  %v8350 = vpop.f32.mrf.mxu0
  %v8351 = vpop.f32.mrf.mxu0
  %8352 = vmatprep.mubr.bf16.mxu0 0
  %8353 = vmatmul.mubr.bf16.gmra.mxu0 %v8201
  %v8354 = vpop.f32.mrf.mxu0
  %v8355 = vpop.f32.mrf.mxu0
  %v8356 = vpop.f32.mrf.mxu0
  %v8357 = vadd.f32 0.0, %v8356
  %v8358 = vpop.f32.mrf.mxu0
  %8359 = vmatprep.mubr.bf16.mxu0 0
  %8360 = vmatmul.mubr.bf16.gmra.mxu0 %v8202
  %v8361 = vpop.f32.mrf.mxu0
  %v8362 = vadd.f32 0.0, %v8361
  %v8363 = vpop.f32.mrf.mxu0
  %v8364 = vpop.f32.mrf.mxu0
  %v8365 = vadd.f32 0.0, %v8364
  %v8366 = vpop.f32.mrf.mxu0
  %8367 = vmatprep.mubr.bf16.mxu0 0
  %8368 = vmatmul.mubr.bf16.gmra.mxu0 %v8203
  %v8369 = vpop.f32.mrf.mxu0
  %v8370 = vpop.f32.mrf.mxu0
  %v8371 = vpop.f32.mrf.mxu0
  %v8372 = vpop.f32.mrf.mxu0
  %8373 = vmatprep.mubr.bf16.mxu0 0
  %8374 = vmatmul.mubr.bf16.gmra.mxu0 %v8204
  %v8375 = vpop.f32.mrf.mxu0
  %v8376 = vadd.f32 0.0, %v8375
  %v8377 = vpop.f32.mrf.mxu0
  %v8378 = vpop.f32.mrf.mxu0
  %v8379 = vadd.f32 0.0, %v8378
  %v8380 = vpop.f32.mrf.mxu0
  %8381 = vmatprep.mubr.bf16.mxu0 0
  %8382 = vmatmul.mubr.bf16.gmra.mxu0 %v8205
  %v8383 = vpop.f32.mrf.mxu0
  %v8384 = vpop.f32.mrf.mxu0
  %v8385 = vpop.f32.mrf.mxu0
  %v8386 = vpop.f32.mrf.mxu0
  %8387 = vmatprep.mubr.bf16.mxu0 0
  %8388 = vmatmul.mubr.bf16.gmra.mxu0 %v8206
  %v8389 = vpop.f32.mrf.mxu0
  %v8390 = vadd.f32 0.0, %v8389
  %v8391 = vpop.f32.mrf.mxu0
  %v8392 = vpop.f32.mrf.mxu0
  %v8393 = vadd.f32 0.0, %v8392
  %v8394 = vpop.f32.mrf.mxu0
  %8395 = vmatprep.mubr.bf16.mxu0 0
  %8396 = vmatmul.mubr.bf16.gmra.mxu0 %v8207
  %v8397 = vpop.f32.mrf.mxu0
  %v8398 = vadd.f32 0.0, %v8397
  %v8399 = vpop.f32.mrf.mxu0
  %v8400 = vpop.f32.mrf.mxu0
  %v8401 = vpop.f32.mrf.mxu0
  %8402 = vmatprep.mubr.bf16.mxu0 0
  %8403 = vmatmul.mubr.bf16.gmra.mxu0 %v8208
  %v8404 = vpop.f32.mrf.mxu0
  %v8405 = vpop.f32.mrf.mxu0
  %v8406 = vpop.f32.mrf.mxu0
  %v8407 = vadd.f32 0.0, %v8406
  %v8408 = vpop.f32.mrf.mxu0
  %8409 = vmatprep.mubr.bf16.mxu0 0
  %8410 = vmatmul.mubr.bf16.gmra.mxu0 %v8209
  %v8411 = vpop.f32.mrf.mxu0
  %v8412 = vadd.f32 0.0, %v8411
  %v8413 = vpop.f32.mrf.mxu0
  %v8414 = vpop.f32.mrf.mxu0
  %v8415 = vpop.f32.mrf.mxu0
  %8416 = vmatprep.mubr.bf16.mxu0 0
  %8417 = vmatmul.mubr.bf16.gmra.mxu0 %v8210
  %v8418 = vpop.f32.mrf.mxu0
  %v8419 = vpop.f32.mrf.mxu0
  %v8420 = vpop.f32.mrf.mxu0
  %v8421 = vadd.f32 0.0, %v8420
  %v8422 = vpop.f32.mrf.mxu0
  %8423 = vmatprep.mubr.bf16.mxu0 0
  %8424 = vmatmul.mubr.bf16.gmra.mxu0 %v8211
  %v8425 = vpop.f32.mrf.mxu0
  %v8426 = vadd.f32 0.0, %v8425
  %v8427 = vpop.f32.mrf.mxu0
  %v8428 = vpop.f32.mrf.mxu0
  %v8429 = vadd.f32 0.0, %v8428
  %v8430 = vpop.f32.mrf.mxu0
  %8431 = vdwg.mxu0
  %v8432 = vadd.f32 %v8141, %v8312
  %v8433 = vadd.f32 %v8142, %v8315
  %v8434 = vadd.f32 %v8143, %v8326
  %v8435 = vadd.f32 %v8144, %v8329
  %v8436 = vadd.f32 %v8145, %v8334
  %v8437 = vadd.f32 %v8146, %v8343
  %v8438 = vadd.f32 %v8147, %v8348
  %v8439 = vadd.f32 %v8148, %v8357
  %v8440 = vadd.f32 %v8149, %v8362
  %v8441 = vadd.f32 %v8150, %v8365
  %v8442 = vadd.f32 %v8151, %v8376
  %v8443 = vadd.f32 %v8152, %v8379
  %v8444 = vadd.f32 %v8153, %v8390
  %v8445 = vadd.f32 %v8154, %v8393
  %v8446 = vadd.f32 %v8155, %v8398
  %v8447 = vadd.f32 %v8156, %v8407
  %v8448 = vadd.f32 %v8157, %v8412
  %v8449 = vadd.f32 %v8158, %v8421
  %v8450 = vadd.f32 %v8159, %v8426
  %v8451 = vadd.f32 %v8160, %v8429
  %v8452 = vld [vmem:[#allocation3 + $0x8] sm:$0xff]
  %v8453 = vld [vmem:[#allocation3 + $0x10] sm:$0xff]
  %v8454 = vld [vmem:[#allocation3 + $0x18] sm:$0xff]
  %v8455 = vld [vmem:[#allocation3 + $0x20] sm:$0xff]
  %v8456 = vld [vmem:[#allocation3 + $0x28] sm:$0xff]
  %v8457 = vld [vmem:[#allocation3 + $0x30] sm:$0xff]
  %v8458 = vld [vmem:[#allocation3 + $0x38] sm:$0xff]
  %v8459 = vld [vmem:[#allocation3 + $0x40] sm:$0xff]
  %v8460 = vld [vmem:[#allocation3 + $0x48] sm:$0xff]
  %v8461 = vld [vmem:[#allocation3 + $0x50] sm:$0xff]
  %v8462 = vld [vmem:[#allocation3 + $0x58] sm:$0xff]
  %v8463 = vld [vmem:[#allocation3 + $0x60] sm:$0xff]
  %v8464 = vld [vmem:[#allocation3 + $0x68] sm:$0xff]
  %v8465 = vld [vmem:[#allocation3 + $0x70] sm:$0xff]
  %v8466 = vld [vmem:[#allocation3 + $0x78] sm:$0xff]
  %v8467 = vld [vmem:[#allocation3 + $0x80] sm:$0xff]
  %v8468 = vld [vmem:[#allocation3 + $0x88] sm:$0xff]
  %v8469 = vld [vmem:[#allocation3 + $0x90] sm:$0xff]
  %v8470 = vld [vmem:[#allocation3 + $0x98] sm:$0xff]
  %v8471 = vld [vmem:[#allocation3 + $0xa0] sm:$0xff]
  %v8472 = vld [vmem:[#allocation3 + $0xa8] sm:$0xff]
  %v8473 = vld [vmem:[#allocation3 + $0xb0] sm:$0xff]
  %v8474 = vld [vmem:[#allocation3 + $0xb8] sm:$0xff]
  %v8475 = vld [vmem:[#allocation3 + $0xc0] sm:$0xff]
  %v8476 = vld [vmem:[#allocation3 + $0xc8] sm:$0xff]
  %v8477 = vld [vmem:[#allocation3 + $0xd0] sm:$0xff]
  %v8478 = vld [vmem:[#allocation3 + $0xd8] sm:$0xff]
  %v8479 = vld [vmem:[#allocation3 + $0xe0] sm:$0xff]
  %v8480 = vld [vmem:[#allocation3 + $0xe8] sm:$0xff]
  %v8481 = vld [vmem:[#allocation3 + $0xf0] sm:$0xff]
  %v8482 = vld [vmem:[#allocation3 + $0xf8] sm:$0xff]
  %v8483 = vld [vmem:[#allocation3 + $0x100] sm:$0xff]
  %v8484 = vld [vmem:[#allocation3 + $0x108] sm:$0xff]
  %v8485 = vld [vmem:[#allocation3 + $0x110] sm:$0x7]
  %v8486 = vpack.c.bf16 %v8453, %v8452
  %v8487 = vpack.c.bf16 %v8455, %v8454
  %v8488 = vpack.c.bf16 %v8457, %v8456
  %v8489 = vpack.c.bf16 %v8459, %v8458
  %v8490 = vpack.c.bf16 %v8461, %v8460
  %v8491 = vpack.c.bf16 %v8463, %v8462
  %v8492 = vpack.c.bf16 %v8465, %v8464
  %v8493 = vpack.c.bf16 %v8467, %v8466
  %v8494 = vpack.c.bf16 %v8469, %v8468
  %v8495 = vpack.c.bf16 %v8471, %v8470
  %v8496 = vpack.c.bf16 %v8473, %v8472
  %v8497 = vpack.c.bf16 %v8475, %v8474
  %v8498 = vpack.c.bf16 %v8477, %v8476
  %v8499 = vpack.c.bf16 %v8479, %v8478
  %v8500 = vpack.c.bf16 %v8481, %v8480
  %v8501 = vpack.c.bf16 %v8483, %v8482
  %v8502 = vpack.c.bf16 %v8485, %v8484
  %s8503 = scalar_lea.vmem %s5, 320
  %v8504 = vld [vmem:[%s8503] sm:$0xf]
  %v8505 = vld [vmem:[%s8503 + $0x4] sm:$0xf]
  %v8506 = vld [vmem:[%s8503 + $0x8] sm:$0xf]
  %v8507 = vld [vmem:[%s8503 + $0xc] sm:$0xf]
  %v8508 = vld [vmem:[%s8503 + $0x10] sm:$0xf]
  %v8509 = vld [vmem:[%s8503 + $0x14] sm:$0xf]
  %v8510 = vld [vmem:[%s8503 + $0x18] sm:$0xf]
  %v8511 = vld [vmem:[%s8503 + $0x1c] sm:$0xf]
  %v8512 = vld [vmem:[%s8503 + $0x20] sm:$0xf]
  %v8513 = vld [vmem:[%s8503 + $0x24] sm:$0xf]
  %v8514 = vld [vmem:[%s8503 + $0x28] sm:$0xf]
  %v8515 = vld [vmem:[%s8503 + $0x2c] sm:$0xf]
  %v8516 = vld [vmem:[%s8503 + $0x30] sm:$0xf]
  %v8517 = vld [vmem:[%s8503 + $0x34] sm:$0xf]
  %v8518 = vld [vmem:[%s8503 + $0x38] sm:$0xf]
  %v8519 = vld [vmem:[%s8503 + $0x3c] sm:$0xf]
  %v8536 = vunpack.c.l.b16 %v8504
  %v8537 = vunpack.c.l.b16 %v8505
  %v8538 = vunpack.c.l.b16 %v8506
  %v8539 = vunpack.c.l.b16 %v8507
  %v8540 = vunpack.c.l.b16 %v8508
  %v8541 = vunpack.c.l.b16 %v8509
  %v8542 = vunpack.c.l.b16 %v8510
  %v8543 = vunpack.c.l.b16 %v8511
  %v8544 = vunpack.c.l.b16 %v8512
  %v8545 = vunpack.c.l.b16 %v8513
  %v8546 = vunpack.c.l.b16 %v8514
  %v8547 = vunpack.c.l.b16 %v8515
  %v8548 = vunpack.c.l.b16 %v8516
  %v8549 = vunpack.c.l.b16 %v8517
  %v8550 = vunpack.c.l.b16 %v8518
  %v8551 = vunpack.c.l.b16 %v8519
  %v8552 = vpack.c.b16 %v8537, %v8536
  %v8553 = vpack.c.b16 %v8539, %v8538
  %v8554 = vpack.c.b16 %v8541, %v8540
  %v8555 = vpack.c.b16 %v8543, %v8542
  %v8556 = vpack.c.b16 %v8545, %v8544
  %v8557 = vpack.c.b16 %v8547, %v8546
  %v8558 = vpack.c.b16 %v8549, %v8548
  %v8559 = vpack.c.b16 %v8551, %v8550
  %8568 = vmatprep.subr.bf16.mxu0 0
  %8569 = vmatpush1.bf16.msra.mxu0 %v8559
  %8570 = vmatprep.subr.bf16.mxu0 0
  %8571 = vmatpush1.bf16.msra.mxu0 %v8558
  %8572 = vmatprep.subr.bf16.mxu0 0
  %8573 = vmatpush1.bf16.msra.mxu0 %v8557
  %8574 = vmatprep.subr.bf16.mxu0 0
  %8575 = vmatpush1.bf16.msra.mxu0 %v8556
  %8576 = vmatprep.subr.bf16.mxu0 0
  %8577 = vmatpush1.bf16.msra.mxu0 %v8555
  %8578 = vmatprep.subr.bf16.mxu0 0
  %8579 = vmatpush1.bf16.msra.mxu0 %v8554
  %8580 = vmatprep.subr.bf16.mxu0 0
  %8581 = vmatpush1.bf16.msra.mxu0 %v8553
  %8582 = vmatprep.subr.bf16.mxu0 0
  %8583 = vmatpush1.bf16.msra.mxu0 %v8552
  %8584 = vmatprep.subr.bf16.mxu0 0
  %8585 = vmatpush2.bf16.msra.mxu0 0
  %8586 = vmatprep.subr.bf16.mxu0 0
  %8587 = vmatpush2.bf16.msra.mxu0 0
  %8588 = vmatprep.subr.bf16.mxu0 0
  %8589 = vmatpush2.bf16.msra.mxu0 0
  %8590 = vmatprep.subr.bf16.mxu0 0
  %8591 = vmatpush2.bf16.msra.mxu0 0
  %8592 = vmatprep.subr.bf16.mxu0 0
  %8593 = vmatpush2.bf16.msra.mxu0 0
  %8594 = vmatprep.subr.bf16.mxu0 0
  %8595 = vmatpush2.bf16.msra.mxu0 0
  %8596 = vmatprep.subr.bf16.mxu0 0
  %8597 = vmatpush2.bf16.msra.mxu0 0
  %8598 = vmatprep.subr.bf16.mxu0 0
  %8599 = vmatpush2.bf16.msra.mxu0 0
  %8600 = vmatprep.mubr.bf16.mxu0 0
  %8601 = vmatmul.mubr.bf16.gmra.mxu0 %v8486
  %v8602 = vpop.f32.mrf.mxu0
  %v8603 = vadd.f32 0.0, %v8602
  %v8604 = vpop.f32.mrf.mxu0
  %v8605 = vpop.f32.mrf.mxu0
  %v8606 = vadd.f32 0.0, %v8605
  %v8607 = vpop.f32.mrf.mxu0
  %8608 = vmatprep.mubr.bf16.mxu0 0
  %8609 = vmatmul.mubr.bf16.gmra.mxu0 %v8487
  %v8610 = vpop.f32.mrf.mxu0
  %v8611 = vpop.f32.mrf.mxu0
  %v8612 = vpop.f32.mrf.mxu0
  %v8613 = vpop.f32.mrf.mxu0
  %8614 = vmatprep.mubr.bf16.mxu0 0
  %8615 = vmatmul.mubr.bf16.gmra.mxu0 %v8488
  %v8616 = vpop.f32.mrf.mxu0
  %v8617 = vadd.f32 0.0, %v8616
  %v8618 = vpop.f32.mrf.mxu0
  %v8619 = vpop.f32.mrf.mxu0
  %v8620 = vadd.f32 0.0, %v8619
  %v8621 = vpop.f32.mrf.mxu0
  %8622 = vmatprep.mubr.bf16.mxu0 0
  %8623 = vmatmul.mubr.bf16.gmra.mxu0 %v8489
  %v8624 = vpop.f32.mrf.mxu0
  %v8625 = vadd.f32 0.0, %v8624
  %v8626 = vpop.f32.mrf.mxu0
  %v8627 = vpop.f32.mrf.mxu0
  %v8628 = vpop.f32.mrf.mxu0
  %8629 = vmatprep.mubr.bf16.mxu0 0
  %8630 = vmatmul.mubr.bf16.gmra.mxu0 %v8490
  %v8631 = vpop.f32.mrf.mxu0
  %v8632 = vpop.f32.mrf.mxu0
  %v8633 = vpop.f32.mrf.mxu0
  %v8634 = vadd.f32 0.0, %v8633
  %v8635 = vpop.f32.mrf.mxu0
  %8636 = vmatprep.mubr.bf16.mxu0 0
  %8637 = vmatmul.mubr.bf16.gmra.mxu0 %v8491
  %v8638 = vpop.f32.mrf.mxu0
  %v8639 = vadd.f32 0.0, %v8638
  %v8640 = vpop.f32.mrf.mxu0
  %v8641 = vpop.f32.mrf.mxu0
  %v8642 = vpop.f32.mrf.mxu0
  %8643 = vmatprep.mubr.bf16.mxu0 0
  %8644 = vmatmul.mubr.bf16.gmra.mxu0 %v8492
  %v8645 = vpop.f32.mrf.mxu0
  %v8646 = vpop.f32.mrf.mxu0
  %v8647 = vpop.f32.mrf.mxu0
  %v8648 = vadd.f32 0.0, %v8647
  %v8649 = vpop.f32.mrf.mxu0
  %8650 = vmatprep.mubr.bf16.mxu0 0
  %8651 = vmatmul.mubr.bf16.gmra.mxu0 %v8493
  %v8652 = vpop.f32.mrf.mxu0
  %v8653 = vadd.f32 0.0, %v8652
  %v8654 = vpop.f32.mrf.mxu0
  %v8655 = vpop.f32.mrf.mxu0
  %v8656 = vadd.f32 0.0, %v8655
  %v8657 = vpop.f32.mrf.mxu0
  %8658 = vmatprep.mubr.bf16.mxu0 0
  %8659 = vmatmul.mubr.bf16.gmra.mxu0 %v8494
  %v8660 = vpop.f32.mrf.mxu0
  %v8661 = vpop.f32.mrf.mxu0
  %v8662 = vpop.f32.mrf.mxu0
  %v8663 = vpop.f32.mrf.mxu0
  %8664 = vmatprep.mubr.bf16.mxu0 0
  %8665 = vmatmul.mubr.bf16.gmra.mxu0 %v8495
  %v8666 = vpop.f32.mrf.mxu0
  %v8667 = vadd.f32 0.0, %v8666
  %v8668 = vpop.f32.mrf.mxu0
  %v8669 = vpop.f32.mrf.mxu0
  %v8670 = vadd.f32 0.0, %v8669
  %v8671 = vpop.f32.mrf.mxu0
  %8672 = vmatprep.mubr.bf16.mxu0 0
  %8673 = vmatmul.mubr.bf16.gmra.mxu0 %v8496
  %v8674 = vpop.f32.mrf.mxu0
  %v8675 = vpop.f32.mrf.mxu0
  %v8676 = vpop.f32.mrf.mxu0
  %v8677 = vpop.f32.mrf.mxu0
  %8678 = vmatprep.mubr.bf16.mxu0 0
  %8679 = vmatmul.mubr.bf16.gmra.mxu0 %v8497
  %v8680 = vpop.f32.mrf.mxu0
  %v8681 = vadd.f32 0.0, %v8680
  %v8682 = vpop.f32.mrf.mxu0
  %v8683 = vpop.f32.mrf.mxu0
  %v8684 = vadd.f32 0.0, %v8683
  %v8685 = vpop.f32.mrf.mxu0
  %8686 = vmatprep.mubr.bf16.mxu0 0
  %8687 = vmatmul.mubr.bf16.gmra.mxu0 %v8498
  %v8688 = vpop.f32.mrf.mxu0
  %v8689 = vadd.f32 0.0, %v8688
  %v8690 = vpop.f32.mrf.mxu0
  %v8691 = vpop.f32.mrf.mxu0
  %v8692 = vpop.f32.mrf.mxu0
  %8693 = vmatprep.mubr.bf16.mxu0 0
  %8694 = vmatmul.mubr.bf16.gmra.mxu0 %v8499
  %v8695 = vpop.f32.mrf.mxu0
  %v8696 = vpop.f32.mrf.mxu0
  %v8697 = vpop.f32.mrf.mxu0
  %v8698 = vadd.f32 0.0, %v8697
  %v8699 = vpop.f32.mrf.mxu0
  %8700 = vmatprep.mubr.bf16.mxu0 0
  %8701 = vmatmul.mubr.bf16.gmra.mxu0 %v8500
  %v8702 = vpop.f32.mrf.mxu0
  %v8703 = vadd.f32 0.0, %v8702
  %v8704 = vpop.f32.mrf.mxu0
  %v8705 = vpop.f32.mrf.mxu0
  %v8706 = vpop.f32.mrf.mxu0
  %8707 = vmatprep.mubr.bf16.mxu0 0
  %8708 = vmatmul.mubr.bf16.gmra.mxu0 %v8501
  %v8709 = vpop.f32.mrf.mxu0
  %v8710 = vpop.f32.mrf.mxu0
  %v8711 = vpop.f32.mrf.mxu0
  %v8712 = vadd.f32 0.0, %v8711
  %v8713 = vpop.f32.mrf.mxu0
  %8714 = vmatprep.mubr.bf16.mxu0 0
  %8715 = vmatmul.mubr.bf16.gmra.mxu0 %v8502
  %v8716 = vpop.f32.mrf.mxu0
  %v8717 = vadd.f32 0.0, %v8716
  %v8718 = vpop.f32.mrf.mxu0
  %v8719 = vpop.f32.mrf.mxu0
  %v8720 = vadd.f32 0.0, %v8719
  %v8721 = vpop.f32.mrf.mxu0
  %8722 = vdwg.mxu0
  %v8723 = vadd.f32 %v8432, %v8603
  %v8724 = vadd.f32 %v8433, %v8606
  %v8725 = vadd.f32 %v8434, %v8617
  %v8726 = vadd.f32 %v8435, %v8620
  %v8727 = vadd.f32 %v8436, %v8625
  %v8728 = vadd.f32 %v8437, %v8634
  %v8729 = vadd.f32 %v8438, %v8639
  %v8730 = vadd.f32 %v8439, %v8648
  %v8731 = vadd.f32 %v8440, %v8653
  %v8732 = vadd.f32 %v8441, %v8656
  %v8733 = vadd.f32 %v8442, %v8667
  %v8734 = vadd.f32 %v8443, %v8670
  %v8735 = vadd.f32 %v8444, %v8681
  %v8736 = vadd.f32 %v8445, %v8684
  %v8737 = vadd.f32 %v8446, %v8689
  %v8738 = vadd.f32 %v8447, %v8698
  %v8739 = vadd.f32 %v8448, %v8703
  %v8740 = vadd.f32 %v8449, %v8712
  %v8741 = vadd.f32 %v8450, %v8717
  %v8742 = vadd.f32 %v8451, %v8720
  %v8743 = vld [vmem:[#allocation3 + $0xc] sm:$0xff]
  %v8744 = vld [vmem:[#allocation3 + $0x14] sm:$0xff]
  %v8745 = vld [vmem:[#allocation3 + $0x1c] sm:$0xff]
  %v8746 = vld [vmem:[#allocation3 + $0x24] sm:$0xff]
  %v8747 = vld [vmem:[#allocation3 + $0x2c] sm:$0xff]
  %v8748 = vld [vmem:[#allocation3 + $0x34] sm:$0xff]
  %v8749 = vld [vmem:[#allocation3 + $0x3c] sm:$0xff]
  %v8750 = vld [vmem:[#allocation3 + $0x44] sm:$0xff]
  %v8751 = vld [vmem:[#allocation3 + $0x4c] sm:$0xff]
  %v8752 = vld [vmem:[#allocation3 + $0x54] sm:$0xff]
  %v8753 = vld [vmem:[#allocation3 + $0x5c] sm:$0xff]
  %v8754 = vld [vmem:[#allocation3 + $0x64] sm:$0xff]
  %v8755 = vld [vmem:[#allocation3 + $0x6c] sm:$0xff]
  %v8756 = vld [vmem:[#allocation3 + $0x74] sm:$0xff]
  %v8757 = vld [vmem:[#allocation3 + $0x7c] sm:$0xff]
  %v8758 = vld [vmem:[#allocation3 + $0x84] sm:$0xff]
  %v8759 = vld [vmem:[#allocation3 + $0x8c] sm:$0xff]
  %v8760 = vld [vmem:[#allocation3 + $0x94] sm:$0xff]
  %v8761 = vld [vmem:[#allocation3 + $0x9c] sm:$0xff]
  %v8762 = vld [vmem:[#allocation3 + $0xa4] sm:$0xff]
  %v8763 = vld [vmem:[#allocation3 + $0xac] sm:$0xff]
  %v8764 = vld [vmem:[#allocation3 + $0xb4] sm:$0xff]
  %v8765 = vld [vmem:[#allocation3 + $0xbc] sm:$0xff]
  %v8766 = vld [vmem:[#allocation3 + $0xc4] sm:$0xff]
  %v8767 = vld [vmem:[#allocation3 + $0xcc] sm:$0xff]
  %v8768 = vld [vmem:[#allocation3 + $0xd4] sm:$0xff]
  %v8769 = vld [vmem:[#allocation3 + $0xdc] sm:$0xff]
  %v8770 = vld [vmem:[#allocation3 + $0xe4] sm:$0xff]
  %v8771 = vld [vmem:[#allocation3 + $0xec] sm:$0xff]
  %v8772 = vld [vmem:[#allocation3 + $0xf4] sm:$0xff]
  %v8773 = vld [vmem:[#allocation3 + $0xfc] sm:$0xff]
  %v8774 = vld [vmem:[#allocation3 + $0x104] sm:$0xff]
  %v8775 = vld [vmem:[#allocation3 + $0x10c] sm:$0xff]
  %v8776 = vld [vmem:[#allocation3 + $0x114] sm:$0x7]
  %v8777 = vpack.c.bf16 %v8744, %v8743
  %v8778 = vpack.c.bf16 %v8746, %v8745
  %v8779 = vpack.c.bf16 %v8748, %v8747
  %v8780 = vpack.c.bf16 %v8750, %v8749
  %v8781 = vpack.c.bf16 %v8752, %v8751
  %v8782 = vpack.c.bf16 %v8754, %v8753
  %v8783 = vpack.c.bf16 %v8756, %v8755
  %v8784 = vpack.c.bf16 %v8758, %v8757
  %v8785 = vpack.c.bf16 %v8760, %v8759
  %v8786 = vpack.c.bf16 %v8762, %v8761
  %v8787 = vpack.c.bf16 %v8764, %v8763
  %v8788 = vpack.c.bf16 %v8766, %v8765
  %v8789 = vpack.c.bf16 %v8768, %v8767
  %v8790 = vpack.c.bf16 %v8770, %v8769
  %v8791 = vpack.c.bf16 %v8772, %v8771
  %v8792 = vpack.c.bf16 %v8774, %v8773
  %v8793 = vpack.c.bf16 %v8776, %v8775
  %s8794 = scalar_lea.vmem %s5, 384
  %v8795 = vld [vmem:[%s8794] sm:$0xf]
  %v8796 = vld [vmem:[%s8794 + $0x4] sm:$0xf]
  %v8797 = vld [vmem:[%s8794 + $0x8] sm:$0xf]
  %v8798 = vld [vmem:[%s8794 + $0xc] sm:$0xf]
  %v8799 = vld [vmem:[%s8794 + $0x10] sm:$0xf]
  %v8800 = vld [vmem:[%s8794 + $0x14] sm:$0xf]
  %v8801 = vld [vmem:[%s8794 + $0x18] sm:$0xf]
  %v8802 = vld [vmem:[%s8794 + $0x1c] sm:$0xf]
  %v8803 = vld [vmem:[%s8794 + $0x20] sm:$0xf]
  %v8804 = vld [vmem:[%s8794 + $0x24] sm:$0xf]
  %v8805 = vld [vmem:[%s8794 + $0x28] sm:$0xf]
  %v8806 = vld [vmem:[%s8794 + $0x2c] sm:$0xf]
  %v8807 = vld [vmem:[%s8794 + $0x30] sm:$0xf]
  %v8808 = vld [vmem:[%s8794 + $0x34] sm:$0xf]
  %v8809 = vld [vmem:[%s8794 + $0x38] sm:$0xf]
  %v8810 = vld [vmem:[%s8794 + $0x3c] sm:$0xf]
  %v8827 = vunpack.c.l.b16 %v8795
  %v8828 = vunpack.c.l.b16 %v8796
  %v8829 = vunpack.c.l.b16 %v8797
  %v8830 = vunpack.c.l.b16 %v8798
  %v8831 = vunpack.c.l.b16 %v8799
  %v8832 = vunpack.c.l.b16 %v8800
  %v8833 = vunpack.c.l.b16 %v8801
  %v8834 = vunpack.c.l.b16 %v8802
  %v8835 = vunpack.c.l.b16 %v8803
  %v8836 = vunpack.c.l.b16 %v8804
  %v8837 = vunpack.c.l.b16 %v8805
  %v8838 = vunpack.c.l.b16 %v8806
  %v8839 = vunpack.c.l.b16 %v8807
  %v8840 = vunpack.c.l.b16 %v8808
  %v8841 = vunpack.c.l.b16 %v8809
  %v8842 = vunpack.c.l.b16 %v8810
  %v8843 = vpack.c.b16 %v8828, %v8827
  %v8844 = vpack.c.b16 %v8830, %v8829
  %v8845 = vpack.c.b16 %v8832, %v8831
  %v8846 = vpack.c.b16 %v8834, %v8833
  %v8847 = vpack.c.b16 %v8836, %v8835
  %v8848 = vpack.c.b16 %v8838, %v8837
  %v8849 = vpack.c.b16 %v8840, %v8839
  %v8850 = vpack.c.b16 %v8842, %v8841
  %8859 = vmatprep.subr.bf16.mxu0 0
  %8860 = vmatpush1.bf16.msra.mxu0 %v8850
  %8861 = vmatprep.subr.bf16.mxu0 0
  %8862 = vmatpush1.bf16.msra.mxu0 %v8849
  %8863 = vmatprep.subr.bf16.mxu0 0
  %8864 = vmatpush1.bf16.msra.mxu0 %v8848
  %8865 = vmatprep.subr.bf16.mxu0 0
  %8866 = vmatpush1.bf16.msra.mxu0 %v8847
  %8867 = vmatprep.subr.bf16.mxu0 0
  %8868 = vmatpush1.bf16.msra.mxu0 %v8846
  %8869 = vmatprep.subr.bf16.mxu0 0
  %8870 = vmatpush1.bf16.msra.mxu0 %v8845
  %8871 = vmatprep.subr.bf16.mxu0 0
  %8872 = vmatpush1.bf16.msra.mxu0 %v8844
  %8873 = vmatprep.subr.bf16.mxu0 0
  %8874 = vmatpush1.bf16.msra.mxu0 %v8843
  %8875 = vmatprep.subr.bf16.mxu0 0
  %8876 = vmatpush2.bf16.msra.mxu0 0
  %8877 = vmatprep.subr.bf16.mxu0 0
  %8878 = vmatpush2.bf16.msra.mxu0 0
  %8879 = vmatprep.subr.bf16.mxu0 0
  %8880 = vmatpush2.bf16.msra.mxu0 0
  %8881 = vmatprep.subr.bf16.mxu0 0
  %8882 = vmatpush2.bf16.msra.mxu0 0
  %8883 = vmatprep.subr.bf16.mxu0 0
  %8884 = vmatpush2.bf16.msra.mxu0 0
  %8885 = vmatprep.subr.bf16.mxu0 0
  %8886 = vmatpush2.bf16.msra.mxu0 0
  %8887 = vmatprep.subr.bf16.mxu0 0
  %8888 = vmatpush2.bf16.msra.mxu0 0
  %8889 = vmatprep.subr.bf16.mxu0 0
  %8890 = vmatpush2.bf16.msra.mxu0 0
  %8891 = vmatprep.mubr.bf16.mxu0 0
  %8892 = vmatmul.mubr.bf16.gmra.mxu0 %v8777
  %v8893 = vpop.f32.mrf.mxu0
  %v8894 = vadd.f32 0.0, %v8893
  %v8895 = vpop.f32.mrf.mxu0
  %v8896 = vpop.f32.mrf.mxu0
  %v8897 = vadd.f32 0.0, %v8896
  %v8898 = vpop.f32.mrf.mxu0
  %8899 = vmatprep.mubr.bf16.mxu0 0
  %8900 = vmatmul.mubr.bf16.gmra.mxu0 %v8778
  %v8901 = vpop.f32.mrf.mxu0
  %v8902 = vpop.f32.mrf.mxu0
  %v8903 = vpop.f32.mrf.mxu0
  %v8904 = vpop.f32.mrf.mxu0
  %8905 = vmatprep.mubr.bf16.mxu0 0
  %8906 = vmatmul.mubr.bf16.gmra.mxu0 %v8779
  %v8907 = vpop.f32.mrf.mxu0
  %v8908 = vadd.f32 0.0, %v8907
  %v8909 = vpop.f32.mrf.mxu0
  %v8910 = vpop.f32.mrf.mxu0
  %v8911 = vadd.f32 0.0, %v8910
  %v8912 = vpop.f32.mrf.mxu0
  %8913 = vmatprep.mubr.bf16.mxu0 0
  %8914 = vmatmul.mubr.bf16.gmra.mxu0 %v8780
  %v8915 = vpop.f32.mrf.mxu0
  %v8916 = vadd.f32 0.0, %v8915
  %v8917 = vpop.f32.mrf.mxu0
  %v8918 = vpop.f32.mrf.mxu0
  %v8919 = vpop.f32.mrf.mxu0
  %8920 = vmatprep.mubr.bf16.mxu0 0
  %8921 = vmatmul.mubr.bf16.gmra.mxu0 %v8781
  %v8922 = vpop.f32.mrf.mxu0
  %v8923 = vpop.f32.mrf.mxu0
  %v8924 = vpop.f32.mrf.mxu0
  %v8925 = vadd.f32 0.0, %v8924
  %v8926 = vpop.f32.mrf.mxu0
  %8927 = vmatprep.mubr.bf16.mxu0 0
  %8928 = vmatmul.mubr.bf16.gmra.mxu0 %v8782
  %v8929 = vpop.f32.mrf.mxu0
  %v8930 = vadd.f32 0.0, %v8929
  %v8931 = vpop.f32.mrf.mxu0
  %v8932 = vpop.f32.mrf.mxu0
  %v8933 = vpop.f32.mrf.mxu0
  %8934 = vmatprep.mubr.bf16.mxu0 0
  %8935 = vmatmul.mubr.bf16.gmra.mxu0 %v8783
  %v8936 = vpop.f32.mrf.mxu0
  %v8937 = vpop.f32.mrf.mxu0
  %v8938 = vpop.f32.mrf.mxu0
  %v8939 = vadd.f32 0.0, %v8938
  %v8940 = vpop.f32.mrf.mxu0
  %8941 = vmatprep.mubr.bf16.mxu0 0
  %8942 = vmatmul.mubr.bf16.gmra.mxu0 %v8784
  %v8943 = vpop.f32.mrf.mxu0
  %v8944 = vadd.f32 0.0, %v8943
  %v8945 = vpop.f32.mrf.mxu0
  %v8946 = vpop.f32.mrf.mxu0
  %v8947 = vadd.f32 0.0, %v8946
  %v8948 = vpop.f32.mrf.mxu0
  %8949 = vmatprep.mubr.bf16.mxu0 0
  %8950 = vmatmul.mubr.bf16.gmra.mxu0 %v8785
  %v8951 = vpop.f32.mrf.mxu0
  %v8952 = vpop.f32.mrf.mxu0
  %v8953 = vpop.f32.mrf.mxu0
  %v8954 = vpop.f32.mrf.mxu0
  %8955 = vmatprep.mubr.bf16.mxu0 0
  %8956 = vmatmul.mubr.bf16.gmra.mxu0 %v8786
  %v8957 = vpop.f32.mrf.mxu0
  %v8958 = vadd.f32 0.0, %v8957
  %v8959 = vpop.f32.mrf.mxu0
  %v8960 = vpop.f32.mrf.mxu0
  %v8961 = vadd.f32 0.0, %v8960
  %v8962 = vpop.f32.mrf.mxu0
  %8963 = vmatprep.mubr.bf16.mxu0 0
  %8964 = vmatmul.mubr.bf16.gmra.mxu0 %v8787
  %v8965 = vpop.f32.mrf.mxu0
  %v8966 = vpop.f32.mrf.mxu0
  %v8967 = vpop.f32.mrf.mxu0
  %v8968 = vpop.f32.mrf.mxu0
  %8969 = vmatprep.mubr.bf16.mxu0 0
  %8970 = vmatmul.mubr.bf16.gmra.mxu0 %v8788
  %v8971 = vpop.f32.mrf.mxu0
  %v8972 = vadd.f32 0.0, %v8971
  %v8973 = vpop.f32.mrf.mxu0
  %v8974 = vpop.f32.mrf.mxu0
  %v8975 = vadd.f32 0.0, %v8974
  %v8976 = vpop.f32.mrf.mxu0
  %8977 = vmatprep.mubr.bf16.mxu0 0
  %8978 = vmatmul.mubr.bf16.gmra.mxu0 %v8789
  %v8979 = vpop.f32.mrf.mxu0
  %v8980 = vadd.f32 0.0, %v8979
  %v8981 = vpop.f32.mrf.mxu0
  %v8982 = vpop.f32.mrf.mxu0
  %v8983 = vpop.f32.mrf.mxu0
  %8984 = vmatprep.mubr.bf16.mxu0 0
  %8985 = vmatmul.mubr.bf16.gmra.mxu0 %v8790
  %v8986 = vpop.f32.mrf.mxu0
  %v8987 = vpop.f32.mrf.mxu0
  %v8988 = vpop.f32.mrf.mxu0
  %v8989 = vadd.f32 0.0, %v8988
  %v8990 = vpop.f32.mrf.mxu0
  %8991 = vmatprep.mubr.bf16.mxu0 0
  %8992 = vmatmul.mubr.bf16.gmra.mxu0 %v8791
  %v8993 = vpop.f32.mrf.mxu0
  %v8994 = vadd.f32 0.0, %v8993
  %v8995 = vpop.f32.mrf.mxu0
  %v8996 = vpop.f32.mrf.mxu0
  %v8997 = vpop.f32.mrf.mxu0
  %8998 = vmatprep.mubr.bf16.mxu0 0
  %8999 = vmatmul.mubr.bf16.gmra.mxu0 %v8792
  %v9000 = vpop.f32.mrf.mxu0
  %v9001 = vpop.f32.mrf.mxu0
  %v9002 = vpop.f32.mrf.mxu0
  %v9003 = vadd.f32 0.0, %v9002
  %v9004 = vpop.f32.mrf.mxu0
  %9005 = vmatprep.mubr.bf16.mxu0 0
  %9006 = vmatmul.mubr.bf16.gmra.mxu0 %v8793
  %v9007 = vpop.f32.mrf.mxu0
  %v9008 = vadd.f32 0.0, %v9007
  %v9009 = vpop.f32.mrf.mxu0
  %v9010 = vpop.f32.mrf.mxu0
  %v9011 = vadd.f32 0.0, %v9010
  %v9012 = vpop.f32.mrf.mxu0
  %9013 = vdwg.mxu0
  %v9014 = vadd.f32 %v8723, %v8894
  %v9015 = vadd.f32 %v8724, %v8897
  %v9016 = vadd.f32 %v8725, %v8908
  %v9017 = vadd.f32 %v8726, %v8911
  %v9018 = vadd.f32 %v8727, %v8916
  %v9019 = vadd.f32 %v8728, %v8925
  %v9020 = vadd.f32 %v8729, %v8930
  %v9021 = vadd.f32 %v8730, %v8939
  %v9022 = vadd.f32 %v8731, %v8944
  %v9023 = vadd.f32 %v8732, %v8947
  %v9024 = vadd.f32 %v8733, %v8958
  %v9025 = vadd.f32 %v8734, %v8961
  %v9026 = vadd.f32 %v8735, %v8972
  %v9027 = vadd.f32 %v8736, %v8975
  %v9028 = vadd.f32 %v8737, %v8980
  %v9029 = vadd.f32 %v8738, %v8989
  %v9030 = vadd.f32 %v8739, %v8994
  %v9031 = vadd.f32 %v8740, %v9003
  %v9032 = vadd.f32 %v8741, %v9008
  %v9033 = vadd.f32 %v8742, %v9011
  %v9034 = vld [vmem:[#allocation3 + $0xd] sm:$0xff]
  %v9035 = vld [vmem:[#allocation3 + $0x15] sm:$0xff]
  %v9036 = vld [vmem:[#allocation3 + $0x1d] sm:$0xff]
  %v9037 = vld [vmem:[#allocation3 + $0x25] sm:$0xff]
  %v9038 = vld [vmem:[#allocation3 + $0x2d] sm:$0xff]
  %v9039 = vld [vmem:[#allocation3 + $0x35] sm:$0xff]
  %v9040 = vld [vmem:[#allocation3 + $0x3d] sm:$0xff]
  %v9041 = vld [vmem:[#allocation3 + $0x45] sm:$0xff]
  %v9042 = vld [vmem:[#allocation3 + $0x4d] sm:$0xff]
  %v9043 = vld [vmem:[#allocation3 + $0x55] sm:$0xff]
  %v9044 = vld [vmem:[#allocation3 + $0x5d] sm:$0xff]
  %v9045 = vld [vmem:[#allocation3 + $0x65] sm:$0xff]
  %v9046 = vld [vmem:[#allocation3 + $0x6d] sm:$0xff]
  %v9047 = vld [vmem:[#allocation3 + $0x75] sm:$0xff]
  %v9048 = vld [vmem:[#allocation3 + $0x7d] sm:$0xff]
  %v9049 = vld [vmem:[#allocation3 + $0x85] sm:$0xff]
  %v9050 = vld [vmem:[#allocation3 + $0x8d] sm:$0xff]
  %v9051 = vld [vmem:[#allocation3 + $0x95] sm:$0xff]
  %v9052 = vld [vmem:[#allocation3 + $0x9d] sm:$0xff]
  %v9053 = vld [vmem:[#allocation3 + $0xa5] sm:$0xff]
  %v9054 = vld [vmem:[#allocation3 + $0xad] sm:$0xff]
  %v9055 = vld [vmem:[#allocation3 + $0xb5] sm:$0xff]
  %v9056 = vld [vmem:[#allocation3 + $0xbd] sm:$0xff]
  %v9057 = vld [vmem:[#allocation3 + $0xc5] sm:$0xff]
  %v9058 = vld [vmem:[#allocation3 + $0xcd] sm:$0xff]
  %v9059 = vld [vmem:[#allocation3 + $0xd5] sm:$0xff]
  %v9060 = vld [vmem:[#allocation3 + $0xdd] sm:$0xff]
  %v9061 = vld [vmem:[#allocation3 + $0xe5] sm:$0xff]
  %v9062 = vld [vmem:[#allocation3 + $0xed] sm:$0xff]
  %v9063 = vld [vmem:[#allocation3 + $0xf5] sm:$0xff]
  %v9064 = vld [vmem:[#allocation3 + $0xfd] sm:$0xff]
  %v9065 = vld [vmem:[#allocation3 + $0x105] sm:$0xff]
  %v9066 = vld [vmem:[#allocation3 + $0x10d] sm:$0xff]
  %v9067 = vld [vmem:[#allocation3 + $0x115] sm:$0x7]
  %v9068 = vpack.c.bf16 %v9035, %v9034
  %v9069 = vpack.c.bf16 %v9037, %v9036
  %v9070 = vpack.c.bf16 %v9039, %v9038
  %v9071 = vpack.c.bf16 %v9041, %v9040
  %v9072 = vpack.c.bf16 %v9043, %v9042
  %v9073 = vpack.c.bf16 %v9045, %v9044
  %v9074 = vpack.c.bf16 %v9047, %v9046
  %v9075 = vpack.c.bf16 %v9049, %v9048
  %v9076 = vpack.c.bf16 %v9051, %v9050
  %v9077 = vpack.c.bf16 %v9053, %v9052
  %v9078 = vpack.c.bf16 %v9055, %v9054
  %v9079 = vpack.c.bf16 %v9057, %v9056
  %v9080 = vpack.c.bf16 %v9059, %v9058
  %v9081 = vpack.c.bf16 %v9061, %v9060
  %v9082 = vpack.c.bf16 %v9063, %v9062
  %v9083 = vpack.c.bf16 %v9065, %v9064
  %v9084 = vpack.c.bf16 %v9067, %v9066
  %s9085 = scalar_lea.vmem %s5, 448
  %v9086 = vld [vmem:[%s9085] sm:$0xf]
  %v9087 = vld [vmem:[%s9085 + $0x4] sm:$0xf]
  %v9088 = vld [vmem:[%s9085 + $0x8] sm:$0xf]
  %v9089 = vld [vmem:[%s9085 + $0xc] sm:$0xf]
  %v9090 = vld [vmem:[%s9085 + $0x10] sm:$0xf]
  %v9091 = vld [vmem:[%s9085 + $0x14] sm:$0xf]
  %v9092 = vld [vmem:[%s9085 + $0x18] sm:$0xf]
  %v9093 = vld [vmem:[%s9085 + $0x1c] sm:$0xf]
  %v9094 = vld [vmem:[%s9085 + $0x20] sm:$0xf]
  %v9095 = vld [vmem:[%s9085 + $0x24] sm:$0xf]
  %v9096 = vld [vmem:[%s9085 + $0x28] sm:$0xf]
  %v9097 = vld [vmem:[%s9085 + $0x2c] sm:$0xf]
  %v9098 = vld [vmem:[%s9085 + $0x30] sm:$0xf]
  %v9099 = vld [vmem:[%s9085 + $0x34] sm:$0xf]
  %v9100 = vld [vmem:[%s9085 + $0x38] sm:$0xf]
  %v9101 = vld [vmem:[%s9085 + $0x3c] sm:$0xf]
  %v9118 = vunpack.c.l.b16 %v9086
  %v9119 = vunpack.c.l.b16 %v9087
  %v9120 = vunpack.c.l.b16 %v9088
  %v9121 = vunpack.c.l.b16 %v9089
  %v9122 = vunpack.c.l.b16 %v9090
  %v9123 = vunpack.c.l.b16 %v9091
  %v9124 = vunpack.c.l.b16 %v9092
  %v9125 = vunpack.c.l.b16 %v9093
  %v9126 = vunpack.c.l.b16 %v9094
  %v9127 = vunpack.c.l.b16 %v9095
  %v9128 = vunpack.c.l.b16 %v9096
  %v9129 = vunpack.c.l.b16 %v9097
  %v9130 = vunpack.c.l.b16 %v9098
  %v9131 = vunpack.c.l.b16 %v9099
  %v9132 = vunpack.c.l.b16 %v9100
  %v9133 = vunpack.c.l.b16 %v9101
  %v9134 = vpack.c.b16 %v9119, %v9118
  %v9135 = vpack.c.b16 %v9121, %v9120
  %v9136 = vpack.c.b16 %v9123, %v9122
  %v9137 = vpack.c.b16 %v9125, %v9124
  %v9138 = vpack.c.b16 %v9127, %v9126
  %v9139 = vpack.c.b16 %v9129, %v9128
  %v9140 = vpack.c.b16 %v9131, %v9130
  %v9141 = vpack.c.b16 %v9133, %v9132
  %9150 = vmatprep.subr.bf16.mxu0 0
  %9151 = vmatpush1.bf16.msra.mxu0 %v9141
  %9152 = vmatprep.subr.bf16.mxu0 0
  %9153 = vmatpush1.bf16.msra.mxu0 %v9140
  %9154 = vmatprep.subr.bf16.mxu0 0
  %9155 = vmatpush1.bf16.msra.mxu0 %v9139
  %9156 = vmatprep.subr.bf16.mxu0 0
  %9157 = vmatpush1.bf16.msra.mxu0 %v9138
  %9158 = vmatprep.subr.bf16.mxu0 0
  %9159 = vmatpush1.bf16.msra.mxu0 %v9137
  %9160 = vmatprep.subr.bf16.mxu0 0
  %9161 = vmatpush1.bf16.msra.mxu0 %v9136
  %9162 = vmatprep.subr.bf16.mxu0 0
  %9163 = vmatpush1.bf16.msra.mxu0 %v9135
  %9164 = vmatprep.subr.bf16.mxu0 0
  %9165 = vmatpush1.bf16.msra.mxu0 %v9134
  %9166 = vmatprep.subr.bf16.mxu0 0
  %9167 = vmatpush2.bf16.msra.mxu0 0
  %9168 = vmatprep.subr.bf16.mxu0 0
  %9169 = vmatpush2.bf16.msra.mxu0 0
  %9170 = vmatprep.subr.bf16.mxu0 0
  %9171 = vmatpush2.bf16.msra.mxu0 0
  %9172 = vmatprep.subr.bf16.mxu0 0
  %9173 = vmatpush2.bf16.msra.mxu0 0
  %9174 = vmatprep.subr.bf16.mxu0 0
  %9175 = vmatpush2.bf16.msra.mxu0 0
  %9176 = vmatprep.subr.bf16.mxu0 0
  %9177 = vmatpush2.bf16.msra.mxu0 0
  %9178 = vmatprep.subr.bf16.mxu0 0
  %9179 = vmatpush2.bf16.msra.mxu0 0
  %9180 = vmatprep.subr.bf16.mxu0 0
  %9181 = vmatpush2.bf16.msra.mxu0 0
  %9182 = vmatprep.mubr.bf16.mxu0 0
  %9183 = vmatmul.mubr.bf16.gmra.mxu0 %v9068
  %v9184 = vpop.f32.mrf.mxu0
  %v9185 = vadd.f32 0.0, %v9184
  %v9186 = vpop.f32.mrf.mxu0
  %v9187 = vpop.f32.mrf.mxu0
  %v9188 = vadd.f32 0.0, %v9187
  %v9189 = vpop.f32.mrf.mxu0
  %9190 = vmatprep.mubr.bf16.mxu0 0
  %9191 = vmatmul.mubr.bf16.gmra.mxu0 %v9069
  %v9192 = vpop.f32.mrf.mxu0
  %v9193 = vpop.f32.mrf.mxu0
  %v9194 = vpop.f32.mrf.mxu0
  %v9195 = vpop.f32.mrf.mxu0
  %9196 = vmatprep.mubr.bf16.mxu0 0
  %9197 = vmatmul.mubr.bf16.gmra.mxu0 %v9070
  %v9198 = vpop.f32.mrf.mxu0
  %v9199 = vadd.f32 0.0, %v9198
  %v9200 = vpop.f32.mrf.mxu0
  %v9201 = vpop.f32.mrf.mxu0
  %v9202 = vadd.f32 0.0, %v9201
  %v9203 = vpop.f32.mrf.mxu0
  %9204 = vmatprep.mubr.bf16.mxu0 0
  %9205 = vmatmul.mubr.bf16.gmra.mxu0 %v9071
  %v9206 = vpop.f32.mrf.mxu0
  %v9207 = vadd.f32 0.0, %v9206
  %v9208 = vpop.f32.mrf.mxu0
  %v9209 = vpop.f32.mrf.mxu0
  %v9210 = vpop.f32.mrf.mxu0
  %9211 = vmatprep.mubr.bf16.mxu0 0
  %9212 = vmatmul.mubr.bf16.gmra.mxu0 %v9072
  %v9213 = vpop.f32.mrf.mxu0
  %v9214 = vpop.f32.mrf.mxu0
  %v9215 = vpop.f32.mrf.mxu0
  %v9216 = vadd.f32 0.0, %v9215
  %v9217 = vpop.f32.mrf.mxu0
  %9218 = vmatprep.mubr.bf16.mxu0 0
  %9219 = vmatmul.mubr.bf16.gmra.mxu0 %v9073
  %v9220 = vpop.f32.mrf.mxu0
  %v9221 = vadd.f32 0.0, %v9220
  %v9222 = vpop.f32.mrf.mxu0
  %v9223 = vpop.f32.mrf.mxu0
  %v9224 = vpop.f32.mrf.mxu0
  %9225 = vmatprep.mubr.bf16.mxu0 0
  %9226 = vmatmul.mubr.bf16.gmra.mxu0 %v9074
  %v9227 = vpop.f32.mrf.mxu0
  %v9228 = vpop.f32.mrf.mxu0
  %v9229 = vpop.f32.mrf.mxu0
  %v9230 = vadd.f32 0.0, %v9229
  %v9231 = vpop.f32.mrf.mxu0
  %9232 = vmatprep.mubr.bf16.mxu0 0
  %9233 = vmatmul.mubr.bf16.gmra.mxu0 %v9075
  %v9234 = vpop.f32.mrf.mxu0
  %v9235 = vadd.f32 0.0, %v9234
  %v9236 = vpop.f32.mrf.mxu0
  %v9237 = vpop.f32.mrf.mxu0
  %v9238 = vadd.f32 0.0, %v9237
  %v9239 = vpop.f32.mrf.mxu0
  %9240 = vmatprep.mubr.bf16.mxu0 0
  %9241 = vmatmul.mubr.bf16.gmra.mxu0 %v9076
  %v9242 = vpop.f32.mrf.mxu0
  %v9243 = vpop.f32.mrf.mxu0
  %v9244 = vpop.f32.mrf.mxu0
  %v9245 = vpop.f32.mrf.mxu0
  %9246 = vmatprep.mubr.bf16.mxu0 0
  %9247 = vmatmul.mubr.bf16.gmra.mxu0 %v9077
  %v9248 = vpop.f32.mrf.mxu0
  %v9249 = vadd.f32 0.0, %v9248
  %v9250 = vpop.f32.mrf.mxu0
  %v9251 = vpop.f32.mrf.mxu0
  %v9252 = vadd.f32 0.0, %v9251
  %v9253 = vpop.f32.mrf.mxu0
  %9254 = vmatprep.mubr.bf16.mxu0 0
  %9255 = vmatmul.mubr.bf16.gmra.mxu0 %v9078
  %v9256 = vpop.f32.mrf.mxu0
  %v9257 = vpop.f32.mrf.mxu0
  %v9258 = vpop.f32.mrf.mxu0
  %v9259 = vpop.f32.mrf.mxu0
  %9260 = vmatprep.mubr.bf16.mxu0 0
  %9261 = vmatmul.mubr.bf16.gmra.mxu0 %v9079
  %v9262 = vpop.f32.mrf.mxu0
  %v9263 = vadd.f32 0.0, %v9262
  %v9264 = vpop.f32.mrf.mxu0
  %v9265 = vpop.f32.mrf.mxu0
  %v9266 = vadd.f32 0.0, %v9265
  %v9267 = vpop.f32.mrf.mxu0
  %9268 = vmatprep.mubr.bf16.mxu0 0
  %9269 = vmatmul.mubr.bf16.gmra.mxu0 %v9080
  %v9270 = vpop.f32.mrf.mxu0
  %v9271 = vadd.f32 0.0, %v9270
  %v9272 = vpop.f32.mrf.mxu0
  %v9273 = vpop.f32.mrf.mxu0
  %v9274 = vpop.f32.mrf.mxu0
  %9275 = vmatprep.mubr.bf16.mxu0 0
  %9276 = vmatmul.mubr.bf16.gmra.mxu0 %v9081
  %v9277 = vpop.f32.mrf.mxu0
  %v9278 = vpop.f32.mrf.mxu0
  %v9279 = vpop.f32.mrf.mxu0
  %v9280 = vadd.f32 0.0, %v9279
  %v9281 = vpop.f32.mrf.mxu0
  %9282 = vmatprep.mubr.bf16.mxu0 0
  %9283 = vmatmul.mubr.bf16.gmra.mxu0 %v9082
  %v9284 = vpop.f32.mrf.mxu0
  %v9285 = vadd.f32 0.0, %v9284
  %v9286 = vpop.f32.mrf.mxu0
  %v9287 = vpop.f32.mrf.mxu0
  %v9288 = vpop.f32.mrf.mxu0
  %9289 = vmatprep.mubr.bf16.mxu0 0
  %9290 = vmatmul.mubr.bf16.gmra.mxu0 %v9083
  %v9291 = vpop.f32.mrf.mxu0
  %v9292 = vpop.f32.mrf.mxu0
  %v9293 = vpop.f32.mrf.mxu0
  %v9294 = vadd.f32 0.0, %v9293
  %v9295 = vpop.f32.mrf.mxu0
  %9296 = vmatprep.mubr.bf16.mxu0 0
  %9297 = vmatmul.mubr.bf16.gmra.mxu0 %v9084
  %v9298 = vpop.f32.mrf.mxu0
  %v9299 = vadd.f32 0.0, %v9298
  %v9300 = vpop.f32.mrf.mxu0
  %v9301 = vpop.f32.mrf.mxu0
  %v9302 = vadd.f32 0.0, %v9301
  %v9303 = vpop.f32.mrf.mxu0
  %9304 = vdwg.mxu0
  %v9305 = vadd.f32 %v9014, %v9185
  %v9306 = vadd.f32 %v9015, %v9188
  %v9307 = vadd.f32 %v9016, %v9199
  %v9308 = vadd.f32 %v9017, %v9202
  %v9309 = vadd.f32 %v9018, %v9207
  %v9310 = vadd.f32 %v9019, %v9216
  %v9311 = vadd.f32 %v9020, %v9221
  %v9312 = vadd.f32 %v9021, %v9230
  %v9313 = vadd.f32 %v9022, %v9235
  %v9314 = vadd.f32 %v9023, %v9238
  %v9315 = vadd.f32 %v9024, %v9249
  %v9316 = vadd.f32 %v9025, %v9252
  %v9317 = vadd.f32 %v9026, %v9263
  %v9318 = vadd.f32 %v9027, %v9266
  %v9319 = vadd.f32 %v9028, %v9271
  %v9320 = vadd.f32 %v9029, %v9280
  %v9321 = vadd.f32 %v9030, %v9285
  %v9322 = vadd.f32 %v9031, %v9294
  %v9323 = vadd.f32 %v9032, %v9299
  %v9324 = vadd.f32 %v9033, %v9302
  %v9325 = vld [vmem:[#allocation3 + $0xe] sm:$0xff]
  %v9326 = vld [vmem:[#allocation3 + $0x16] sm:$0xff]
  %v9327 = vld [vmem:[#allocation3 + $0x1e] sm:$0xff]
  %v9328 = vld [vmem:[#allocation3 + $0x26] sm:$0xff]
  %v9329 = vld [vmem:[#allocation3 + $0x2e] sm:$0xff]
  %v9330 = vld [vmem:[#allocation3 + $0x36] sm:$0xff]
  %v9331 = vld [vmem:[#allocation3 + $0x3e] sm:$0xff]
  %v9332 = vld [vmem:[#allocation3 + $0x46] sm:$0xff]
  %v9333 = vld [vmem:[#allocation3 + $0x4e] sm:$0xff]
  %v9334 = vld [vmem:[#allocation3 + $0x56] sm:$0xff]
  %v9335 = vld [vmem:[#allocation3 + $0x5e] sm:$0xff]
  %v9336 = vld [vmem:[#allocation3 + $0x66] sm:$0xff]
  %v9337 = vld [vmem:[#allocation3 + $0x6e] sm:$0xff]
  %v9338 = vld [vmem:[#allocation3 + $0x76] sm:$0xff]
  %v9339 = vld [vmem:[#allocation3 + $0x7e] sm:$0xff]
  %v9340 = vld [vmem:[#allocation3 + $0x86] sm:$0xff]
  %v9341 = vld [vmem:[#allocation3 + $0x8e] sm:$0xff]
  %v9342 = vld [vmem:[#allocation3 + $0x96] sm:$0xff]
  %v9343 = vld [vmem:[#allocation3 + $0x9e] sm:$0xff]
  %v9344 = vld [vmem:[#allocation3 + $0xa6] sm:$0xff]
  %v9345 = vld [vmem:[#allocation3 + $0xae] sm:$0xff]
  %v9346 = vld [vmem:[#allocation3 + $0xb6] sm:$0xff]
  %v9347 = vld [vmem:[#allocation3 + $0xbe] sm:$0xff]
  %v9348 = vld [vmem:[#allocation3 + $0xc6] sm:$0xff]
  %v9349 = vld [vmem:[#allocation3 + $0xce] sm:$0xff]
  %v9350 = vld [vmem:[#allocation3 + $0xd6] sm:$0xff]
  %v9351 = vld [vmem:[#allocation3 + $0xde] sm:$0xff]
  %v9352 = vld [vmem:[#allocation3 + $0xe6] sm:$0xff]
  %v9353 = vld [vmem:[#allocation3 + $0xee] sm:$0xff]
  %v9354 = vld [vmem:[#allocation3 + $0xf6] sm:$0xff]
  %v9355 = vld [vmem:[#allocation3 + $0xfe] sm:$0xff]
  %v9356 = vld [vmem:[#allocation3 + $0x106] sm:$0xff]
  %v9357 = vld [vmem:[#allocation3 + $0x10e] sm:$0xff]
  %v9358 = vld [vmem:[#allocation3 + $0x116] sm:$0x7]
  %v9359 = vpack.c.bf16 %v9326, %v9325
  %v9360 = vpack.c.bf16 %v9328, %v9327
  %v9361 = vpack.c.bf16 %v9330, %v9329
  %v9362 = vpack.c.bf16 %v9332, %v9331
  %v9363 = vpack.c.bf16 %v9334, %v9333
  %v9364 = vpack.c.bf16 %v9336, %v9335
  %v9365 = vpack.c.bf16 %v9338, %v9337
  %v9366 = vpack.c.bf16 %v9340, %v9339
  %v9367 = vpack.c.bf16 %v9342, %v9341
  %v9368 = vpack.c.bf16 %v9344, %v9343
  %v9369 = vpack.c.bf16 %v9346, %v9345
  %v9370 = vpack.c.bf16 %v9348, %v9347
  %v9371 = vpack.c.bf16 %v9350, %v9349
  %v9372 = vpack.c.bf16 %v9352, %v9351
  %v9373 = vpack.c.bf16 %v9354, %v9353
  %v9374 = vpack.c.bf16 %v9356, %v9355
  %v9375 = vpack.c.bf16 %v9358, %v9357
  %s9376 = scalar_lea.vmem %s5, 512
  %v9377 = vld [vmem:[%s9376] sm:$0xf]
  %v9378 = vld [vmem:[%s9376 + $0x4] sm:$0xf]
  %v9379 = vld [vmem:[%s9376 + $0x8] sm:$0xf]
  %v9380 = vld [vmem:[%s9376 + $0xc] sm:$0xf]
  %v9381 = vld [vmem:[%s9376 + $0x10] sm:$0xf]
  %v9382 = vld [vmem:[%s9376 + $0x14] sm:$0xf]
  %v9383 = vld [vmem:[%s9376 + $0x18] sm:$0xf]
  %v9384 = vld [vmem:[%s9376 + $0x1c] sm:$0xf]
  %v9385 = vld [vmem:[%s9376 + $0x20] sm:$0xf]
  %v9386 = vld [vmem:[%s9376 + $0x24] sm:$0xf]
  %v9387 = vld [vmem:[%s9376 + $0x28] sm:$0xf]
  %v9388 = vld [vmem:[%s9376 + $0x2c] sm:$0xf]
  %v9389 = vld [vmem:[%s9376 + $0x30] sm:$0xf]
  %v9390 = vld [vmem:[%s9376 + $0x34] sm:$0xf]
  %v9391 = vld [vmem:[%s9376 + $0x38] sm:$0xf]
  %v9392 = vld [vmem:[%s9376 + $0x3c] sm:$0xf]
  %v9409 = vunpack.c.l.b16 %v9377
  %v9410 = vunpack.c.l.b16 %v9378
  %v9411 = vunpack.c.l.b16 %v9379
  %v9412 = vunpack.c.l.b16 %v9380
  %v9413 = vunpack.c.l.b16 %v9381
  %v9414 = vunpack.c.l.b16 %v9382
  %v9415 = vunpack.c.l.b16 %v9383
  %v9416 = vunpack.c.l.b16 %v9384
  %v9417 = vunpack.c.l.b16 %v9385
  %v9418 = vunpack.c.l.b16 %v9386
  %v9419 = vunpack.c.l.b16 %v9387
  %v9420 = vunpack.c.l.b16 %v9388
  %v9421 = vunpack.c.l.b16 %v9389
  %v9422 = vunpack.c.l.b16 %v9390
  %v9423 = vunpack.c.l.b16 %v9391
  %v9424 = vunpack.c.l.b16 %v9392
  %v9425 = vpack.c.b16 %v9410, %v9409
  %v9426 = vpack.c.b16 %v9412, %v9411
  %v9427 = vpack.c.b16 %v9414, %v9413
  %v9428 = vpack.c.b16 %v9416, %v9415
  %v9429 = vpack.c.b16 %v9418, %v9417
  %v9430 = vpack.c.b16 %v9420, %v9419
  %v9431 = vpack.c.b16 %v9422, %v9421
  %v9432 = vpack.c.b16 %v9424, %v9423
  %9441 = vmatprep.subr.bf16.mxu0 0
  %9442 = vmatpush1.bf16.msra.mxu0 %v9432
  %9443 = vmatprep.subr.bf16.mxu0 0
  %9444 = vmatpush1.bf16.msra.mxu0 %v9431
  %9445 = vmatprep.subr.bf16.mxu0 0
  %9446 = vmatpush1.bf16.msra.mxu0 %v9430
  %9447 = vmatprep.subr.bf16.mxu0 0
  %9448 = vmatpush1.bf16.msra.mxu0 %v9429
  %9449 = vmatprep.subr.bf16.mxu0 0
  %9450 = vmatpush1.bf16.msra.mxu0 %v9428
  %9451 = vmatprep.subr.bf16.mxu0 0
  %9452 = vmatpush1.bf16.msra.mxu0 %v9427
  %9453 = vmatprep.subr.bf16.mxu0 0
  %9454 = vmatpush1.bf16.msra.mxu0 %v9426
  %9455 = vmatprep.subr.bf16.mxu0 0
  %9456 = vmatpush1.bf16.msra.mxu0 %v9425
  %9457 = vmatprep.subr.bf16.mxu0 0
  %9458 = vmatpush2.bf16.msra.mxu0 0
  %9459 = vmatprep.subr.bf16.mxu0 0
  %9460 = vmatpush2.bf16.msra.mxu0 0
  %9461 = vmatprep.subr.bf16.mxu0 0
  %9462 = vmatpush2.bf16.msra.mxu0 0
  %9463 = vmatprep.subr.bf16.mxu0 0
  %9464 = vmatpush2.bf16.msra.mxu0 0
  %9465 = vmatprep.subr.bf16.mxu0 0
  %9466 = vmatpush2.bf16.msra.mxu0 0
  %9467 = vmatprep.subr.bf16.mxu0 0
  %9468 = vmatpush2.bf16.msra.mxu0 0
  %9469 = vmatprep.subr.bf16.mxu0 0
  %9470 = vmatpush2.bf16.msra.mxu0 0
  %9471 = vmatprep.subr.bf16.mxu0 0
  %9472 = vmatpush2.bf16.msra.mxu0 0
  %9473 = vmatprep.mubr.bf16.mxu0 0
  %9474 = vmatmul.mubr.bf16.gmra.mxu0 %v9359
  %v9475 = vpop.f32.mrf.mxu0
  %v9476 = vadd.f32 0.0, %v9475
  %v9477 = vpop.f32.mrf.mxu0
  %v9478 = vpop.f32.mrf.mxu0
  %v9479 = vadd.f32 0.0, %v9478
  %v9480 = vpop.f32.mrf.mxu0
  %9481 = vmatprep.mubr.bf16.mxu0 0
  %9482 = vmatmul.mubr.bf16.gmra.mxu0 %v9360
  %v9483 = vpop.f32.mrf.mxu0
  %v9484 = vpop.f32.mrf.mxu0
  %v9485 = vpop.f32.mrf.mxu0
  %v9486 = vpop.f32.mrf.mxu0
  %9487 = vmatprep.mubr.bf16.mxu0 0
  %9488 = vmatmul.mubr.bf16.gmra.mxu0 %v9361
  %v9489 = vpop.f32.mrf.mxu0
  %v9490 = vadd.f32 0.0, %v9489
  %v9491 = vpop.f32.mrf.mxu0
  %v9492 = vpop.f32.mrf.mxu0
  %v9493 = vadd.f32 0.0, %v9492
  %v9494 = vpop.f32.mrf.mxu0
  %9495 = vmatprep.mubr.bf16.mxu0 0
  %9496 = vmatmul.mubr.bf16.gmra.mxu0 %v9362
  %v9497 = vpop.f32.mrf.mxu0
  %v9498 = vadd.f32 0.0, %v9497
  %v9499 = vpop.f32.mrf.mxu0
  %v9500 = vpop.f32.mrf.mxu0
  %v9501 = vpop.f32.mrf.mxu0
  %9502 = vmatprep.mubr.bf16.mxu0 0
  %9503 = vmatmul.mubr.bf16.gmra.mxu0 %v9363
  %v9504 = vpop.f32.mrf.mxu0
  %v9505 = vpop.f32.mrf.mxu0
  %v9506 = vpop.f32.mrf.mxu0
  %v9507 = vadd.f32 0.0, %v9506
  %v9508 = vpop.f32.mrf.mxu0
  %9509 = vmatprep.mubr.bf16.mxu0 0
  %9510 = vmatmul.mubr.bf16.gmra.mxu0 %v9364
  %v9511 = vpop.f32.mrf.mxu0
  %v9512 = vadd.f32 0.0, %v9511
  %v9513 = vpop.f32.mrf.mxu0
  %v9514 = vpop.f32.mrf.mxu0
  %v9515 = vpop.f32.mrf.mxu0
  %9516 = vmatprep.mubr.bf16.mxu0 0
  %9517 = vmatmul.mubr.bf16.gmra.mxu0 %v9365
  %v9518 = vpop.f32.mrf.mxu0
  %v9519 = vpop.f32.mrf.mxu0
  %v9520 = vpop.f32.mrf.mxu0
  %v9521 = vadd.f32 0.0, %v9520
  %v9522 = vpop.f32.mrf.mxu0
  %9523 = vmatprep.mubr.bf16.mxu0 0
  %9524 = vmatmul.mubr.bf16.gmra.mxu0 %v9366
  %v9525 = vpop.f32.mrf.mxu0
  %v9526 = vadd.f32 0.0, %v9525
  %v9527 = vpop.f32.mrf.mxu0
  %v9528 = vpop.f32.mrf.mxu0
  %v9529 = vadd.f32 0.0, %v9528
  %v9530 = vpop.f32.mrf.mxu0
  %9531 = vmatprep.mubr.bf16.mxu0 0
  %9532 = vmatmul.mubr.bf16.gmra.mxu0 %v9367
  %v9533 = vpop.f32.mrf.mxu0
  %v9534 = vpop.f32.mrf.mxu0
  %v9535 = vpop.f32.mrf.mxu0
  %v9536 = vpop.f32.mrf.mxu0
  %9537 = vmatprep.mubr.bf16.mxu0 0
  %9538 = vmatmul.mubr.bf16.gmra.mxu0 %v9368
  %v9539 = vpop.f32.mrf.mxu0
  %v9540 = vadd.f32 0.0, %v9539
  %v9541 = vpop.f32.mrf.mxu0
  %v9542 = vpop.f32.mrf.mxu0
  %v9543 = vadd.f32 0.0, %v9542
  %v9544 = vpop.f32.mrf.mxu0
  %9545 = vmatprep.mubr.bf16.mxu0 0
  %9546 = vmatmul.mubr.bf16.gmra.mxu0 %v9369
  %v9547 = vpop.f32.mrf.mxu0
  %v9548 = vpop.f32.mrf.mxu0
  %v9549 = vpop.f32.mrf.mxu0
  %v9550 = vpop.f32.mrf.mxu0
  %9551 = vmatprep.mubr.bf16.mxu0 0
  %9552 = vmatmul.mubr.bf16.gmra.mxu0 %v9370
  %v9553 = vpop.f32.mrf.mxu0
  %v9554 = vadd.f32 0.0, %v9553
  %v9555 = vpop.f32.mrf.mxu0
  %v9556 = vpop.f32.mrf.mxu0
  %v9557 = vadd.f32 0.0, %v9556
  %v9558 = vpop.f32.mrf.mxu0
  %9559 = vmatprep.mubr.bf16.mxu0 0
  %9560 = vmatmul.mubr.bf16.gmra.mxu0 %v9371
  %v9561 = vpop.f32.mrf.mxu0
  %v9562 = vadd.f32 0.0, %v9561
  %v9563 = vpop.f32.mrf.mxu0
  %v9564 = vpop.f32.mrf.mxu0
  %v9565 = vpop.f32.mrf.mxu0
  %9566 = vmatprep.mubr.bf16.mxu0 0
  %9567 = vmatmul.mubr.bf16.gmra.mxu0 %v9372
  %v9568 = vpop.f32.mrf.mxu0
  %v9569 = vpop.f32.mrf.mxu0
  %v9570 = vpop.f32.mrf.mxu0
  %v9571 = vadd.f32 0.0, %v9570
  %v9572 = vpop.f32.mrf.mxu0
  %9573 = vmatprep.mubr.bf16.mxu0 0
  %9574 = vmatmul.mubr.bf16.gmra.mxu0 %v9373
  %v9575 = vpop.f32.mrf.mxu0
  %v9576 = vadd.f32 0.0, %v9575
  %v9577 = vpop.f32.mrf.mxu0
  %v9578 = vpop.f32.mrf.mxu0
  %v9579 = vpop.f32.mrf.mxu0
  %9580 = vmatprep.mubr.bf16.mxu0 0
  %9581 = vmatmul.mubr.bf16.gmra.mxu0 %v9374
  %v9582 = vpop.f32.mrf.mxu0
  %v9583 = vpop.f32.mrf.mxu0
  %v9584 = vpop.f32.mrf.mxu0
  %v9585 = vadd.f32 0.0, %v9584
  %v9586 = vpop.f32.mrf.mxu0
  %9587 = vmatprep.mubr.bf16.mxu0 0
  %9588 = vmatmul.mubr.bf16.gmra.mxu0 %v9375
  %v9589 = vpop.f32.mrf.mxu0
  %v9590 = vadd.f32 0.0, %v9589
  %v9591 = vpop.f32.mrf.mxu0
  %v9592 = vpop.f32.mrf.mxu0
  %v9593 = vadd.f32 0.0, %v9592
  %v9594 = vpop.f32.mrf.mxu0
  %9595 = vdwg.mxu0
  %v9596 = vadd.f32 %v9305, %v9476
  %v9597 = vadd.f32 %v9306, %v9479
  %v9598 = vadd.f32 %v9307, %v9490
  %v9599 = vadd.f32 %v9308, %v9493
  %v9600 = vadd.f32 %v9309, %v9498
  %v9601 = vadd.f32 %v9310, %v9507
  %v9602 = vadd.f32 %v9311, %v9512
  %v9603 = vadd.f32 %v9312, %v9521
  %v9604 = vadd.f32 %v9313, %v9526
  %v9605 = vadd.f32 %v9314, %v9529
  %v9606 = vadd.f32 %v9315, %v9540
  %v9607 = vadd.f32 %v9316, %v9543
  %v9608 = vadd.f32 %v9317, %v9554
  %v9609 = vadd.f32 %v9318, %v9557
  %v9610 = vadd.f32 %v9319, %v9562
  %v9611 = vadd.f32 %v9320, %v9571
  %v9612 = vadd.f32 %v9321, %v9576
  %v9613 = vadd.f32 %v9322, %v9585
  %v9614 = vadd.f32 %v9323, %v9590
  %v9615 = vadd.f32 %v9324, %v9593
  %v9616 = vld [vmem:[%s6] sm:$0x1]
  %v9618 = vlaneseq
  %v9619 = vshrl.u32 %v9618, 7
  %v9620 = vsub.s32 0, %v9619
  %v9621 = vrot.slane %v9616, %v9620
  %v9623 = vadd.f32 %v9596, %v9621
  %v9624 = vadd.f32 %v9597, %v9621
  %v9625 = vadd.f32 %v9598, %v9621
  %v9626 = vadd.f32 %v9599, %v9621
  %v9627 = vadd.f32 %v9600, %v9621
  %v9628 = vadd.f32 %v9601, %v9621
  %v9629 = vadd.f32 %v9602, %v9621
  %v9630 = vadd.f32 %v9603, %v9621
  %v9631 = vadd.f32 %v9604, %v9621
  %v9632 = vadd.f32 %v9605, %v9621
  %v9633 = vadd.f32 %v9606, %v9621
  %v9634 = vadd.f32 %v9607, %v9621
  %v9635 = vadd.f32 %v9608, %v9621
  %v9636 = vadd.f32 %v9609, %v9621
  %v9637 = vadd.f32 %v9610, %v9621
  %v9638 = vadd.f32 %v9611, %v9621
  %v9639 = vadd.f32 %v9612, %v9621
  %v9640 = vadd.f32 %v9613, %v9621
  %v9641 = vadd.f32 %v9614, %v9621
  %v9642 = vadd.f32 %v9615, %v9621
  %v9643 = vmax.f32 %v9623, 0.0
  %v9644 = vmax.f32 %v9624, 0.0
  %v9645 = vmax.f32 %v9625, 0.0
  %v9646 = vmax.f32 %v9626, 0.0
  %v9647 = vmax.f32 %v9627, 0.0
  %v9648 = vmax.f32 %v9628, 0.0
  %v9649 = vmax.f32 %v9629, 0.0
  %v9650 = vmax.f32 %v9630, 0.0
  %v9651 = vmax.f32 %v9631, 0.0
  %v9652 = vmax.f32 %v9632, 0.0
  %v9653 = vmax.f32 %v9633, 0.0
  %v9654 = vmax.f32 %v9634, 0.0
  %v9655 = vmax.f32 %v9635, 0.0
  %v9656 = vmax.f32 %v9636, 0.0
  %v9657 = vmax.f32 %v9637, 0.0
  %v9658 = vmax.f32 %v9638, 0.0
  %v9659 = vmax.f32 %v9639, 0.0
  %v9660 = vmax.f32 %v9640, 0.0
  %v9661 = vmax.f32 %v9641, 0.0
  %v9662 = vmax.f32 %v9642, 0.0
  %9663 = vst [vmem:[#allocation4] sm:$0x7] %v9643
  %9664 = vst [vmem:[#allocation4 - $0x3] sm:$0xc0] %v9643
  %9665 = vst [vmem:[#allocation4 + $0x5] sm:$0x1] %v9644
  %9666 = vst [vmem:[#allocation4 + $0x2] sm:$0x70] %v9644
  %9667 = vst [vmem:[#allocation4 + $0x5] sm:$0x70] %v9645
  %9668 = vst [vmem:[#allocation4 + $0xa] sm:$0x1c] %v9646
  %9669 = vst [vmem:[#allocation4 + $0xf] sm:$0x7] %v9647
  %9670 = vst [vmem:[#allocation4 + $0x12] sm:$0x7] %v9648
  %9671 = vst [vmem:[#allocation4 + $0xf] sm:$0xc0] %v9648
  %9672 = vst [vmem:[#allocation4 + $0x17] sm:$0x1] %v9649
  %9673 = vst [vmem:[#allocation4 + $0x14] sm:$0x70] %v9649
  %9674 = vst [vmem:[#allocation4 + $0x17] sm:$0x70] %v9650
  %9675 = vst [vmem:[#allocation4 + $0x1c] sm:$0x1c] %v9651
  %9676 = vst [vmem:[#allocation4 + $0x21] sm:$0x7] %v9652
  %9677 = vst [vmem:[#allocation4 + $0x24] sm:$0x7] %v9653
  %9678 = vst [vmem:[#allocation4 + $0x21] sm:$0xc0] %v9653
  %9679 = vst [vmem:[#allocation4 + $0x29] sm:$0x1] %v9654
  %9680 = vst [vmem:[#allocation4 + $0x26] sm:$0x70] %v9654
  %9681 = vst [vmem:[#allocation4 + $0x29] sm:$0x70] %v9655
  %9682 = vst [vmem:[#allocation4 + $0x2e] sm:$0x1c] %v9656
  %9683 = vst [vmem:[#allocation4 + $0x33] sm:$0x7] %v9657
  %9684 = vst [vmem:[#allocation4 + $0x36] sm:$0x7] %v9658
  %9685 = vst [vmem:[#allocation4 + $0x33] sm:$0xc0] %v9658
  %9686 = vst [vmem:[#allocation4 + $0x3b] sm:$0x1] %v9659
  %9687 = vst [vmem:[#allocation4 + $0x38] sm:$0x70] %v9659
  %9688 = vst [vmem:[#allocation4 + $0x3b] sm:$0x70] %v9660
  %9689 = vst [vmem:[#allocation4 + $0x40] sm:$0x1c] %v9661
  %9690 = vst [vmem:[#allocation4 + $0x45] sm:$0x7] %v9662
  %v9691 = vld [vmem:[#allocation4] sm:$0xff]
  %v9692 = vld [vmem:[#allocation4 + $0x8] sm:$0xff]
  %v9693 = vld [vmem:[#allocation4 + $0x10] sm:$0xff]
  %v9694 = vld [vmem:[#allocation4 + $0x18] sm:$0xff]
  %v9695 = vld [vmem:[#allocation4 + $0x20] sm:$0xff]
  %v9696 = vld [vmem:[#allocation4 + $0x28] sm:$0xff]
  %v9697 = vld [vmem:[#allocation4 + $0x30] sm:$0xff]
  %v9698 = vld [vmem:[#allocation4 + $0x38] sm:$0xff]
  %v9699 = vld [vmem:[#allocation4 + $0x40] sm:$0xff]
  %9700 = vst [vmem:[%s7] sm:$0xff] %v9691
  %9701 = vst [vmem:[%s7 + $0x8] sm:$0xff] %v9692
  %9702 = vst [vmem:[%s7 + $0x10] sm:$0xff] %v9693
  %9703 = vst [vmem:[%s7 + $0x18] sm:$0xff] %v9694
  %9704 = vst [vmem:[%s7 + $0x20] sm:$0xff] %v9695
  %9705 = vst [vmem:[%s7 + $0x28] sm:$0xff] %v9696
  %9706 = vst [vmem:[%s7 + $0x30] sm:$0xff] %v9697
  %9707 = vst [vmem:[%s7 + $0x38] sm:$0xff] %v9698
  %9708 = vst [vmem:[%s7 + $0x40] sm:$0xff] %v9699
  // Predicated region
  $region30: #{cnn_shared_net_forward.1} parent=0 // pred_check
    _
  $region31: #{cnn_shared_net_forward.1} parent=0 // pred_check_branch
    %9710 = sbr.rel (0) target = $region33
  $region32: #{cnn_shared_net_forward.1} parent=0 // pred_region
    _
  $region33: #{cnn_shared_net_forward.1} parent=0 // pred_fallthru
    _
  // Predicated region
  $region34: #{cnn_shared_net_forward.1} parent=0 // pred_check
    _
  $region35: #{cnn_shared_net_forward.1} parent=0 // pred_check_branch
    %9712 = sbr.rel (0) target = $region37
  $region36: #{cnn_shared_net_forward.1} parent=0 // pred_region
    _
  $region37: #{cnn_shared_net_forward.1} parent=0 // pred_fallthru
    _

</llo_original>
